<compile_context>
chip_gen: v6e
topology: v6e:2x2x1
jax: 0.10.0
libtpu: 0.0.40
codegen_flags: <defaults>
</compile_context>

<pallas_src>
import math
import functools

import numpy as np
import jax
import jax.numpy as jnp
from jax.experimental import pallas as pl
from jax.experimental.pallas import tpu as pltpu

HID = 32                   # hidden channels per conditioning net
NNET = 8                   # 4 polyphase contexts x {mu, sigma}
C8 = NNET * HID            # 256 packed channels
K1 = 9 * 4                 # first-layer im2col width (3x3 taps x 4 padded input ch)
LEAKY_SLOPE = 0.01
SCALE_BOUND = 0.11
LIKELIHOOD_BOUND = 1e-9
INV_LN2 = 1.4426950408889634
SQRT2_INV = 0.7071067811865476


# ----------------------------------------------------------------------------
# small in-kernel math helpers (exp / floor / tanh / where only)
# ----------------------------------------------------------------------------
def _round_half_even(x):
    f = jnp.floor(x)
    d = x - f
    f_is_even = (f - 2.0 * jnp.floor(f * 0.5)) == 0.0
    return jnp.where(d < 0.5, f,
                     jnp.where(d > 0.5, f + 1.0,
                               jnp.where(f_is_even, f, f + 1.0)))


def _erfc(x):
    # Numerical-Recipes rational approximation (fractional error < 1.2e-7).
    z = jnp.abs(x)
    t = 1.0 / (1.0 + 0.5 * z)
    poly = -1.26551223 + t * (1.00002368 + t * (0.37409196 + t * (0.09678418 +
           t * (-0.18628806 + t * (0.27886807 + t * (-1.13520398 + t * (1.48851587 +
           t * (-0.82215223 + t * 0.17087277))))))))
    ans = t * jnp.exp(-z * z + poly)
    return jnp.where(x >= 0, ans, 2.0 - ans)


def _std_cdf(x):
    return 0.5 * _erfc(-x * SQRT2_INV)


def _sigmoid(x):
    return 1.0 / (1.0 + jnp.exp(-x))


# ----------------------------------------------------------------------------
# Pallas kernel 1: fused per-subband conditioning nets + Gaussian likelihood
#   activations are (channels, pixels); pixels = B*h*w ride the 128-lane axis
# ----------------------------------------------------------------------------
def _dep_level_kernel(cols_ref, xq_ref, s_ref,
                      w1_ref, w2_ref, w3_ref, w4_ref, w5m_ref, w5s_ref,
                      b14_ref, b5m_ref, b5s_ref,
                      info_ref):
    f32 = jnp.float32
    bf16 = jnp.bfloat16

    def leaky(v):
        return jnp.where(v >= 0.0, v, LEAKY_SLOPE * v)

    # layer 1: 3x3 conv (im2col precomputed in the wrapper), all 8 nets fused
    cols = cols_ref[0]                                              # (K1, N) bf16
    h = jnp.dot(w1_ref[0], cols, preferred_element_type=f32)        # (256, N)
    h = leaky(h + b14_ref[0, 0])

    # layer 2: 3x3 conv in-kernel: 9 taps realised as 0/1 pixel-shift matmuls
    # (activations stay resident in VMEM/vregs, no HBM round-trip, no reshapes)
    hb = h.astype(bf16)
    acc = jnp.zeros(h.shape, f32)
    for t in range(9):
        shifted = jnp.dot(hb, s_ref[t], preferred_element_type=f32)        # (256, N)
        acc = acc + jnp.dot(w2_ref[0, t], shifted.astype(bf16),
                            preferred_element_type=f32)
    h = leaky(acc + b14_ref[0, 1])

    # layers 3 & 4: 1x1 convs (block-diagonal packed weights)
    h = leaky(jnp.dot(w3_ref[0], h.astype(bf16), preferred_element_type=f32)
              + b14_ref[0, 2])
    h = leaky(jnp.dot(w4_ref[0], h.astype(bf16), preferred_element_type=f32)
              + b14_ref[0, 3])
    hb = h.astype(bf16)

    # layer 5: 1-channel heads -> mu / sigma per polyphase quadrant
    mu = jnp.dot(w5m_ref[0], hb, preferred_element_type=f32) + b5m_ref[0]   # (4, N)
    sg = jnp.dot(w5s_ref[0], hb, preferred_element_type=f32) + b5s_ref[0]   # (4, N)

    # fused GaussianConditional (eval): likelihood of round(x - mu) under N(0, s)
    x = xq_ref[0]                                                   # (4, N) f32
    v = jnp.abs(_round_half_even(x - mu))
    s = jnp.maximum(sg, SCALE_BOUND)
    upper = _std_cdf((0.5 - v) / s)
    lower = _std_cdf((-0.5 - v) / s)
    like = jnp.maximum(upper - lower, LIKELIHOOD_BOUND)
    info_ref[0] = -jnp.log(like) * INV_LN2


@functools.lru_cache(maxsize=None)
def _shift_mats_np(B, h, w):
    """0/1 matrices acting on the flattened pixel axis: column p of S[t] picks the
    3x3-neighbour (dy-1, dx-1) of pixel p (zero padding outside, no batch mixing)."""
    N = B * h * w
    S = np.zeros((9, N, N), np.float32)
    for b in range(B):
        for y in range(h):
            for x in range(w):
                p = (b * h + y) * w + x
                for dy in range(3):
                    for dx in range(3):
                        yy, xx = y + dy - 1, x + dx - 1
                        if 0 <= yy < h and 0 <= xx < w:
                            q = (b * h + yy) * w + xx
                            S[dy * 3 + dx, q, p] = 1.0
    return S


def dep_level(x_fine, con, packed):
    """One DWT level: all 3 subbands, 4 polyphase contexts, mu+sigma nets and the
    Gaussian self-information, in one pallas_call with grid=(3,)."""
    B, _, Hf, Wf = x_fine.shape
    h, w = Hf // 2, Wf // 2
    N = B * h * w

    xq = jnp.round(x_fine)                              # GaussianConditional.quantize('dequantize')
    q_ee = xq[:, :, 0::2, 0::2]
    q_eo = xq[:, :, 0::2, 1::2]
    q_oe = xq[:, :, 1::2, 0::2]
    # conditioning stack per subband: [con_j, ee, eo, oe]; contexts 1..4 use prefixes
    dep = jnp.stack([con, q_ee, q_eo, q_oe], axis=-1)            # (B,3,h,w,4)
    depp = jnp.pad(dep, ((0, 0), (0, 0), (1, 1), (1, 1), (0, 0)))
    taps = jnp.stack([depp[:, :, dy:dy + h, dx:dx + w, :]
                      for dy in range(3) for dx in range(3)], axis=0)   # (9,B,3,h,w,4)
    cols = jnp.transpose(taps, (2, 0, 5, 1, 3, 4)).reshape(3, K1, N).astype(jnp.bfloat16)

    # raw (unquantized) subband values, quadrant-planar, for the likelihood tail
    xquad = jnp.stack([x_fine[:, :, 0::2, 0::2], x_fine[:, :, 0::2, 1::2],
                       x_fine[:, :, 1::2, 0::2], x_fine[:, :, 1::2, 1::2]], axis=0)
    xquad = jnp.transpose(xquad, (2, 0, 1, 3, 4)).reshape(3, 4, N)

    shift = jnp.asarray(_shift_mats_np(B, h, w), dtype=jnp.bfloat16)

    (w1, w2, w3, w4, w5m, w5s, b14, b5m, b5s) = packed

    info_q = pl.pallas_call(
        _dep_level_kernel,
        grid=(3,),
        in_specs=[
            pl.BlockSpec((1, K1, N), lambda j: (j, 0, 0)),        # im2col cols
            pl.BlockSpec((1, 4, N), lambda j: (j, 0, 0)),         # x quadrants
            pl.BlockSpec((9, N, N), lambda j: (0, 0, 0)),         # shift mats (shared)
            pl.BlockSpec((1, C8, K1), lambda j: (j, 0, 0)),       # w1
            pl.BlockSpec((1, 9, C8, C8), lambda j: (j, 0, 0, 0)),  # w2 (per tap)
            pl.BlockSpec((1, C8, C8), lambda j: (j, 0, 0)),       # w3
            pl.BlockSpec((1, C8, C8), lambda j: (j, 0, 0)),       # w4
            pl.BlockSpec((1, 4, C8), lambda j: (j, 0, 0)),        # w5 mu
            pl.BlockSpec((1, 4, C8), lambda j: (j, 0, 0)),        # w5 sigma
            pl.BlockSpec((1, 4, C8, 1), lambda j: (j, 0, 0, 0)),  # biases layers 1-4
            pl.BlockSpec((1, 4, 1), lambda j: (j, 0, 0)),         # bias mu head
            pl.BlockSpec((1, 4, 1), lambda j: (j, 0, 0)),         # bias sigma head
        ],
        out_specs=pl.BlockSpec((1, 4, N), lambda j: (j, 0, 0)),
        out_shape=jax.ShapeDtypeStruct((3, 4, N), jnp.float32),
        compiler_params=pltpu.CompilerParams(dimension_semantics=("parallel",)),
    )(cols, xquad, shift, w1, w2, w3, w4, w5m, w5s, b14, b5m, b5s)

    # quadrant-planar -> full resolution (pure layout plumbing outside the kernel)
    info = (info_q.reshape(3, 2, 2, B, h, w)
                   .transpose(3, 0, 4, 1, 5, 2)
                   .reshape(B, 3, Hf, Wf))
    return info, xq


# ----------------------------------------------------------------------------
# Pallas kernel 2: factorized EntropyBottleneck (compressai), eval mode.
# Per-channel params packed into a 64-wide SMEM row:
#   [0:3] softplus(M0)  [3:6] b0  [6:9] tanh(f0)
#   l=1..3: base=9+15(l-1): [base:+9] softplus(Ml), [+9:+12] bl, [+12:+15] tanh(fl)
#   [54:57] softplus(M4)  [57] b4  [58] median
# ----------------------------------------------------------------------------
def _eb_kernel(x_ref, p_ref, q_ref, info_ref):
    c = pl.program_id(0)
    pv = [p_ref[c, k] for k in range(59)]       # scalar reads hoisted once per channel
    x = x_ref[0]                                # (1, N), lane-dense
    med = pv[58]
    out = _round_half_even(x - med) + med       # quantize("dequantize", medians)

    def logits_cumulative(u):
        h = [pv[0 + j] * u + pv[3 + j] for j in range(3)]
        h = [h[j] + pv[6 + j] * jnp.tanh(h[j]) for j in range(3)]
        for layer in range(3):
            base = 9 + layer * 15
            hn = []
            for j in range(3):
                a = (pv[base + j * 3 + 0] * h[0] +
                     pv[base + j * 3 + 1] * h[1] +
                     pv[base + j * 3 + 2] * h[2] + pv[base + 9 + j])
                hn.append(a + pv[base + 12 + j] * jnp.tanh(a))
            h = hn
        return pv[54] * h[0] + pv[55] * h[1] + pv[56] * h[2] + pv[57]

    lower = logits_cumulative(out - 0.5)
    upper = logits_cumulative(out + 0.5)
    lu = lower + upper
    sgn = jnp.where(lu < 0.0, 1.0, jnp.where(lu > 0.0, -1.0, 0.0))
    like = jnp.abs(_sigmoid(sgn * upper) - _sigmoid(sgn * lower))
    like = jnp.maximum(like, LIKELIHOOD_BOUND)

    q_ref[0] = out
    info_ref[0] = -jnp.log(like) * INV_LN2


def entropy_bottleneck(x_nchw, packed_params):
    B, C, H, W = x_nchw.shape
    N = B * H * W
    x = jnp.transpose(x_nchw, (1, 0, 2, 3)).reshape(C, 1, N)    # lane-dense (N mult of 128 here)
    blk = pl.BlockSpec((1, 1, N), lambda c: (c, 0, 0))
    q, info = pl.pallas_call(
        _eb_kernel,
        grid=(C,),
        in_specs=[blk, pl.BlockSpec(memory_space=pltpu.MemorySpace.SMEM)],
        out_specs=[blk, blk],
        out_shape=[jax.ShapeDtypeStruct((C, 1, N), jnp.float32),
                   jax.ShapeDtypeStruct((C, 1, N), jnp.float32)],
        compiler_params=pltpu.CompilerParams(dimension_semantics=("parallel",)),
    )(x, packed_params)
    q = q.reshape(C, B, H, W).transpose(1, 0, 2, 3)
    info = info.reshape(C, B, H, W).transpose(1, 0, 2, 3)
    return q, info


# ----------------------------------------------------------------------------
# parameter construction (deterministic, synthetic; faithful module structure)
# ----------------------------------------------------------------------------
def init_conv_net(key, in_ch):
    # conv shapes mirror the PyTorch module: 3x3 in->32, 3x3 32->32, 1x1 32->32,
    # 1x1 32->32, 1x1 32->1
    specs = [(in_ch, HID, 3), (HID, HID, 3), (HID, HID, 1), (HID, HID, 1), (HID, 1, 1)]
    net = []
    for li, (cin, cout, k) in enumerate(specs):
        kw = jax.random.fold_in(key, 2 * li)
        kb = jax.random.fold_in(key, 2 * li + 1)
        fan_in = cin * k * k
        wgt = np.asarray(jax.random.normal(kw, (cout, cin, k, k)) / np.sqrt(fan_in),
                         dtype=np.float32)
        bias = np.asarray(jax.random.normal(kb, (cout,)) * 0.01, dtype=np.float32)
        net.append((wgt, bias))
    return net


def pack_level_nets(nets):
    """nets[j][which][q] -> 5 (conv_w, bias) pairs.  Packs the 24 conv-nets of one
    level into block matrices in the transposed (out, in) orientation used by the
    kernel.  Net n = which*4 + q owns channel rows [n*32, (n+1)*32)."""
    w1 = np.zeros((3, C8, K1), np.float32)
    w2 = np.zeros((3, 9, C8, C8), np.float32)
    w3 = np.zeros((3, C8, C8), np.float32)
    w4 = np.zeros((3, C8, C8), np.float32)
    w5m = np.zeros((3, 4, C8), np.float32)
    w5s = np.zeros((3, 4, C8), np.float32)
    b14 = np.zeros((3, 4, C8, 1), np.float32)
    b5m = np.zeros((3, 4, 1), np.float32)
    b5s = np.zeros((3, 4, 1), np.float32)
    for j in range(3):
        for which in range(2):              # 0 = mu, 1 = sigma
            for q in range(4):              # polyphase context dep_1 .. dep_4
                n = which * 4 + q
                r = slice(n * HID, (n + 1) * HID)
                (cw1, cb1), (cw2, cb2), (cw3, cb3), (cw4, cb4), (cw5, cb5) = nets[j][which][q]
                in_ch = q + 1               # unused channels stay zero in w1
                for dy in range(3):
                    for dx in range(3):
                        t = dy * 3 + dx
                        w1[j, r, t * 4: t * 4 + in_ch] = cw1[:, :, dy, dx]
                        w2[j, t, r, r] = cw2[:, :, dy, dx]
                w3[j, r, r] = cw3[:, :, 0, 0]
                w4[j, r, r] = cw4[:, :, 0, 0]
                b14[j, 0, r, 0] = cb1
                b14[j, 1, r, 0] = cb2
                b14[j, 2, r, 0] = cb3
                b14[j, 3, r, 0] = cb4
                if which == 0:
                    w5m[j, q, r] = cw5[0, :, 0, 0]
                    b5m[j, q, 0] = cb5[0]
                else:
                    w5s[j, q, r] = cw5[0, :, 0, 0]
                    b5s[j, q, 0] = cb5[0]
    bf = lambda a: jnp.asarray(a, dtype=jnp.bfloat16)
    f32 = lambda a: jnp.asarray(a, dtype=jnp.float32)
    return (bf(w1), bf(w2), bf(w3), bf(w4), bf(w5m), bf(w5s),
            f32(b14), f32(b5m), f32(b5s))


def init_eb_packed(key, channels, init_scale=10.0):
    # compressai EntropyBottleneck defaults: filters=(3,3,3,3), quantiles init -> median 0
    filt = (1, 3, 3, 3, 3, 1)
    scale = init_scale ** (1.0 / 5.0)
    rows = []
    for c in range(channels):
        vec = []
        for i in range(5):
            fin, fout = filt[i], filt[i + 1]
            init = math.log(math.expm1(1.0 / scale / fout))
            sp = math.log1p(math.exp(init))                  # softplus(matrix) precomputed
            vec += [sp] * (fout * fin)
            b = np.asarray(jax.random.uniform(jax.random.fold_in(key, c * 16 + i),
                                              (fout,), minval=-0.5, maxval=0.5))
            vec += [float(v) for v in b]
            if i < 4:
                vec += [0.0] * fout                          # tanh(factor=0) = 0
        vec += [0.0]                                         # median
        vec += [0.0] * (64 - len(vec))
        rows.append(vec)
    return jnp.asarray(rows, dtype=jnp.float32)


def init_params(key, num_levels):
    k_eb, k_dep = jax.random.split(key)
    params = {"eb_xe": init_eb_packed(jax.random.fold_in(k_eb, 0), 1),
              "eb_xo": init_eb_packed(jax.random.fold_in(k_eb, 1), 3),
              "dep": []}
    for i in range(num_levels - 1):
        nets = [[[init_conv_net(
                      jax.random.fold_in(k_dep, ((i * 3 + j) * 2 + which) * 4 + q),
                      q + 1)
                  for q in range(4)]
                 for which in range(2)]
                for j in range(3)]
        params["dep"].append({"packed": pack_level_nets(nets)})
    return params


# ----------------------------------------------------------------------------
# full forward pass (eval mode), mirroring the PyTorch module
# ----------------------------------------------------------------------------
def forward(out_xe, out_xo_list, params, num_levels):
    L = num_levels
    # both EntropyBottlenecks (xe 1ch + coarsest xo 3ch) fused into one call
    x_comb = jnp.concatenate([out_xe, out_xo_list[L - 1]], axis=1)      # (B,4,Hc,Wc)
    p_comb = jnp.concatenate([params["eb_xe"], params["eb_xo"]], axis=0)
    q_comb, info_comb = entropy_bottleneck(x_comb, p_comb)
    xe_qnt, xo_qnt = q_comb[:, :1], q_comb[:, 1:]
    info_xe, info_xo = info_comb[:, :1], info_comb[:, 1:]

    info_list = [info_xo]
    qnt_list = [xo_qnt]
    con = xo_qnt                                     # coarsest quantized subbands
    for i in range(L - 1):
        x_fine = out_xo_list[L - i - 2]              # (B, 3, H, W)
        info, xq = dep_level(x_fine, con, params["dep"][i]["packed"])
        info_list.append(info)
        con = xq
        qnt_list.append(xq)

    qnt_list.reverse()
    info_list.reverse()
    return info_xe, info_list, xe_qnt, qnt_list


# ----------------------------------------------------------------------------
if __name__ == "__main__":
    key = jax.random.PRNGKey(0)
    B = 2
    L = 2                                   # config.dwtlevels
    k1, k2, k3, kp = jax.random.split(key, 4)
    out_xe = (jax.random.normal(k1, (B, 1, 8, 8)) * 4.0).astype(jnp.float32)
    out_xo_list = [
        (jax.random.normal(k2, (B, 3, 16, 16)) * 2.0).astype(jnp.float32),  # finest
        (jax.random.normal(k3, (B, 3, 8, 8)) * 2.0).astype(jnp.float32),    # coarsest
    ]
    params = init_params(kp, L)

    fwd = jax.jit(functools.partial(forward, num_levels=L))
    outs = fwd(out_xe, out_xo_list, params)
    jax.block_until_ready(outs)

    info_xe, info_list, xe_qnt, qnt_list = outs
    assert info_xe.shape == (B, 1, 8, 8)
    assert xe_qnt.shape == (B, 1, 8, 8)
    assert info_list[0].shape == (B, 3, 16, 16) and info_list[1].shape == (B, 3, 8, 8)
    assert qnt_list[0].shape == (B, 3, 16, 16) and qnt_list[1].shape == (B, 3, 8, 8)
    assert bool(jnp.all(jnp.isfinite(info_xe)))
    assert bool(jnp.all(jnp.isfinite(info_list[0]))) and bool(jnp.all(jnp.isfinite(info_list[1])))
    print("KERNEL_OK")
</pallas_src>

<mosaic_0001>
module attributes {stable_mosaic.version = 11 : i64} {
  func.func @_eb_kernel(%arg0: i32, %arg1: memref<1x1x128xf32, #tpu.memory_space<vmem>>, %arg2: memref<4x64xf32, #tpu.memory_space<smem>>, %arg3: memref<1x1x128xf32, #tpu.memory_space<vmem>>, %arg4: memref<1x1x128xf32, #tpu.memory_space<vmem>>) attributes {dimension_semantics = [#tpu.dimension_semantics<parallel>], iteration_bounds = array<i64: 4>, scalar_prefetch = 0 : i64, scratch_operands = 0 : i64, tpu.core_type = #tpu.core_type<tc>, window_params = [{transform_indices = @transform_0, window_bounds = array<i64: 1, 1, 128>}, {transform_indices = @transform_1, window_bounds = array<i64: 4, 64>}, {transform_indices = @transform_2, window_bounds = array<i64: 1, 1, 128>}, {transform_indices = @transform_3, window_bounds = array<i64: 1, 1, 128>}]} {
    %0 = arith.index_cast %arg0 : i32 to index
    %c0 = arith.constant 0 : index
    %1 = memref.load %arg2[%0, %c0] : memref<4x64xf32, #tpu.memory_space<smem>>
    %2 = arith.index_cast %arg0 : i32 to index
    %c1 = arith.constant 1 : index
    %3 = memref.load %arg2[%2, %c1] : memref<4x64xf32, #tpu.memory_space<smem>>
    %4 = arith.index_cast %arg0 : i32 to index
    %c2 = arith.constant 2 : index
    %5 = memref.load %arg2[%4, %c2] : memref<4x64xf32, #tpu.memory_space<smem>>
    %6 = arith.index_cast %arg0 : i32 to index
    %c3 = arith.constant 3 : index
    %7 = memref.load %arg2[%6, %c3] : memref<4x64xf32, #tpu.memory_space<smem>>
    %8 = arith.index_cast %arg0 : i32 to index
    %c4 = arith.constant 4 : index
    %9 = memref.load %arg2[%8, %c4] : memref<4x64xf32, #tpu.memory_space<smem>>
    %10 = arith.index_cast %arg0 : i32 to index
    %c5 = arith.constant 5 : index
    %11 = memref.load %arg2[%10, %c5] : memref<4x64xf32, #tpu.memory_space<smem>>
    %12 = arith.index_cast %arg0 : i32 to index
    %c6 = arith.constant 6 : index
    %13 = memref.load %arg2[%12, %c6] : memref<4x64xf32, #tpu.memory_space<smem>>
    %14 = arith.index_cast %arg0 : i32 to index
    %c7 = arith.constant 7 : index
    %15 = memref.load %arg2[%14, %c7] : memref<4x64xf32, #tpu.memory_space<smem>>
    %16 = arith.index_cast %arg0 : i32 to index
    %c8 = arith.constant 8 : index
    %17 = memref.load %arg2[%16, %c8] : memref<4x64xf32, #tpu.memory_space<smem>>
    %18 = arith.index_cast %arg0 : i32 to index
    %c9 = arith.constant 9 : index
    %19 = memref.load %arg2[%18, %c9] : memref<4x64xf32, #tpu.memory_space<smem>>
    %20 = arith.index_cast %arg0 : i32 to index
    %c10 = arith.constant 10 : index
    %21 = memref.load %arg2[%20, %c10] : memref<4x64xf32, #tpu.memory_space<smem>>
    %22 = arith.index_cast %arg0 : i32 to index
    %c11 = arith.constant 11 : index
    %23 = memref.load %arg2[%22, %c11] : memref<4x64xf32, #tpu.memory_space<smem>>
    %24 = arith.index_cast %arg0 : i32 to index
    %c12 = arith.constant 12 : index
    %25 = memref.load %arg2[%24, %c12] : memref<4x64xf32, #tpu.memory_space<smem>>
    %26 = arith.index_cast %arg0 : i32 to index
    %c13 = arith.constant 13 : index
    %27 = memref.load %arg2[%26, %c13] : memref<4x64xf32, #tpu.memory_space<smem>>
    %28 = arith.index_cast %arg0 : i32 to index
    %c14 = arith.constant 14 : index
    %29 = memref.load %arg2[%28, %c14] : memref<4x64xf32, #tpu.memory_space<smem>>
    %30 = arith.index_cast %arg0 : i32 to index
    %c15 = arith.constant 15 : index
    %31 = memref.load %arg2[%30, %c15] : memref<4x64xf32, #tpu.memory_space<smem>>
    %32 = arith.index_cast %arg0 : i32 to index
    %c16 = arith.constant 16 : index
    %33 = memref.load %arg2[%32, %c16] : memref<4x64xf32, #tpu.memory_space<smem>>
    %34 = arith.index_cast %arg0 : i32 to index
    %c17 = arith.constant 17 : index
    %35 = memref.load %arg2[%34, %c17] : memref<4x64xf32, #tpu.memory_space<smem>>
    %36 = arith.index_cast %arg0 : i32 to index
    %c18 = arith.constant 18 : index
    %37 = memref.load %arg2[%36, %c18] : memref<4x64xf32, #tpu.memory_space<smem>>
    %38 = arith.index_cast %arg0 : i32 to index
    %c19 = arith.constant 19 : index
    %39 = memref.load %arg2[%38, %c19] : memref<4x64xf32, #tpu.memory_space<smem>>
    %40 = arith.index_cast %arg0 : i32 to index
    %c20 = arith.constant 20 : index
    %41 = memref.load %arg2[%40, %c20] : memref<4x64xf32, #tpu.memory_space<smem>>
    %42 = arith.index_cast %arg0 : i32 to index
    %c21 = arith.constant 21 : index
    %43 = memref.load %arg2[%42, %c21] : memref<4x64xf32, #tpu.memory_space<smem>>
    %44 = arith.index_cast %arg0 : i32 to index
    %c22 = arith.constant 22 : index
    %45 = memref.load %arg2[%44, %c22] : memref<4x64xf32, #tpu.memory_space<smem>>
    %46 = arith.index_cast %arg0 : i32 to index
    %c23 = arith.constant 23 : index
    %47 = memref.load %arg2[%46, %c23] : memref<4x64xf32, #tpu.memory_space<smem>>
    %48 = arith.index_cast %arg0 : i32 to index
    %c24 = arith.constant 24 : index
    %49 = memref.load %arg2[%48, %c24] : memref<4x64xf32, #tpu.memory_space<smem>>
    %50 = arith.index_cast %arg0 : i32 to index
    %c25 = arith.constant 25 : index
    %51 = memref.load %arg2[%50, %c25] : memref<4x64xf32, #tpu.memory_space<smem>>
    %52 = arith.index_cast %arg0 : i32 to index
    %c26 = arith.constant 26 : index
    %53 = memref.load %arg2[%52, %c26] : memref<4x64xf32, #tpu.memory_space<smem>>
    %54 = arith.index_cast %arg0 : i32 to index
    %c27 = arith.constant 27 : index
    %55 = memref.load %arg2[%54, %c27] : memref<4x64xf32, #tpu.memory_space<smem>>
    %56 = arith.index_cast %arg0 : i32 to index
    %c28 = arith.constant 28 : index
    %57 = memref.load %arg2[%56, %c28] : memref<4x64xf32, #tpu.memory_space<smem>>
    %58 = arith.index_cast %arg0 : i32 to index
    %c29 = arith.constant 29 : index
    %59 = memref.load %arg2[%58, %c29] : memref<4x64xf32, #tpu.memory_space<smem>>
    %60 = arith.index_cast %arg0 : i32 to index
    %c30 = arith.constant 30 : index
    %61 = memref.load %arg2[%60, %c30] : memref<4x64xf32, #tpu.memory_space<smem>>
    %62 = arith.index_cast %arg0 : i32 to index
    %c31 = arith.constant 31 : index
    %63 = memref.load %arg2[%62, %c31] : memref<4x64xf32, #tpu.memory_space<smem>>
    %64 = arith.index_cast %arg0 : i32 to index
    %c32 = arith.constant 32 : index
    %65 = memref.load %arg2[%64, %c32] : memref<4x64xf32, #tpu.memory_space<smem>>
    %66 = arith.index_cast %arg0 : i32 to index
    %c33 = arith.constant 33 : index
    %67 = memref.load %arg2[%66, %c33] : memref<4x64xf32, #tpu.memory_space<smem>>
    %68 = arith.index_cast %arg0 : i32 to index
    %c34 = arith.constant 34 : index
    %69 = memref.load %arg2[%68, %c34] : memref<4x64xf32, #tpu.memory_space<smem>>
    %70 = arith.index_cast %arg0 : i32 to index
    %c35 = arith.constant 35 : index
    %71 = memref.load %arg2[%70, %c35] : memref<4x64xf32, #tpu.memory_space<smem>>
    %72 = arith.index_cast %arg0 : i32 to index
    %c36 = arith.constant 36 : index
    %73 = memref.load %arg2[%72, %c36] : memref<4x64xf32, #tpu.memory_space<smem>>
    %74 = arith.index_cast %arg0 : i32 to index
    %c37 = arith.constant 37 : index
    %75 = memref.load %arg2[%74, %c37] : memref<4x64xf32, #tpu.memory_space<smem>>
    %76 = arith.index_cast %arg0 : i32 to index
    %c38 = arith.constant 38 : index
    %77 = memref.load %arg2[%76, %c38] : memref<4x64xf32, #tpu.memory_space<smem>>
    %78 = arith.index_cast %arg0 : i32 to index
    %c39 = arith.constant 39 : index
    %79 = memref.load %arg2[%78, %c39] : memref<4x64xf32, #tpu.memory_space<smem>>
    %80 = arith.index_cast %arg0 : i32 to index
    %c40 = arith.constant 40 : index
    %81 = memref.load %arg2[%80, %c40] : memref<4x64xf32, #tpu.memory_space<smem>>
    %82 = arith.index_cast %arg0 : i32 to index
    %c41 = arith.constant 41 : index
    %83 = memref.load %arg2[%82, %c41] : memref<4x64xf32, #tpu.memory_space<smem>>
    %84 = arith.index_cast %arg0 : i32 to index
    %c42 = arith.constant 42 : index
    %85 = memref.load %arg2[%84, %c42] : memref<4x64xf32, #tpu.memory_space<smem>>
    %86 = arith.index_cast %arg0 : i32 to index
    %c43 = arith.constant 43 : index
    %87 = memref.load %arg2[%86, %c43] : memref<4x64xf32, #tpu.memory_space<smem>>
    %88 = arith.index_cast %arg0 : i32 to index
    %c44 = arith.constant 44 : index
    %89 = memref.load %arg2[%88, %c44] : memref<4x64xf32, #tpu.memory_space<smem>>
    %90 = arith.index_cast %arg0 : i32 to index
    %c45 = arith.constant 45 : index
    %91 = memref.load %arg2[%90, %c45] : memref<4x64xf32, #tpu.memory_space<smem>>
    %92 = arith.index_cast %arg0 : i32 to index
    %c46 = arith.constant 46 : index
    %93 = memref.load %arg2[%92, %c46] : memref<4x64xf32, #tpu.memory_space<smem>>
    %94 = arith.index_cast %arg0 : i32 to index
    %c47 = arith.constant 47 : index
    %95 = memref.load %arg2[%94, %c47] : memref<4x64xf32, #tpu.memory_space<smem>>
    %96 = arith.index_cast %arg0 : i32 to index
    %c48 = arith.constant 48 : index
    %97 = memref.load %arg2[%96, %c48] : memref<4x64xf32, #tpu.memory_space<smem>>
    %98 = arith.index_cast %arg0 : i32 to index
    %c49 = arith.constant 49 : index
    %99 = memref.load %arg2[%98, %c49] : memref<4x64xf32, #tpu.memory_space<smem>>
    %100 = arith.index_cast %arg0 : i32 to index
    %c50 = arith.constant 50 : index
    %101 = memref.load %arg2[%100, %c50] : memref<4x64xf32, #tpu.memory_space<smem>>
    %102 = arith.index_cast %arg0 : i32 to index
    %c51 = arith.constant 51 : index
    %103 = memref.load %arg2[%102, %c51] : memref<4x64xf32, #tpu.memory_space<smem>>
    %104 = arith.index_cast %arg0 : i32 to index
    %c52 = arith.constant 52 : index
    %105 = memref.load %arg2[%104, %c52] : memref<4x64xf32, #tpu.memory_space<smem>>
    %106 = arith.index_cast %arg0 : i32 to index
    %c53 = arith.constant 53 : index
    %107 = memref.load %arg2[%106, %c53] : memref<4x64xf32, #tpu.memory_space<smem>>
    %108 = arith.index_cast %arg0 : i32 to index
    %c54 = arith.constant 54 : index
    %109 = memref.load %arg2[%108, %c54] : memref<4x64xf32, #tpu.memory_space<smem>>
    %110 = arith.index_cast %arg0 : i32 to index
    %c55 = arith.constant 55 : index
    %111 = memref.load %arg2[%110, %c55] : memref<4x64xf32, #tpu.memory_space<smem>>
    %112 = arith.index_cast %arg0 : i32 to index
    %c56 = arith.constant 56 : index
    %113 = memref.load %arg2[%112, %c56] : memref<4x64xf32, #tpu.memory_space<smem>>
    %114 = arith.index_cast %arg0 : i32 to index
    %c57 = arith.constant 57 : index
    %115 = memref.load %arg2[%114, %c57] : memref<4x64xf32, #tpu.memory_space<smem>>
    %116 = arith.index_cast %arg0 : i32 to index
    %c58 = arith.constant 58 : index
    %117 = memref.load %arg2[%116, %c58] : memref<4x64xf32, #tpu.memory_space<smem>>
    %c0_0 = arith.constant 0 : index
    %c0_1 = arith.constant 0 : index
    %c0_2 = arith.constant 0 : index
    %118 = vector.load %arg1[%c0_0, %c0_1, %c0_2] : memref<1x1x128xf32, #tpu.memory_space<vmem>>, vector<1x1x128xf32>
    %119 = vector.shape_cast %118 : vector<1x1x128xf32> to vector<1x128xf32>
    %120 = vector.broadcast %117 : f32 to vector<1x128xf32>
    %121 = arith.subf %119, %120 : vector<1x128xf32>
    %122 = math.floor %121 : vector<1x128xf32>
    %123 = arith.subf %121, %122 : vector<1x128xf32>
    %cst = arith.constant 5.000000e-01 : f32
    %124 = vector.broadcast %cst : f32 to vector<1x128xf32>
    %125 = arith.mulf %122, %124 : vector<1x128xf32>
    %126 = math.floor %125 : vector<1x128xf32>
    %cst_3 = arith.constant 2.000000e+00 : f32
    %127 = vector.broadcast %cst_3 : f32 to vector<1x128xf32>
    %128 = arith.mulf %127, %126 : vector<1x128xf32>
    %129 = arith.subf %122, %128 : vector<1x128xf32>
    %cst_4 = arith.constant 0.000000e+00 : f32
    %130 = vector.broadcast %cst_4 : f32 to vector<1x128xf32>
    %131 = arith.cmpf oeq, %129, %130 : vector<1x128xf32>
    %cst_5 = arith.constant 5.000000e-01 : f32
    %132 = vector.broadcast %cst_5 : f32 to vector<1x128xf32>
    %133 = arith.cmpf olt, %123, %132 : vector<1x128xf32>
    %cst_6 = arith.constant 5.000000e-01 : f32
    %134 = vector.broadcast %cst_6 : f32 to vector<1x128xf32>
    %135 = arith.cmpf ogt, %123, %134 : vector<1x128xf32>
    %cst_7 = arith.constant 1.000000e+00 : f32
    %136 = vector.broadcast %cst_7 : f32 to vector<1x128xf32>
    %137 = arith.addf %122, %136 : vector<1x128xf32>
    %cst_8 = arith.constant 1.000000e+00 : f32
    %138 = vector.broadcast %cst_8 : f32 to vector<1x128xf32>
    %139 = arith.addf %122, %138 : vector<1x128xf32>
    %140 = arith.select %131, %122, %139 : vector<1x128xi1>, vector<1x128xf32>
    %141 = arith.select %135, %137, %140 : vector<1x128xi1>, vector<1x128xf32>
    %142 = arith.select %133, %122, %141 : vector<1x128xi1>, vector<1x128xf32>
    %143 = vector.broadcast %117 : f32 to vector<1x128xf32>
    %144 = arith.addf %142, %143 : vector<1x128xf32>
    %cst_9 = arith.constant 5.000000e-01 : f32
    %145 = vector.broadcast %cst_9 : f32 to vector<1x128xf32>
    %146 = arith.subf %144, %145 : vector<1x128xf32>
    %147 = vector.broadcast %1 : f32 to vector<1x128xf32>
    %148 = arith.mulf %147, %146 : vector<1x128xf32>
    %149 = vector.broadcast %7 : f32 to vector<1x128xf32>
    %150 = arith.addf %148, %149 : vector<1x128xf32>
    %151 = vector.broadcast %3 : f32 to vector<1x128xf32>
    %152 = arith.mulf %151, %146 : vector<1x128xf32>
    %153 = vector.broadcast %9 : f32 to vector<1x128xf32>
    %154 = arith.addf %152, %153 : vector<1x128xf32>
    %155 = vector.broadcast %5 : f32 to vector<1x128xf32>
    %156 = arith.mulf %155, %146 : vector<1x128xf32>
    %157 = vector.broadcast %11 : f32 to vector<1x128xf32>
    %158 = arith.addf %156, %157 : vector<1x128xf32>
    %159 = math.tanh %150 : vector<1x128xf32>
    %160 = vector.broadcast %13 : f32 to vector<1x128xf32>
    %161 = arith.mulf %160, %159 : vector<1x128xf32>
    %162 = arith.addf %150, %161 : vector<1x128xf32>
    %163 = math.tanh %154 : vector<1x128xf32>
    %164 = vector.broadcast %15 : f32 to vector<1x128xf32>
    %165 = arith.mulf %164, %163 : vector<1x128xf32>
    %166 = arith.addf %154, %165 : vector<1x128xf32>
    %167 = math.tanh %158 : vector<1x128xf32>
    %168 = vector.broadcast %17 : f32 to vector<1x128xf32>
    %169 = arith.mulf %168, %167 : vector<1x128xf32>
    %170 = arith.addf %158, %169 : vector<1x128xf32>
    %171 = vector.broadcast %19 : f32 to vector<1x128xf32>
    %172 = arith.mulf %171, %162 : vector<1x128xf32>
    %173 = vector.broadcast %21 : f32 to vector<1x128xf32>
    %174 = arith.mulf %173, %166 : vector<1x128xf32>
    %175 = arith.addf %172, %174 : vector<1x128xf32>
    %176 = vector.broadcast %23 : f32 to vector<1x128xf32>
    %177 = arith.mulf %176, %170 : vector<1x128xf32>
    %178 = arith.addf %175, %177 : vector<1x128xf32>
    %179 = vector.broadcast %37 : f32 to vector<1x128xf32>
    %180 = arith.addf %178, %179 : vector<1x128xf32>
    %181 = math.tanh %180 : vector<1x128xf32>
    %182 = vector.broadcast %43 : f32 to vector<1x128xf32>
    %183 = arith.mulf %182, %181 : vector<1x128xf32>
    %184 = arith.addf %180, %183 : vector<1x128xf32>
    %185 = vector.broadcast %25 : f32 to vector<1x128xf32>
    %186 = arith.mulf %185, %162 : vector<1x128xf32>
    %187 = vector.broadcast %27 : f32 to vector<1x128xf32>
    %188 = arith.mulf %187, %166 : vector<1x128xf32>
    %189 = arith.addf %186, %188 : vector<1x128xf32>
    %190 = vector.broadcast %29 : f32 to vector<1x128xf32>
    %191 = arith.mulf %190, %170 : vector<1x128xf32>
    %192 = arith.addf %189, %191 : vector<1x128xf32>
    %193 = vector.broadcast %39 : f32 to vector<1x128xf32>
    %194 = arith.addf %192, %193 : vector<1x128xf32>
    %195 = math.tanh %194 : vector<1x128xf32>
    %196 = vector.broadcast %45 : f32 to vector<1x128xf32>
    %197 = arith.mulf %196, %195 : vector<1x128xf32>
    %198 = arith.addf %194, %197 : vector<1x128xf32>
    %199 = vector.broadcast %31 : f32 to vector<1x128xf32>
    %200 = arith.mulf %199, %162 : vector<1x128xf32>
    %201 = vector.broadcast %33 : f32 to vector<1x128xf32>
    %202 = arith.mulf %201, %166 : vector<1x128xf32>
    %203 = arith.addf %200, %202 : vector<1x128xf32>
    %204 = vector.broadcast %35 : f32 to vector<1x128xf32>
    %205 = arith.mulf %204, %170 : vector<1x128xf32>
    %206 = arith.addf %203, %205 : vector<1x128xf32>
    %207 = vector.broadcast %41 : f32 to vector<1x128xf32>
    %208 = arith.addf %206, %207 : vector<1x128xf32>
    %209 = math.tanh %208 : vector<1x128xf32>
    %210 = vector.broadcast %47 : f32 to vector<1x128xf32>
    %211 = arith.mulf %210, %209 : vector<1x128xf32>
    %212 = arith.addf %208, %211 : vector<1x128xf32>
    %213 = vector.broadcast %49 : f32 to vector<1x128xf32>
    %214 = arith.mulf %213, %184 : vector<1x128xf32>
    %215 = vector.broadcast %51 : f32 to vector<1x128xf32>
    %216 = arith.mulf %215, %198 : vector<1x128xf32>
    %217 = arith.addf %214, %216 : vector<1x128xf32>
    %218 = vector.broadcast %53 : f32 to vector<1x128xf32>
    %219 = arith.mulf %218, %212 : vector<1x128xf32>
    %220 = arith.addf %217, %219 : vector<1x128xf32>
    %221 = vector.broadcast %67 : f32 to vector<1x128xf32>
    %222 = arith.addf %220, %221 : vector<1x128xf32>
    %223 = math.tanh %222 : vector<1x128xf32>
    %224 = vector.broadcast %73 : f32 to vector<1x128xf32>
    %225 = arith.mulf %224, %223 : vector<1x128xf32>
    %226 = arith.addf %222, %225 : vector<1x128xf32>
    %227 = vector.broadcast %55 : f32 to vector<1x128xf32>
    %228 = arith.mulf %227, %184 : vector<1x128xf32>
    %229 = vector.broadcast %57 : f32 to vector<1x128xf32>
    %230 = arith.mulf %229, %198 : vector<1x128xf32>
    %231 = arith.addf %228, %230 : vector<1x128xf32>
    %232 = vector.broadcast %59 : f32 to vector<1x128xf32>
    %233 = arith.mulf %232, %212 : vector<1x128xf32>
    %234 = arith.addf %231, %233 : vector<1x128xf32>
    %235 = vector.broadcast %69 : f32 to vector<1x128xf32>
    %236 = arith.addf %234, %235 : vector<1x128xf32>
    %237 = math.tanh %236 : vector<1x128xf32>
    %238 = vector.broadcast %75 : f32 to vector<1x128xf32>
    %239 = arith.mulf %238, %237 : vector<1x128xf32>
    %240 = arith.addf %236, %239 : vector<1x128xf32>
    %241 = vector.broadcast %61 : f32 to vector<1x128xf32>
    %242 = arith.mulf %241, %184 : vector<1x128xf32>
    %243 = vector.broadcast %63 : f32 to vector<1x128xf32>
    %244 = arith.mulf %243, %198 : vector<1x128xf32>
    %245 = arith.addf %242, %244 : vector<1x128xf32>
    %246 = vector.broadcast %65 : f32 to vector<1x128xf32>
    %247 = arith.mulf %246, %212 : vector<1x128xf32>
    %248 = arith.addf %245, %247 : vector<1x128xf32>
    %249 = vector.broadcast %71 : f32 to vector<1x128xf32>
    %250 = arith.addf %248, %249 : vector<1x128xf32>
    %251 = math.tanh %250 : vector<1x128xf32>
    %252 = vector.broadcast %77 : f32 to vector<1x128xf32>
    %253 = arith.mulf %252, %251 : vector<1x128xf32>
    %254 = arith.addf %250, %253 : vector<1x128xf32>
    %255 = vector.broadcast %79 : f32 to vector<1x128xf32>
    %256 = arith.mulf %255, %226 : vector<1x128xf32>
    %257 = vector.broadcast %81 : f32 to vector<1x128xf32>
    %258 = arith.mulf %257, %240 : vector<1x128xf32>
    %259 = arith.addf %256, %258 : vector<1x128xf32>
    %260 = vector.broadcast %83 : f32 to vector<1x128xf32>
    %261 = arith.mulf %260, %254 : vector<1x128xf32>
    %262 = arith.addf %259, %261 : vector<1x128xf32>
    %263 = vector.broadcast %97 : f32 to vector<1x128xf32>
    %264 = arith.addf %262, %263 : vector<1x128xf32>
    %265 = math.tanh %264 : vector<1x128xf32>
    %266 = vector.broadcast %103 : f32 to vector<1x128xf32>
    %267 = arith.mulf %266, %265 : vector<1x128xf32>
    %268 = arith.addf %264, %267 : vector<1x128xf32>
    %269 = vector.broadcast %85 : f32 to vector<1x128xf32>
    %270 = arith.mulf %269, %226 : vector<1x128xf32>
    %271 = vector.broadcast %87 : f32 to vector<1x128xf32>
    %272 = arith.mulf %271, %240 : vector<1x128xf32>
    %273 = arith.addf %270, %272 : vector<1x128xf32>
    %274 = vector.broadcast %89 : f32 to vector<1x128xf32>
    %275 = arith.mulf %274, %254 : vector<1x128xf32>
    %276 = arith.addf %273, %275 : vector<1x128xf32>
    %277 = vector.broadcast %99 : f32 to vector<1x128xf32>
    %278 = arith.addf %276, %277 : vector<1x128xf32>
    %279 = math.tanh %278 : vector<1x128xf32>
    %280 = vector.broadcast %105 : f32 to vector<1x128xf32>
    %281 = arith.mulf %280, %279 : vector<1x128xf32>
    %282 = arith.addf %278, %281 : vector<1x128xf32>
    %283 = vector.broadcast %91 : f32 to vector<1x128xf32>
    %284 = arith.mulf %283, %226 : vector<1x128xf32>
    %285 = vector.broadcast %93 : f32 to vector<1x128xf32>
    %286 = arith.mulf %285, %240 : vector<1x128xf32>
    %287 = arith.addf %284, %286 : vector<1x128xf32>
    %288 = vector.broadcast %95 : f32 to vector<1x128xf32>
    %289 = arith.mulf %288, %254 : vector<1x128xf32>
    %290 = arith.addf %287, %289 : vector<1x128xf32>
    %291 = vector.broadcast %101 : f32 to vector<1x128xf32>
    %292 = arith.addf %290, %291 : vector<1x128xf32>
    %293 = math.tanh %292 : vector<1x128xf32>
    %294 = vector.broadcast %107 : f32 to vector<1x128xf32>
    %295 = arith.mulf %294, %293 : vector<1x128xf32>
    %296 = arith.addf %292, %295 : vector<1x128xf32>
    %297 = vector.broadcast %109 : f32 to vector<1x128xf32>
    %298 = arith.mulf %297, %268 : vector<1x128xf32>
    %299 = vector.broadcast %111 : f32 to vector<1x128xf32>
    %300 = arith.mulf %299, %282 : vector<1x128xf32>
    %301 = arith.addf %298, %300 : vector<1x128xf32>
    %302 = vector.broadcast %113 : f32 to vector<1x128xf32>
    %303 = arith.mulf %302, %296 : vector<1x128xf32>
    %304 = arith.addf %301, %303 : vector<1x128xf32>
    %305 = vector.broadcast %115 : f32 to vector<1x128xf32>
    %306 = arith.addf %304, %305 : vector<1x128xf32>
    %cst_10 = arith.constant 5.000000e-01 : f32
    %307 = vector.broadcast %cst_10 : f32 to vector<1x128xf32>
    %308 = arith.addf %144, %307 : vector<1x128xf32>
    %309 = vector.broadcast %1 : f32 to vector<1x128xf32>
    %310 = arith.mulf %309, %308 : vector<1x128xf32>
    %311 = vector.broadcast %7 : f32 to vector<1x128xf32>
    %312 = arith.addf %310, %311 : vector<1x128xf32>
    %313 = vector.broadcast %3 : f32 to vector<1x128xf32>
    %314 = arith.mulf %313, %308 : vector<1x128xf32>
    %315 = vector.broadcast %9 : f32 to vector<1x128xf32>
    %316 = arith.addf %314, %315 : vector<1x128xf32>
    %317 = vector.broadcast %5 : f32 to vector<1x128xf32>
    %318 = arith.mulf %317, %308 : vector<1x128xf32>
    %319 = vector.broadcast %11 : f32 to vector<1x128xf32>
    %320 = arith.addf %318, %319 : vector<1x128xf32>
    %321 = math.tanh %312 : vector<1x128xf32>
    %322 = vector.broadcast %13 : f32 to vector<1x128xf32>
    %323 = arith.mulf %322, %321 : vector<1x128xf32>
    %324 = arith.addf %312, %323 : vector<1x128xf32>
    %325 = math.tanh %316 : vector<1x128xf32>
    %326 = vector.broadcast %15 : f32 to vector<1x128xf32>
    %327 = arith.mulf %326, %325 : vector<1x128xf32>
    %328 = arith.addf %316, %327 : vector<1x128xf32>
    %329 = math.tanh %320 : vector<1x128xf32>
    %330 = vector.broadcast %17 : f32 to vector<1x128xf32>
    %331 = arith.mulf %330, %329 : vector<1x128xf32>
    %332 = arith.addf %320, %331 : vector<1x128xf32>
    %333 = vector.broadcast %19 : f32 to vector<1x128xf32>
    %334 = arith.mulf %333, %324 : vector<1x128xf32>
    %335 = vector.broadcast %21 : f32 to vector<1x128xf32>
    %336 = arith.mulf %335, %328 : vector<1x128xf32>
    %337 = arith.addf %334, %336 : vector<1x128xf32>
    %338 = vector.broadcast %23 : f32 to vector<1x128xf32>
    %339 = arith.mulf %338, %332 : vector<1x128xf32>
    %340 = arith.addf %337, %339 : vector<1x128xf32>
    %341 = vector.broadcast %37 : f32 to vector<1x128xf32>
    %342 = arith.addf %340, %341 : vector<1x128xf32>
    %343 = math.tanh %342 : vector<1x128xf32>
    %344 = vector.broadcast %43 : f32 to vector<1x128xf32>
    %345 = arith.mulf %344, %343 : vector<1x128xf32>
    %346 = arith.addf %342, %345 : vector<1x128xf32>
    %347 = vector.broadcast %25 : f32 to vector<1x128xf32>
    %348 = arith.mulf %347, %324 : vector<1x128xf32>
    %349 = vector.broadcast %27 : f32 to vector<1x128xf32>
    %350 = arith.mulf %349, %328 : vector<1x128xf32>
    %351 = arith.addf %348, %350 : vector<1x128xf32>
    %352 = vector.broadcast %29 : f32 to vector<1x128xf32>
    %353 = arith.mulf %352, %332 : vector<1x128xf32>
    %354 = arith.addf %351, %353 : vector<1x128xf32>
    %355 = vector.broadcast %39 : f32 to vector<1x128xf32>
    %356 = arith.addf %354, %355 : vector<1x128xf32>
    %357 = math.tanh %356 : vector<1x128xf32>
    %358 = vector.broadcast %45 : f32 to vector<1x128xf32>
    %359 = arith.mulf %358, %357 : vector<1x128xf32>
    %360 = arith.addf %356, %359 : vector<1x128xf32>
    %361 = vector.broadcast %31 : f32 to vector<1x128xf32>
    %362 = arith.mulf %361, %324 : vector<1x128xf32>
    %363 = vector.broadcast %33 : f32 to vector<1x128xf32>
    %364 = arith.mulf %363, %328 : vector<1x128xf32>
    %365 = arith.addf %362, %364 : vector<1x128xf32>
    %366 = vector.broadcast %35 : f32 to vector<1x128xf32>
    %367 = arith.mulf %366, %332 : vector<1x128xf32>
    %368 = arith.addf %365, %367 : vector<1x128xf32>
    %369 = vector.broadcast %41 : f32 to vector<1x128xf32>
    %370 = arith.addf %368, %369 : vector<1x128xf32>
    %371 = math.tanh %370 : vector<1x128xf32>
    %372 = vector.broadcast %47 : f32 to vector<1x128xf32>
    %373 = arith.mulf %372, %371 : vector<1x128xf32>
    %374 = arith.addf %370, %373 : vector<1x128xf32>
    %375 = vector.broadcast %49 : f32 to vector<1x128xf32>
    %376 = arith.mulf %375, %346 : vector<1x128xf32>
    %377 = vector.broadcast %51 : f32 to vector<1x128xf32>
    %378 = arith.mulf %377, %360 : vector<1x128xf32>
    %379 = arith.addf %376, %378 : vector<1x128xf32>
    %380 = vector.broadcast %53 : f32 to vector<1x128xf32>
    %381 = arith.mulf %380, %374 : vector<1x128xf32>
    %382 = arith.addf %379, %381 : vector<1x128xf32>
    %383 = vector.broadcast %67 : f32 to vector<1x128xf32>
    %384 = arith.addf %382, %383 : vector<1x128xf32>
    %385 = math.tanh %384 : vector<1x128xf32>
    %386 = vector.broadcast %73 : f32 to vector<1x128xf32>
    %387 = arith.mulf %386, %385 : vector<1x128xf32>
    %388 = arith.addf %384, %387 : vector<1x128xf32>
    %389 = vector.broadcast %55 : f32 to vector<1x128xf32>
    %390 = arith.mulf %389, %346 : vector<1x128xf32>
    %391 = vector.broadcast %57 : f32 to vector<1x128xf32>
    %392 = arith.mulf %391, %360 : vector<1x128xf32>
    %393 = arith.addf %390, %392 : vector<1x128xf32>
    %394 = vector.broadcast %59 : f32 to vector<1x128xf32>
    %395 = arith.mulf %394, %374 : vector<1x128xf32>
    %396 = arith.addf %393, %395 : vector<1x128xf32>
    %397 = vector.broadcast %69 : f32 to vector<1x128xf32>
    %398 = arith.addf %396, %397 : vector<1x128xf32>
    %399 = math.tanh %398 : vector<1x128xf32>
    %400 = vector.broadcast %75 : f32 to vector<1x128xf32>
    %401 = arith.mulf %400, %399 : vector<1x128xf32>
    %402 = arith.addf %398, %401 : vector<1x128xf32>
    %403 = vector.broadcast %61 : f32 to vector<1x128xf32>
    %404 = arith.mulf %403, %346 : vector<1x128xf32>
    %405 = vector.broadcast %63 : f32 to vector<1x128xf32>
    %406 = arith.mulf %405, %360 : vector<1x128xf32>
    %407 = arith.addf %404, %406 : vector<1x128xf32>
    %408 = vector.broadcast %65 : f32 to vector<1x128xf32>
    %409 = arith.mulf %408, %374 : vector<1x128xf32>
    %410 = arith.addf %407, %409 : vector<1x128xf32>
    %411 = vector.broadcast %71 : f32 to vector<1x128xf32>
    %412 = arith.addf %410, %411 : vector<1x128xf32>
    %413 = math.tanh %412 : vector<1x128xf32>
    %414 = vector.broadcast %77 : f32 to vector<1x128xf32>
    %415 = arith.mulf %414, %413 : vector<1x128xf32>
    %416 = arith.addf %412, %415 : vector<1x128xf32>
    %417 = vector.broadcast %79 : f32 to vector<1x128xf32>
    %418 = arith.mulf %417, %388 : vector<1x128xf32>
    %419 = vector.broadcast %81 : f32 to vector<1x128xf32>
    %420 = arith.mulf %419, %402 : vector<1x128xf32>
    %421 = arith.addf %418, %420 : vector<1x128xf32>
    %422 = vector.broadcast %83 : f32 to vector<1x128xf32>
    %423 = arith.mulf %422, %416 : vector<1x128xf32>
    %424 = arith.addf %421, %423 : vector<1x128xf32>
    %425 = vector.broadcast %97 : f32 to vector<1x128xf32>
    %426 = arith.addf %424, %425 : vector<1x128xf32>
    %427 = math.tanh %426 : vector<1x128xf32>
    %428 = vector.broadcast %103 : f32 to vector<1x128xf32>
    %429 = arith.mulf %428, %427 : vector<1x128xf32>
    %430 = arith.addf %426, %429 : vector<1x128xf32>
    %431 = vector.broadcast %85 : f32 to vector<1x128xf32>
    %432 = arith.mulf %431, %388 : vector<1x128xf32>
    %433 = vector.broadcast %87 : f32 to vector<1x128xf32>
    %434 = arith.mulf %433, %402 : vector<1x128xf32>
    %435 = arith.addf %432, %434 : vector<1x128xf32>
    %436 = vector.broadcast %89 : f32 to vector<1x128xf32>
    %437 = arith.mulf %436, %416 : vector<1x128xf32>
    %438 = arith.addf %435, %437 : vector<1x128xf32>
    %439 = vector.broadcast %99 : f32 to vector<1x128xf32>
    %440 = arith.addf %438, %439 : vector<1x128xf32>
    %441 = math.tanh %440 : vector<1x128xf32>
    %442 = vector.broadcast %105 : f32 to vector<1x128xf32>
    %443 = arith.mulf %442, %441 : vector<1x128xf32>
    %444 = arith.addf %440, %443 : vector<1x128xf32>
    %445 = vector.broadcast %91 : f32 to vector<1x128xf32>
    %446 = arith.mulf %445, %388 : vector<1x128xf32>
    %447 = vector.broadcast %93 : f32 to vector<1x128xf32>
    %448 = arith.mulf %447, %402 : vector<1x128xf32>
    %449 = arith.addf %446, %448 : vector<1x128xf32>
    %450 = vector.broadcast %95 : f32 to vector<1x128xf32>
    %451 = arith.mulf %450, %416 : vector<1x128xf32>
    %452 = arith.addf %449, %451 : vector<1x128xf32>
    %453 = vector.broadcast %101 : f32 to vector<1x128xf32>
    %454 = arith.addf %452, %453 : vector<1x128xf32>
    %455 = math.tanh %454 : vector<1x128xf32>
    %456 = vector.broadcast %107 : f32 to vector<1x128xf32>
    %457 = arith.mulf %456, %455 : vector<1x128xf32>
    %458 = arith.addf %454, %457 : vector<1x128xf32>
    %459 = vector.broadcast %109 : f32 to vector<1x128xf32>
    %460 = arith.mulf %459, %430 : vector<1x128xf32>
    %461 = vector.broadcast %111 : f32 to vector<1x128xf32>
    %462 = arith.mulf %461, %444 : vector<1x128xf32>
    %463 = arith.addf %460, %462 : vector<1x128xf32>
    %464 = vector.broadcast %113 : f32 to vector<1x128xf32>
    %465 = arith.mulf %464, %458 : vector<1x128xf32>
    %466 = arith.addf %463, %465 : vector<1x128xf32>
    %467 = vector.broadcast %115 : f32 to vector<1x128xf32>
    %468 = arith.addf %466, %467 : vector<1x128xf32>
    %469 = arith.addf %306, %468 : vector<1x128xf32>
    %cst_11 = arith.constant 0.000000e+00 : f32
    %470 = vector.broadcast %cst_11 : f32 to vector<1x128xf32>
    %471 = arith.cmpf olt, %469, %470 : vector<1x128xf32>
    %cst_12 = arith.constant 0.000000e+00 : f32
    %472 = vector.broadcast %cst_12 : f32 to vector<1x128xf32>
    %473 = arith.cmpf ogt, %469, %472 : vector<1x128xf32>
    %cst_13 = arith.constant -1.000000e+00 : f32
    %cst_14 = arith.constant 0.000000e+00 : f32
    %474 = vector.broadcast %cst_13 : f32 to vector<1x128xf32>
    %475 = vector.broadcast %cst_14 : f32 to vector<1x128xf32>
    %476 = arith.select %473, %474, %475 : vector<1x128xi1>, vector<1x128xf32>
    %cst_15 = arith.constant 1.000000e+00 : f32
    %477 = vector.broadcast %cst_15 : f32 to vector<1x128xf32>
    %478 = arith.select %471, %477, %476 : vector<1x128xi1>, vector<1x128xf32>
    %479 = arith.mulf %478, %468 : vector<1x128xf32>
    %cst_16 = arith.constant 0.000000e+00 : f32
    %480 = vector.broadcast %cst_16 : f32 to vector<1x128xf32>
    %481 = arith.subf %480, %479 : vector<1x128xf32>
    %482 = math.exp %481 : vector<1x128xf32>
    %cst_17 = arith.constant 1.000000e+00 : f32
    %483 = vector.broadcast %cst_17 : f32 to vector<1x128xf32>
    %484 = arith.addf %483, %482 : vector<1x128xf32>
    %cst_18 = arith.constant 1.000000e+00 : f32
    %485 = vector.broadcast %cst_18 : f32 to vector<1x128xf32>
    %486 = arith.divf %485, %484 : vector<1x128xf32>
    %487 = arith.mulf %478, %306 : vector<1x128xf32>
    %cst_19 = arith.constant 0.000000e+00 : f32
    %488 = vector.broadcast %cst_19 : f32 to vector<1x128xf32>
    %489 = arith.subf %488, %487 : vector<1x128xf32>
    %490 = math.exp %489 : vector<1x128xf32>
    %cst_20 = arith.constant 1.000000e+00 : f32
    %491 = vector.broadcast %cst_20 : f32 to vector<1x128xf32>
    %492 = arith.addf %491, %490 : vector<1x128xf32>
    %cst_21 = arith.constant 1.000000e+00 : f32
    %493 = vector.broadcast %cst_21 : f32 to vector<1x128xf32>
    %494 = arith.divf %493, %492 : vector<1x128xf32>
    %495 = arith.subf %486, %494 : vector<1x128xf32>
    %496 = math.absf %495 : vector<1x128xf32>
    %cst_22 = arith.constant 9.99999971E-10 : f32
    %497 = vector.broadcast %cst_22 : f32 to vector<1x128xf32>
    %498 = arith.maximumf %496, %497 : vector<1x128xf32>
    %c0_23 = arith.constant 0 : index
    %c0_24 = arith.constant 0 : index
    %c0_25 = arith.constant 0 : index
    %499 = vector.load %arg3[%c0_23, %c0_24, %c0_25] : memref<1x1x128xf32, #tpu.memory_space<vmem>>, vector<1x1x128xf32>
    %500 = vector.shape_cast %499 : vector<1x1x128xf32> to vector<1x128xf32>
    %501 = vector.shape_cast %144 : vector<1x128xf32> to vector<1x1x128xf32>
    tpu.vector_store %arg3[%c0_23, %c0_24, %c0_25], %501 {strides = array<i32>} : memref<1x1x128xf32, #tpu.memory_space<vmem>>, vector<1x1x128xf32>,
    %502 = math.log %498 : vector<1x128xf32>
    %cst_26 = arith.constant 0.000000e+00 : f32
    %503 = vector.broadcast %cst_26 : f32 to vector<1x128xf32>
    %504 = arith.subf %503, %502 : vector<1x128xf32>
    %cst_27 = arith.constant 1.44269502 : f32
    %505 = vector.broadcast %cst_27 : f32 to vector<1x128xf32>
    %506 = arith.mulf %504, %505 : vector<1x128xf32>
    %c0_28 = arith.constant 0 : index
    %c0_29 = arith.constant 0 : index
    %c0_30 = arith.constant 0 : index
    %507 = vector.load %arg4[%c0_28, %c0_29, %c0_30] : memref<1x1x128xf32, #tpu.memory_space<vmem>>, vector<1x1x128xf32>
    %508 = vector.shape_cast %507 : vector<1x1x128xf32> to vector<1x128xf32>
    %509 = vector.shape_cast %506 : vector<1x128xf32> to vector<1x1x128xf32>
    tpu.vector_store %arg4[%c0_28, %c0_29, %c0_30], %509 {strides = array<i32>} : memref<1x1x128xf32, #tpu.memory_space<vmem>>, vector<1x1x128xf32>,
    return
  }
  func.func @transform_0(%arg0: i32) -> (i32, i32, i32) {
    %c0_i32 = arith.constant 0 : i32
    %c0_i32_0 = arith.constant 0 : i32
    %c0_i32_1 = arith.constant 0 : i32
    return %arg0, %c0_i32, %c0_i32_0 : i32, i32, i32
  }
  func.func @transform_1(%arg0: i32) -> (i32, i32) {
    %c0_i32 = arith.constant 0 : i32
    %c0_i32_0 = arith.constant 0 : i32
    %c0_i32_1 = arith.constant 0 : i32
    return %c0_i32, %c0_i32_0 : i32, i32
  }
  func.func @transform_2(%arg0: i32) -> (i32, i32, i32) {
    %c0_i32 = arith.constant 0 : i32
    %c0_i32_0 = arith.constant 0 : i32
    %c0_i32_1 = arith.constant 0 : i32
    return %arg0, %c0_i32, %c0_i32_0 : i32, i32, i32
  }
  func.func @transform_3(%arg0: i32) -> (i32, i32, i32) {
    %c0_i32 = arith.constant 0 : i32
    %c0_i32_0 = arith.constant 0 : i32
    %c0_i32_1 = arith.constant 0 : i32
    return %arg0, %c0_i32, %c0_i32_0 : i32, i32, i32
  }
}

module attributes {stable_mosaic.version = 11 : i64} {
  func.func @_dep_level_kernel(%arg0: i32, %arg1: memref<1x36x128xbf16, #tpu.memory_space<vmem>>, %arg2: memref<1x4x128xf32, #tpu.memory_space<vmem>>, %arg3: memref<9x128x128xbf16, #tpu.memory_space<vmem>>, %arg4: memref<1x256x36xbf16, #tpu.memory_space<vmem>>, %arg5: memref<1x9x256x256xbf16, #tpu.memory_space<vmem>>, %arg6: memref<1x256x256xbf16, #tpu.memory_space<vmem>>, %arg7: memref<1x256x256xbf16, #tpu.memory_space<vmem>>, %arg8: memref<1x4x256xbf16, #tpu.memory_space<vmem>>, %arg9: memref<1x4x256xbf16, #tpu.memory_space<vmem>>, %arg10: memref<1x4x256x1xf32, #tpu.memory_space<vmem>>, %arg11: memref<1x4x1xf32, #tpu.memory_space<vmem>>, %arg12: memref<1x4x1xf32, #tpu.memory_space<vmem>>, %arg13: memref<1x4x128xf32, #tpu.memory_space<vmem>>) attributes {dimension_semantics = [#tpu.dimension_semantics<parallel>], iteration_bounds = array<i64: 3>, scalar_prefetch = 0 : i64, scratch_operands = 0 : i64, tpu.core_type = #tpu.core_type<tc>, window_params = [{transform_indices = @transform_0, window_bounds = array<i64: 1, 36, 128>}, {transform_indices = @transform_1, window_bounds = array<i64: 1, 4, 128>}, {pipeline_mode = #tpu.pipeline_mode<synchronous>, transform_indices = @transform_2, window_bounds = array<i64: 9, 128, 128>}, {transform_indices = @transform_3, window_bounds = array<i64: 1, 256, 36>}, {transform_indices = @transform_4, window_bounds = array<i64: 1, 9, 256, 256>}, {transform_indices = @transform_5, window_bounds = array<i64: 1, 256, 256>}, {transform_indices = @transform_6, window_bounds = array<i64: 1, 256, 256>}, {transform_indices = @transform_7, window_bounds = array<i64: 1, 4, 256>}, {transform_indices = @transform_8, window_bounds = array<i64: 1, 4, 256>}, {transform_indices = @transform_9, window_bounds = array<i64: 1, 4, 256, 1>}, {transform_indices = @transform_10, window_bounds = array<i64: 1, 4, 1>}, {transform_indices = @transform_11, window_bounds = array<i64: 1, 4, 1>}, {transform_indices = @transform_12, window_bounds = array<i64: 1, 4, 128>}]} {
    %c0 = arith.constant 0 : index
    %c0_0 = arith.constant 0 : index
    %c0_1 = arith.constant 0 : index
    %0 = vector.load %arg1[%c0, %c0_0, %c0_1] : memref<1x36x128xbf16, #tpu.memory_space<vmem>>, vector<1x36x128xbf16>
    %1 = vector.shape_cast %0 : vector<1x36x128xbf16> to vector<36x128xbf16>
    %c0_2 = arith.constant 0 : index
    %c0_3 = arith.constant 0 : index
    %c0_4 = arith.constant 0 : index
    %2 = vector.load %arg4[%c0_2, %c0_3, %c0_4] : memref<1x256x36xbf16, #tpu.memory_space<vmem>>, vector<1x256x36xbf16>
    %3 = vector.shape_cast %2 : vector<1x256x36xbf16> to vector<256x36xbf16>
    %cst = arith.constant dense<0.000000e+00> : vector<256x128xf32>
    %4 = tpu.matmul %3, %1, %cst {dimension_numbers = #tpu.dot_dimension_numbers<[1], [0], [0], [1], [0, 0, 1, 1], [], []>} : vector<256x36xbf16>, vector<36x128xbf16>, vector<256x128xf32> -> vector<256x128xf32>
    %c0_5 = arith.constant 0 : index
    %c0_6 = arith.constant 0 : index
    %c0_7 = arith.constant 0 : index
    %c0_8 = arith.constant 0 : index
    %5 = vector.load %arg10[%c0_5, %c0_6, %c0_7, %c0_8] : memref<1x4x256x1xf32, #tpu.memory_space<vmem>>, vector<1x1x256x1xf32>
    %6 = vector.shape_cast %5 : vector<1x1x256x1xf32> to vector<256x1xf32>
    %7 = vector.broadcast %6 : vector<256x1xf32> to vector<256x128xf32>
    %8 = arith.addf %4, %7 : vector<256x128xf32>
    %cst_9 = arith.constant 0.000000e+00 : f32
    %9 = vector.broadcast %cst_9 : f32 to vector<256x128xf32>
    %10 = arith.cmpf oge, %8, %9 : vector<256x128xf32>
    %cst_10 = arith.constant 0.00999999977 : f32
    %11 = vector.broadcast %cst_10 : f32 to vector<256x128xf32>
    %12 = arith.mulf %11, %8 : vector<256x128xf32>
    %13 = arith.select %10, %8, %12 : vector<256x128xi1>, vector<256x128xf32>
    %14 = arith.truncf %13 : vector<256x128xf32> to vector<256x128xbf16>
    %cst_11 = arith.constant 0.000000e+00 : f32
    %15 = vector.broadcast %cst_11 : f32 to vector<256x128xf32>
    %c0_12 = arith.constant 0 : index
    %c0_13 = arith.constant 0 : index
    %c0_14 = arith.constant 0 : index
    %16 = vector.load %arg3[%c0_12, %c0_13, %c0_14] : memref<9x128x128xbf16, #tpu.memory_space<vmem>>, vector<1x128x128xbf16>
    %17 = vector.shape_cast %16 : vector<1x128x128xbf16> to vector<128x128xbf16>
    %cst_15 = arith.constant dense<0.000000e+00> : vector<256x128xf32>
    %18 = tpu.matmul %14, %17, %cst_15 {dimension_numbers = #tpu.dot_dimension_numbers<[1], [0], [0], [1], [0, 0, 1, 1], [], []>} : vector<256x128xbf16>, vector<128x128xbf16>, vector<256x128xf32> -> vector<256x128xf32>
    %c0_16 = arith.constant 0 : index
    %c0_17 = arith.constant 0 : index
    %c0_18 = arith.constant 0 : index
    %c0_19 = arith.constant 0 : index
    %19 = vector.load %arg5[%c0_16, %c0_17, %c0_18, %c0_19] : memref<1x9x256x256xbf16, #tpu.memory_space<vmem>>, vector<1x1x256x256xbf16>
    %20 = vector.shape_cast %19 : vector<1x1x256x256xbf16> to vector<256x256xbf16>
    %21 = arith.truncf %18 : vector<256x128xf32> to vector<256x128xbf16>
    %cst_20 = arith.constant dense<0.000000e+00> : vector<256x128xf32>
    %22 = tpu.matmul %20, %21, %cst_20 {dimension_numbers = #tpu.dot_dimension_numbers<[1], [0], [0], [1], [0, 0, 1, 1], [], []>} : vector<256x256xbf16>, vector<256x128xbf16>, vector<256x128xf32> -> vector<256x128xf32>
    %23 = arith.addf %15, %22 : vector<256x128xf32>
    %c1 = arith.constant 1 : index
    %c0_21 = arith.constant 0 : index
    %c0_22 = arith.constant 0 : index
    %24 = vector.load %arg3[%c1, %c0_21, %c0_22] : memref<9x128x128xbf16, #tpu.memory_space<vmem>>, vector<1x128x128xbf16>
    %25 = vector.shape_cast %24 : vector<1x128x128xbf16> to vector<128x128xbf16>
    %cst_23 = arith.constant dense<0.000000e+00> : vector<256x128xf32>
    %26 = tpu.matmul %14, %25, %cst_23 {dimension_numbers = #tpu.dot_dimension_numbers<[1], [0], [0], [1], [0, 0, 1, 1], [], []>} : vector<256x128xbf16>, vector<128x128xbf16>, vector<256x128xf32> -> vector<256x128xf32>
    %c0_24 = arith.constant 0 : index
    %c1_25 = arith.constant 1 : index
    %c0_26 = arith.constant 0 : index
    %c0_27 = arith.constant 0 : index
    %27 = vector.load %arg5[%c0_24, %c1_25, %c0_26, %c0_27] : memref<1x9x256x256xbf16, #tpu.memory_space<vmem>>, vector<1x1x256x256xbf16>
    %28 = vector.shape_cast %27 : vector<1x1x256x256xbf16> to vector<256x256xbf16>
    %29 = arith.truncf %26 : vector<256x128xf32> to vector<256x128xbf16>
    %cst_28 = arith.constant dense<0.000000e+00> : vector<256x128xf32>
    %30 = tpu.matmul %28, %29, %cst_28 {dimension_numbers = #tpu.dot_dimension_numbers<[1], [0], [0], [1], [0, 0, 1, 1], [], []>} : vector<256x256xbf16>, vector<256x128xbf16>, vector<256x128xf32> -> vector<256x128xf32>
    %31 = arith.addf %23, %30 : vector<256x128xf32>
    %c2 = arith.constant 2 : index
    %c0_29 = arith.constant 0 : index
    %c0_30 = arith.constant 0 : index
    %32 = vector.load %arg3[%c2, %c0_29, %c0_30] : memref<9x128x128xbf16, #tpu.memory_space<vmem>>, vector<1x128x128xbf16>
    %33 = vector.shape_cast %32 : vector<1x128x128xbf16> to vector<128x128xbf16>
    %cst_31 = arith.constant dense<0.000000e+00> : vector<256x128xf32>
    %34 = tpu.matmul %14, %33, %cst_31 {dimension_numbers = #tpu.dot_dimension_numbers<[1], [0], [0], [1], [0, 0, 1, 1], [], []>} : vector<256x128xbf16>, vector<128x128xbf16>, vector<256x128xf32> -> vector<256x128xf32>
    %c0_32 = arith.constant 0 : index
    %c2_33 = arith.constant 2 : index
    %c0_34 = arith.constant 0 : index
    %c0_35 = arith.constant 0 : index
    %35 = vector.load %arg5[%c0_32, %c2_33, %c0_34, %c0_35] : memref<1x9x256x256xbf16, #tpu.memory_space<vmem>>, vector<1x1x256x256xbf16>
    %36 = vector.shape_cast %35 : vector<1x1x256x256xbf16> to vector<256x256xbf16>
    %37 = arith.truncf %34 : vector<256x128xf32> to vector<256x128xbf16>
    %cst_36 = arith.constant dense<0.000000e+00> : vector<256x128xf32>
    %38 = tpu.matmul %36, %37, %cst_36 {dimension_numbers = #tpu.dot_dimension_numbers<[1], [0], [0], [1], [0, 0, 1, 1], [], []>} : vector<256x256xbf16>, vector<256x128xbf16>, vector<256x128xf32> -> vector<256x128xf32>
    %39 = arith.addf %31, %38 : vector<256x128xf32>
    %c3 = arith.constant 3 : index
    %c0_37 = arith.constant 0 : index
    %c0_38 = arith.constant 0 : index
    %40 = vector.load %arg3[%c3, %c0_37, %c0_38] : memref<9x128x128xbf16, #tpu.memory_space<vmem>>, vector<1x128x128xbf16>
    %41 = vector.shape_cast %40 : vector<1x128x128xbf16> to vector<128x128xbf16>
    %cst_39 = arith.constant dense<0.000000e+00> : vector<256x128xf32>
    %42 = tpu.matmul %14, %41, %cst_39 {dimension_numbers = #tpu.dot_dimension_numbers<[1], [0], [0], [1], [0, 0, 1, 1], [], []>} : vector<256x128xbf16>, vector<128x128xbf16>, vector<256x128xf32> -> vector<256x128xf32>
    %c0_40 = arith.constant 0 : index
    %c3_41 = arith.constant 3 : index
    %c0_42 = arith.constant 0 : index
    %c0_43 = arith.constant 0 : index
    %43 = vector.load %arg5[%c0_40, %c3_41, %c0_42, %c0_43] : memref<1x9x256x256xbf16, #tpu.memory_space<vmem>>, vector<1x1x256x256xbf16>
    %44 = vector.shape_cast %43 : vector<1x1x256x256xbf16> to vector<256x256xbf16>
    %45 = arith.truncf %42 : vector<256x128xf32> to vector<256x128xbf16>
    %cst_44 = arith.constant dense<0.000000e+00> : vector<256x128xf32>
    %46 = tpu.matmul %44, %45, %cst_44 {dimension_numbers = #tpu.dot_dimension_numbers<[1], [0], [0], [1], [0, 0, 1, 1], [], []>} : vector<256x256xbf16>, vector<256x128xbf16>, vector<256x128xf32> -> vector<256x128xf32>
    %47 = arith.addf %39, %46 : vector<256x128xf32>
    %c4 = arith.constant 4 : index
    %c0_45 = arith.constant 0 : index
    %c0_46 = arith.constant 0 : index
    %48 = vector.load %arg3[%c4, %c0_45, %c0_46] : memref<9x128x128xbf16, #tpu.memory_space<vmem>>, vector<1x128x128xbf16>
    %49 = vector.shape_cast %48 : vector<1x128x128xbf16> to vector<128x128xbf16>
    %cst_47 = arith.constant dense<0.000000e+00> : vector<256x128xf32>
    %50 = tpu.matmul %14, %49, %cst_47 {dimension_numbers = #tpu.dot_dimension_numbers<[1], [0], [0], [1], [0, 0, 1, 1], [], []>} : vector<256x128xbf16>, vector<128x128xbf16>, vector<256x128xf32> -> vector<256x128xf32>
    %c0_48 = arith.constant 0 : index
    %c4_49 = arith.constant 4 : index
    %c0_50 = arith.constant 0 : index
    %c0_51 = arith.constant 0 : index
    %51 = vector.load %arg5[%c0_48, %c4_49, %c0_50, %c0_51] : memref<1x9x256x256xbf16, #tpu.memory_space<vmem>>, vector<1x1x256x256xbf16>
    %52 = vector.shape_cast %51 : vector<1x1x256x256xbf16> to vector<256x256xbf16>
    %53 = arith.truncf %50 : vector<256x128xf32> to vector<256x128xbf16>
    %cst_52 = arith.constant dense<0.000000e+00> : vector<256x128xf32>
    %54 = tpu.matmul %52, %53, %cst_52 {dimension_numbers = #tpu.dot_dimension_numbers<[1], [0], [0], [1], [0, 0, 1, 1], [], []>} : vector<256x256xbf16>, vector<256x128xbf16>, vector<256x128xf32> -> vector<256x128xf32>
    %55 = arith.addf %47, %54 : vector<256x128xf32>
    %c5 = arith.constant 5 : index
    %c0_53 = arith.constant 0 : index
    %c0_54 = arith.constant 0 : index
    %56 = vector.load %arg3[%c5, %c0_53, %c0_54] : memref<9x128x128xbf16, #tpu.memory_space<vmem>>, vector<1x128x128xbf16>
    %57 = vector.shape_cast %56 : vector<1x128x128xbf16> to vector<128x128xbf16>
    %cst_55 = arith.constant dense<0.000000e+00> : vector<256x128xf32>
    %58 = tpu.matmul %14, %57, %cst_55 {dimension_numbers = #tpu.dot_dimension_numbers<[1], [0], [0], [1], [0, 0, 1, 1], [], []>} : vector<256x128xbf16>, vector<128x128xbf16>, vector<256x128xf32> -> vector<256x128xf32>
    %c0_56 = arith.constant 0 : index
    %c5_57 = arith.constant 5 : index
    %c0_58 = arith.constant 0 : index
    %c0_59 = arith.constant 0 : index
    %59 = vector.load %arg5[%c0_56, %c5_57, %c0_58, %c0_59] : memref<1x9x256x256xbf16, #tpu.memory_space<vmem>>, vector<1x1x256x256xbf16>
    %60 = vector.shape_cast %59 : vector<1x1x256x256xbf16> to vector<256x256xbf16>
    %61 = arith.truncf %58 : vector<256x128xf32> to vector<256x128xbf16>
    %cst_60 = arith.constant dense<0.000000e+00> : vector<256x128xf32>
    %62 = tpu.matmul %60, %61, %cst_60 {dimension_numbers = #tpu.dot_dimension_numbers<[1], [0], [0], [1], [0, 0, 1, 1], [], []>} : vector<256x256xbf16>, vector<256x128xbf16>, vector<256x128xf32> -> vector<256x128xf32>
    %63 = arith.addf %55, %62 : vector<256x128xf32>
    %c6 = arith.constant 6 : index
    %c0_61 = arith.constant 0 : index
    %c0_62 = arith.constant 0 : index
    %64 = vector.load %arg3[%c6, %c0_61, %c0_62] : memref<9x128x128xbf16, #tpu.memory_space<vmem>>, vector<1x128x128xbf16>
    %65 = vector.shape_cast %64 : vector<1x128x128xbf16> to vector<128x128xbf16>
    %cst_63 = arith.constant dense<0.000000e+00> : vector<256x128xf32>
    %66 = tpu.matmul %14, %65, %cst_63 {dimension_numbers = #tpu.dot_dimension_numbers<[1], [0], [0], [1], [0, 0, 1, 1], [], []>} : vector<256x128xbf16>, vector<128x128xbf16>, vector<256x128xf32> -> vector<256x128xf32>
    %c0_64 = arith.constant 0 : index
    %c6_65 = arith.constant 6 : index
    %c0_66 = arith.constant 0 : index
    %c0_67 = arith.constant 0 : index
    %67 = vector.load %arg5[%c0_64, %c6_65, %c0_66, %c0_67] : memref<1x9x256x256xbf16, #tpu.memory_space<vmem>>, vector<1x1x256x256xbf16>
    %68 = vector.shape_cast %67 : vector<1x1x256x256xbf16> to vector<256x256xbf16>
    %69 = arith.truncf %66 : vector<256x128xf32> to vector<256x128xbf16>
    %cst_68 = arith.constant dense<0.000000e+00> : vector<256x128xf32>
    %70 = tpu.matmul %68, %69, %cst_68 {dimension_numbers = #tpu.dot_dimension_numbers<[1], [0], [0], [1], [0, 0, 1, 1], [], []>} : vector<256x256xbf16>, vector<256x128xbf16>, vector<256x128xf32> -> vector<256x128xf32>
    %71 = arith.addf %63, %70 : vector<256x128xf32>
    %c7 = arith.constant 7 : index
    %c0_69 = arith.constant 0 : index
    %c0_70 = arith.constant 0 : index
    %72 = vector.load %arg3[%c7, %c0_69, %c0_70] : memref<9x128x128xbf16, #tpu.memory_space<vmem>>, vector<1x128x128xbf16>
    %73 = vector.shape_cast %72 : vector<1x128x128xbf16> to vector<128x128xbf16>
    %cst_71 = arith.constant dense<0.000000e+00> : vector<256x128xf32>
    %74 = tpu.matmul %14, %73, %cst_71 {dimension_numbers = #tpu.dot_dimension_numbers<[1], [0], [0], [1], [0, 0, 1, 1], [], []>} : vector<256x128xbf16>, vector<128x128xbf16>, vector<256x128xf32> -> vector<256x128xf32>
    %c0_72 = arith.constant 0 : index
    %c7_73 = arith.constant 7 : index
    %c0_74 = arith.constant 0 : index
    %c0_75 = arith.constant 0 : index
    %75 = vector.load %arg5[%c0_72, %c7_73, %c0_74, %c0_75] : memref<1x9x256x256xbf16, #tpu.memory_space<vmem>>, vector<1x1x256x256xbf16>
    %76 = vector.shape_cast %75 : vector<1x1x256x256xbf16> to vector<256x256xbf16>
    %77 = arith.truncf %74 : vector<256x128xf32> to vector<256x128xbf16>
    %cst_76 = arith.constant dense<0.000000e+00> : vector<256x128xf32>
    %78 = tpu.matmul %76, %77, %cst_76 {dimension_numbers = #tpu.dot_dimension_numbers<[1], [0], [0], [1], [0, 0, 1, 1], [], []>} : vector<256x256xbf16>, vector<256x128xbf16>, vector<256x128xf32> -> vector<256x128xf32>
    %79 = arith.addf %71, %78 : vector<256x128xf32>
    %c8 = arith.constant 8 : index
    %c0_77 = arith.constant 0 : index
    %c0_78 = arith.constant 0 : index
    %80 = vector.load %arg3[%c8, %c0_77, %c0_78] : memref<9x128x128xbf16, #tpu.memory_space<vmem>>, vector<1x128x128xbf16>
    %81 = vector.shape_cast %80 : vector<1x128x128xbf16> to vector<128x128xbf16>
    %cst_79 = arith.constant dense<0.000000e+00> : vector<256x128xf32>
    %82 = tpu.matmul %14, %81, %cst_79 {dimension_numbers = #tpu.dot_dimension_numbers<[1], [0], [0], [1], [0, 0, 1, 1], [], []>} : vector<256x128xbf16>, vector<128x128xbf16>, vector<256x128xf32> -> vector<256x128xf32>
    %c0_80 = arith.constant 0 : index
    %c8_81 = arith.constant 8 : index
    %c0_82 = arith.constant 0 : index
    %c0_83 = arith.constant 0 : index
    %83 = vector.load %arg5[%c0_80, %c8_81, %c0_82, %c0_83] : memref<1x9x256x256xbf16, #tpu.memory_space<vmem>>, vector<1x1x256x256xbf16>
    %84 = vector.shape_cast %83 : vector<1x1x256x256xbf16> to vector<256x256xbf16>
    %85 = arith.truncf %82 : vector<256x128xf32> to vector<256x128xbf16>
    %cst_84 = arith.constant dense<0.000000e+00> : vector<256x128xf32>
    %86 = tpu.matmul %84, %85, %cst_84 {dimension_numbers = #tpu.dot_dimension_numbers<[1], [0], [0], [1], [0, 0, 1, 1], [], []>} : vector<256x256xbf16>, vector<256x128xbf16>, vector<256x128xf32> -> vector<256x128xf32>
    %87 = arith.addf %79, %86 : vector<256x128xf32>
    %c0_85 = arith.constant 0 : index
    %c1_86 = arith.constant 1 : index
    %c0_87 = arith.constant 0 : index
    %c0_88 = arith.constant 0 : index
    %88 = vector.load %arg10[%c0_85, %c1_86, %c0_87, %c0_88] : memref<1x4x256x1xf32, #tpu.memory_space<vmem>>, vector<1x1x256x1xf32>
    %89 = vector.shape_cast %88 : vector<1x1x256x1xf32> to vector<256x1xf32>
    %90 = vector.broadcast %89 : vector<256x1xf32> to vector<256x128xf32>
    %91 = arith.addf %87, %90 : vector<256x128xf32>
    %cst_89 = arith.constant 0.000000e+00 : f32
    %92 = vector.broadcast %cst_89 : f32 to vector<256x128xf32>
    %93 = arith.cmpf oge, %91, %92 : vector<256x128xf32>
    %cst_90 = arith.constant 0.00999999977 : f32
    %94 = vector.broadcast %cst_90 : f32 to vector<256x128xf32>
    %95 = arith.mulf %94, %91 : vector<256x128xf32>
    %96 = arith.select %93, %91, %95 : vector<256x128xi1>, vector<256x128xf32>
    %c0_91 = arith.constant 0 : index
    %c0_92 = arith.constant 0 : index
    %c0_93 = arith.constant 0 : index
    %97 = vector.load %arg6[%c0_91, %c0_92, %c0_93] : memref<1x256x256xbf16, #tpu.memory_space<vmem>>, vector<1x256x256xbf16>
    %98 = vector.shape_cast %97 : vector<1x256x256xbf16> to vector<256x256xbf16>
    %99 = arith.truncf %96 : vector<256x128xf32> to vector<256x128xbf16>
    %cst_94 = arith.constant dense<0.000000e+00> : vector<256x128xf32>
    %100 = tpu.matmul %98, %99, %cst_94 {dimension_numbers = #tpu.dot_dimension_numbers<[1], [0], [0], [1], [0, 0, 1, 1], [], []>} : vector<256x256xbf16>, vector<256x128xbf16>, vector<256x128xf32> -> vector<256x128xf32>
    %c0_95 = arith.constant 0 : index
    %c2_96 = arith.constant 2 : index
    %c0_97 = arith.constant 0 : index
    %c0_98 = arith.constant 0 : index
    %101 = vector.load %arg10[%c0_95, %c2_96, %c0_97, %c0_98] : memref<1x4x256x1xf32, #tpu.memory_space<vmem>>, vector<1x1x256x1xf32>
    %102 = vector.shape_cast %101 : vector<1x1x256x1xf32> to vector<256x1xf32>
    %103 = vector.broadcast %102 : vector<256x1xf32> to vector<256x128xf32>
    %104 = arith.addf %100, %103 : vector<256x128xf32>
    %cst_99 = arith.constant 0.000000e+00 : f32
    %105 = vector.broadcast %cst_99 : f32 to vector<256x128xf32>
    %106 = arith.cmpf oge, %104, %105 : vector<256x128xf32>
    %cst_100 = arith.constant 0.00999999977 : f32
    %107 = vector.broadcast %cst_100 : f32 to vector<256x128xf32>
    %108 = arith.mulf %107, %104 : vector<256x128xf32>
    %109 = arith.select %106, %104, %108 : vector<256x128xi1>, vector<256x128xf32>
    %c0_101 = arith.constant 0 : index
    %c0_102 = arith.constant 0 : index
    %c0_103 = arith.constant 0 : index
    %110 = vector.load %arg7[%c0_101, %c0_102, %c0_103] : memref<1x256x256xbf16, #tpu.memory_space<vmem>>, vector<1x256x256xbf16>
    %111 = vector.shape_cast %110 : vector<1x256x256xbf16> to vector<256x256xbf16>
    %112 = arith.truncf %109 : vector<256x128xf32> to vector<256x128xbf16>
    %cst_104 = arith.constant dense<0.000000e+00> : vector<256x128xf32>
    %113 = tpu.matmul %111, %112, %cst_104 {dimension_numbers = #tpu.dot_dimension_numbers<[1], [0], [0], [1], [0, 0, 1, 1], [], []>} : vector<256x256xbf16>, vector<256x128xbf16>, vector<256x128xf32> -> vector<256x128xf32>
    %c0_105 = arith.constant 0 : index
    %c3_106 = arith.constant 3 : index
    %c0_107 = arith.constant 0 : index
    %c0_108 = arith.constant 0 : index
    %114 = vector.load %arg10[%c0_105, %c3_106, %c0_107, %c0_108] : memref<1x4x256x1xf32, #tpu.memory_space<vmem>>, vector<1x1x256x1xf32>
    %115 = vector.shape_cast %114 : vector<1x1x256x1xf32> to vector<256x1xf32>
    %116 = vector.broadcast %115 : vector<256x1xf32> to vector<256x128xf32>
    %117 = arith.addf %113, %116 : vector<256x128xf32>
    %cst_109 = arith.constant 0.000000e+00 : f32
    %118 = vector.broadcast %cst_109 : f32 to vector<256x128xf32>
    %119 = arith.cmpf oge, %117, %118 : vector<256x128xf32>
    %cst_110 = arith.constant 0.00999999977 : f32
    %120 = vector.broadcast %cst_110 : f32 to vector<256x128xf32>
    %121 = arith.mulf %120, %117 : vector<256x128xf32>
    %122 = arith.select %119, %117, %121 : vector<256x128xi1>, vector<256x128xf32>
    %123 = arith.truncf %122 : vector<256x128xf32> to vector<256x128xbf16>
    %c0_111 = arith.constant 0 : index
    %c0_112 = arith.constant 0 : index
    %c0_113 = arith.constant 0 : index
    %124 = vector.load %arg8[%c0_111, %c0_112, %c0_113] : memref<1x4x256xbf16, #tpu.memory_space<vmem>>, vector<1x4x256xbf16>
    %125 = vector.shape_cast %124 : vector<1x4x256xbf16> to vector<4x256xbf16>
    %cst_114 = arith.constant dense<0.000000e+00> : vector<4x128xf32>
    %126 = tpu.matmul %125, %123, %cst_114 {dimension_numbers = #tpu.dot_dimension_numbers<[1], [0], [0], [1], [0, 0, 1, 1], [], []>} : vector<4x256xbf16>, vector<256x128xbf16>, vector<4x128xf32> -> vector<4x128xf32>
    %c0_115 = arith.constant 0 : index
    %c0_116 = arith.constant 0 : index
    %c0_117 = arith.constant 0 : index
    %127 = vector.load %arg11[%c0_115, %c0_116, %c0_117] : memref<1x4x1xf32, #tpu.memory_space<vmem>>, vector<1x4x1xf32>
    %128 = vector.shape_cast %127 : vector<1x4x1xf32> to vector<4x1xf32>
    %129 = vector.broadcast %128 : vector<4x1xf32> to vector<4x128xf32>
    %130 = arith.addf %126, %129 : vector<4x128xf32>
    %c0_118 = arith.constant 0 : index
    %c0_119 = arith.constant 0 : index
    %c0_120 = arith.constant 0 : index
    %131 = vector.load %arg9[%c0_118, %c0_119, %c0_120] : memref<1x4x256xbf16, #tpu.memory_space<vmem>>, vector<1x4x256xbf16>
    %132 = vector.shape_cast %131 : vector<1x4x256xbf16> to vector<4x256xbf16>
    %cst_121 = arith.constant dense<0.000000e+00> : vector<4x128xf32>
    %133 = tpu.matmul %132, %123, %cst_121 {dimension_numbers = #tpu.dot_dimension_numbers<[1], [0], [0], [1], [0, 0, 1, 1], [], []>} : vector<4x256xbf16>, vector<256x128xbf16>, vector<4x128xf32> -> vector<4x128xf32>
    %c0_122 = arith.constant 0 : index
    %c0_123 = arith.constant 0 : index
    %c0_124 = arith.constant 0 : index
    %134 = vector.load %arg12[%c0_122, %c0_123, %c0_124] : memref<1x4x1xf32, #tpu.memory_space<vmem>>, vector<1x4x1xf32>
    %135 = vector.shape_cast %134 : vector<1x4x1xf32> to vector<4x1xf32>
    %136 = vector.broadcast %135 : vector<4x1xf32> to vector<4x128xf32>
    %137 = arith.addf %133, %136 : vector<4x128xf32>
    %c0_125 = arith.constant 0 : index
    %c0_126 = arith.constant 0 : index
    %c0_127 = arith.constant 0 : index
    %138 = vector.load %arg2[%c0_125, %c0_126, %c0_127] : memref<1x4x128xf32, #tpu.memory_space<vmem>>, vector<1x4x128xf32>
    %139 = vector.shape_cast %138 : vector<1x4x128xf32> to vector<4x128xf32>
    %140 = arith.subf %139, %130 : vector<4x128xf32>
    %141 = math.floor %140 : vector<4x128xf32>
    %142 = arith.subf %140, %141 : vector<4x128xf32>
    %cst_128 = arith.constant 5.000000e-01 : f32
    %143 = vector.broadcast %cst_128 : f32 to vector<4x128xf32>
    %144 = arith.mulf %141, %143 : vector<4x128xf32>
    %145 = math.floor %144 : vector<4x128xf32>
    %cst_129 = arith.constant 2.000000e+00 : f32
    %146 = vector.broadcast %cst_129 : f32 to vector<4x128xf32>
    %147 = arith.mulf %146, %145 : vector<4x128xf32>
    %148 = arith.subf %141, %147 : vector<4x128xf32>
    %cst_130 = arith.constant 0.000000e+00 : f32
    %149 = vector.broadcast %cst_130 : f32 to vector<4x128xf32>
    %150 = arith.cmpf oeq, %148, %149 : vector<4x128xf32>
    %cst_131 = arith.constant 5.000000e-01 : f32
    %151 = vector.broadcast %cst_131 : f32 to vector<4x128xf32>
    %152 = arith.cmpf olt, %142, %151 : vector<4x128xf32>
    %cst_132 = arith.constant 5.000000e-01 : f32
    %153 = vector.broadcast %cst_132 : f32 to vector<4x128xf32>
    %154 = arith.cmpf ogt, %142, %153 : vector<4x128xf32>
    %cst_133 = arith.constant 1.000000e+00 : f32
    %155 = vector.broadcast %cst_133 : f32 to vector<4x128xf32>
    %156 = arith.addf %141, %155 : vector<4x128xf32>
    %cst_134 = arith.constant 1.000000e+00 : f32
    %157 = vector.broadcast %cst_134 : f32 to vector<4x128xf32>
    %158 = arith.addf %141, %157 : vector<4x128xf32>
    %159 = arith.select %150, %141, %158 : vector<4x128xi1>, vector<4x128xf32>
    %160 = arith.select %154, %156, %159 : vector<4x128xi1>, vector<4x128xf32>
    %161 = arith.select %152, %141, %160 : vector<4x128xi1>, vector<4x128xf32>
    %162 = math.absf %161 : vector<4x128xf32>
    %cst_135 = arith.constant 1.100000e-01 : f32
    %163 = vector.broadcast %cst_135 : f32 to vector<4x128xf32>
    %164 = arith.maximumf %137, %163 : vector<4x128xf32>
    %cst_136 = arith.constant 5.000000e-01 : f32
    %165 = vector.broadcast %cst_136 : f32 to vector<4x128xf32>
    %166 = arith.subf %165, %162 : vector<4x128xf32>
    %167 = arith.divf %166, %164 : vector<4x128xf32>
    %cst_137 = arith.constant 0.000000e+00 : f32
    %168 = vector.broadcast %cst_137 : f32 to vector<4x128xf32>
    %169 = arith.subf %168, %167 : vector<4x128xf32>
    %cst_138 = arith.constant 0.707106769 : f32
    %170 = vector.broadcast %cst_138 : f32 to vector<4x128xf32>
    %171 = arith.mulf %169, %170 : vector<4x128xf32>
    %172 = math.absf %171 : vector<4x128xf32>
    %cst_139 = arith.constant 5.000000e-01 : f32
    %173 = vector.broadcast %cst_139 : f32 to vector<4x128xf32>
    %174 = arith.mulf %173, %172 : vector<4x128xf32>
    %cst_140 = arith.constant 1.000000e+00 : f32
    %175 = vector.broadcast %cst_140 : f32 to vector<4x128xf32>
    %176 = arith.addf %175, %174 : vector<4x128xf32>
    %cst_141 = arith.constant 1.000000e+00 : f32
    %177 = vector.broadcast %cst_141 : f32 to vector<4x128xf32>
    %178 = arith.divf %177, %176 : vector<4x128xf32>
    %cst_142 = arith.constant 0.170872763 : f32
    %179 = vector.broadcast %cst_142 : f32 to vector<4x128xf32>
    %180 = arith.mulf %178, %179 : vector<4x128xf32>
    %cst_143 = arith.constant -0.822152256 : f32
    %181 = vector.broadcast %cst_143 : f32 to vector<4x128xf32>
    %182 = arith.addf %181, %180 : vector<4x128xf32>
    %183 = arith.mulf %178, %182 : vector<4x128xf32>
    %cst_144 = arith.constant 1.48851585 : f32
    %184 = vector.broadcast %cst_144 : f32 to vector<4x128xf32>
    %185 = arith.addf %184, %183 : vector<4x128xf32>
    %186 = arith.mulf %178, %185 : vector<4x128xf32>
    %cst_145 = arith.constant -1.13520396 : f32
    %187 = vector.broadcast %cst_145 : f32 to vector<4x128xf32>
    %188 = arith.addf %187, %186 : vector<4x128xf32>
    %189 = arith.mulf %178, %188 : vector<4x128xf32>
    %cst_146 = arith.constant 0.278868079 : f32
    %190 = vector.broadcast %cst_146 : f32 to vector<4x128xf32>
    %191 = arith.addf %190, %189 : vector<4x128xf32>
    %192 = arith.mulf %178, %191 : vector<4x128xf32>
    %cst_147 = arith.constant -0.186288059 : f32
    %193 = vector.broadcast %cst_147 : f32 to vector<4x128xf32>
    %194 = arith.addf %193, %192 : vector<4x128xf32>
    %195 = arith.mulf %178, %194 : vector<4x128xf32>
    %cst_148 = arith.constant 0.0967841818 : f32
    %196 = vector.broadcast %cst_148 : f32 to vector<4x128xf32>
    %197 = arith.addf %196, %195 : vector<4x128xf32>
    %198 = arith.mulf %178, %197 : vector<4x128xf32>
    %cst_149 = arith.constant 0.374091953 : f32
    %199 = vector.broadcast %cst_149 : f32 to vector<4x128xf32>
    %200 = arith.addf %199, %198 : vector<4x128xf32>
    %201 = arith.mulf %178, %200 : vector<4x128xf32>
    %cst_150 = arith.constant 1.00002372 : f32
    %202 = vector.broadcast %cst_150 : f32 to vector<4x128xf32>
    %203 = arith.addf %202, %201 : vector<4x128xf32>
    %204 = arith.mulf %178, %203 : vector<4x128xf32>
    %cst_151 = arith.constant -1.26551223 : f32
    %205 = vector.broadcast %cst_151 : f32 to vector<4x128xf32>
    %206 = arith.addf %205, %204 : vector<4x128xf32>
    %cst_152 = arith.constant 0.000000e+00 : f32
    %207 = vector.broadcast %cst_152 : f32 to vector<4x128xf32>
    %208 = arith.subf %207, %172 : vector<4x128xf32>
    %209 = arith.mulf %208, %172 : vector<4x128xf32>
    %210 = arith.addf %209, %206 : vector<4x128xf32>
    %211 = math.exp %210 : vector<4x128xf32>
    %212 = arith.mulf %178, %211 : vector<4x128xf32>
    %cst_153 = arith.constant 0.000000e+00 : f32
    %213 = vector.broadcast %cst_153 : f32 to vector<4x128xf32>
    %214 = arith.cmpf oge, %171, %213 : vector<4x128xf32>
    %cst_154 = arith.constant 2.000000e+00 : f32
    %215 = vector.broadcast %cst_154 : f32 to vector<4x128xf32>
    %216 = arith.subf %215, %212 : vector<4x128xf32>
    %217 = arith.select %214, %212, %216 : vector<4x128xi1>, vector<4x128xf32>
    %cst_155 = arith.constant 5.000000e-01 : f32
    %218 = vector.broadcast %cst_155 : f32 to vector<4x128xf32>
    %219 = arith.mulf %218, %217 : vector<4x128xf32>
    %cst_156 = arith.constant -5.000000e-01 : f32
    %220 = vector.broadcast %cst_156 : f32 to vector<4x128xf32>
    %221 = arith.subf %220, %162 : vector<4x128xf32>
    %222 = arith.divf %221, %164 : vector<4x128xf32>
    %cst_157 = arith.constant 0.000000e+00 : f32
    %223 = vector.broadcast %cst_157 : f32 to vector<4x128xf32>
    %224 = arith.subf %223, %222 : vector<4x128xf32>
    %cst_158 = arith.constant 0.707106769 : f32
    %225 = vector.broadcast %cst_158 : f32 to vector<4x128xf32>
    %226 = arith.mulf %224, %225 : vector<4x128xf32>
    %227 = math.absf %226 : vector<4x128xf32>
    %cst_159 = arith.constant 5.000000e-01 : f32
    %228 = vector.broadcast %cst_159 : f32 to vector<4x128xf32>
    %229 = arith.mulf %228, %227 : vector<4x128xf32>
    %cst_160 = arith.constant 1.000000e+00 : f32
    %230 = vector.broadcast %cst_160 : f32 to vector<4x128xf32>
    %231 = arith.addf %230, %229 : vector<4x128xf32>
    %cst_161 = arith.constant 1.000000e+00 : f32
    %232 = vector.broadcast %cst_161 : f32 to vector<4x128xf32>
    %233 = arith.divf %232, %231 : vector<4x128xf32>
    %cst_162 = arith.constant 0.170872763 : f32
    %234 = vector.broadcast %cst_162 : f32 to vector<4x128xf32>
    %235 = arith.mulf %233, %234 : vector<4x128xf32>
    %cst_163 = arith.constant -0.822152256 : f32
    %236 = vector.broadcast %cst_163 : f32 to vector<4x128xf32>
    %237 = arith.addf %236, %235 : vector<4x128xf32>
    %238 = arith.mulf %233, %237 : vector<4x128xf32>
    %cst_164 = arith.constant 1.48851585 : f32
    %239 = vector.broadcast %cst_164 : f32 to vector<4x128xf32>
    %240 = arith.addf %239, %238 : vector<4x128xf32>
    %241 = arith.mulf %233, %240 : vector<4x128xf32>
    %cst_165 = arith.constant -1.13520396 : f32
    %242 = vector.broadcast %cst_165 : f32 to vector<4x128xf32>
    %243 = arith.addf %242, %241 : vector<4x128xf32>
    %244 = arith.mulf %233, %243 : vector<4x128xf32>
    %cst_166 = arith.constant 0.278868079 : f32
    %245 = vector.broadcast %cst_166 : f32 to vector<4x128xf32>
    %246 = arith.addf %245, %244 : vector<4x128xf32>
    %247 = arith.mulf %233, %246 : vector<4x128xf32>
    %cst_167 = arith.constant -0.186288059 : f32
    %248 = vector.broadcast %cst_167 : f32 to vector<4x128xf32>
    %249 = arith.addf %248, %247 : vector<4x128xf32>
    %250 = arith.mulf %233, %249 : vector<4x128xf32>
    %cst_168 = arith.constant 0.0967841818 : f32
    %251 = vector.broadcast %cst_168 : f32 to vector<4x128xf32>
    %252 = arith.addf %251, %250 : vector<4x128xf32>
    %253 = arith.mulf %233, %252 : vector<4x128xf32>
    %cst_169 = arith.constant 0.374091953 : f32
    %254 = vector.broadcast %cst_169 : f32 to vector<4x128xf32>
    %255 = arith.addf %254, %253 : vector<4x128xf32>
    %256 = arith.mulf %233, %255 : vector<4x128xf32>
    %cst_170 = arith.constant 1.00002372 : f32
    %257 = vector.broadcast %cst_170 : f32 to vector<4x128xf32>
    %258 = arith.addf %257, %256 : vector<4x128xf32>
    %259 = arith.mulf %233, %258 : vector<4x128xf32>
    %cst_171 = arith.constant -1.26551223 : f32
    %260 = vector.broadcast %cst_171 : f32 to vector<4x128xf32>
    %261 = arith.addf %260, %259 : vector<4x128xf32>
    %cst_172 = arith.constant 0.000000e+00 : f32
    %262 = vector.broadcast %cst_172 : f32 to vector<4x128xf32>
    %263 = arith.subf %262, %227 : vector<4x128xf32>
    %264 = arith.mulf %263, %227 : vector<4x128xf32>
    %265 = arith.addf %264, %261 : vector<4x128xf32>
    %266 = math.exp %265 : vector<4x128xf32>
    %267 = arith.mulf %233, %266 : vector<4x128xf32>
    %cst_173 = arith.constant 0.000000e+00 : f32
    %268 = vector.broadcast %cst_173 : f32 to vector<4x128xf32>
    %269 = arith.cmpf oge, %226, %268 : vector<4x128xf32>
    %cst_174 = arith.constant 2.000000e+00 : f32
    %270 = vector.broadcast %cst_174 : f32 to vector<4x128xf32>
    %271 = arith.subf %270, %267 : vector<4x128xf32>
    %272 = arith.select %269, %267, %271 : vector<4x128xi1>, vector<4x128xf32>
    %cst_175 = arith.constant 5.000000e-01 : f32
    %273 = vector.broadcast %cst_175 : f32 to vector<4x128xf32>
    %274 = arith.mulf %273, %272 : vector<4x128xf32>
    %275 = arith.subf %219, %274 : vector<4x128xf32>
    %cst_176 = arith.constant 9.99999971E-10 : f32
    %276 = vector.broadcast %cst_176 : f32 to vector<4x128xf32>
    %277 = arith.maximumf %275, %276 : vector<4x128xf32>
    %278 = math.log %277 : vector<4x128xf32>
    %cst_177 = arith.constant 0.000000e+00 : f32
    %279 = vector.broadcast %cst_177 : f32 to vector<4x128xf32>
    %280 = arith.subf %279, %278 : vector<4x128xf32>
    %cst_178 = arith.constant 1.44269502 : f32
    %281 = vector.broadcast %cst_178 : f32 to vector<4x128xf32>
    %282 = arith.mulf %280, %281 : vector<4x128xf32>
    %c0_179 = arith.constant 0 : index
    %c0_180 = arith.constant 0 : index
    %c0_181 = arith.constant 0 : index
    %283 = vector.load %arg13[%c0_179, %c0_180, %c0_181] : memref<1x4x128xf32, #tpu.memory_space<vmem>>, vector<1x4x128xf32>
    %284 = vector.shape_cast %283 : vector<1x4x128xf32> to vector<4x128xf32>
    %285 = vector.shape_cast %282 : vector<4x128xf32> to vector<1x4x128xf32>
    tpu.vector_store %arg13[%c0_179, %c0_180, %c0_181], %285 {strides = array<i32>} : memref<1x4x128xf32, #tpu.memory_space<vmem>>, vector<1x4x128xf32>,
    return
  }
  func.func @transform_0(%arg0: i32) -> (i32, i32, i32) {
    %c0_i32 = arith.constant 0 : i32
    %c0_i32_0 = arith.constant 0 : i32
    %c0_i32_1 = arith.constant 0 : i32
    return %arg0, %c0_i32, %c0_i32_0 : i32, i32, i32
  }
  func.func @transform_1(%arg0: i32) -> (i32, i32, i32) {
    %c0_i32 = arith.constant 0 : i32
    %c0_i32_0 = arith.constant 0 : i32
    %c0_i32_1 = arith.constant 0 : i32
    return %arg0, %c0_i32, %c0_i32_0 : i32, i32, i32
  }
  func.func @transform_2(%arg0: i32) -> (i32, i32, i32) {
    %c0_i32 = arith.constant 0 : i32
    %c0_i32_0 = arith.constant 0 : i32
    %c0_i32_1 = arith.constant 0 : i32
    %c0_i32_2 = arith.constant 0 : i32
    return %c0_i32, %c0_i32_0, %c0_i32_1 : i32, i32, i32
  }
  func.func @transform_3(%arg0: i32) -> (i32, i32, i32) {
    %c0_i32 = arith.constant 0 : i32
    %c0_i32_0 = arith.constant 0 : i32
    %c0_i32_1 = arith.constant 0 : i32
    return %arg0, %c0_i32, %c0_i32_0 : i32, i32, i32
  }
  func.func @transform_4(%arg0: i32) -> (i32, i32, i32, i32) {
    %c0_i32 = arith.constant 0 : i32
    %c0_i32_0 = arith.constant 0 : i32
    %c0_i32_1 = arith.constant 0 : i32
    %c0_i32_2 = arith.constant 0 : i32
    return %arg0, %c0_i32, %c0_i32_0, %c0_i32_1 : i32, i32, i32, i32
  }
  func.func @transform_5(%arg0: i32) -> (i32, i32, i32) {
    %c0_i32 = arith.constant 0 : i32
    %c0_i32_0 = arith.constant 0 : i32
    %c0_i32_1 = arith.constant 0 : i32
    return %arg0, %c0_i32, %c0_i32_0 : i32, i32, i32
  }
  func.func @transform_6(%arg0: i32) -> (i32, i32, i32) {
    %c0_i32 = arith.constant 0 : i32
    %c0_i32_0 = arith.constant 0 : i32
    %c0_i32_1 = arith.constant 0 : i32
    return %arg0, %c0_i32, %c0_i32_0 : i32, i32, i32
  }
  func.func @transform_7(%arg0: i32) -> (i32, i32, i32) {
    %c0_i32 = arith.constant 0 : i32
    %c0_i32_0 = arith.constant 0 : i32
    %c0_i32_1 = arith.constant 0 : i32
    return %arg0, %c0_i32, %c0_i32_0 : i32, i32, i32
  }
  func.func @transform_8(%arg0: i32) -> (i32, i32, i32) {
    %c0_i32 = arith.constant 0 : i32
    %c0_i32_0 = arith.constant 0 : i32
    %c0_i32_1 = arith.constant 0 : i32
    return %arg0, %c0_i32, %c0_i32_0 : i32, i32, i32
  }
  func.func @transform_9(%arg0: i32) -> (i32, i32, i32, i32) {
    %c0_i32 = arith.constant 0 : i32
    %c0_i32_0 = arith.constant 0 : i32
    %c0_i32_1 = arith.constant 0 : i32
    %c0_i32_2 = arith.constant 0 : i32
    return %arg0, %c0_i32, %c0_i32_0, %c0_i32_1 : i32, i32, i32, i32
  }
  func.func @transform_10(%arg0: i32) -> (i32, i32, i32) {
    %c0_i32 = arith.constant 0 : i32
    %c0_i32_0 = arith.constant 0 : i32
    %c0_i32_1 = arith.constant 0 : i32
    return %arg0, %c0_i32, %c0_i32_0 : i32, i32, i32
  }
  func.func @transform_11(%arg0: i32) -> (i32, i32, i32) {
    %c0_i32 = arith.constant 0 : i32
    %c0_i32_0 = arith.constant 0 : i32
    %c0_i32_1 = arith.constant 0 : i32
    return %arg0, %c0_i32, %c0_i32_0 : i32, i32, i32
  }
  func.func @transform_12(%arg0: i32) -> (i32, i32, i32) {
    %c0_i32 = arith.constant 0 : i32
    %c0_i32_0 = arith.constant 0 : i32
    %c0_i32_1 = arith.constant 0 : i32
    return %arg0, %c0_i32, %c0_i32_0 : i32, i32, i32
  }
}

</mosaic_0001>

<llo_original>
// kernel: forward.2
$region0: #{forward.2}
  #allocation0 [shape = 'u32[]', space=smem, size = 0x4, offset = 0x4, fixed_abs, tag = 'smem constant byte address 0x4 - core index']
  #allocation1 [shape = 'u32[144,128]{1,0:T(1,128)}', space=vmem, size = 0x12000, scoped, tag = 'internal scratch']
  %s0 = inlined_call_operand.vmem [shape: f32[4,1,128], index: 0, kind: input, shape index: {}]
  %s1 = inlined_call_operand.vmem [shape: f32[4,64], index: 1, kind: input, shape index: {}]
  %s2 = inlined_call_operand.vmem [shape: f32[4,1,128], index: 2, kind: output, shape index: {0}]
  %s3 = inlined_call_operand.vmem [shape: f32[4,1,128], index: 3, kind: output, shape index: {1}]
  %4 = xla_tuple %s2, %s3
  %s5 = sld [smem:[#allocation0]]
  $region53: #{forward.2} parent=0
    _
  %s7 = ssub.s32 1, %s5
  %s8 = scalar_select 0, %s7, %s5
  $region1: #{forward.2} parent=0
    #allocation2 [shape = 'u8[2048]{0}', space=smem, size = 0x800, scoped, tag = 'input window, operand 1, single buffered']
    #allocation3 [shape = 's32[2]{0}', space=sflag, size = 0x8, scoped, tag = 'scoped memory for forward.2']
    %9 = vsyncpa [#allocation3], 0
    loop: start=0, step=1, limit=6
    $region2: #{forward.2} parent=1 // loop_pre_header
      _
    $region3: #{forward.2} parent=1 // loop_header
      %s11 = sphi 0, %s15
      %p12 = scmp.ge.s32.totalorder %s11, 6
      %s21 = sphi 0, %s23
      %s24 = sphi 0, %s21
      %s25 = sphi 0, %s24
      %s41 = sphi 0, %s25
      %s45 = sphi 0, %s45
      %s47 = sphi 0, %s45
      %s48 = sphi 0, %s47
      %s62 = sphi 0, %s48
      %s68 = sphi 0, %s70
      %s71 = sphi 0, %s68
      %s72 = sphi 0, %s71
      %s88 = sphi 0, %s72
      %s94 = sphi 0, %s96
      %s97 = sphi 0, %s94
      %s98 = sphi 0, %s97
      %s114 = sphi 0, %s98
    $region4: #{forward.2} parent=1 // loop_header_branch
      %14 = sbr.rel (%p12) target = $region8
    $region5: #{forward.2} parent=1 // loop_body
      %s16 = ssub.s32 %s11, 1
      %s17 = ssub.s32 %s11, 2
      %s18 = sadd.s32 %s11, 1
      %s19 = ssub.s32 %s11, %s18
      %p20 = scmp.eq.s32.totalorder %s19, 0
      %s22 = sadd.s32 %s21, 1
      %s23 = scalar_select %p20, %s21, %s22
      %p26 = pneg %p20
      %p27 = scmp.eq.s32.totalorder %s11, 3
      %p28 = por %p26, %p27
      %p29 = scmp.ne.s32.totalorder %s21, %s24
      %p30 = scmp.eq.s32.totalorder %s11, 0
      %p31 = por %p29, %p30
      %p32 = scmp.ne.s32.totalorder %s21, %s24
      %p33 = scmp.eq.s32.totalorder %s16, 3
      %p34 = por %p32, %p33
      %p35 = scmp.ne.s32.totalorder %s24, %s25
      %p36 = scmp.eq.s32.totalorder %s16, 0
      %p37 = por %p35, %p36
      %p38 = scmp.ne.s32.totalorder %s24, %s25
      %p39 = scmp.eq.s32.totalorder %s17, 3
      %p40 = por %p38, %p39
      %p42 = scmp.ne.s32.totalorder %s25, %s41
      %p43 = scmp.eq.s32.totalorder %s17, 0
      %p44 = por %p42, %p43
      %s46 = sadd.s32 %s45, 1
      %p49 = scmp.eq.s32.totalorder %s11, 3
      %p50 = scmp.ne.s32.totalorder %s45, %s47
      %p51 = scmp.eq.s32.totalorder %s11, 0
      %p52 = por %p50, %p51
      %p53 = scmp.ne.s32.totalorder %s45, %s47
      %p54 = scmp.eq.s32.totalorder %s16, 3
      %p55 = por %p53, %p54
      %p56 = scmp.ne.s32.totalorder %s47, %s48
      %p57 = scmp.eq.s32.totalorder %s16, 0
      %p58 = por %p56, %p57
      %p59 = scmp.ne.s32.totalorder %s47, %s48
      %p60 = scmp.eq.s32.totalorder %s17, 3
      %p61 = por %p59, %p60
      %p63 = scmp.ne.s32.totalorder %s48, %s62
      %p64 = scmp.eq.s32.totalorder %s17, 0
      %p65 = por %p63, %p64
      %s66 = ssub.s32 %s11, %s18
      %p67 = scmp.eq.s32.totalorder %s66, 0
      %s69 = sadd.s32 %s68, 1
      %s70 = scalar_select %p67, %s68, %s69
      %p73 = pneg %p67
      %p74 = scmp.eq.s32.totalorder %s11, 3
      %p75 = por %p73, %p74
      %p76 = scmp.ne.s32.totalorder %s68, %s71
      %p77 = scmp.eq.s32.totalorder %s11, 0
      %p78 = por %p76, %p77
      %p79 = scmp.ne.s32.totalorder %s68, %s71
      %p80 = scmp.eq.s32.totalorder %s16, 3
      %p81 = por %p79, %p80
      %p82 = scmp.ne.s32.totalorder %s71, %s72
      %p83 = scmp.eq.s32.totalorder %s16, 0
      %p84 = por %p82, %p83
      %p85 = scmp.ne.s32.totalorder %s71, %s72
      %p86 = scmp.eq.s32.totalorder %s17, 3
      %p87 = por %p85, %p86
      %p89 = scmp.ne.s32.totalorder %s72, %s88
      %p90 = scmp.eq.s32.totalorder %s17, 0
      %p91 = por %p89, %p90
      %s92 = ssub.s32 %s11, %s18
      %p93 = scmp.eq.s32.totalorder %s92, 0
      %s95 = sadd.s32 %s94, 1
      %s96 = scalar_select %p93, %s94, %s95
      %p99 = pneg %p93
      %p100 = scmp.eq.s32.totalorder %s11, 3
      %p101 = por %p99, %p100
      %p102 = scmp.ne.s32.totalorder %s94, %s97
      %p103 = scmp.eq.s32.totalorder %s11, 0
      %p104 = por %p102, %p103
      %p105 = scmp.ne.s32.totalorder %s94, %s97
      %p106 = scmp.eq.s32.totalorder %s16, 3
      %p107 = por %p105, %p106
      %p108 = scmp.ne.s32.totalorder %s97, %s98
      %p109 = scmp.eq.s32.totalorder %s16, 0
      %p110 = por %p108, %p109
      %p111 = scmp.ne.s32.totalorder %s97, %s98
      %p112 = scmp.eq.s32.totalorder %s17, 3
      %p113 = por %p111, %p112
      %p115 = scmp.ne.s32.totalorder %s98, %s114
      %p116 = scmp.eq.s32.totalorder %s17, 0
      %p117 = por %p115, %p116
      %p118 = scmp.le.s32.totalorder 1, %s11
      %p119 = scmp.lt.s32.totalorder %s11, 5
      %p120 = pnand %p118, %p119
      %p121 = pneg %p120
      // Predicated region
      $region9: #{forward.2} parent=5 // pred_check
        _
      $region10: #{forward.2} parent=5 // pred_check_branch
        %123 = sbr.rel (%p120) target = $region12
      $region11: #{forward.2} parent=5 // pred_region
        %s124 = ssub.s32 %s11, 1
        // Predicated region
        $region13: #{forward.2} parent=11 // pred_check
          %p125 = pneg %p58
        $region14: #{forward.2} parent=11 // pred_check_branch
          %127 = sbr.rel (%p125) target = $region16
        $region15: #{forward.2} parent=11 // pred_region
          %s129 = ssub.s32 64, 64
          %130 = vsyncadd [#allocation3], %s129
          %s132 = sshll.u32 %s1, 4
          %s133 = int_to_ptr.vmem [resolvable:$true] %s132
          %135 = dma.vmem_to_smem %s133, 64, [#allocation2], [#allocation3]
        $region16: #{forward.2} parent=11 // pred_fallthru
          _
      $region12: #{forward.2} parent=5 // pred_fallthru
        _
      %p136 = scmp.lt.s32.totalorder %s11, 4
      // Predicated region
      $region17: #{forward.2} parent=5 // pred_check
        %p137 = pneg %p136
      $region18: #{forward.2} parent=5 // pred_check_branch
        %139 = sbr.rel (%p137) target = $region20
      $region19: #{forward.2} parent=5 // pred_region
        // Predicated region
        $region21: #{forward.2} parent=19 // pred_check
          %p140 = pneg %p31
        $region22: #{forward.2} parent=19 // pred_check_branch
          %142 = sbr.rel (%p140) target = $region24
        $region23: #{forward.2} parent=19 // pred_region
          %p143 = scmp.lt.s32.totalorder %s11, 3
          %s144 = scalar_select %p143, %s11, 3
          %s145 = scalar_lea.vmem %s0, %s144
        $region24: #{forward.2} parent=19 // pred_fallthru
          _
      $region20: #{forward.2} parent=5 // pred_fallthru
        _
      %p146 = scmp.le.s32.totalorder 1, %s11
      %p147 = scmp.lt.s32.totalorder %s11, 5
      %p148 = pnand %p146, %p147
      %p149 = pneg %p148
      // Predicated region
      $region25: #{forward.2} parent=5 // pred_check
        _
      $region26: #{forward.2} parent=5 // pred_check_branch
        %151 = sbr.rel (%p148) target = $region28
      $region27: #{forward.2} parent=5 // pred_region
        %s152 = ssub.s32 %s11, 1
        // Predicated region
        $region29: #{forward.2} parent=27 // pred_check
          %p153 = pneg %p58
        $region30: #{forward.2} parent=27 // pred_check_branch
          %155 = sbr.rel (%p153) target = $region32
        $region31: #{forward.2} parent=27 // pred_region
          %156 = dma.done [#allocation3], 64
        $region32: #{forward.2} parent=27 // pred_fallthru
          _
        %157 = sfence
        %p158 = scmp.lt.s32.totalorder %s16, 3
        %s159 = scalar_select %p158, %s16, 3
        %s160 = scalar_lea.vmem %s0, %s159
        %p161 = pneg %p37
        %p162 = pneg %p34
        %p163 = pneg %p58
        %p164 = pneg %p55
        %p165 = pneg %p84
        %p166 = pneg %p81
        %p167 = scmp.lt.s32.totalorder %s16, 3
        %s168 = scalar_select %p167, %s16, 3
        %s169 = scalar_lea.vmem %s2, %s168
        %p170 = pneg %p110
        %p171 = pneg %p107
        %p172 = scmp.lt.s32.totalorder %s16, 3
        %s173 = scalar_select %p172, %s16, 3
        %s174 = scalar_lea.vmem %s3, %s173
        %p175 = scmp.lt.s32.totalorder %s16, 3
        %s176 = scalar_select %p175, %s16, 3
        %s177 = scalar_lea.vmem %s0, %s176
        %p178 = scmp.lt.s32.totalorder %s16, 3
        %s179 = scalar_select %p178, %s16, 3
        %s180 = scalar_lea.vmem %s2, %s179
        %p181 = scmp.lt.s32.totalorder %s16, 3
        %s182 = scalar_select %p181, %s16, 3
        %s183 = scalar_lea.vmem %s3, %s182
        %s184 = smul.u32 %s16, 128
        %s185 = sld [smem:[#allocation2 + %s184]]
        %s186 = sadd.s32 %s184, 1
        %s187 = sld [smem:[#allocation2 + %s186]]
        %s188 = sadd.s32 %s184, 2
        %s189 = sld [smem:[#allocation2 + %s188]]
        %s190 = sadd.s32 %s184, 3
        %s191 = sld [smem:[#allocation2 + %s190]]
        %s192 = sadd.s32 %s184, 4
        %s193 = sld [smem:[#allocation2 + %s192]]
        %s194 = sadd.s32 %s184, 5
        %s195 = sld [smem:[#allocation2 + %s194]]
        %s196 = sadd.s32 %s184, 6
        %s197 = sld [smem:[#allocation2 + %s196]]
        %s198 = sadd.s32 %s184, 7
        %s199 = sld [smem:[#allocation2 + %s198]]
        %s200 = sadd.s32 %s184, 8
        %s201 = sld [smem:[#allocation2 + %s200]]
        %s202 = sadd.s32 %s184, 9
        %s203 = sld [smem:[#allocation2 + %s202]]
        %s204 = sadd.s32 %s184, 10
        %s205 = sld [smem:[#allocation2 + %s204]]
        %s206 = sadd.s32 %s184, 11
        %s207 = sld [smem:[#allocation2 + %s206]]
        %s208 = sadd.s32 %s184, 12
        %s209 = sld [smem:[#allocation2 + %s208]]
        %s210 = sadd.s32 %s184, 13
        %s211 = sld [smem:[#allocation2 + %s210]]
        %s212 = sadd.s32 %s184, 14
        %s213 = sld [smem:[#allocation2 + %s212]]
        %s214 = sadd.s32 %s184, 15
        %s215 = sld [smem:[#allocation2 + %s214]]
        %s216 = sadd.s32 %s184, 16
        %s217 = sld [smem:[#allocation2 + %s216]]
        %s218 = sadd.s32 %s184, 17
        %s219 = sld [smem:[#allocation2 + %s218]]
        %s220 = sadd.s32 %s184, 18
        %s221 = sld [smem:[#allocation2 + %s220]]
        %s222 = sadd.s32 %s184, 19
        %s223 = sld [smem:[#allocation2 + %s222]]
        %s224 = sadd.s32 %s184, 20
        %s225 = sld [smem:[#allocation2 + %s224]]
        %s226 = sadd.s32 %s184, 21
        %s227 = sld [smem:[#allocation2 + %s226]]
        %s228 = sadd.s32 %s184, 22
        %s229 = sld [smem:[#allocation2 + %s228]]
        %s230 = sadd.s32 %s184, 23
        %s231 = sld [smem:[#allocation2 + %s230]]
        %s232 = sadd.s32 %s184, 24
        %s233 = sld [smem:[#allocation2 + %s232]]
        %s234 = sadd.s32 %s184, 25
        %s235 = sld [smem:[#allocation2 + %s234]]
        %s236 = sadd.s32 %s184, 26
        %s237 = sld [smem:[#allocation2 + %s236]]
        %s238 = sadd.s32 %s184, 27
        %s239 = sld [smem:[#allocation2 + %s238]]
        %s240 = sadd.s32 %s184, 28
        %s241 = sld [smem:[#allocation2 + %s240]]
        %s242 = sadd.s32 %s184, 29
        %s243 = sld [smem:[#allocation2 + %s242]]
        %s244 = sadd.s32 %s184, 30
        %s245 = sld [smem:[#allocation2 + %s244]]
        %s246 = sadd.s32 %s184, 31
        %s247 = sld [smem:[#allocation2 + %s246]]
        %s248 = sadd.s32 %s184, 32
        %s249 = sld [smem:[#allocation2 + %s248]]
        %s250 = sadd.s32 %s184, 33
        %s251 = sld [smem:[#allocation2 + %s250]]
        %s252 = sadd.s32 %s184, 34
        %s253 = sld [smem:[#allocation2 + %s252]]
        %s254 = sadd.s32 %s184, 35
        %s255 = sld [smem:[#allocation2 + %s254]]
        %s256 = sadd.s32 %s184, 36
        %s257 = sld [smem:[#allocation2 + %s256]]
        %s258 = sadd.s32 %s184, 37
        %s259 = sld [smem:[#allocation2 + %s258]]
        %s260 = sadd.s32 %s184, 38
        %s261 = sld [smem:[#allocation2 + %s260]]
        %s262 = sadd.s32 %s184, 39
        %s263 = sld [smem:[#allocation2 + %s262]]
        %s264 = sadd.s32 %s184, 40
        %s265 = sld [smem:[#allocation2 + %s264]]
        %s266 = sadd.s32 %s184, 41
        %s267 = sld [smem:[#allocation2 + %s266]]
        %s268 = sadd.s32 %s184, 42
        %s269 = sld [smem:[#allocation2 + %s268]]
        %s270 = sadd.s32 %s184, 43
        %s271 = sld [smem:[#allocation2 + %s270]]
        %s272 = sadd.s32 %s184, 44
        %s273 = sld [smem:[#allocation2 + %s272]]
        %s274 = sadd.s32 %s184, 45
        %s275 = sld [smem:[#allocation2 + %s274]]
        %s276 = sadd.s32 %s184, 46
        %s277 = sld [smem:[#allocation2 + %s276]]
        %s278 = sadd.s32 %s184, 47
        %s279 = sld [smem:[#allocation2 + %s278]]
        %s280 = sadd.s32 %s184, 48
        %s281 = sld [smem:[#allocation2 + %s280]]
        %s282 = sadd.s32 %s184, 49
        %s283 = sld [smem:[#allocation2 + %s282]]
        %s284 = sadd.s32 %s184, 50
        %s285 = sld [smem:[#allocation2 + %s284]]
        %s286 = sadd.s32 %s184, 51
        %s287 = sld [smem:[#allocation2 + %s286]]
        %s288 = sadd.s32 %s184, 52
        %s289 = sld [smem:[#allocation2 + %s288]]
        %s290 = sadd.s32 %s184, 53
        %s291 = sld [smem:[#allocation2 + %s290]]
        %s292 = sadd.s32 %s184, 54
        %s293 = sld [smem:[#allocation2 + %s292]]
        %s294 = sadd.s32 %s184, 55
        %s295 = sld [smem:[#allocation2 + %s294]]
        %s296 = sadd.s32 %s184, 56
        %s297 = sld [smem:[#allocation2 + %s296]]
        %s298 = sadd.s32 %s184, 57
        %s299 = sld [smem:[#allocation2 + %s298]]
        %s300 = sadd.s32 %s184, 58
        %s301 = sld [smem:[#allocation2 + %s300]]
        %v302 = vld [vmem:[%s177] sm:$0x1]
        %v303 = vstv %s301
        %v304 = vsub.f32 %v302, %v303
        %v305 = vfloor.f32 %v304
        %v306 = vsub.f32 %v304, %v305
        %v307 = vmul.f32 %v305, 0.5
        %v308 = vfloor.f32 %v307
        %v309 = vmul.f32 %v308, 2.0
        %v310 = vsub.f32 %v305, %v309
        %vm311 = vcmp.eq.f32.partialorder %v310, 0.0
        %vm312 = vcmp.lt.f32.partialorder %v306, 0.5
        %vm313 = vcmp.gt.f32.partialorder %v306, 0.5
        %v314 = vadd.f32 %v305, 1.0
        %v315 = vsel %vm311, %v305, %v314
        %v316 = vsel %vm313, %v314, %v315
        %v317 = vsel %vm312, %v305, %v316
        %v318 = vadd.f32 %v317, %v303
        %v319 = vsub.f32 %v318, 0.5
        %v320 = vstv %s185
        %v321 = vmul.f32 %v320, %v319
        %v322 = vstv %s191
        %v323 = vadd.f32 %v321, %v322
        %v324 = vstv %s187
        %v325 = vmul.f32 %v324, %v319
        %v326 = vstv %s193
        %v327 = vadd.f32 %v325, %v326
        %v328 = vstv %s189
        %v329 = vmul.f32 %v328, %v319
        %v330 = vstv %s195
        %v331 = vadd.f32 %v329, %v330
        %v332 = vtanh.pop %v323
        %v333 = vstv %s197
        %v334 = vmul.f32 %v333, %v332
        %v335 = vadd.f32 %v323, %v334
        %v336 = vtanh.pop %v327
        %v337 = vstv %s199
        %v338 = vmul.f32 %v337, %v336
        %v339 = vadd.f32 %v327, %v338
        %v340 = vtanh.pop %v331
        %v341 = vstv %s201
        %v342 = vmul.f32 %v341, %v340
        %v343 = vadd.f32 %v331, %v342
        %v344 = vstv %s203
        %v345 = vmul.f32 %v344, %v335
        %v346 = vstv %s205
        %v347 = vmul.f32 %v346, %v339
        %v348 = vadd.f32 %v345, %v347
        %v349 = vstv %s207
        %v350 = vmul.f32 %v349, %v343
        %v351 = vadd.f32 %v348, %v350
        %v352 = vstv %s221
        %v353 = vadd.f32 %v351, %v352
        %v354 = vtanh.pop %v353
        %v355 = vstv %s227
        %v356 = vmul.f32 %v355, %v354
        %v357 = vadd.f32 %v353, %v356
        %v358 = vstv %s209
        %v359 = vmul.f32 %v358, %v335
        %v360 = vstv %s211
        %v361 = vmul.f32 %v360, %v339
        %v362 = vadd.f32 %v359, %v361
        %v363 = vstv %s213
        %v364 = vmul.f32 %v363, %v343
        %v365 = vadd.f32 %v362, %v364
        %v366 = vstv %s223
        %v367 = vadd.f32 %v365, %v366
        %v368 = vtanh.pop %v367
        %v369 = vstv %s229
        %v370 = vmul.f32 %v369, %v368
        %v371 = vadd.f32 %v367, %v370
        %v372 = vstv %s215
        %v373 = vmul.f32 %v372, %v335
        %v374 = vstv %s217
        %v375 = vmul.f32 %v374, %v339
        %v376 = vadd.f32 %v373, %v375
        %v377 = vstv %s219
        %v378 = vmul.f32 %v377, %v343
        %v379 = vadd.f32 %v376, %v378
        %v380 = vstv %s225
        %v381 = vadd.f32 %v379, %v380
        %v382 = vtanh.pop %v381
        %v383 = vstv %s231
        %v384 = vmul.f32 %v383, %v382
        %v385 = vadd.f32 %v381, %v384
        %v386 = vstv %s233
        %v387 = vmul.f32 %v386, %v357
        %v388 = vstv %s235
        %v389 = vmul.f32 %v388, %v371
        %v390 = vadd.f32 %v387, %v389
        %v391 = vstv %s237
        %v392 = vmul.f32 %v391, %v385
        %v393 = vadd.f32 %v390, %v392
        %v394 = vstv %s251
        %v395 = vadd.f32 %v393, %v394
        %v396 = vtanh.pop %v395
        %v397 = vstv %s257
        %v398 = vmul.f32 %v397, %v396
        %v399 = vadd.f32 %v395, %v398
        %v400 = vstv %s239
        %v401 = vmul.f32 %v400, %v357
        %v402 = vstv %s241
        %v403 = vmul.f32 %v402, %v371
        %v404 = vadd.f32 %v401, %v403
        %v405 = vstv %s243
        %v406 = vmul.f32 %v405, %v385
        %v407 = vadd.f32 %v404, %v406
        %v408 = vstv %s253
        %v409 = vadd.f32 %v407, %v408
        %v410 = vtanh.pop %v409
        %v411 = vstv %s259
        %v412 = vmul.f32 %v411, %v410
        %v413 = vadd.f32 %v409, %v412
        %v414 = vstv %s245
        %v415 = vmul.f32 %v414, %v357
        %v416 = vstv %s247
        %v417 = vmul.f32 %v416, %v371
        %v418 = vadd.f32 %v415, %v417
        %v419 = vstv %s249
        %v420 = vmul.f32 %v419, %v385
        %v421 = vadd.f32 %v418, %v420
        %v422 = vstv %s255
        %v423 = vadd.f32 %v421, %v422
        %v424 = vtanh.pop %v423
        %v425 = vstv %s261
        %v426 = vmul.f32 %v425, %v424
        %v427 = vadd.f32 %v423, %v426
        %v428 = vstv %s263
        %v429 = vmul.f32 %v428, %v399
        %v430 = vstv %s265
        %v431 = vmul.f32 %v430, %v413
        %v432 = vadd.f32 %v429, %v431
        %v433 = vstv %s267
        %v434 = vmul.f32 %v433, %v427
        %v435 = vadd.f32 %v432, %v434
        %v436 = vstv %s281
        %v437 = vadd.f32 %v435, %v436
        %v438 = vtanh.pop %v437
        %v439 = vstv %s287
        %v440 = vmul.f32 %v439, %v438
        %v441 = vadd.f32 %v437, %v440
        %v442 = vstv %s269
        %v443 = vmul.f32 %v442, %v399
        %v444 = vstv %s271
        %v445 = vmul.f32 %v444, %v413
        %v446 = vadd.f32 %v443, %v445
        %v447 = vstv %s273
        %v448 = vmul.f32 %v447, %v427
        %v449 = vadd.f32 %v446, %v448
        %v450 = vstv %s283
        %v451 = vadd.f32 %v449, %v450
        %v452 = vtanh.pop %v451
        %v453 = vstv %s289
        %v454 = vmul.f32 %v453, %v452
        %v455 = vadd.f32 %v451, %v454
        %v456 = vstv %s275
        %v457 = vmul.f32 %v456, %v399
        %v458 = vstv %s277
        %v459 = vmul.f32 %v458, %v413
        %v460 = vadd.f32 %v457, %v459
        %v461 = vstv %s279
        %v462 = vmul.f32 %v461, %v427
        %v463 = vadd.f32 %v460, %v462
        %v464 = vstv %s285
        %v465 = vadd.f32 %v463, %v464
        %v466 = vtanh.pop %v465
        %v467 = vstv %s291
        %v468 = vmul.f32 %v467, %v466
        %v469 = vadd.f32 %v465, %v468
        %v470 = vstv %s293
        %v471 = vmul.f32 %v470, %v441
        %v472 = vstv %s295
        %v473 = vmul.f32 %v472, %v455
        %v474 = vadd.f32 %v471, %v473
        %v475 = vstv %s297
        %v476 = vmul.f32 %v475, %v469
        %v477 = vadd.f32 %v474, %v476
        %v478 = vstv %s299
        %v479 = vadd.f32 %v477, %v478
        %v480 = vadd.f32 %v318, 0.5
        %v481 = vmul.f32 %v320, %v480
        %v482 = vadd.f32 %v481, %v322
        %v483 = vmul.f32 %v324, %v480
        %v484 = vadd.f32 %v483, %v326
        %v485 = vmul.f32 %v328, %v480
        %v486 = vadd.f32 %v485, %v330
        %v487 = vtanh.pop %v482
        %v488 = vmul.f32 %v333, %v487
        %v489 = vadd.f32 %v482, %v488
        %v490 = vtanh.pop %v484
        %v491 = vmul.f32 %v337, %v490
        %v492 = vadd.f32 %v484, %v491
        %v493 = vtanh.pop %v486
        %v494 = vmul.f32 %v341, %v493
        %v495 = vadd.f32 %v486, %v494
        %v496 = vmul.f32 %v344, %v489
        %v497 = vmul.f32 %v346, %v492
        %v498 = vadd.f32 %v496, %v497
        %v499 = vmul.f32 %v349, %v495
        %v500 = vadd.f32 %v498, %v499
        %v501 = vadd.f32 %v500, %v352
        %v502 = vtanh.pop %v501
        %v503 = vmul.f32 %v355, %v502
        %v504 = vadd.f32 %v501, %v503
        %v505 = vmul.f32 %v358, %v489
        %v506 = vmul.f32 %v360, %v492
        %v507 = vadd.f32 %v505, %v506
        %v508 = vmul.f32 %v363, %v495
        %v509 = vadd.f32 %v507, %v508
        %v510 = vadd.f32 %v509, %v366
        %v511 = vtanh.pop %v510
        %v512 = vmul.f32 %v369, %v511
        %v513 = vadd.f32 %v510, %v512
        %v514 = vmul.f32 %v372, %v489
        %v515 = vmul.f32 %v374, %v492
        %v516 = vadd.f32 %v514, %v515
        %v517 = vmul.f32 %v377, %v495
        %v518 = vadd.f32 %v516, %v517
        %v519 = vadd.f32 %v518, %v380
        %v520 = vtanh.pop %v519
        %v521 = vmul.f32 %v383, %v520
        %v522 = vadd.f32 %v519, %v521
        %v523 = vmul.f32 %v386, %v504
        %v524 = vmul.f32 %v388, %v513
        %v525 = vadd.f32 %v523, %v524
        %v526 = vmul.f32 %v391, %v522
        %v527 = vadd.f32 %v525, %v526
        %v528 = vadd.f32 %v527, %v394
        %v529 = vtanh.pop %v528
        %v530 = vmul.f32 %v397, %v529
        %v531 = vadd.f32 %v528, %v530
        %v532 = vmul.f32 %v400, %v504
        %v533 = vmul.f32 %v402, %v513
        %v534 = vadd.f32 %v532, %v533
        %v535 = vmul.f32 %v405, %v522
        %v536 = vadd.f32 %v534, %v535
        %v537 = vadd.f32 %v536, %v408
        %v538 = vtanh.pop %v537
        %v539 = vmul.f32 %v411, %v538
        %v540 = vadd.f32 %v537, %v539
        %v541 = vmul.f32 %v414, %v504
        %v542 = vmul.f32 %v416, %v513
        %v543 = vadd.f32 %v541, %v542
        %v544 = vmul.f32 %v419, %v522
        %v545 = vadd.f32 %v543, %v544
        %v546 = vadd.f32 %v545, %v422
        %v547 = vtanh.pop %v546
        %v548 = vmul.f32 %v425, %v547
        %v549 = vadd.f32 %v546, %v548
        %v550 = vmul.f32 %v428, %v531
        %v551 = vmul.f32 %v430, %v540
        %v552 = vadd.f32 %v550, %v551
        %v553 = vmul.f32 %v433, %v549
        %v554 = vadd.f32 %v552, %v553
        %v555 = vadd.f32 %v554, %v436
        %v556 = vtanh.pop %v555
        %v557 = vmul.f32 %v439, %v556
        %v558 = vadd.f32 %v555, %v557
        %v559 = vmul.f32 %v442, %v531
        %v560 = vmul.f32 %v444, %v540
        %v561 = vadd.f32 %v559, %v560
        %v562 = vmul.f32 %v447, %v549
        %v563 = vadd.f32 %v561, %v562
        %v564 = vadd.f32 %v563, %v450
        %v565 = vtanh.pop %v564
        %v566 = vmul.f32 %v453, %v565
        %v567 = vadd.f32 %v564, %v566
        %v568 = vmul.f32 %v456, %v531
        %v569 = vmul.f32 %v458, %v540
        %v570 = vadd.f32 %v568, %v569
        %v571 = vmul.f32 %v461, %v549
        %v572 = vadd.f32 %v570, %v571
        %v573 = vadd.f32 %v572, %v464
        %v574 = vtanh.pop %v573
        %v575 = vmul.f32 %v467, %v574
        %v576 = vadd.f32 %v573, %v575
        %v577 = vmul.f32 %v470, %v558
        %v578 = vmul.f32 %v472, %v567
        %v579 = vadd.f32 %v577, %v578
        %v580 = vmul.f32 %v475, %v576
        %v581 = vadd.f32 %v579, %v580
        %v582 = vadd.f32 %v581, %v478
        %v583 = vadd.f32 %v479, %v582
        %vm584 = vcmp.lt.f32.partialorder %v583, 0.0
        %vm585 = vcmp.gt.f32.partialorder %v583, 0.0
        %v586 = vsel %vm585, -1.0, 0.0
        %v587 = vsel %vm584, 1.0, %v586
        %v588 = vmul.f32 %v587, %v582
        %v589 = vsub.f32 0.0, %v588
        %v590 = vmul.f32 %v589, 1.442695
        %v591 = vpow.pop %v590
        %v592 = vadd.f32 %v591, 1.0
        %v593 = vrcp.pop %v592
        %v594 = vmul.f32 1.0, %v593
        %v595 = vmul.f32 %v587, %v479
        %v596 = vsub.f32 0.0, %v595
        %v597 = vmul.f32 %v596, 1.442695
        %v598 = vpow.pop %v597
        %v599 = vadd.f32 %v598, 1.0
        %v600 = vrcp.pop %v599
        %v601 = vmul.f32 1.0, %v600
        %v602 = vsub.f32 %v594, %v601
        %v603 = vand.u32 2147483647, %v602
        %v604 = vmax.f32 %v603, 1e-09
        %605 = vst [vmem:[%s180] sm:$0x1] %v318
        %v606 = vlog2.pop %v604
        %v607 = vmul.f32 %v606, 0.6931472
        %v608 = vsub.f32 0.0, %v607
        %v609 = vmul.f32 %v608, 1.442695
        %610 = vst [vmem:[%s183] sm:$0x1] %v609
        %p611 = scmp.lt.s32.totalorder %s16, 3
        %s612 = scalar_select %p611, %s16, 3
        %s613 = scalar_lea.vmem %s2, %s612
        %p614 = scmp.lt.s32.totalorder %s16, 3
        %s615 = scalar_select %p614, %s16, 3
        %s616 = scalar_lea.vmem %s3, %s615
        // Predicated region
        $region33: #{forward.2} parent=27 // pred_check
          %p617 = pneg %p81
        $region34: #{forward.2} parent=27 // pred_check_branch
          %619 = sbr.rel (%p617) target = $region36
        $region35: #{forward.2} parent=27 // pred_region
          _
        $region36: #{forward.2} parent=27 // pred_fallthru
          _
        // Predicated region
        $region37: #{forward.2} parent=27 // pred_check
          %p620 = pneg %p107
        $region38: #{forward.2} parent=27 // pred_check_branch
          %622 = sbr.rel (%p620) target = $region40
        $region39: #{forward.2} parent=27 // pred_region
          _
        $region40: #{forward.2} parent=27 // pred_fallthru
          _
      $region28: #{forward.2} parent=5 // pred_fallthru
        _
      %p623 = scmp.le.s32.totalorder 2, %s11
      // Predicated region
      $region41: #{forward.2} parent=5 // pred_check
        %p624 = pneg %p623
      $region42: #{forward.2} parent=5 // pred_check_branch
        %626 = sbr.rel (%p624) target = $region44
      $region43: #{forward.2} parent=5 // pred_region
        %s627 = ssub.s32 %s11, 2
        // Predicated region
        $region45: #{forward.2} parent=43 // pred_check
          %p628 = pneg %p87
        $region46: #{forward.2} parent=43 // pred_check_branch
          %630 = sbr.rel (%p628) target = $region48
        $region47: #{forward.2} parent=43 // pred_region
          %p631 = scmp.lt.s32.totalorder %s17, 3
          %s632 = scalar_select %p631, %s17, 3
          %s633 = scalar_lea.vmem %s2, %s632
        $region48: #{forward.2} parent=43 // pred_fallthru
          _
        // Predicated region
        $region49: #{forward.2} parent=43 // pred_check
          %p634 = pneg %p113
        $region50: #{forward.2} parent=43 // pred_check_branch
          %636 = sbr.rel (%p634) target = $region52
        $region51: #{forward.2} parent=43 // pred_region
          %p637 = scmp.lt.s32.totalorder %s17, 3
          %s638 = scalar_select %p637, %s17, 3
          %s639 = scalar_lea.vmem %s3, %s638
        $region52: #{forward.2} parent=43 // pred_fallthru
          _
      $region44: #{forward.2} parent=5 // pred_fallthru
        _
    $region6: #{forward.2} parent=1 // loop_footer
      %s15 = sadd.s32 1, %s11
    $region7: #{forward.2} parent=1 // loop_footer_branch
      %10 = sbr.rel target = $region3
    $region8: #{forward.2} parent=1 // loop_exit
      _
    %640 = vsyncpa [#allocation3], 1
    %s641 = scalar_lea.sflag [#allocation3], 1
    %642 = vsyncpa %s641, 1

// kernel: forward.3
$region0: #{forward.3}
  #allocation0 [shape = 'u32[]', space=smem, size = 0x4, offset = 0x4, fixed_abs, tag = 'smem constant byte address 0x4 - core index']
  #allocation1 [shape = 'u32[144,128]{1,0:T(1,128)}', space=vmem, size = 0x12000, scoped, tag = 'internal scratch']
  %s0 = inlined_call_operand.vmem [shape: bf16[3,36,128], index: 0, kind: input, shape index: {}]
  %s1 = inlined_call_operand.vmem [shape: f32[3,4,128], index: 1, kind: input, shape index: {}]
  %s2 = inlined_call_operand.vmem [shape: bf16[9,128,128], index: 2, kind: input, shape index: {}]
  %s3 = inlined_call_operand.vmem [shape: bf16[3,256,36], index: 3, kind: input, shape index: {}]
  %s4 = inlined_call_operand.vmem [shape: bf16[3,9,256,256], index: 4, kind: input, shape index: {}]
  %s5 = inlined_call_operand.vmem [shape: bf16[3,256,256], index: 5, kind: input, shape index: {}]
  %s6 = inlined_call_operand.vmem [shape: bf16[3,256,256], index: 6, kind: input, shape index: {}]
  %s7 = inlined_call_operand.vmem [shape: bf16[3,4,256], index: 7, kind: input, shape index: {}]
  %s8 = inlined_call_operand.vmem [shape: bf16[3,4,256], index: 8, kind: input, shape index: {}]
  %s9 = inlined_call_operand.vmem [shape: f32[3,4,256,1], index: 9, kind: input, shape index: {}]
  %s10 = inlined_call_operand.vmem [shape: f32[3,4,1], index: 10, kind: input, shape index: {}]
  %s11 = inlined_call_operand.vmem [shape: f32[3,4,1], index: 11, kind: input, shape index: {}]
  %s12 = inlined_call_operand.vmem [shape: f32[3,4,128], index: 12, kind: output, shape index: {}]
  %s13 = sld [smem:[#allocation0]]
  $region81: #{forward.3} parent=0
    _
  %s15 = ssub.s32 1, %s13
  %s16 = scalar_select 0, %s15, %s13
  loop: start=0, step=1, limit=5
  $region2: #{forward.3} parent=0 // loop_pre_header
    _
  $region3: #{forward.3} parent=0 // loop_header
    %s18 = sphi 0, %s22
    %p19 = scmp.ge.s32.totalorder %s18, 5
    %s28 = sphi 0, %s30
    %s31 = sphi 0, %s28
    %s32 = sphi 0, %s31
    %s48 = sphi 0, %s32
    %s54 = sphi 0, %s56
    %s57 = sphi 0, %s54
    %s58 = sphi 0, %s57
    %s74 = sphi 0, %s58
    %s78 = sphi 0, %s78
    %s80 = sphi 0, %s78
    %s81 = sphi 0, %s80
    %s95 = sphi 0, %s81
    %s101 = sphi 0, %s103
    %s104 = sphi 0, %s101
    %s105 = sphi 0, %s104
    %s121 = sphi 0, %s105
    %s127 = sphi 0, %s129
    %s130 = sphi 0, %s127
    %s131 = sphi 0, %s130
    %s147 = sphi 0, %s131
    %s153 = sphi 0, %s155
    %s156 = sphi 0, %s153
    %s157 = sphi 0, %s156
    %s173 = sphi 0, %s157
    %s179 = sphi 0, %s181
    %s182 = sphi 0, %s179
    %s183 = sphi 0, %s182
    %s199 = sphi 0, %s183
    %s205 = sphi 0, %s207
    %s208 = sphi 0, %s205
    %s209 = sphi 0, %s208
    %s225 = sphi 0, %s209
    %s231 = sphi 0, %s233
    %s234 = sphi 0, %s231
    %s235 = sphi 0, %s234
    %s251 = sphi 0, %s235
    %s257 = sphi 0, %s259
    %s260 = sphi 0, %s257
    %s261 = sphi 0, %s260
    %s277 = sphi 0, %s261
    %s283 = sphi 0, %s285
    %s286 = sphi 0, %s283
    %s287 = sphi 0, %s286
    %s303 = sphi 0, %s287
    %s309 = sphi 0, %s311
    %s312 = sphi 0, %s309
    %s313 = sphi 0, %s312
    %s329 = sphi 0, %s313
    %s335 = sphi 0, %s337
    %s338 = sphi 0, %s335
    %s339 = sphi 0, %s338
    %s355 = sphi 0, %s339
  $region4: #{forward.3} parent=0 // loop_header_branch
    %21 = sbr.rel (%p19) target = $region8
  $region5: #{forward.3} parent=0 // loop_body
    %s23 = ssub.s32 %s18, 1
    %s24 = ssub.s32 %s18, 2
    %s25 = sadd.s32 %s18, 1
    %s26 = ssub.s32 %s18, %s25
    %p27 = scmp.eq.s32.totalorder %s26, 0
    %s29 = sadd.s32 %s28, 1
    %s30 = scalar_select %p27, %s28, %s29
    %p33 = pneg %p27
    %p34 = scmp.eq.s32.totalorder %s18, 2
    %p35 = por %p33, %p34
    %p36 = scmp.ne.s32.totalorder %s28, %s31
    %p37 = scmp.eq.s32.totalorder %s18, 0
    %p38 = por %p36, %p37
    %p39 = scmp.ne.s32.totalorder %s28, %s31
    %p40 = scmp.eq.s32.totalorder %s23, 2
    %p41 = por %p39, %p40
    %p42 = scmp.ne.s32.totalorder %s31, %s32
    %p43 = scmp.eq.s32.totalorder %s23, 0
    %p44 = por %p42, %p43
    %p45 = scmp.ne.s32.totalorder %s31, %s32
    %p46 = scmp.eq.s32.totalorder %s24, 2
    %p47 = por %p45, %p46
    %p49 = scmp.ne.s32.totalorder %s32, %s48
    %p50 = scmp.eq.s32.totalorder %s24, 0
    %p51 = por %p49, %p50
    %s52 = ssub.s32 %s18, %s25
    %p53 = scmp.eq.s32.totalorder %s52, 0
    %s55 = sadd.s32 %s54, 1
    %s56 = scalar_select %p53, %s54, %s55
    %p59 = pneg %p53
    %p60 = scmp.eq.s32.totalorder %s18, 2
    %p61 = por %p59, %p60
    %p62 = scmp.ne.s32.totalorder %s54, %s57
    %p63 = scmp.eq.s32.totalorder %s18, 0
    %p64 = por %p62, %p63
    %p65 = scmp.ne.s32.totalorder %s54, %s57
    %p66 = scmp.eq.s32.totalorder %s23, 2
    %p67 = por %p65, %p66
    %p68 = scmp.ne.s32.totalorder %s57, %s58
    %p69 = scmp.eq.s32.totalorder %s23, 0
    %p70 = por %p68, %p69
    %p71 = scmp.ne.s32.totalorder %s57, %s58
    %p72 = scmp.eq.s32.totalorder %s24, 2
    %p73 = por %p71, %p72
    %p75 = scmp.ne.s32.totalorder %s58, %s74
    %p76 = scmp.eq.s32.totalorder %s24, 0
    %p77 = por %p75, %p76
    %s79 = sadd.s32 %s78, 1
    %p82 = scmp.eq.s32.totalorder %s18, 2
    %p83 = scmp.ne.s32.totalorder %s78, %s80
    %p84 = scmp.eq.s32.totalorder %s18, 0
    %p85 = por %p83, %p84
    %p86 = scmp.ne.s32.totalorder %s78, %s80
    %p87 = scmp.eq.s32.totalorder %s23, 2
    %p88 = por %p86, %p87
    %p89 = scmp.ne.s32.totalorder %s80, %s81
    %p90 = scmp.eq.s32.totalorder %s23, 0
    %p91 = por %p89, %p90
    %p92 = scmp.ne.s32.totalorder %s80, %s81
    %p93 = scmp.eq.s32.totalorder %s24, 2
    %p94 = por %p92, %p93
    %p96 = scmp.ne.s32.totalorder %s81, %s95
    %p97 = scmp.eq.s32.totalorder %s24, 0
    %p98 = por %p96, %p97
    %s99 = ssub.s32 %s18, %s25
    %p100 = scmp.eq.s32.totalorder %s99, 0
    %s102 = sadd.s32 %s101, 1
    %s103 = scalar_select %p100, %s101, %s102
    %p106 = pneg %p100
    %p107 = scmp.eq.s32.totalorder %s18, 2
    %p108 = por %p106, %p107
    %p109 = scmp.ne.s32.totalorder %s101, %s104
    %p110 = scmp.eq.s32.totalorder %s18, 0
    %p111 = por %p109, %p110
    %p112 = scmp.ne.s32.totalorder %s101, %s104
    %p113 = scmp.eq.s32.totalorder %s23, 2
    %p114 = por %p112, %p113
    %p115 = scmp.ne.s32.totalorder %s104, %s105
    %p116 = scmp.eq.s32.totalorder %s23, 0
    %p117 = por %p115, %p116
    %p118 = scmp.ne.s32.totalorder %s104, %s105
    %p119 = scmp.eq.s32.totalorder %s24, 2
    %p120 = por %p118, %p119
    %p122 = scmp.ne.s32.totalorder %s105, %s121
    %p123 = scmp.eq.s32.totalorder %s24, 0
    %p124 = por %p122, %p123
    %s125 = ssub.s32 %s18, %s25
    %p126 = scmp.eq.s32.totalorder %s125, 0
    %s128 = sadd.s32 %s127, 1
    %s129 = scalar_select %p126, %s127, %s128
    %p132 = pneg %p126
    %p133 = scmp.eq.s32.totalorder %s18, 2
    %p134 = por %p132, %p133
    %p135 = scmp.ne.s32.totalorder %s127, %s130
    %p136 = scmp.eq.s32.totalorder %s18, 0
    %p137 = por %p135, %p136
    %p138 = scmp.ne.s32.totalorder %s127, %s130
    %p139 = scmp.eq.s32.totalorder %s23, 2
    %p140 = por %p138, %p139
    %p141 = scmp.ne.s32.totalorder %s130, %s131
    %p142 = scmp.eq.s32.totalorder %s23, 0
    %p143 = por %p141, %p142
    %p144 = scmp.ne.s32.totalorder %s130, %s131
    %p145 = scmp.eq.s32.totalorder %s24, 2
    %p146 = por %p144, %p145
    %p148 = scmp.ne.s32.totalorder %s131, %s147
    %p149 = scmp.eq.s32.totalorder %s24, 0
    %p150 = por %p148, %p149
    %s151 = ssub.s32 %s18, %s25
    %p152 = scmp.eq.s32.totalorder %s151, 0
    %s154 = sadd.s32 %s153, 1
    %s155 = scalar_select %p152, %s153, %s154
    %p158 = pneg %p152
    %p159 = scmp.eq.s32.totalorder %s18, 2
    %p160 = por %p158, %p159
    %p161 = scmp.ne.s32.totalorder %s153, %s156
    %p162 = scmp.eq.s32.totalorder %s18, 0
    %p163 = por %p161, %p162
    %p164 = scmp.ne.s32.totalorder %s153, %s156
    %p165 = scmp.eq.s32.totalorder %s23, 2
    %p166 = por %p164, %p165
    %p167 = scmp.ne.s32.totalorder %s156, %s157
    %p168 = scmp.eq.s32.totalorder %s23, 0
    %p169 = por %p167, %p168
    %p170 = scmp.ne.s32.totalorder %s156, %s157
    %p171 = scmp.eq.s32.totalorder %s24, 2
    %p172 = por %p170, %p171
    %p174 = scmp.ne.s32.totalorder %s157, %s173
    %p175 = scmp.eq.s32.totalorder %s24, 0
    %p176 = por %p174, %p175
    %s177 = ssub.s32 %s18, %s25
    %p178 = scmp.eq.s32.totalorder %s177, 0
    %s180 = sadd.s32 %s179, 1
    %s181 = scalar_select %p178, %s179, %s180
    %p184 = pneg %p178
    %p185 = scmp.eq.s32.totalorder %s18, 2
    %p186 = por %p184, %p185
    %p187 = scmp.ne.s32.totalorder %s179, %s182
    %p188 = scmp.eq.s32.totalorder %s18, 0
    %p189 = por %p187, %p188
    %p190 = scmp.ne.s32.totalorder %s179, %s182
    %p191 = scmp.eq.s32.totalorder %s23, 2
    %p192 = por %p190, %p191
    %p193 = scmp.ne.s32.totalorder %s182, %s183
    %p194 = scmp.eq.s32.totalorder %s23, 0
    %p195 = por %p193, %p194
    %p196 = scmp.ne.s32.totalorder %s182, %s183
    %p197 = scmp.eq.s32.totalorder %s24, 2
    %p198 = por %p196, %p197
    %p200 = scmp.ne.s32.totalorder %s183, %s199
    %p201 = scmp.eq.s32.totalorder %s24, 0
    %p202 = por %p200, %p201
    %s203 = ssub.s32 %s18, %s25
    %p204 = scmp.eq.s32.totalorder %s203, 0
    %s206 = sadd.s32 %s205, 1
    %s207 = scalar_select %p204, %s205, %s206
    %p210 = pneg %p204
    %p211 = scmp.eq.s32.totalorder %s18, 2
    %p212 = por %p210, %p211
    %p213 = scmp.ne.s32.totalorder %s205, %s208
    %p214 = scmp.eq.s32.totalorder %s18, 0
    %p215 = por %p213, %p214
    %p216 = scmp.ne.s32.totalorder %s205, %s208
    %p217 = scmp.eq.s32.totalorder %s23, 2
    %p218 = por %p216, %p217
    %p219 = scmp.ne.s32.totalorder %s208, %s209
    %p220 = scmp.eq.s32.totalorder %s23, 0
    %p221 = por %p219, %p220
    %p222 = scmp.ne.s32.totalorder %s208, %s209
    %p223 = scmp.eq.s32.totalorder %s24, 2
    %p224 = por %p222, %p223
    %p226 = scmp.ne.s32.totalorder %s209, %s225
    %p227 = scmp.eq.s32.totalorder %s24, 0
    %p228 = por %p226, %p227
    %s229 = ssub.s32 %s18, %s25
    %p230 = scmp.eq.s32.totalorder %s229, 0
    %s232 = sadd.s32 %s231, 1
    %s233 = scalar_select %p230, %s231, %s232
    %p236 = pneg %p230
    %p237 = scmp.eq.s32.totalorder %s18, 2
    %p238 = por %p236, %p237
    %p239 = scmp.ne.s32.totalorder %s231, %s234
    %p240 = scmp.eq.s32.totalorder %s18, 0
    %p241 = por %p239, %p240
    %p242 = scmp.ne.s32.totalorder %s231, %s234
    %p243 = scmp.eq.s32.totalorder %s23, 2
    %p244 = por %p242, %p243
    %p245 = scmp.ne.s32.totalorder %s234, %s235
    %p246 = scmp.eq.s32.totalorder %s23, 0
    %p247 = por %p245, %p246
    %p248 = scmp.ne.s32.totalorder %s234, %s235
    %p249 = scmp.eq.s32.totalorder %s24, 2
    %p250 = por %p248, %p249
    %p252 = scmp.ne.s32.totalorder %s235, %s251
    %p253 = scmp.eq.s32.totalorder %s24, 0
    %p254 = por %p252, %p253
    %s255 = ssub.s32 %s18, %s25
    %p256 = scmp.eq.s32.totalorder %s255, 0
    %s258 = sadd.s32 %s257, 1
    %s259 = scalar_select %p256, %s257, %s258
    %p262 = pneg %p256
    %p263 = scmp.eq.s32.totalorder %s18, 2
    %p264 = por %p262, %p263
    %p265 = scmp.ne.s32.totalorder %s257, %s260
    %p266 = scmp.eq.s32.totalorder %s18, 0
    %p267 = por %p265, %p266
    %p268 = scmp.ne.s32.totalorder %s257, %s260
    %p269 = scmp.eq.s32.totalorder %s23, 2
    %p270 = por %p268, %p269
    %p271 = scmp.ne.s32.totalorder %s260, %s261
    %p272 = scmp.eq.s32.totalorder %s23, 0
    %p273 = por %p271, %p272
    %p274 = scmp.ne.s32.totalorder %s260, %s261
    %p275 = scmp.eq.s32.totalorder %s24, 2
    %p276 = por %p274, %p275
    %p278 = scmp.ne.s32.totalorder %s261, %s277
    %p279 = scmp.eq.s32.totalorder %s24, 0
    %p280 = por %p278, %p279
    %s281 = ssub.s32 %s18, %s25
    %p282 = scmp.eq.s32.totalorder %s281, 0
    %s284 = sadd.s32 %s283, 1
    %s285 = scalar_select %p282, %s283, %s284
    %p288 = pneg %p282
    %p289 = scmp.eq.s32.totalorder %s18, 2
    %p290 = por %p288, %p289
    %p291 = scmp.ne.s32.totalorder %s283, %s286
    %p292 = scmp.eq.s32.totalorder %s18, 0
    %p293 = por %p291, %p292
    %p294 = scmp.ne.s32.totalorder %s283, %s286
    %p295 = scmp.eq.s32.totalorder %s23, 2
    %p296 = por %p294, %p295
    %p297 = scmp.ne.s32.totalorder %s286, %s287
    %p298 = scmp.eq.s32.totalorder %s23, 0
    %p299 = por %p297, %p298
    %p300 = scmp.ne.s32.totalorder %s286, %s287
    %p301 = scmp.eq.s32.totalorder %s24, 2
    %p302 = por %p300, %p301
    %p304 = scmp.ne.s32.totalorder %s287, %s303
    %p305 = scmp.eq.s32.totalorder %s24, 0
    %p306 = por %p304, %p305
    %s307 = ssub.s32 %s18, %s25
    %p308 = scmp.eq.s32.totalorder %s307, 0
    %s310 = sadd.s32 %s309, 1
    %s311 = scalar_select %p308, %s309, %s310
    %p314 = pneg %p308
    %p315 = scmp.eq.s32.totalorder %s18, 2
    %p316 = por %p314, %p315
    %p317 = scmp.ne.s32.totalorder %s309, %s312
    %p318 = scmp.eq.s32.totalorder %s18, 0
    %p319 = por %p317, %p318
    %p320 = scmp.ne.s32.totalorder %s309, %s312
    %p321 = scmp.eq.s32.totalorder %s23, 2
    %p322 = por %p320, %p321
    %p323 = scmp.ne.s32.totalorder %s312, %s313
    %p324 = scmp.eq.s32.totalorder %s23, 0
    %p325 = por %p323, %p324
    %p326 = scmp.ne.s32.totalorder %s312, %s313
    %p327 = scmp.eq.s32.totalorder %s24, 2
    %p328 = por %p326, %p327
    %p330 = scmp.ne.s32.totalorder %s313, %s329
    %p331 = scmp.eq.s32.totalorder %s24, 0
    %p332 = por %p330, %p331
    %s333 = ssub.s32 %s18, %s25
    %p334 = scmp.eq.s32.totalorder %s333, 0
    %s336 = sadd.s32 %s335, 1
    %s337 = scalar_select %p334, %s335, %s336
    %p340 = pneg %p334
    %p341 = scmp.eq.s32.totalorder %s18, 2
    %p342 = por %p340, %p341
    %p343 = scmp.ne.s32.totalorder %s335, %s338
    %p344 = scmp.eq.s32.totalorder %s18, 0
    %p345 = por %p343, %p344
    %p346 = scmp.ne.s32.totalorder %s335, %s338
    %p347 = scmp.eq.s32.totalorder %s23, 2
    %p348 = por %p346, %p347
    %p349 = scmp.ne.s32.totalorder %s338, %s339
    %p350 = scmp.eq.s32.totalorder %s23, 0
    %p351 = por %p349, %p350
    %p352 = scmp.ne.s32.totalorder %s338, %s339
    %p353 = scmp.eq.s32.totalorder %s24, 2
    %p354 = por %p352, %p353
    %p356 = scmp.ne.s32.totalorder %s339, %s355
    %p357 = scmp.eq.s32.totalorder %s24, 0
    %p358 = por %p356, %p357
    %p359 = scmp.le.s32.totalorder 1, %s18
    %p360 = scmp.lt.s32.totalorder %s18, 4
    %p361 = pnand %p359, %p360
    %p362 = pneg %p361
    // Predicated region
    $region9: #{forward.3} parent=5 // pred_check
      _
    $region10: #{forward.3} parent=5 // pred_check_branch
      %364 = sbr.rel (%p361) target = $region12
    $region11: #{forward.3} parent=5 // pred_region
      %s365 = ssub.s32 %s18, 1
      // Predicated region
      $region13: #{forward.3} parent=11 // pred_check
        %p366 = pneg %p91
      $region14: #{forward.3} parent=11 // pred_check_branch
        %368 = sbr.rel (%p366) target = $region16
      $region15: #{forward.3} parent=11 // pred_region
        _
      $region16: #{forward.3} parent=11 // pred_fallthru
        _
    $region12: #{forward.3} parent=5 // pred_fallthru
      _
    %p369 = scmp.lt.s32.totalorder %s18, 3
    // Predicated region
    $region17: #{forward.3} parent=5 // pred_check
      %p370 = pneg %p369
    $region18: #{forward.3} parent=5 // pred_check_branch
      %372 = sbr.rel (%p370) target = $region20
    $region19: #{forward.3} parent=5 // pred_region
      // Predicated region
      $region21: #{forward.3} parent=19 // pred_check
        %p373 = pneg %p38
      $region22: #{forward.3} parent=19 // pred_check_branch
        %375 = sbr.rel (%p373) target = $region24
      $region23: #{forward.3} parent=19 // pred_region
        %p376 = scmp.lt.s32.totalorder %s18, 2
        %s377 = scalar_select %p376, %s18, 2
        %s378 = smul.addr %s377, 5
        %s379 = smul.addr %s378, 4
        %s380 = scalar_lea.vmem %s0, %s379
      $region24: #{forward.3} parent=19 // pred_fallthru
        _
      // Predicated region
      $region25: #{forward.3} parent=19 // pred_check
        %p381 = pneg %p64
      $region26: #{forward.3} parent=19 // pred_check_branch
        %383 = sbr.rel (%p381) target = $region28
      $region27: #{forward.3} parent=19 // pred_region
        %p384 = scmp.lt.s32.totalorder %s18, 2
        %s385 = scalar_select %p384, %s18, 2
        %s386 = smul.addr %s385, 4
        %s387 = scalar_lea.vmem %s1, %s386
      $region28: #{forward.3} parent=19 // pred_fallthru
        _
      // Predicated region
      $region29: #{forward.3} parent=19 // pred_check
        %p388 = pneg %p111
      $region30: #{forward.3} parent=19 // pred_check_branch
        %390 = sbr.rel (%p388) target = $region32
      $region31: #{forward.3} parent=19 // pred_region
        %p391 = scmp.lt.s32.totalorder %s18, 2
        %s392 = scalar_select %p391, %s18, 2
        %s393 = smul.addr %s392, 32
        %s394 = smul.addr %s393, 4
        %s395 = scalar_lea.vmem %s3, %s394
      $region32: #{forward.3} parent=19 // pred_fallthru
        _
      // Predicated region
      $region33: #{forward.3} parent=19 // pred_check
        %p396 = pneg %p137
      $region34: #{forward.3} parent=19 // pred_check_branch
        %398 = sbr.rel (%p396) target = $region36
      $region35: #{forward.3} parent=19 // pred_region
        %p399 = scmp.lt.s32.totalorder %s18, 2
        %s400 = scalar_select %p399, %s18, 2
        %s401 = smul.addr %s400, 576
        %s402 = smul.addr %s401, 4
        %s403 = scalar_lea.vmem %s4, %s402
      $region36: #{forward.3} parent=19 // pred_fallthru
        _
      // Predicated region
      $region37: #{forward.3} parent=19 // pred_check
        %p404 = pneg %p163
      $region38: #{forward.3} parent=19 // pred_check_branch
        %406 = sbr.rel (%p404) target = $region40
      $region39: #{forward.3} parent=19 // pred_region
        %p407 = scmp.lt.s32.totalorder %s18, 2
        %s408 = scalar_select %p407, %s18, 2
        %s409 = smul.addr %s408, 64
        %s410 = smul.addr %s409, 4
        %s411 = scalar_lea.vmem %s5, %s410
      $region40: #{forward.3} parent=19 // pred_fallthru
        _
      // Predicated region
      $region41: #{forward.3} parent=19 // pred_check
        %p412 = pneg %p189
      $region42: #{forward.3} parent=19 // pred_check_branch
        %414 = sbr.rel (%p412) target = $region44
      $region43: #{forward.3} parent=19 // pred_region
        %p415 = scmp.lt.s32.totalorder %s18, 2
        %s416 = scalar_select %p415, %s18, 2
        %s417 = smul.addr %s416, 64
        %s418 = smul.addr %s417, 4
        %s419 = scalar_lea.vmem %s6, %s418
      $region44: #{forward.3} parent=19 // pred_fallthru
        _
      // Predicated region
      $region45: #{forward.3} parent=19 // pred_check
        %p420 = pneg %p215
      $region46: #{forward.3} parent=19 // pred_check_branch
        %422 = sbr.rel (%p420) target = $region48
      $region47: #{forward.3} parent=19 // pred_region
        %p423 = scmp.lt.s32.totalorder %s18, 2
        %s424 = scalar_select %p423, %s18, 2
        %s425 = smul.addr %s424, 2
        %s426 = smul.addr %s425, 2
        %s427 = scalar_lea.vmem %s7, %s426
      $region48: #{forward.3} parent=19 // pred_fallthru
        _
      // Predicated region
      $region49: #{forward.3} parent=19 // pred_check
        %p428 = pneg %p241
      $region50: #{forward.3} parent=19 // pred_check_branch
        %430 = sbr.rel (%p428) target = $region52
      $region51: #{forward.3} parent=19 // pred_region
        %p431 = scmp.lt.s32.totalorder %s18, 2
        %s432 = scalar_select %p431, %s18, 2
        %s433 = smul.addr %s432, 2
        %s434 = smul.addr %s433, 2
        %s435 = scalar_lea.vmem %s8, %s434
      $region52: #{forward.3} parent=19 // pred_fallthru
        _
      // Predicated region
      $region53: #{forward.3} parent=19 // pred_check
        %p436 = pneg %p267
      $region54: #{forward.3} parent=19 // pred_check_branch
        %438 = sbr.rel (%p436) target = $region56
      $region55: #{forward.3} parent=19 // pred_region
        %p439 = scmp.lt.s32.totalorder %s18, 2
        %s440 = scalar_select %p439, %s18, 2
        %s441 = smul.addr %s440, 128
        %s442 = smul.addr %s441, 8
        %s443 = scalar_lea.vmem %s9, %s442
      $region56: #{forward.3} parent=19 // pred_fallthru
        _
      // Predicated region
      $region57: #{forward.3} parent=19 // pred_check
        %p444 = pneg %p293
      $region58: #{forward.3} parent=19 // pred_check_branch
        %446 = sbr.rel (%p444) target = $region60
      $region59: #{forward.3} parent=19 // pred_region
        %p447 = scmp.lt.s32.totalorder %s18, 2
        %s448 = scalar_select %p447, %s18, 2
        %s449 = smul.addr %s448, 4
        %s450 = scalar_lea.vmem %s10, %s449
      $region60: #{forward.3} parent=19 // pred_fallthru
        _
      // Predicated region
      $region61: #{forward.3} parent=19 // pred_check
        %p451 = pneg %p319
      $region62: #{forward.3} parent=19 // pred_check_branch
        %453 = sbr.rel (%p451) target = $region64
      $region63: #{forward.3} parent=19 // pred_region
        %p454 = scmp.lt.s32.totalorder %s18, 2
        %s455 = scalar_select %p454, %s18, 2
        %s456 = smul.addr %s455, 4
        %s457 = scalar_lea.vmem %s11, %s456
      $region64: #{forward.3} parent=19 // pred_fallthru
        _
    $region20: #{forward.3} parent=5 // pred_fallthru
      _
    %p458 = scmp.le.s32.totalorder 1, %s18
    %p459 = scmp.lt.s32.totalorder %s18, 4
    %p460 = pnand %p458, %p459
    %p461 = pneg %p460
    // Predicated region
    $region65: #{forward.3} parent=5 // pred_check
      _
    $region66: #{forward.3} parent=5 // pred_check_branch
      %463 = sbr.rel (%p460) target = $region68
    $region67: #{forward.3} parent=5 // pred_region
      %s464 = ssub.s32 %s18, 1
      %p465 = scmp.lt.s32.totalorder %s23, 2
      %s466 = scalar_select %p465, %s23, 2
      %s467 = smul.addr %s466, 5
      %s468 = smul.addr %s467, 4
      %s469 = scalar_lea.vmem %s0, %s468
      %p470 = pneg %p44
      %p471 = pneg %p41
      %p472 = scmp.lt.s32.totalorder %s23, 2
      %s473 = scalar_select %p472, %s23, 2
      %s474 = smul.addr %s473, 4
      %s475 = scalar_lea.vmem %s1, %s474
      %p476 = pneg %p70
      %p477 = pneg %p67
      %p478 = pneg %p91
      %p479 = pneg %p88
      %p480 = scmp.lt.s32.totalorder %s23, 2
      %s481 = scalar_select %p480, %s23, 2
      %s482 = smul.addr %s481, 32
      %s483 = smul.addr %s482, 4
      %s484 = scalar_lea.vmem %s3, %s483
      %p485 = pneg %p117
      %p486 = pneg %p114
      %p487 = scmp.lt.s32.totalorder %s23, 2
      %s488 = scalar_select %p487, %s23, 2
      %s489 = smul.addr %s488, 576
      %s490 = smul.addr %s489, 4
      %s491 = scalar_lea.vmem %s4, %s490
      %p492 = pneg %p143
      %p493 = pneg %p140
      %p494 = scmp.lt.s32.totalorder %s23, 2
      %s495 = scalar_select %p494, %s23, 2
      %s496 = smul.addr %s495, 64
      %s497 = smul.addr %s496, 4
      %s498 = scalar_lea.vmem %s5, %s497
      %p499 = pneg %p169
      %p500 = pneg %p166
      %p501 = scmp.lt.s32.totalorder %s23, 2
      %s502 = scalar_select %p501, %s23, 2
      %s503 = smul.addr %s502, 64
      %s504 = smul.addr %s503, 4
      %s505 = scalar_lea.vmem %s6, %s504
      %p506 = pneg %p195
      %p507 = pneg %p192
      %p508 = scmp.lt.s32.totalorder %s23, 2
      %s509 = scalar_select %p508, %s23, 2
      %s510 = smul.addr %s509, 2
      %s511 = smul.addr %s510, 2
      %s512 = scalar_lea.vmem %s7, %s511
      %p513 = pneg %p221
      %p514 = pneg %p218
      %p515 = scmp.lt.s32.totalorder %s23, 2
      %s516 = scalar_select %p515, %s23, 2
      %s517 = smul.addr %s516, 2
      %s518 = smul.addr %s517, 2
      %s519 = scalar_lea.vmem %s8, %s518
      %p520 = pneg %p247
      %p521 = pneg %p244
      %p522 = scmp.lt.s32.totalorder %s23, 2
      %s523 = scalar_select %p522, %s23, 2
      %s524 = smul.addr %s523, 128
      %s525 = smul.addr %s524, 8
      %s526 = scalar_lea.vmem %s9, %s525
      %p527 = pneg %p273
      %p528 = pneg %p270
      %p529 = scmp.lt.s32.totalorder %s23, 2
      %s530 = scalar_select %p529, %s23, 2
      %s531 = smul.addr %s530, 4
      %s532 = scalar_lea.vmem %s10, %s531
      %p533 = pneg %p299
      %p534 = pneg %p296
      %p535 = scmp.lt.s32.totalorder %s23, 2
      %s536 = scalar_select %p535, %s23, 2
      %s537 = smul.addr %s536, 4
      %s538 = scalar_lea.vmem %s11, %s537
      %p539 = pneg %p325
      %p540 = pneg %p322
      %p541 = pneg %p351
      %p542 = pneg %p348
      %p543 = scmp.lt.s32.totalorder %s23, 2
      %s544 = scalar_select %p543, %s23, 2
      %s545 = smul.addr %s544, 4
      %s546 = scalar_lea.vmem %s12, %s545
      %p547 = scmp.lt.s32.totalorder %s23, 2
      %s548 = scalar_select %p547, %s23, 2
      %s549 = smul.addr %s548, 5
      %s550 = smul.addr %s549, 4
      %s551 = scalar_lea.vmem %s0, %s550
      %p552 = scmp.lt.s32.totalorder %s23, 2
      %s553 = scalar_select %p552, %s23, 2
      %s554 = smul.addr %s553, 4
      %s555 = scalar_lea.vmem %s1, %s554
      %p556 = scmp.lt.s32.totalorder %s23, 2
      %s557 = scalar_select %p556, %s23, 2
      %s558 = smul.addr %s557, 32
      %s559 = smul.addr %s558, 4
      %s560 = scalar_lea.vmem %s3, %s559
      %p561 = scmp.lt.s32.totalorder %s23, 2
      %s562 = scalar_select %p561, %s23, 2
      %s563 = smul.addr %s562, 576
      %s564 = smul.addr %s563, 4
      %s565 = scalar_lea.vmem %s4, %s564
      %p566 = scmp.lt.s32.totalorder %s23, 2
      %s567 = scalar_select %p566, %s23, 2
      %s568 = smul.addr %s567, 64
      %s569 = smul.addr %s568, 4
      %s570 = scalar_lea.vmem %s5, %s569
      %p571 = scmp.lt.s32.totalorder %s23, 2
      %s572 = scalar_select %p571, %s23, 2
      %s573 = smul.addr %s572, 64
      %s574 = smul.addr %s573, 4
      %s575 = scalar_lea.vmem %s6, %s574
      %p576 = scmp.lt.s32.totalorder %s23, 2
      %s577 = scalar_select %p576, %s23, 2
      %s578 = smul.addr %s577, 2
      %s579 = smul.addr %s578, 2
      %s580 = scalar_lea.vmem %s7, %s579
      %p581 = scmp.lt.s32.totalorder %s23, 2
      %s582 = scalar_select %p581, %s23, 2
      %s583 = smul.addr %s582, 2
      %s584 = smul.addr %s583, 2
      %s585 = scalar_lea.vmem %s8, %s584
      %p586 = scmp.lt.s32.totalorder %s23, 2
      %s587 = scalar_select %p586, %s23, 2
      %s588 = smul.addr %s587, 128
      %s589 = smul.addr %s588, 8
      %s590 = scalar_lea.vmem %s9, %s589
      %p591 = scmp.lt.s32.totalorder %s23, 2
      %s592 = scalar_select %p591, %s23, 2
      %s593 = smul.addr %s592, 4
      %s594 = scalar_lea.vmem %s10, %s593
      %p595 = scmp.lt.s32.totalorder %s23, 2
      %s596 = scalar_select %p595, %s23, 2
      %s597 = smul.addr %s596, 4
      %s598 = scalar_lea.vmem %s11, %s597
      %p599 = scmp.lt.s32.totalorder %s23, 2
      %s600 = scalar_select %p599, %s23, 2
      %s601 = smul.addr %s600, 4
      %s602 = scalar_lea.vmem %s12, %s601
      %v604 = vld [vmem:[%s551] sm:$0xf]
      %v605 = vld [vmem:[%s551 + $0x4] sm:$0xf]
      %v606 = vld [vmem:[%s551 + $0x8] sm:$0xf]
      %v607 = vld [vmem:[%s551 + $0xc] sm:$0xf]
      %v608 = vld [vmem:[%s551 + $0x10] sm:$0x3]
      %v609 = vld [vmem:[%s560] sm:$0xf]
      %v610 = vld [vmem:[%s560 + $0x4] sm:$0xf]
      %v611 = vld [vmem:[%s560 + $0x8] sm:$0xf]
      %v612 = vld [vmem:[%s560 + $0xc] sm:$0xf]
      %v613 = vld [vmem:[%s560 + $0x10] sm:$0xf]
      %v614 = vld [vmem:[%s560 + $0x14] sm:$0xf]
      %v615 = vld [vmem:[%s560 + $0x18] sm:$0xf]
      %v616 = vld [vmem:[%s560 + $0x1c] sm:$0xf]
      %v617 = vld [vmem:[%s560 + $0x20] sm:$0xf]
      %v618 = vld [vmem:[%s560 + $0x24] sm:$0xf]
      %v619 = vld [vmem:[%s560 + $0x28] sm:$0xf]
      %v620 = vld [vmem:[%s560 + $0x2c] sm:$0xf]
      %v621 = vld [vmem:[%s560 + $0x30] sm:$0xf]
      %v622 = vld [vmem:[%s560 + $0x34] sm:$0xf]
      %v623 = vld [vmem:[%s560 + $0x38] sm:$0xf]
      %v624 = vld [vmem:[%s560 + $0x3c] sm:$0xf]
      %v625 = vld [vmem:[%s560 + $0x40] sm:$0xf]
      %v626 = vld [vmem:[%s560 + $0x44] sm:$0xf]
      %v627 = vld [vmem:[%s560 + $0x48] sm:$0xf]
      %v628 = vld [vmem:[%s560 + $0x4c] sm:$0xf]
      %v629 = vld [vmem:[%s560 + $0x50] sm:$0xf]
      %v630 = vld [vmem:[%s560 + $0x54] sm:$0xf]
      %v631 = vld [vmem:[%s560 + $0x58] sm:$0xf]
      %v632 = vld [vmem:[%s560 + $0x5c] sm:$0xf]
      %v633 = vld [vmem:[%s560 + $0x60] sm:$0xf]
      %v634 = vld [vmem:[%s560 + $0x64] sm:$0xf]
      %v635 = vld [vmem:[%s560 + $0x68] sm:$0xf]
      %v636 = vld [vmem:[%s560 + $0x6c] sm:$0xf]
      %v637 = vld [vmem:[%s560 + $0x70] sm:$0xf]
      %v638 = vld [vmem:[%s560 + $0x74] sm:$0xf]
      %v639 = vld [vmem:[%s560 + $0x78] sm:$0xf]
      %v640 = vld [vmem:[%s560 + $0x7c] sm:$0xf]
      %v641 = vld [vmem:[%s590] sm:$0xff]
      %v642 = vld [vmem:[%s590 + $0x8] sm:$0xff]
      %v643 = vld [vmem:[%s590 + $0x10] sm:$0xff]
      %v644 = vld [vmem:[%s590 + $0x18] sm:$0xff]
      %v645 = vld [vmem:[%s590 + $0x20] sm:$0xff]
      %v646 = vld [vmem:[%s590 + $0x28] sm:$0xff]
      %v647 = vld [vmem:[%s590 + $0x30] sm:$0xff]
      %v648 = vld [vmem:[%s590 + $0x38] sm:$0xff]
      %v649 = vld [vmem:[%s590 + $0x40] sm:$0xff]
      %v650 = vld [vmem:[%s590 + $0x48] sm:$0xff]
      %v651 = vld [vmem:[%s590 + $0x50] sm:$0xff]
      %v652 = vld [vmem:[%s590 + $0x58] sm:$0xff]
      %v653 = vld [vmem:[%s590 + $0x60] sm:$0xff]
      %v654 = vld [vmem:[%s590 + $0x68] sm:$0xff]
      %v655 = vld [vmem:[%s590 + $0x70] sm:$0xff]
      %v656 = vld [vmem:[%s590 + $0x78] sm:$0xff]
      %v657 = vld [vmem:[%s590 + $0x80] sm:$0xff]
      %v658 = vld [vmem:[%s590 + $0x88] sm:$0xff]
      %v659 = vld [vmem:[%s590 + $0x90] sm:$0xff]
      %v660 = vld [vmem:[%s590 + $0x98] sm:$0xff]
      %v661 = vld [vmem:[%s590 + $0xa0] sm:$0xff]
      %v662 = vld [vmem:[%s590 + $0xa8] sm:$0xff]
      %v663 = vld [vmem:[%s590 + $0xb0] sm:$0xff]
      %v664 = vld [vmem:[%s590 + $0xb8] sm:$0xff]
      %v665 = vld [vmem:[%s590 + $0xc0] sm:$0xff]
      %v666 = vld [vmem:[%s590 + $0xc8] sm:$0xff]
      %v667 = vld [vmem:[%s590 + $0xd0] sm:$0xff]
      %v668 = vld [vmem:[%s590 + $0xd8] sm:$0xff]
      %v669 = vld [vmem:[%s590 + $0xe0] sm:$0xff]
      %v670 = vld [vmem:[%s590 + $0xe8] sm:$0xff]
      %v671 = vld [vmem:[%s590 + $0xf0] sm:$0xff]
      %v672 = vld [vmem:[%s590 + $0xf8] sm:$0xff]
      %674 = vset.pattern.permute.xlu0 0
      %675 = vperm.xlu0 %674, %v641
      %v676 = vpop.permute.xlu0 %675
      %679 = vset.pattern.permute.xlu0 0
      %680 = vperm.xlu0 %679, %v642
      %v681 = vpop.permute.xlu0 %680
      %684 = vset.pattern.permute.xlu0 0
      %685 = vperm.xlu0 %684, %v643
      %v686 = vpop.permute.xlu0 %685
      %689 = vset.pattern.permute.xlu0 0
      %690 = vperm.xlu0 %689, %v644
      %v691 = vpop.permute.xlu0 %690
      %694 = vset.pattern.permute.xlu0 0
      %695 = vperm.xlu0 %694, %v645
      %v696 = vpop.permute.xlu0 %695
      %699 = vset.pattern.permute.xlu0 0
      %700 = vperm.xlu0 %699, %v646
      %v701 = vpop.permute.xlu0 %700
      %704 = vset.pattern.permute.xlu0 0
      %705 = vperm.xlu0 %704, %v647
      %v706 = vpop.permute.xlu0 %705
      %709 = vset.pattern.permute.xlu0 0
      %710 = vperm.xlu0 %709, %v648
      %v711 = vpop.permute.xlu0 %710
      %714 = vset.pattern.permute.xlu0 0
      %715 = vperm.xlu0 %714, %v649
      %v716 = vpop.permute.xlu0 %715
      %719 = vset.pattern.permute.xlu0 0
      %720 = vperm.xlu0 %719, %v650
      %v721 = vpop.permute.xlu0 %720
      %724 = vset.pattern.permute.xlu0 0
      %725 = vperm.xlu0 %724, %v651
      %v726 = vpop.permute.xlu0 %725
      %729 = vset.pattern.permute.xlu0 0
      %730 = vperm.xlu0 %729, %v652
      %v731 = vpop.permute.xlu0 %730
      %734 = vset.pattern.permute.xlu0 0
      %735 = vperm.xlu0 %734, %v653
      %v736 = vpop.permute.xlu0 %735
      %739 = vset.pattern.permute.xlu0 0
      %740 = vperm.xlu0 %739, %v654
      %v741 = vpop.permute.xlu0 %740
      %744 = vset.pattern.permute.xlu0 0
      %745 = vperm.xlu0 %744, %v655
      %v746 = vpop.permute.xlu0 %745
      %749 = vset.pattern.permute.xlu0 0
      %750 = vperm.xlu0 %749, %v656
      %v751 = vpop.permute.xlu0 %750
      %754 = vset.pattern.permute.xlu0 0
      %755 = vperm.xlu0 %754, %v657
      %v756 = vpop.permute.xlu0 %755
      %759 = vset.pattern.permute.xlu0 0
      %760 = vperm.xlu0 %759, %v658
      %v761 = vpop.permute.xlu0 %760
      %764 = vset.pattern.permute.xlu0 0
      %765 = vperm.xlu0 %764, %v659
      %v766 = vpop.permute.xlu0 %765
      %769 = vset.pattern.permute.xlu0 0
      %770 = vperm.xlu0 %769, %v660
      %v771 = vpop.permute.xlu0 %770
      %774 = vset.pattern.permute.xlu0 0
      %775 = vperm.xlu0 %774, %v661
      %v776 = vpop.permute.xlu0 %775
      %779 = vset.pattern.permute.xlu0 0
      %780 = vperm.xlu0 %779, %v662
      %v781 = vpop.permute.xlu0 %780
      %784 = vset.pattern.permute.xlu0 0
      %785 = vperm.xlu0 %784, %v663
      %v786 = vpop.permute.xlu0 %785
      %789 = vset.pattern.permute.xlu0 0
      %790 = vperm.xlu0 %789, %v664
      %v791 = vpop.permute.xlu0 %790
      %794 = vset.pattern.permute.xlu0 0
      %795 = vperm.xlu0 %794, %v665
      %v796 = vpop.permute.xlu0 %795
      %799 = vset.pattern.permute.xlu0 0
      %800 = vperm.xlu0 %799, %v666
      %v801 = vpop.permute.xlu0 %800
      %804 = vset.pattern.permute.xlu0 0
      %805 = vperm.xlu0 %804, %v667
      %v806 = vpop.permute.xlu0 %805
      %809 = vset.pattern.permute.xlu0 0
      %810 = vperm.xlu0 %809, %v668
      %v811 = vpop.permute.xlu0 %810
      %814 = vset.pattern.permute.xlu0 0
      %815 = vperm.xlu0 %814, %v669
      %v816 = vpop.permute.xlu0 %815
      %819 = vset.pattern.permute.xlu0 0
      %820 = vperm.xlu0 %819, %v670
      %v821 = vpop.permute.xlu0 %820
      %824 = vset.pattern.permute.xlu0 0
      %825 = vperm.xlu0 %824, %v671
      %v826 = vpop.permute.xlu0 %825
      %829 = vset.pattern.permute.xlu0 0
      %830 = vperm.xlu0 %829, %v672
      %v831 = vpop.permute.xlu0 %830
      %v865 = vunpack.c.l.b16 %v609
      %v866 = vunpack.c.l.b16 %v610
      %v867 = vunpack.c.l.b16 %v611
      %v868 = vunpack.c.l.b16 %v612
      %v869 = vunpack.c.l.b16 %v613
      %v870 = vunpack.c.l.b16 %v614
      %v871 = vunpack.c.l.b16 %v615
      %v872 = vunpack.c.l.b16 %v616
      %v873 = vunpack.c.l.b16 %v617
      %v874 = vunpack.c.l.b16 %v618
      %v875 = vunpack.c.l.b16 %v619
      %v876 = vunpack.c.l.b16 %v620
      %v877 = vunpack.c.l.b16 %v621
      %v878 = vunpack.c.l.b16 %v622
      %v879 = vunpack.c.l.b16 %v623
      %v880 = vunpack.c.l.b16 %v624
      %v881 = vunpack.c.l.b16 %v625
      %v882 = vunpack.c.l.b16 %v626
      %v883 = vunpack.c.l.b16 %v627
      %v884 = vunpack.c.l.b16 %v628
      %v885 = vunpack.c.l.b16 %v629
      %v886 = vunpack.c.l.b16 %v630
      %v887 = vunpack.c.l.b16 %v631
      %v888 = vunpack.c.l.b16 %v632
      %v889 = vunpack.c.l.b16 %v633
      %v890 = vunpack.c.l.b16 %v634
      %v891 = vunpack.c.l.b16 %v635
      %v892 = vunpack.c.l.b16 %v636
      %v893 = vunpack.c.l.b16 %v637
      %v894 = vunpack.c.l.b16 %v638
      %v895 = vunpack.c.l.b16 %v639
      %v896 = vunpack.c.l.b16 %v640
      %v897 = vpack.c.b16 %v866, %v865
      %v898 = vpack.c.b16 %v868, %v867
      %v899 = vpack.c.b16 %v870, %v869
      %v900 = vpack.c.b16 %v872, %v871
      %v901 = vpack.c.b16 %v874, %v873
      %v902 = vpack.c.b16 %v876, %v875
      %v903 = vpack.c.b16 %v878, %v877
      %v904 = vpack.c.b16 %v880, %v879
      %v905 = vpack.c.b16 %v882, %v881
      %v906 = vpack.c.b16 %v884, %v883
      %v907 = vpack.c.b16 %v886, %v885
      %v908 = vpack.c.b16 %v888, %v887
      %v909 = vpack.c.b16 %v890, %v889
      %v910 = vpack.c.b16 %v892, %v891
      %v911 = vpack.c.b16 %v894, %v893
      %v912 = vpack.c.b16 %v896, %v895
      %v918 = vunpack.c.l.b16 %v604
      %v919 = vunpack.c.l.b16 %v605
      %v920 = vunpack.c.l.b16 %v606
      %v921 = vunpack.c.l.b16 %v607
      %v922 = vunpack.c.l.b16 %v608
      %v923 = vpack.c.b16 %v919, %v918
      %v924 = vpack.c.b16 %v921, %v920
      %v925 = vpack.c.b16 %v922, %v922
      %vm928 = vcmask 293888
      %v930 = vsel %vm928, %v897, 0
      %v933 = vsel %vm928, %v898, 0
      %v936 = vsel %vm928, %v899, 0
      %v939 = vsel %vm928, %v900, 0
      %v942 = vsel %vm928, %v901, 0
      %v945 = vsel %vm928, %v902, 0
      %v948 = vsel %vm928, %v903, 0
      %v951 = vsel %vm928, %v904, 0
      %v954 = vsel %vm928, %v905, 0
      %v957 = vsel %vm928, %v906, 0
      %v960 = vsel %vm928, %v907, 0
      %v963 = vsel %vm928, %v908, 0
      %v966 = vsel %vm928, %v909, 0
      %v969 = vsel %vm928, %v910, 0
      %v972 = vsel %vm928, %v911, 0
      %v975 = vsel %vm928, %v912, 0
      %vm977 = vcmask 1041408
      %v979 = vsel %vm977, %v925, 0
      %981 = vmatprep.subr.bf16.mxu0 0
      %982 = vmatpush1.bf16.msra.mxu0 0
      %983 = vmatprep.subr.bf16.mxu0 0
      %984 = vmatpush1.bf16.msra.mxu0 0
      %985 = vmatprep.subr.bf16.mxu0 0
      %986 = vmatpush1.bf16.msra.mxu0 0
      %987 = vmatprep.subr.bf16.mxu0 0
      %988 = vmatpush1.bf16.msra.mxu0 0
      %989 = vmatprep.subr.bf16.mxu0 0
      %990 = vmatpush1.bf16.msra.mxu0 0
      %991 = vmatprep.subr.bf16.mxu0 0
      %992 = vmatpush1.bf16.msra.mxu0 %v979
      %993 = vmatprep.subr.bf16.mxu0 0
      %994 = vmatpush1.bf16.msra.mxu0 %v924
      %995 = vmatprep.subr.bf16.mxu0 0
      %996 = vmatpush1.bf16.msra.mxu0 %v923
      %997 = vmatprep.subr.bf16.mxu0 0
      %998 = vmatpush2.bf16.msra.mxu0 0
      %999 = vmatprep.subr.bf16.mxu0 0
      %1000 = vmatpush2.bf16.msra.mxu0 0
      %1001 = vmatprep.subr.bf16.mxu0 0
      %1002 = vmatpush2.bf16.msra.mxu0 0
      %1003 = vmatprep.subr.bf16.mxu0 0
      %1004 = vmatpush2.bf16.msra.mxu0 0
      %1005 = vmatprep.subr.bf16.mxu0 0
      %1006 = vmatpush2.bf16.msra.mxu0 0
      %1007 = vmatprep.subr.bf16.mxu0 0
      %1008 = vmatpush2.bf16.msra.mxu0 0
      %1009 = vmatprep.subr.bf16.mxu0 0
      %1010 = vmatpush2.bf16.msra.mxu0 0
      %1011 = vmatprep.subr.bf16.mxu0 0
      %1012 = vmatpush2.bf16.msra.mxu0 0
      %1013 = vmatprep.mubr.bf16.mxu0 0
      %1014 = vmatmul.mubr.bf16.gmra.mxu0 %v930
      %v1015 = vpop.f32.mrf.mxu0
      %v1016 = vadd.f32 %v676, %v1015
      %v1017 = vpop.f32.mrf.mxu0
      %v1018 = vpop.f32.mrf.mxu0
      %v1019 = vadd.f32 %v681, %v1018
      %v1020 = vpop.f32.mrf.mxu0
      %1021 = vmatprep.mubr.bf16.mxu0 0
      %1022 = vmatmul.mubr.bf16.gmra.mxu0 %v933
      %v1023 = vpop.f32.mrf.mxu0
      %v1024 = vadd.f32 %v686, %v1023
      %v1025 = vpop.f32.mrf.mxu0
      %v1026 = vpop.f32.mrf.mxu0
      %v1027 = vadd.f32 %v691, %v1026
      %v1028 = vpop.f32.mrf.mxu0
      %1029 = vmatprep.mubr.bf16.mxu0 0
      %1030 = vmatmul.mubr.bf16.gmra.mxu0 %v936
      %v1031 = vpop.f32.mrf.mxu0
      %v1032 = vadd.f32 %v696, %v1031
      %v1033 = vpop.f32.mrf.mxu0
      %v1034 = vpop.f32.mrf.mxu0
      %v1035 = vadd.f32 %v701, %v1034
      %v1036 = vpop.f32.mrf.mxu0
      %1037 = vmatprep.mubr.bf16.mxu0 0
      %1038 = vmatmul.mubr.bf16.gmra.mxu0 %v939
      %v1039 = vpop.f32.mrf.mxu0
      %v1040 = vadd.f32 %v706, %v1039
      %v1041 = vpop.f32.mrf.mxu0
      %v1042 = vpop.f32.mrf.mxu0
      %v1043 = vadd.f32 %v711, %v1042
      %v1044 = vpop.f32.mrf.mxu0
      %1045 = vmatprep.mubr.bf16.mxu0 0
      %1046 = vmatmul.mubr.bf16.gmra.mxu0 %v942
      %v1047 = vpop.f32.mrf.mxu0
      %v1048 = vadd.f32 %v716, %v1047
      %v1049 = vpop.f32.mrf.mxu0
      %v1050 = vpop.f32.mrf.mxu0
      %v1051 = vadd.f32 %v721, %v1050
      %v1052 = vpop.f32.mrf.mxu0
      %1053 = vmatprep.mubr.bf16.mxu0 0
      %1054 = vmatmul.mubr.bf16.gmra.mxu0 %v945
      %v1055 = vpop.f32.mrf.mxu0
      %v1056 = vadd.f32 %v726, %v1055
      %v1057 = vpop.f32.mrf.mxu0
      %v1058 = vpop.f32.mrf.mxu0
      %v1059 = vadd.f32 %v731, %v1058
      %v1060 = vpop.f32.mrf.mxu0
      %1061 = vmatprep.mubr.bf16.mxu0 0
      %1062 = vmatmul.mubr.bf16.gmra.mxu0 %v948
      %v1063 = vpop.f32.mrf.mxu0
      %v1064 = vadd.f32 %v736, %v1063
      %v1065 = vpop.f32.mrf.mxu0
      %v1066 = vpop.f32.mrf.mxu0
      %v1067 = vadd.f32 %v741, %v1066
      %v1068 = vpop.f32.mrf.mxu0
      %1069 = vmatprep.mubr.bf16.mxu0 0
      %1070 = vmatmul.mubr.bf16.gmra.mxu0 %v951
      %v1071 = vpop.f32.mrf.mxu0
      %v1072 = vadd.f32 %v746, %v1071
      %v1073 = vpop.f32.mrf.mxu0
      %v1074 = vpop.f32.mrf.mxu0
      %v1075 = vadd.f32 %v751, %v1074
      %v1076 = vpop.f32.mrf.mxu0
      %1077 = vmatprep.mubr.bf16.mxu0 0
      %1078 = vmatmul.mubr.bf16.gmra.mxu0 %v954
      %v1079 = vpop.f32.mrf.mxu0
      %v1080 = vadd.f32 %v756, %v1079
      %v1081 = vpop.f32.mrf.mxu0
      %v1082 = vpop.f32.mrf.mxu0
      %v1083 = vadd.f32 %v761, %v1082
      %v1084 = vpop.f32.mrf.mxu0
      %1085 = vmatprep.mubr.bf16.mxu0 0
      %1086 = vmatmul.mubr.bf16.gmra.mxu0 %v957
      %v1087 = vpop.f32.mrf.mxu0
      %v1088 = vadd.f32 %v766, %v1087
      %v1089 = vpop.f32.mrf.mxu0
      %v1090 = vpop.f32.mrf.mxu0
      %v1091 = vadd.f32 %v771, %v1090
      %v1092 = vpop.f32.mrf.mxu0
      %1093 = vmatprep.mubr.bf16.mxu0 0
      %1094 = vmatmul.mubr.bf16.gmra.mxu0 %v960
      %v1095 = vpop.f32.mrf.mxu0
      %v1096 = vadd.f32 %v776, %v1095
      %v1097 = vpop.f32.mrf.mxu0
      %v1098 = vpop.f32.mrf.mxu0
      %v1099 = vadd.f32 %v781, %v1098
      %v1100 = vpop.f32.mrf.mxu0
      %1101 = vmatprep.mubr.bf16.mxu0 0
      %1102 = vmatmul.mubr.bf16.gmra.mxu0 %v963
      %v1103 = vpop.f32.mrf.mxu0
      %v1104 = vadd.f32 %v786, %v1103
      %v1105 = vpop.f32.mrf.mxu0
      %v1106 = vpop.f32.mrf.mxu0
      %v1107 = vadd.f32 %v791, %v1106
      %v1108 = vpop.f32.mrf.mxu0
      %1109 = vmatprep.mubr.bf16.mxu0 0
      %1110 = vmatmul.mubr.bf16.gmra.mxu0 %v966
      %v1111 = vpop.f32.mrf.mxu0
      %v1112 = vadd.f32 %v796, %v1111
      %v1113 = vpop.f32.mrf.mxu0
      %v1114 = vpop.f32.mrf.mxu0
      %v1115 = vadd.f32 %v801, %v1114
      %v1116 = vpop.f32.mrf.mxu0
      %1117 = vmatprep.mubr.bf16.mxu0 0
      %1118 = vmatmul.mubr.bf16.gmra.mxu0 %v969
      %v1119 = vpop.f32.mrf.mxu0
      %v1120 = vadd.f32 %v806, %v1119
      %v1121 = vpop.f32.mrf.mxu0
      %v1122 = vpop.f32.mrf.mxu0
      %v1123 = vadd.f32 %v811, %v1122
      %v1124 = vpop.f32.mrf.mxu0
      %1125 = vmatprep.mubr.bf16.mxu0 0
      %1126 = vmatmul.mubr.bf16.gmra.mxu0 %v972
      %v1127 = vpop.f32.mrf.mxu0
      %v1128 = vadd.f32 %v816, %v1127
      %v1129 = vpop.f32.mrf.mxu0
      %v1130 = vpop.f32.mrf.mxu0
      %v1131 = vadd.f32 %v821, %v1130
      %v1132 = vpop.f32.mrf.mxu0
      %1133 = vmatprep.mubr.bf16.mxu0 0
      %1134 = vmatmul.mubr.bf16.gmra.mxu0 %v975
      %v1135 = vpop.f32.mrf.mxu0
      %v1136 = vadd.f32 %v826, %v1135
      %v1137 = vpop.f32.mrf.mxu0
      %v1138 = vpop.f32.mrf.mxu0
      %v1139 = vadd.f32 %v831, %v1138
      %v1140 = vpop.f32.mrf.mxu0
      %1141 = vdwg.mxu0
      %vm1142 = vcmp.ge.f32.partialorder %v1016, 0.0
      %vm1143 = vcmp.ge.f32.partialorder %v1019, 0.0
      %vm1144 = vcmp.ge.f32.partialorder %v1024, 0.0
      %vm1145 = vcmp.ge.f32.partialorder %v1027, 0.0
      %vm1146 = vcmp.ge.f32.partialorder %v1032, 0.0
      %vm1147 = vcmp.ge.f32.partialorder %v1035, 0.0
      %vm1148 = vcmp.ge.f32.partialorder %v1040, 0.0
      %vm1149 = vcmp.ge.f32.partialorder %v1043, 0.0
      %vm1150 = vcmp.ge.f32.partialorder %v1048, 0.0
      %vm1151 = vcmp.ge.f32.partialorder %v1051, 0.0
      %vm1152 = vcmp.ge.f32.partialorder %v1056, 0.0
      %vm1153 = vcmp.ge.f32.partialorder %v1059, 0.0
      %vm1154 = vcmp.ge.f32.partialorder %v1064, 0.0
      %vm1155 = vcmp.ge.f32.partialorder %v1067, 0.0
      %vm1156 = vcmp.ge.f32.partialorder %v1072, 0.0
      %vm1157 = vcmp.ge.f32.partialorder %v1075, 0.0
      %vm1158 = vcmp.ge.f32.partialorder %v1080, 0.0
      %vm1159 = vcmp.ge.f32.partialorder %v1083, 0.0
      %vm1160 = vcmp.ge.f32.partialorder %v1088, 0.0
      %vm1161 = vcmp.ge.f32.partialorder %v1091, 0.0
      %vm1162 = vcmp.ge.f32.partialorder %v1096, 0.0
      %vm1163 = vcmp.ge.f32.partialorder %v1099, 0.0
      %vm1164 = vcmp.ge.f32.partialorder %v1104, 0.0
      %vm1165 = vcmp.ge.f32.partialorder %v1107, 0.0
      %vm1166 = vcmp.ge.f32.partialorder %v1112, 0.0
      %vm1167 = vcmp.ge.f32.partialorder %v1115, 0.0
      %vm1168 = vcmp.ge.f32.partialorder %v1120, 0.0
      %vm1169 = vcmp.ge.f32.partialorder %v1123, 0.0
      %vm1170 = vcmp.ge.f32.partialorder %v1128, 0.0
      %vm1171 = vcmp.ge.f32.partialorder %v1131, 0.0
      %vm1172 = vcmp.ge.f32.partialorder %v1136, 0.0
      %vm1173 = vcmp.ge.f32.partialorder %v1139, 0.0
      %v1174 = vmul.f32 %v1016, 0.01
      %v1175 = vmul.f32 %v1019, 0.01
      %v1176 = vmul.f32 %v1024, 0.01
      %v1177 = vmul.f32 %v1027, 0.01
      %v1178 = vmul.f32 %v1032, 0.01
      %v1179 = vmul.f32 %v1035, 0.01
      %v1180 = vmul.f32 %v1040, 0.01
      %v1181 = vmul.f32 %v1043, 0.01
      %v1182 = vmul.f32 %v1048, 0.01
      %v1183 = vmul.f32 %v1051, 0.01
      %v1184 = vmul.f32 %v1056, 0.01
      %v1185 = vmul.f32 %v1059, 0.01
      %v1186 = vmul.f32 %v1064, 0.01
      %v1187 = vmul.f32 %v1067, 0.01
      %v1188 = vmul.f32 %v1072, 0.01
      %v1189 = vmul.f32 %v1075, 0.01
      %v1190 = vmul.f32 %v1080, 0.01
      %v1191 = vmul.f32 %v1083, 0.01
      %v1192 = vmul.f32 %v1088, 0.01
      %v1193 = vmul.f32 %v1091, 0.01
      %v1194 = vmul.f32 %v1096, 0.01
      %v1195 = vmul.f32 %v1099, 0.01
      %v1196 = vmul.f32 %v1104, 0.01
      %v1197 = vmul.f32 %v1107, 0.01
      %v1198 = vmul.f32 %v1112, 0.01
      %v1199 = vmul.f32 %v1115, 0.01
      %v1200 = vmul.f32 %v1120, 0.01
      %v1201 = vmul.f32 %v1123, 0.01
      %v1202 = vmul.f32 %v1128, 0.01
      %v1203 = vmul.f32 %v1131, 0.01
      %v1204 = vmul.f32 %v1136, 0.01
      %v1205 = vmul.f32 %v1139, 0.01
      %v1206 = vsel %vm1142, %v1016, %v1174
      %v1207 = vsel %vm1143, %v1019, %v1175
      %v1208 = vsel %vm1144, %v1024, %v1176
      %v1209 = vsel %vm1145, %v1027, %v1177
      %v1210 = vsel %vm1146, %v1032, %v1178
      %v1211 = vsel %vm1147, %v1035, %v1179
      %v1212 = vsel %vm1148, %v1040, %v1180
      %v1213 = vsel %vm1149, %v1043, %v1181
      %v1214 = vsel %vm1150, %v1048, %v1182
      %v1215 = vsel %vm1151, %v1051, %v1183
      %v1216 = vsel %vm1152, %v1056, %v1184
      %v1217 = vsel %vm1153, %v1059, %v1185
      %v1218 = vsel %vm1154, %v1064, %v1186
      %v1219 = vsel %vm1155, %v1067, %v1187
      %v1220 = vsel %vm1156, %v1072, %v1188
      %v1221 = vsel %vm1157, %v1075, %v1189
      %v1222 = vsel %vm1158, %v1080, %v1190
      %v1223 = vsel %vm1159, %v1083, %v1191
      %v1224 = vsel %vm1160, %v1088, %v1192
      %v1225 = vsel %vm1161, %v1091, %v1193
      %v1226 = vsel %vm1162, %v1096, %v1194
      %v1227 = vsel %vm1163, %v1099, %v1195
      %v1228 = vsel %vm1164, %v1104, %v1196
      %v1229 = vsel %vm1165, %v1107, %v1197
      %v1230 = vsel %vm1166, %v1112, %v1198
      %v1231 = vsel %vm1167, %v1115, %v1199
      %v1232 = vsel %vm1168, %v1120, %v1200
      %v1233 = vsel %vm1169, %v1123, %v1201
      %v1234 = vsel %vm1170, %v1128, %v1202
      %v1235 = vsel %vm1171, %v1131, %v1203
      %v1236 = vsel %vm1172, %v1136, %v1204
      %v1237 = vsel %vm1173, %v1139, %v1205
      %v1238 = vpack.c.bf16 %v1207, %v1206
      %v1239 = vpack.c.bf16 %v1209, %v1208
      %v1240 = vpack.c.bf16 %v1211, %v1210
      %v1241 = vpack.c.bf16 %v1213, %v1212
      %v1242 = vpack.c.bf16 %v1215, %v1214
      %v1243 = vpack.c.bf16 %v1217, %v1216
      %v1244 = vpack.c.bf16 %v1219, %v1218
      %v1245 = vpack.c.bf16 %v1221, %v1220
      %v1246 = vpack.c.bf16 %v1223, %v1222
      %v1247 = vpack.c.bf16 %v1225, %v1224
      %v1248 = vpack.c.bf16 %v1227, %v1226
      %v1249 = vpack.c.bf16 %v1229, %v1228
      %v1250 = vpack.c.bf16 %v1231, %v1230
      %v1251 = vpack.c.bf16 %v1233, %v1232
      %v1252 = vpack.c.bf16 %v1235, %v1234
      %v1253 = vpack.c.bf16 %v1237, %v1236
      %v1254 = vld [vmem:[%s2] sm:$0xf]
      %v1255 = vld [vmem:[%s2 + $0x4] sm:$0xf]
      %v1256 = vld [vmem:[%s2 + $0x8] sm:$0xf]
      %v1257 = vld [vmem:[%s2 + $0xc] sm:$0xf]
      %v1258 = vld [vmem:[%s2 + $0x10] sm:$0xf]
      %v1259 = vld [vmem:[%s2 + $0x14] sm:$0xf]
      %v1260 = vld [vmem:[%s2 + $0x18] sm:$0xf]
      %v1261 = vld [vmem:[%s2 + $0x1c] sm:$0xf]
      %v1262 = vld [vmem:[%s2 + $0x20] sm:$0xf]
      %v1263 = vld [vmem:[%s2 + $0x24] sm:$0xf]
      %v1264 = vld [vmem:[%s2 + $0x28] sm:$0xf]
      %v1265 = vld [vmem:[%s2 + $0x2c] sm:$0xf]
      %v1266 = vld [vmem:[%s2 + $0x30] sm:$0xf]
      %v1267 = vld [vmem:[%s2 + $0x34] sm:$0xf]
      %v1268 = vld [vmem:[%s2 + $0x38] sm:$0xf]
      %v1269 = vld [vmem:[%s2 + $0x3c] sm:$0xf]
      %v1286 = vunpack.c.l.b16 %v1254
      %v1287 = vunpack.c.l.b16 %v1255
      %v1288 = vunpack.c.l.b16 %v1256
      %v1289 = vunpack.c.l.b16 %v1257
      %v1290 = vunpack.c.l.b16 %v1258
      %v1291 = vunpack.c.l.b16 %v1259
      %v1292 = vunpack.c.l.b16 %v1260
      %v1293 = vunpack.c.l.b16 %v1261
      %v1294 = vunpack.c.l.b16 %v1262
      %v1295 = vunpack.c.l.b16 %v1263
      %v1296 = vunpack.c.l.b16 %v1264
      %v1297 = vunpack.c.l.b16 %v1265
      %v1298 = vunpack.c.l.b16 %v1266
      %v1299 = vunpack.c.l.b16 %v1267
      %v1300 = vunpack.c.l.b16 %v1268
      %v1301 = vunpack.c.l.b16 %v1269
      %v1302 = vpack.c.b16 %v1287, %v1286
      %v1303 = vpack.c.b16 %v1289, %v1288
      %v1304 = vpack.c.b16 %v1291, %v1290
      %v1305 = vpack.c.b16 %v1293, %v1292
      %v1306 = vpack.c.b16 %v1295, %v1294
      %v1307 = vpack.c.b16 %v1297, %v1296
      %v1308 = vpack.c.b16 %v1299, %v1298
      %v1309 = vpack.c.b16 %v1301, %v1300
      %1318 = vmatprep.subr.bf16.mxu0 0
      %1319 = vmatpush1.bf16.msra.mxu0 %v1309
      %1320 = vmatprep.subr.bf16.mxu0 0
      %1321 = vmatpush1.bf16.msra.mxu0 %v1308
      %1322 = vmatprep.subr.bf16.mxu0 0
      %1323 = vmatpush1.bf16.msra.mxu0 %v1307
      %1324 = vmatprep.subr.bf16.mxu0 0
      %1325 = vmatpush1.bf16.msra.mxu0 %v1306
      %1326 = vmatprep.subr.bf16.mxu0 0
      %1327 = vmatpush1.bf16.msra.mxu0 %v1305
      %1328 = vmatprep.subr.bf16.mxu0 0
      %1329 = vmatpush1.bf16.msra.mxu0 %v1304
      %1330 = vmatprep.subr.bf16.mxu0 0
      %1331 = vmatpush1.bf16.msra.mxu0 %v1303
      %1332 = vmatprep.subr.bf16.mxu0 0
      %1333 = vmatpush1.bf16.msra.mxu0 %v1302
      %1334 = vmatprep.subr.bf16.mxu0 0
      %1335 = vmatpush2.bf16.msra.mxu0 0
      %1336 = vmatprep.subr.bf16.mxu0 0
      %1337 = vmatpush2.bf16.msra.mxu0 0
      %1338 = vmatprep.subr.bf16.mxu0 0
      %1339 = vmatpush2.bf16.msra.mxu0 0
      %1340 = vmatprep.subr.bf16.mxu0 0
      %1341 = vmatpush2.bf16.msra.mxu0 0
      %1342 = vmatprep.subr.bf16.mxu0 0
      %1343 = vmatpush2.bf16.msra.mxu0 0
      %1344 = vmatprep.subr.bf16.mxu0 0
      %1345 = vmatpush2.bf16.msra.mxu0 0
      %1346 = vmatprep.subr.bf16.mxu0 0
      %1347 = vmatpush2.bf16.msra.mxu0 0
      %1348 = vmatprep.subr.bf16.mxu0 0
      %1349 = vmatpush2.bf16.msra.mxu0 0
      %1350 = vmatprep.mubr.bf16.mxu0 0
      %1351 = vmatmul.mubr.bf16.gmra.mxu0 %v1238
      %v1352 = vpop.f32.mrf.mxu0
      %v1353 = vadd.f32 0.0, %v1352
      %v1354 = vpop.f32.mrf.mxu0
      %v1355 = vpop.f32.mrf.mxu0
      %v1356 = vadd.f32 0.0, %v1355
      %v1357 = vpop.f32.mrf.mxu0
      %1358 = vmatprep.mubr.bf16.mxu0 0
      %1359 = vmatmul.mubr.bf16.gmra.mxu0 %v1239
      %v1360 = vpop.f32.mrf.mxu0
      %v1361 = vadd.f32 0.0, %v1360
      %v1362 = vpop.f32.mrf.mxu0
      %v1363 = vpop.f32.mrf.mxu0
      %v1364 = vadd.f32 0.0, %v1363
      %v1365 = vpop.f32.mrf.mxu0
      %1366 = vmatprep.mubr.bf16.mxu0 0
      %1367 = vmatmul.mubr.bf16.gmra.mxu0 %v1240
      %v1368 = vpop.f32.mrf.mxu0
      %v1369 = vadd.f32 0.0, %v1368
      %v1370 = vpop.f32.mrf.mxu0
      %v1371 = vpop.f32.mrf.mxu0
      %v1372 = vadd.f32 0.0, %v1371
      %v1373 = vpop.f32.mrf.mxu0
      %1374 = vmatprep.mubr.bf16.mxu0 0
      %1375 = vmatmul.mubr.bf16.gmra.mxu0 %v1241
      %v1376 = vpop.f32.mrf.mxu0
      %v1377 = vadd.f32 0.0, %v1376
      %v1378 = vpop.f32.mrf.mxu0
      %v1379 = vpop.f32.mrf.mxu0
      %v1380 = vadd.f32 0.0, %v1379
      %v1381 = vpop.f32.mrf.mxu0
      %1382 = vmatprep.mubr.bf16.mxu0 0
      %1383 = vmatmul.mubr.bf16.gmra.mxu0 %v1242
      %v1384 = vpop.f32.mrf.mxu0
      %v1385 = vadd.f32 0.0, %v1384
      %v1386 = vpop.f32.mrf.mxu0
      %v1387 = vpop.f32.mrf.mxu0
      %v1388 = vadd.f32 0.0, %v1387
      %v1389 = vpop.f32.mrf.mxu0
      %1390 = vmatprep.mubr.bf16.mxu0 0
      %1391 = vmatmul.mubr.bf16.gmra.mxu0 %v1243
      %v1392 = vpop.f32.mrf.mxu0
      %v1393 = vadd.f32 0.0, %v1392
      %v1394 = vpop.f32.mrf.mxu0
      %v1395 = vpop.f32.mrf.mxu0
      %v1396 = vadd.f32 0.0, %v1395
      %v1397 = vpop.f32.mrf.mxu0
      %1398 = vmatprep.mubr.bf16.mxu0 0
      %1399 = vmatmul.mubr.bf16.gmra.mxu0 %v1244
      %v1400 = vpop.f32.mrf.mxu0
      %v1401 = vadd.f32 0.0, %v1400
      %v1402 = vpop.f32.mrf.mxu0
      %v1403 = vpop.f32.mrf.mxu0
      %v1404 = vadd.f32 0.0, %v1403
      %v1405 = vpop.f32.mrf.mxu0
      %1406 = vmatprep.mubr.bf16.mxu0 0
      %1407 = vmatmul.mubr.bf16.gmra.mxu0 %v1245
      %v1408 = vpop.f32.mrf.mxu0
      %v1409 = vadd.f32 0.0, %v1408
      %v1410 = vpop.f32.mrf.mxu0
      %v1411 = vpop.f32.mrf.mxu0
      %v1412 = vadd.f32 0.0, %v1411
      %v1413 = vpop.f32.mrf.mxu0
      %1414 = vmatprep.mubr.bf16.mxu0 0
      %1415 = vmatmul.mubr.bf16.gmra.mxu0 %v1246
      %v1416 = vpop.f32.mrf.mxu0
      %v1417 = vadd.f32 0.0, %v1416
      %v1418 = vpop.f32.mrf.mxu0
      %v1419 = vpop.f32.mrf.mxu0
      %v1420 = vadd.f32 0.0, %v1419
      %v1421 = vpop.f32.mrf.mxu0
      %1422 = vmatprep.mubr.bf16.mxu0 0
      %1423 = vmatmul.mubr.bf16.gmra.mxu0 %v1247
      %v1424 = vpop.f32.mrf.mxu0
      %v1425 = vadd.f32 0.0, %v1424
      %v1426 = vpop.f32.mrf.mxu0
      %v1427 = vpop.f32.mrf.mxu0
      %v1428 = vadd.f32 0.0, %v1427
      %v1429 = vpop.f32.mrf.mxu0
      %1430 = vmatprep.mubr.bf16.mxu0 0
      %1431 = vmatmul.mubr.bf16.gmra.mxu0 %v1248
      %v1432 = vpop.f32.mrf.mxu0
      %v1433 = vadd.f32 0.0, %v1432
      %v1434 = vpop.f32.mrf.mxu0
      %v1435 = vpop.f32.mrf.mxu0
      %v1436 = vadd.f32 0.0, %v1435
      %v1437 = vpop.f32.mrf.mxu0
      %1438 = vmatprep.mubr.bf16.mxu0 0
      %1439 = vmatmul.mubr.bf16.gmra.mxu0 %v1249
      %v1440 = vpop.f32.mrf.mxu0
      %v1441 = vadd.f32 0.0, %v1440
      %v1442 = vpop.f32.mrf.mxu0
      %v1443 = vpop.f32.mrf.mxu0
      %v1444 = vadd.f32 0.0, %v1443
      %v1445 = vpop.f32.mrf.mxu0
      %1446 = vmatprep.mubr.bf16.mxu0 0
      %1447 = vmatmul.mubr.bf16.gmra.mxu0 %v1250
      %v1448 = vpop.f32.mrf.mxu0
      %v1449 = vadd.f32 0.0, %v1448
      %v1450 = vpop.f32.mrf.mxu0
      %v1451 = vpop.f32.mrf.mxu0
      %v1452 = vadd.f32 0.0, %v1451
      %v1453 = vpop.f32.mrf.mxu0
      %1454 = vmatprep.mubr.bf16.mxu0 0
      %1455 = vmatmul.mubr.bf16.gmra.mxu0 %v1251
      %v1456 = vpop.f32.mrf.mxu0
      %v1457 = vadd.f32 0.0, %v1456
      %v1458 = vpop.f32.mrf.mxu0
      %v1459 = vpop.f32.mrf.mxu0
      %v1460 = vadd.f32 0.0, %v1459
      %v1461 = vpop.f32.mrf.mxu0
      %1462 = vmatprep.mubr.bf16.mxu0 0
      %1463 = vmatmul.mubr.bf16.gmra.mxu0 %v1252
      %v1464 = vpop.f32.mrf.mxu0
      %v1465 = vadd.f32 0.0, %v1464
      %v1466 = vpop.f32.mrf.mxu0
      %v1467 = vpop.f32.mrf.mxu0
      %v1468 = vadd.f32 0.0, %v1467
      %v1469 = vpop.f32.mrf.mxu0
      %1470 = vmatprep.mubr.bf16.mxu0 0
      %1471 = vmatmul.mubr.bf16.gmra.mxu0 %v1253
      %v1472 = vpop.f32.mrf.mxu0
      %v1473 = vadd.f32 0.0, %v1472
      %v1474 = vpop.f32.mrf.mxu0
      %v1475 = vpop.f32.mrf.mxu0
      %v1476 = vadd.f32 0.0, %v1475
      %v1477 = vpop.f32.mrf.mxu0
      %1478 = vdwg.mxu0
      %v1479 = vld [vmem:[%s565] sm:$0xff]
      %v1480 = vld [vmem:[%s565 + $0x8] sm:$0xff]
      %v1481 = vld [vmem:[%s565 + $0x10] sm:$0xff]
      %v1482 = vld [vmem:[%s565 + $0x18] sm:$0xff]
      %v1483 = vld [vmem:[%s565 + $0x20] sm:$0xff]
      %v1484 = vld [vmem:[%s565 + $0x28] sm:$0xff]
      %v1485 = vld [vmem:[%s565 + $0x30] sm:$0xff]
      %v1486 = vld [vmem:[%s565 + $0x38] sm:$0xff]
      %v1487 = vld [vmem:[%s565 + $0x40] sm:$0xff]
      %v1488 = vld [vmem:[%s565 + $0x48] sm:$0xff]
      %v1489 = vld [vmem:[%s565 + $0x50] sm:$0xff]
      %v1490 = vld [vmem:[%s565 + $0x58] sm:$0xff]
      %v1491 = vld [vmem:[%s565 + $0x60] sm:$0xff]
      %v1492 = vld [vmem:[%s565 + $0x68] sm:$0xff]
      %v1493 = vld [vmem:[%s565 + $0x70] sm:$0xff]
      %v1494 = vld [vmem:[%s565 + $0x78] sm:$0xff]
      %v1495 = vld [vmem:[%s565 + $0x80] sm:$0xff]
      %v1496 = vld [vmem:[%s565 + $0x88] sm:$0xff]
      %v1497 = vld [vmem:[%s565 + $0x90] sm:$0xff]
      %v1498 = vld [vmem:[%s565 + $0x98] sm:$0xff]
      %v1499 = vld [vmem:[%s565 + $0xa0] sm:$0xff]
      %v1500 = vld [vmem:[%s565 + $0xa8] sm:$0xff]
      %v1501 = vld [vmem:[%s565 + $0xb0] sm:$0xff]
      %v1502 = vld [vmem:[%s565 + $0xb8] sm:$0xff]
      %v1503 = vld [vmem:[%s565 + $0xc0] sm:$0xff]
      %v1504 = vld [vmem:[%s565 + $0xc8] sm:$0xff]
      %v1505 = vld [vmem:[%s565 + $0xd0] sm:$0xff]
      %v1506 = vld [vmem:[%s565 + $0xd8] sm:$0xff]
      %v1507 = vld [vmem:[%s565 + $0xe0] sm:$0xff]
      %v1508 = vld [vmem:[%s565 + $0xe8] sm:$0xff]
      %v1509 = vld [vmem:[%s565 + $0xf0] sm:$0xff]
      %v1510 = vld [vmem:[%s565 + $0xf8] sm:$0xff]
      %v1511 = vpack.c.bf16 %v1356, %v1353
      %v1512 = vpack.c.bf16 %v1364, %v1361
      %v1513 = vpack.c.bf16 %v1372, %v1369
      %v1514 = vpack.c.bf16 %v1380, %v1377
      %v1515 = vpack.c.bf16 %v1388, %v1385
      %v1516 = vpack.c.bf16 %v1396, %v1393
      %v1517 = vpack.c.bf16 %v1404, %v1401
      %v1518 = vpack.c.bf16 %v1412, %v1409
      %v1519 = vpack.c.bf16 %v1420, %v1417
      %v1520 = vpack.c.bf16 %v1428, %v1425
      %v1521 = vpack.c.bf16 %v1436, %v1433
      %v1522 = vpack.c.bf16 %v1444, %v1441
      %v1523 = vpack.c.bf16 %v1452, %v1449
      %v1524 = vpack.c.bf16 %v1460, %v1457
      %v1525 = vpack.c.bf16 %v1468, %v1465
      %v1526 = vpack.c.bf16 %v1476, %v1473
      %s1527 = scalar_lea.vmem %s2, 64
      %v1528 = vld [vmem:[%s1527] sm:$0xf]
      %v1529 = vld [vmem:[%s1527 + $0x4] sm:$0xf]
      %v1530 = vld [vmem:[%s1527 + $0x8] sm:$0xf]
      %v1531 = vld [vmem:[%s1527 + $0xc] sm:$0xf]
      %v1532 = vld [vmem:[%s1527 + $0x10] sm:$0xf]
      %v1533 = vld [vmem:[%s1527 + $0x14] sm:$0xf]
      %v1534 = vld [vmem:[%s1527 + $0x18] sm:$0xf]
      %v1535 = vld [vmem:[%s1527 + $0x1c] sm:$0xf]
      %v1536 = vld [vmem:[%s1527 + $0x20] sm:$0xf]
      %v1537 = vld [vmem:[%s1527 + $0x24] sm:$0xf]
      %v1538 = vld [vmem:[%s1527 + $0x28] sm:$0xf]
      %v1539 = vld [vmem:[%s1527 + $0x2c] sm:$0xf]
      %v1540 = vld [vmem:[%s1527 + $0x30] sm:$0xf]
      %v1541 = vld [vmem:[%s1527 + $0x34] sm:$0xf]
      %v1542 = vld [vmem:[%s1527 + $0x38] sm:$0xf]
      %v1543 = vld [vmem:[%s1527 + $0x3c] sm:$0xf]
      %v1560 = vunpack.c.l.b16 %v1528
      %v1561 = vunpack.c.l.b16 %v1529
      %v1562 = vunpack.c.l.b16 %v1530
      %v1563 = vunpack.c.l.b16 %v1531
      %v1564 = vunpack.c.l.b16 %v1532
      %v1565 = vunpack.c.l.b16 %v1533
      %v1566 = vunpack.c.l.b16 %v1534
      %v1567 = vunpack.c.l.b16 %v1535
      %v1568 = vunpack.c.l.b16 %v1536
      %v1569 = vunpack.c.l.b16 %v1537
      %v1570 = vunpack.c.l.b16 %v1538
      %v1571 = vunpack.c.l.b16 %v1539
      %v1572 = vunpack.c.l.b16 %v1540
      %v1573 = vunpack.c.l.b16 %v1541
      %v1574 = vunpack.c.l.b16 %v1542
      %v1575 = vunpack.c.l.b16 %v1543
      %v1576 = vpack.c.b16 %v1561, %v1560
      %v1577 = vpack.c.b16 %v1563, %v1562
      %v1578 = vpack.c.b16 %v1565, %v1564
      %v1579 = vpack.c.b16 %v1567, %v1566
      %v1580 = vpack.c.b16 %v1569, %v1568
      %v1581 = vpack.c.b16 %v1571, %v1570
      %v1582 = vpack.c.b16 %v1573, %v1572
      %v1583 = vpack.c.b16 %v1575, %v1574
      %1592 = vmatprep.subr.bf16.mxu0 0
      %1593 = vmatpush1.bf16.msra.mxu0 %v1583
      %1594 = vmatprep.subr.bf16.mxu0 0
      %1595 = vmatpush1.bf16.msra.mxu0 %v1582
      %1596 = vmatprep.subr.bf16.mxu0 0
      %1597 = vmatpush1.bf16.msra.mxu0 %v1581
      %1598 = vmatprep.subr.bf16.mxu0 0
      %1599 = vmatpush1.bf16.msra.mxu0 %v1580
      %1600 = vmatprep.subr.bf16.mxu0 0
      %1601 = vmatpush1.bf16.msra.mxu0 %v1579
      %1602 = vmatprep.subr.bf16.mxu0 0
      %1603 = vmatpush1.bf16.msra.mxu0 %v1578
      %1604 = vmatprep.subr.bf16.mxu0 0
      %1605 = vmatpush1.bf16.msra.mxu0 %v1577
      %1606 = vmatprep.subr.bf16.mxu0 0
      %1607 = vmatpush1.bf16.msra.mxu0 %v1576
      %1608 = vmatprep.subr.bf16.mxu0 0
      %1609 = vmatpush2.bf16.msra.mxu0 0
      %1610 = vmatprep.subr.bf16.mxu0 0
      %1611 = vmatpush2.bf16.msra.mxu0 0
      %1612 = vmatprep.subr.bf16.mxu0 0
      %1613 = vmatpush2.bf16.msra.mxu0 0
      %1614 = vmatprep.subr.bf16.mxu0 0
      %1615 = vmatpush2.bf16.msra.mxu0 0
      %1616 = vmatprep.subr.bf16.mxu0 0
      %1617 = vmatpush2.bf16.msra.mxu0 0
      %1618 = vmatprep.subr.bf16.mxu0 0
      %1619 = vmatpush2.bf16.msra.mxu0 0
      %1620 = vmatprep.subr.bf16.mxu0 0
      %1621 = vmatpush2.bf16.msra.mxu0 0
      %1622 = vmatprep.subr.bf16.mxu0 0
      %1623 = vmatpush2.bf16.msra.mxu0 0
      %1624 = vmatprep.mubr.bf16.mxu0 0
      %1625 = vmatmul.mubr.bf16.gmra.mxu0 %v1238
      %v1626 = vpop.f32.mrf.mxu0
      %v1627 = vadd.f32 0.0, %v1626
      %v1628 = vpop.f32.mrf.mxu0
      %v1629 = vpop.f32.mrf.mxu0
      %v1630 = vadd.f32 0.0, %v1629
      %v1631 = vpop.f32.mrf.mxu0
      %1632 = vmatprep.mubr.bf16.mxu0 0
      %1633 = vmatmul.mubr.bf16.gmra.mxu0 %v1239
      %v1634 = vpop.f32.mrf.mxu0
      %v1635 = vadd.f32 0.0, %v1634
      %v1636 = vpop.f32.mrf.mxu0
      %v1637 = vpop.f32.mrf.mxu0
      %v1638 = vadd.f32 0.0, %v1637
      %v1639 = vpop.f32.mrf.mxu0
      %1640 = vmatprep.mubr.bf16.mxu0 0
      %1641 = vmatmul.mubr.bf16.gmra.mxu0 %v1240
      %v1642 = vpop.f32.mrf.mxu0
      %v1643 = vadd.f32 0.0, %v1642
      %v1644 = vpop.f32.mrf.mxu0
      %v1645 = vpop.f32.mrf.mxu0
      %v1646 = vadd.f32 0.0, %v1645
      %v1647 = vpop.f32.mrf.mxu0
      %1648 = vmatprep.mubr.bf16.mxu0 0
      %1649 = vmatmul.mubr.bf16.gmra.mxu0 %v1241
      %v1650 = vpop.f32.mrf.mxu0
      %v1651 = vadd.f32 0.0, %v1650
      %v1652 = vpop.f32.mrf.mxu0
      %v1653 = vpop.f32.mrf.mxu0
      %v1654 = vadd.f32 0.0, %v1653
      %v1655 = vpop.f32.mrf.mxu0
      %1656 = vmatprep.mubr.bf16.mxu0 0
      %1657 = vmatmul.mubr.bf16.gmra.mxu0 %v1242
      %v1658 = vpop.f32.mrf.mxu0
      %v1659 = vadd.f32 0.0, %v1658
      %v1660 = vpop.f32.mrf.mxu0
      %v1661 = vpop.f32.mrf.mxu0
      %v1662 = vadd.f32 0.0, %v1661
      %v1663 = vpop.f32.mrf.mxu0
      %1664 = vmatprep.mubr.bf16.mxu0 0
      %1665 = vmatmul.mubr.bf16.gmra.mxu0 %v1243
      %v1666 = vpop.f32.mrf.mxu0
      %v1667 = vadd.f32 0.0, %v1666
      %v1668 = vpop.f32.mrf.mxu0
      %v1669 = vpop.f32.mrf.mxu0
      %v1670 = vadd.f32 0.0, %v1669
      %v1671 = vpop.f32.mrf.mxu0
      %1672 = vmatprep.mubr.bf16.mxu0 0
      %1673 = vmatmul.mubr.bf16.gmra.mxu0 %v1244
      %v1674 = vpop.f32.mrf.mxu0
      %v1675 = vadd.f32 0.0, %v1674
      %v1676 = vpop.f32.mrf.mxu0
      %v1677 = vpop.f32.mrf.mxu0
      %v1678 = vadd.f32 0.0, %v1677
      %v1679 = vpop.f32.mrf.mxu0
      %1680 = vmatprep.mubr.bf16.mxu0 0
      %1681 = vmatmul.mubr.bf16.gmra.mxu0 %v1245
      %v1682 = vpop.f32.mrf.mxu0
      %v1683 = vadd.f32 0.0, %v1682
      %v1684 = vpop.f32.mrf.mxu0
      %v1685 = vpop.f32.mrf.mxu0
      %v1686 = vadd.f32 0.0, %v1685
      %v1687 = vpop.f32.mrf.mxu0
      %1688 = vmatprep.mubr.bf16.mxu0 0
      %1689 = vmatmul.mubr.bf16.gmra.mxu0 %v1246
      %v1690 = vpop.f32.mrf.mxu0
      %v1691 = vadd.f32 0.0, %v1690
      %v1692 = vpop.f32.mrf.mxu0
      %v1693 = vpop.f32.mrf.mxu0
      %v1694 = vadd.f32 0.0, %v1693
      %v1695 = vpop.f32.mrf.mxu0
      %1696 = vmatprep.mubr.bf16.mxu0 0
      %1697 = vmatmul.mubr.bf16.gmra.mxu0 %v1247
      %v1698 = vpop.f32.mrf.mxu0
      %v1699 = vadd.f32 0.0, %v1698
      %v1700 = vpop.f32.mrf.mxu0
      %v1701 = vpop.f32.mrf.mxu0
      %v1702 = vadd.f32 0.0, %v1701
      %v1703 = vpop.f32.mrf.mxu0
      %1704 = vmatprep.mubr.bf16.mxu0 0
      %1705 = vmatmul.mubr.bf16.gmra.mxu0 %v1248
      %v1706 = vpop.f32.mrf.mxu0
      %v1707 = vadd.f32 0.0, %v1706
      %v1708 = vpop.f32.mrf.mxu0
      %v1709 = vpop.f32.mrf.mxu0
      %v1710 = vadd.f32 0.0, %v1709
      %v1711 = vpop.f32.mrf.mxu0
      %1712 = vmatprep.mubr.bf16.mxu0 0
      %1713 = vmatmul.mubr.bf16.gmra.mxu0 %v1249
      %v1714 = vpop.f32.mrf.mxu0
      %v1715 = vadd.f32 0.0, %v1714
      %v1716 = vpop.f32.mrf.mxu0
      %v1717 = vpop.f32.mrf.mxu0
      %v1718 = vadd.f32 0.0, %v1717
      %v1719 = vpop.f32.mrf.mxu0
      %1720 = vmatprep.mubr.bf16.mxu0 0
      %1721 = vmatmul.mubr.bf16.gmra.mxu0 %v1250
      %v1722 = vpop.f32.mrf.mxu0
      %v1723 = vadd.f32 0.0, %v1722
      %v1724 = vpop.f32.mrf.mxu0
      %v1725 = vpop.f32.mrf.mxu0
      %v1726 = vadd.f32 0.0, %v1725
      %v1727 = vpop.f32.mrf.mxu0
      %1728 = vmatprep.mubr.bf16.mxu0 0
      %1729 = vmatmul.mubr.bf16.gmra.mxu0 %v1251
      %v1730 = vpop.f32.mrf.mxu0
      %v1731 = vadd.f32 0.0, %v1730
      %v1732 = vpop.f32.mrf.mxu0
      %v1733 = vpop.f32.mrf.mxu0
      %v1734 = vadd.f32 0.0, %v1733
      %v1735 = vpop.f32.mrf.mxu0
      %1736 = vmatprep.mubr.bf16.mxu0 0
      %1737 = vmatmul.mubr.bf16.gmra.mxu0 %v1252
      %v1738 = vpop.f32.mrf.mxu0
      %v1739 = vadd.f32 0.0, %v1738
      %v1740 = vpop.f32.mrf.mxu0
      %v1741 = vpop.f32.mrf.mxu0
      %v1742 = vadd.f32 0.0, %v1741
      %v1743 = vpop.f32.mrf.mxu0
      %1744 = vmatprep.mubr.bf16.mxu0 0
      %1745 = vmatmul.mubr.bf16.gmra.mxu0 %v1253
      %v1746 = vpop.f32.mrf.mxu0
      %v1747 = vadd.f32 0.0, %v1746
      %v1748 = vpop.f32.mrf.mxu0
      %v1749 = vpop.f32.mrf.mxu0
      %v1750 = vadd.f32 0.0, %v1749
      %v1751 = vpop.f32.mrf.mxu0
      %1752 = vdwg.mxu0
      %s1753 = scalar_lea.vmem %s565, 256
      %v1754 = vld [vmem:[%s1753] sm:$0xff]
      %v1755 = vld [vmem:[%s1753 + $0x8] sm:$0xff]
      %v1756 = vld [vmem:[%s1753 + $0x10] sm:$0xff]
      %v1757 = vld [vmem:[%s1753 + $0x18] sm:$0xff]
      %v1758 = vld [vmem:[%s1753 + $0x20] sm:$0xff]
      %v1759 = vld [vmem:[%s1753 + $0x28] sm:$0xff]
      %v1760 = vld [vmem:[%s1753 + $0x30] sm:$0xff]
      %v1761 = vld [vmem:[%s1753 + $0x38] sm:$0xff]
      %v1762 = vld [vmem:[%s1753 + $0x40] sm:$0xff]
      %v1763 = vld [vmem:[%s1753 + $0x48] sm:$0xff]
      %v1764 = vld [vmem:[%s1753 + $0x50] sm:$0xff]
      %v1765 = vld [vmem:[%s1753 + $0x58] sm:$0xff]
      %v1766 = vld [vmem:[%s1753 + $0x60] sm:$0xff]
      %v1767 = vld [vmem:[%s1753 + $0x68] sm:$0xff]
      %v1768 = vld [vmem:[%s1753 + $0x70] sm:$0xff]
      %v1769 = vld [vmem:[%s1753 + $0x78] sm:$0xff]
      %v1770 = vld [vmem:[%s1753 + $0x80] sm:$0xff]
      %v1771 = vld [vmem:[%s1753 + $0x88] sm:$0xff]
      %v1772 = vld [vmem:[%s1753 + $0x90] sm:$0xff]
      %v1773 = vld [vmem:[%s1753 + $0x98] sm:$0xff]
      %v1774 = vld [vmem:[%s1753 + $0xa0] sm:$0xff]
      %v1775 = vld [vmem:[%s1753 + $0xa8] sm:$0xff]
      %v1776 = vld [vmem:[%s1753 + $0xb0] sm:$0xff]
      %v1777 = vld [vmem:[%s1753 + $0xb8] sm:$0xff]
      %v1778 = vld [vmem:[%s1753 + $0xc0] sm:$0xff]
      %v1779 = vld [vmem:[%s1753 + $0xc8] sm:$0xff]
      %v1780 = vld [vmem:[%s1753 + $0xd0] sm:$0xff]
      %v1781 = vld [vmem:[%s1753 + $0xd8] sm:$0xff]
      %v1782 = vld [vmem:[%s1753 + $0xe0] sm:$0xff]
      %v1783 = vld [vmem:[%s1753 + $0xe8] sm:$0xff]
      %v1784 = vld [vmem:[%s1753 + $0xf0] sm:$0xff]
      %v1785 = vld [vmem:[%s1753 + $0xf8] sm:$0xff]
      %v1786 = vpack.c.bf16 %v1630, %v1627
      %v1787 = vpack.c.bf16 %v1638, %v1635
      %v1788 = vpack.c.bf16 %v1646, %v1643
      %v1789 = vpack.c.bf16 %v1654, %v1651
      %v1790 = vpack.c.bf16 %v1662, %v1659
      %v1791 = vpack.c.bf16 %v1670, %v1667
      %v1792 = vpack.c.bf16 %v1678, %v1675
      %v1793 = vpack.c.bf16 %v1686, %v1683
      %v1794 = vpack.c.bf16 %v1694, %v1691
      %v1795 = vpack.c.bf16 %v1702, %v1699
      %v1796 = vpack.c.bf16 %v1710, %v1707
      %v1797 = vpack.c.bf16 %v1718, %v1715
      %v1798 = vpack.c.bf16 %v1726, %v1723
      %v1799 = vpack.c.bf16 %v1734, %v1731
      %v1800 = vpack.c.bf16 %v1742, %v1739
      %v1801 = vpack.c.bf16 %v1750, %v1747
      %v1834 = vunpack.c.l.b16 %v1754
      %v1835 = vunpack.c.h.b16 %v1754
      %v1836 = vunpack.c.l.b16 %v1755
      %v1837 = vunpack.c.h.b16 %v1755
      %v1838 = vunpack.c.l.b16 %v1756
      %v1839 = vunpack.c.h.b16 %v1756
      %v1840 = vunpack.c.l.b16 %v1757
      %v1841 = vunpack.c.h.b16 %v1757
      %v1842 = vunpack.c.l.b16 %v1758
      %v1843 = vunpack.c.h.b16 %v1758
      %v1844 = vunpack.c.l.b16 %v1759
      %v1845 = vunpack.c.h.b16 %v1759
      %v1846 = vunpack.c.l.b16 %v1760
      %v1847 = vunpack.c.h.b16 %v1760
      %v1848 = vunpack.c.l.b16 %v1761
      %v1849 = vunpack.c.h.b16 %v1761
      %v1850 = vunpack.c.l.b16 %v1762
      %v1851 = vunpack.c.h.b16 %v1762
      %v1852 = vunpack.c.l.b16 %v1763
      %v1853 = vunpack.c.h.b16 %v1763
      %v1854 = vunpack.c.l.b16 %v1764
      %v1855 = vunpack.c.h.b16 %v1764
      %v1856 = vunpack.c.l.b16 %v1765
      %v1857 = vunpack.c.h.b16 %v1765
      %v1858 = vunpack.c.l.b16 %v1766
      %v1859 = vunpack.c.h.b16 %v1766
      %v1860 = vunpack.c.l.b16 %v1767
      %v1861 = vunpack.c.h.b16 %v1767
      %v1862 = vunpack.c.l.b16 %v1768
      %v1863 = vunpack.c.h.b16 %v1768
      %v1864 = vunpack.c.l.b16 %v1769
      %v1865 = vunpack.c.h.b16 %v1769
      %v1866 = vunpack.c.l.b16 %v1770
      %v1867 = vunpack.c.h.b16 %v1770
      %v1868 = vunpack.c.l.b16 %v1771
      %v1869 = vunpack.c.h.b16 %v1771
      %v1870 = vunpack.c.l.b16 %v1772
      %v1871 = vunpack.c.h.b16 %v1772
      %v1872 = vunpack.c.l.b16 %v1773
      %v1873 = vunpack.c.h.b16 %v1773
      %v1874 = vunpack.c.l.b16 %v1774
      %v1875 = vunpack.c.h.b16 %v1774
      %v1876 = vunpack.c.l.b16 %v1775
      %v1877 = vunpack.c.h.b16 %v1775
      %v1878 = vunpack.c.l.b16 %v1776
      %v1879 = vunpack.c.h.b16 %v1776
      %v1880 = vunpack.c.l.b16 %v1777
      %v1881 = vunpack.c.h.b16 %v1777
      %v1882 = vunpack.c.l.b16 %v1778
      %v1883 = vunpack.c.h.b16 %v1778
      %v1884 = vunpack.c.l.b16 %v1779
      %v1885 = vunpack.c.h.b16 %v1779
      %v1886 = vunpack.c.l.b16 %v1780
      %v1887 = vunpack.c.h.b16 %v1780
      %v1888 = vunpack.c.l.b16 %v1781
      %v1889 = vunpack.c.h.b16 %v1781
      %v1890 = vunpack.c.l.b16 %v1782
      %v1891 = vunpack.c.h.b16 %v1782
      %v1892 = vunpack.c.l.b16 %v1783
      %v1893 = vunpack.c.h.b16 %v1783
      %v1894 = vunpack.c.l.b16 %v1784
      %v1895 = vunpack.c.h.b16 %v1784
      %v1896 = vunpack.c.l.b16 %v1785
      %v1897 = vunpack.c.h.b16 %v1785
      %v1898 = vpack.c.b16 %v1836, %v1834
      %v1899 = vpack.c.b16 %v1837, %v1835
      %v1900 = vpack.c.b16 %v1840, %v1838
      %v1901 = vpack.c.b16 %v1841, %v1839
      %v1902 = vpack.c.b16 %v1844, %v1842
      %v1903 = vpack.c.b16 %v1845, %v1843
      %v1904 = vpack.c.b16 %v1848, %v1846
      %v1905 = vpack.c.b16 %v1849, %v1847
      %v1906 = vpack.c.b16 %v1852, %v1850
      %v1907 = vpack.c.b16 %v1853, %v1851
      %v1908 = vpack.c.b16 %v1856, %v1854
      %v1909 = vpack.c.b16 %v1857, %v1855
      %v1910 = vpack.c.b16 %v1860, %v1858
      %v1911 = vpack.c.b16 %v1861, %v1859
      %v1912 = vpack.c.b16 %v1864, %v1862
      %v1913 = vpack.c.b16 %v1865, %v1863
      %v1914 = vpack.c.b16 %v1868, %v1866
      %v1915 = vpack.c.b16 %v1869, %v1867
      %v1916 = vpack.c.b16 %v1872, %v1870
      %v1917 = vpack.c.b16 %v1873, %v1871
      %v1918 = vpack.c.b16 %v1876, %v1874
      %v1919 = vpack.c.b16 %v1877, %v1875
      %v1920 = vpack.c.b16 %v1880, %v1878
      %v1921 = vpack.c.b16 %v1881, %v1879
      %v1922 = vpack.c.b16 %v1884, %v1882
      %v1923 = vpack.c.b16 %v1885, %v1883
      %v1924 = vpack.c.b16 %v1888, %v1886
      %v1925 = vpack.c.b16 %v1889, %v1887
      %v1926 = vpack.c.b16 %v1892, %v1890
      %v1927 = vpack.c.b16 %v1893, %v1891
      %v1928 = vpack.c.b16 %v1896, %v1894
      %v1929 = vpack.c.b16 %v1897, %v1895
      %1962 = vmatprep.subr.bf16.mxu0 0
      %1963 = vmatpush1.bf16.msra.mxu0 %v1793
      %1964 = vmatprep.subr.bf16.mxu0 0
      %1965 = vmatpush1.bf16.msra.mxu0 %v1792
      %1966 = vmatprep.subr.bf16.mxu0 0
      %1967 = vmatpush1.bf16.msra.mxu0 %v1791
      %1968 = vmatprep.subr.bf16.mxu0 0
      %1969 = vmatpush1.bf16.msra.mxu0 %v1790
      %1970 = vmatprep.subr.bf16.mxu0 0
      %1971 = vmatpush1.bf16.msra.mxu0 %v1789
      %1972 = vmatprep.subr.bf16.mxu0 0
      %1973 = vmatpush1.bf16.msra.mxu0 %v1788
      %1974 = vmatprep.subr.bf16.mxu0 0
      %1975 = vmatpush1.bf16.msra.mxu0 %v1787
      %1976 = vmatprep.subr.bf16.mxu0 0
      %1977 = vmatpush1.bf16.msra.mxu0 %v1786
      %1978 = vmatprep.subr.bf16.mxu0 0
      %1979 = vmatpush2.bf16.msra.mxu0 %v1801
      %1980 = vmatprep.subr.bf16.mxu0 0
      %1981 = vmatpush2.bf16.msra.mxu0 %v1800
      %1982 = vmatprep.subr.bf16.mxu0 0
      %1983 = vmatpush2.bf16.msra.mxu0 %v1799
      %1984 = vmatprep.subr.bf16.mxu0 0
      %1985 = vmatpush2.bf16.msra.mxu0 %v1798
      %1986 = vmatprep.subr.bf16.mxu0 0
      %1987 = vmatpush2.bf16.msra.mxu0 %v1797
      %1988 = vmatprep.subr.bf16.mxu0 0
      %1989 = vmatpush2.bf16.msra.mxu0 %v1796
      %1990 = vmatprep.subr.bf16.mxu0 0
      %1991 = vmatpush2.bf16.msra.mxu0 %v1795
      %1992 = vmatprep.subr.bf16.mxu0 0
      %1993 = vmatpush2.bf16.msra.mxu0 %v1794
      %1994 = vmatprep.mubr.bf16.mxu0 %v1899
      %1995 = vmatmul.mubr.bf16.gmra.mxu0 %v1898
      %v1996 = vpop.f32.mrf.mxu0
      %v1997 = vadd.f32 0.0, %v1996
      %v1998 = vpop.f32.mrf.mxu0
      %v1999 = vpop.f32.mrf.mxu0
      %v2000 = vadd.f32 0.0, %v1999
      %v2001 = vpop.f32.mrf.mxu0
      %2002 = vmatprep.mubr.bf16.mxu0 %v1901
      %2003 = vmatmul.mubr.bf16.gmra.mxu0 %v1900
      %v2004 = vpop.f32.mrf.mxu0
      %v2005 = vadd.f32 0.0, %v2004
      %v2006 = vpop.f32.mrf.mxu0
      %v2007 = vpop.f32.mrf.mxu0
      %v2008 = vadd.f32 0.0, %v2007
      %v2009 = vpop.f32.mrf.mxu0
      %2010 = vmatprep.mubr.bf16.mxu0 %v1903
      %2011 = vmatmul.mubr.bf16.gmra.mxu0 %v1902
      %v2012 = vpop.f32.mrf.mxu0
      %v2013 = vadd.f32 0.0, %v2012
      %v2014 = vpop.f32.mrf.mxu0
      %v2015 = vpop.f32.mrf.mxu0
      %v2016 = vadd.f32 0.0, %v2015
      %v2017 = vpop.f32.mrf.mxu0
      %2018 = vmatprep.mubr.bf16.mxu0 %v1905
      %2019 = vmatmul.mubr.bf16.gmra.mxu0 %v1904
      %v2020 = vpop.f32.mrf.mxu0
      %v2021 = vadd.f32 0.0, %v2020
      %v2022 = vpop.f32.mrf.mxu0
      %v2023 = vpop.f32.mrf.mxu0
      %v2024 = vadd.f32 0.0, %v2023
      %v2025 = vpop.f32.mrf.mxu0
      %2026 = vmatprep.mubr.bf16.mxu0 %v1907
      %2027 = vmatmul.mubr.bf16.gmra.mxu0 %v1906
      %v2028 = vpop.f32.mrf.mxu0
      %v2029 = vadd.f32 0.0, %v2028
      %v2030 = vpop.f32.mrf.mxu0
      %v2031 = vpop.f32.mrf.mxu0
      %v2032 = vadd.f32 0.0, %v2031
      %v2033 = vpop.f32.mrf.mxu0
      %2034 = vmatprep.mubr.bf16.mxu0 %v1909
      %2035 = vmatmul.mubr.bf16.gmra.mxu0 %v1908
      %v2036 = vpop.f32.mrf.mxu0
      %v2037 = vadd.f32 0.0, %v2036
      %v2038 = vpop.f32.mrf.mxu0
      %v2039 = vpop.f32.mrf.mxu0
      %v2040 = vadd.f32 0.0, %v2039
      %v2041 = vpop.f32.mrf.mxu0
      %2042 = vmatprep.mubr.bf16.mxu0 %v1911
      %2043 = vmatmul.mubr.bf16.gmra.mxu0 %v1910
      %v2044 = vpop.f32.mrf.mxu0
      %v2045 = vadd.f32 0.0, %v2044
      %v2046 = vpop.f32.mrf.mxu0
      %v2047 = vpop.f32.mrf.mxu0
      %v2048 = vadd.f32 0.0, %v2047
      %v2049 = vpop.f32.mrf.mxu0
      %2050 = vmatprep.mubr.bf16.mxu0 %v1913
      %2051 = vmatmul.mubr.bf16.gmra.mxu0 %v1912
      %v2052 = vpop.f32.mrf.mxu0
      %v2053 = vadd.f32 0.0, %v2052
      %v2054 = vpop.f32.mrf.mxu0
      %v2055 = vpop.f32.mrf.mxu0
      %v2056 = vadd.f32 0.0, %v2055
      %v2057 = vpop.f32.mrf.mxu0
      %2058 = vmatprep.mubr.bf16.mxu0 %v1915
      %2059 = vmatmul.mubr.bf16.gmra.mxu0 %v1914
      %v2060 = vpop.f32.mrf.mxu0
      %v2061 = vadd.f32 0.0, %v2060
      %v2062 = vpop.f32.mrf.mxu0
      %v2063 = vpop.f32.mrf.mxu0
      %v2064 = vadd.f32 0.0, %v2063
      %v2065 = vpop.f32.mrf.mxu0
      %2066 = vmatprep.mubr.bf16.mxu0 %v1917
      %2067 = vmatmul.mubr.bf16.gmra.mxu0 %v1916
      %v2068 = vpop.f32.mrf.mxu0
      %v2069 = vadd.f32 0.0, %v2068
      %v2070 = vpop.f32.mrf.mxu0
      %v2071 = vpop.f32.mrf.mxu0
      %v2072 = vadd.f32 0.0, %v2071
      %v2073 = vpop.f32.mrf.mxu0
      %2074 = vmatprep.mubr.bf16.mxu0 %v1919
      %2075 = vmatmul.mubr.bf16.gmra.mxu0 %v1918
      %v2076 = vpop.f32.mrf.mxu0
      %v2077 = vadd.f32 0.0, %v2076
      %v2078 = vpop.f32.mrf.mxu0
      %v2079 = vpop.f32.mrf.mxu0
      %v2080 = vadd.f32 0.0, %v2079
      %v2081 = vpop.f32.mrf.mxu0
      %2082 = vmatprep.mubr.bf16.mxu0 %v1921
      %2083 = vmatmul.mubr.bf16.gmra.mxu0 %v1920
      %v2084 = vpop.f32.mrf.mxu0
      %v2085 = vadd.f32 0.0, %v2084
      %v2086 = vpop.f32.mrf.mxu0
      %v2087 = vpop.f32.mrf.mxu0
      %v2088 = vadd.f32 0.0, %v2087
      %v2089 = vpop.f32.mrf.mxu0
      %2090 = vmatprep.mubr.bf16.mxu0 %v1923
      %2091 = vmatmul.mubr.bf16.gmra.mxu0 %v1922
      %v2092 = vpop.f32.mrf.mxu0
      %v2093 = vadd.f32 0.0, %v2092
      %v2094 = vpop.f32.mrf.mxu0
      %v2095 = vpop.f32.mrf.mxu0
      %v2096 = vadd.f32 0.0, %v2095
      %v2097 = vpop.f32.mrf.mxu0
      %2098 = vmatprep.mubr.bf16.mxu0 %v1925
      %2099 = vmatmul.mubr.bf16.gmra.mxu0 %v1924
      %v2100 = vpop.f32.mrf.mxu0
      %v2101 = vadd.f32 0.0, %v2100
      %v2102 = vpop.f32.mrf.mxu0
      %v2103 = vpop.f32.mrf.mxu0
      %v2104 = vadd.f32 0.0, %v2103
      %v2105 = vpop.f32.mrf.mxu0
      %2106 = vmatprep.mubr.bf16.mxu0 %v1927
      %2107 = vmatmul.mubr.bf16.gmra.mxu0 %v1926
      %v2108 = vpop.f32.mrf.mxu0
      %v2109 = vadd.f32 0.0, %v2108
      %v2110 = vpop.f32.mrf.mxu0
      %v2111 = vpop.f32.mrf.mxu0
      %v2112 = vadd.f32 0.0, %v2111
      %v2113 = vpop.f32.mrf.mxu0
      %2114 = vmatprep.mubr.bf16.mxu0 %v1929
      %2115 = vmatmul.mubr.bf16.gmra.mxu0 %v1928
      %v2116 = vpop.f32.mrf.mxu0
      %v2117 = vadd.f32 0.0, %v2116
      %v2118 = vpop.f32.mrf.mxu0
      %v2119 = vpop.f32.mrf.mxu0
      %v2120 = vadd.f32 0.0, %v2119
      %v2121 = vpop.f32.mrf.mxu0
      %2122 = vdwg.mxu0
      %v2155 = vunpack.c.l.b16 %v1479
      %v2156 = vunpack.c.h.b16 %v1479
      %v2157 = vunpack.c.l.b16 %v1480
      %v2158 = vunpack.c.h.b16 %v1480
      %v2159 = vunpack.c.l.b16 %v1481
      %v2160 = vunpack.c.h.b16 %v1481
      %v2161 = vunpack.c.l.b16 %v1482
      %v2162 = vunpack.c.h.b16 %v1482
      %v2163 = vunpack.c.l.b16 %v1483
      %v2164 = vunpack.c.h.b16 %v1483
      %v2165 = vunpack.c.l.b16 %v1484
      %v2166 = vunpack.c.h.b16 %v1484
      %v2167 = vunpack.c.l.b16 %v1485
      %v2168 = vunpack.c.h.b16 %v1485
      %v2169 = vunpack.c.l.b16 %v1486
      %v2170 = vunpack.c.h.b16 %v1486
      %v2171 = vunpack.c.l.b16 %v1487
      %v2172 = vunpack.c.h.b16 %v1487
      %v2173 = vunpack.c.l.b16 %v1488
      %v2174 = vunpack.c.h.b16 %v1488
      %v2175 = vunpack.c.l.b16 %v1489
      %v2176 = vunpack.c.h.b16 %v1489
      %v2177 = vunpack.c.l.b16 %v1490
      %v2178 = vunpack.c.h.b16 %v1490
      %v2179 = vunpack.c.l.b16 %v1491
      %v2180 = vunpack.c.h.b16 %v1491
      %v2181 = vunpack.c.l.b16 %v1492
      %v2182 = vunpack.c.h.b16 %v1492
      %v2183 = vunpack.c.l.b16 %v1493
      %v2184 = vunpack.c.h.b16 %v1493
      %v2185 = vunpack.c.l.b16 %v1494
      %v2186 = vunpack.c.h.b16 %v1494
      %v2187 = vunpack.c.l.b16 %v1495
      %v2188 = vunpack.c.h.b16 %v1495
      %v2189 = vunpack.c.l.b16 %v1496
      %v2190 = vunpack.c.h.b16 %v1496
      %v2191 = vunpack.c.l.b16 %v1497
      %v2192 = vunpack.c.h.b16 %v1497
      %v2193 = vunpack.c.l.b16 %v1498
      %v2194 = vunpack.c.h.b16 %v1498
      %v2195 = vunpack.c.l.b16 %v1499
      %v2196 = vunpack.c.h.b16 %v1499
      %v2197 = vunpack.c.l.b16 %v1500
      %v2198 = vunpack.c.h.b16 %v1500
      %v2199 = vunpack.c.l.b16 %v1501
      %v2200 = vunpack.c.h.b16 %v1501
      %v2201 = vunpack.c.l.b16 %v1502
      %v2202 = vunpack.c.h.b16 %v1502
      %v2203 = vunpack.c.l.b16 %v1503
      %v2204 = vunpack.c.h.b16 %v1503
      %v2205 = vunpack.c.l.b16 %v1504
      %v2206 = vunpack.c.h.b16 %v1504
      %v2207 = vunpack.c.l.b16 %v1505
      %v2208 = vunpack.c.h.b16 %v1505
      %v2209 = vunpack.c.l.b16 %v1506
      %v2210 = vunpack.c.h.b16 %v1506
      %v2211 = vunpack.c.l.b16 %v1507
      %v2212 = vunpack.c.h.b16 %v1507
      %v2213 = vunpack.c.l.b16 %v1508
      %v2214 = vunpack.c.h.b16 %v1508
      %v2215 = vunpack.c.l.b16 %v1509
      %v2216 = vunpack.c.h.b16 %v1509
      %v2217 = vunpack.c.l.b16 %v1510
      %v2218 = vunpack.c.h.b16 %v1510
      %v2219 = vpack.c.b16 %v2157, %v2155
      %v2220 = vpack.c.b16 %v2158, %v2156
      %v2221 = vpack.c.b16 %v2161, %v2159
      %v2222 = vpack.c.b16 %v2162, %v2160
      %v2223 = vpack.c.b16 %v2165, %v2163
      %v2224 = vpack.c.b16 %v2166, %v2164
      %v2225 = vpack.c.b16 %v2169, %v2167
      %v2226 = vpack.c.b16 %v2170, %v2168
      %v2227 = vpack.c.b16 %v2173, %v2171
      %v2228 = vpack.c.b16 %v2174, %v2172
      %v2229 = vpack.c.b16 %v2177, %v2175
      %v2230 = vpack.c.b16 %v2178, %v2176
      %v2231 = vpack.c.b16 %v2181, %v2179
      %v2232 = vpack.c.b16 %v2182, %v2180
      %v2233 = vpack.c.b16 %v2185, %v2183
      %v2234 = vpack.c.b16 %v2186, %v2184
      %v2235 = vpack.c.b16 %v2189, %v2187
      %v2236 = vpack.c.b16 %v2190, %v2188
      %v2237 = vpack.c.b16 %v2193, %v2191
      %v2238 = vpack.c.b16 %v2194, %v2192
      %v2239 = vpack.c.b16 %v2197, %v2195
      %v2240 = vpack.c.b16 %v2198, %v2196
      %v2241 = vpack.c.b16 %v2201, %v2199
      %v2242 = vpack.c.b16 %v2202, %v2200
      %v2243 = vpack.c.b16 %v2205, %v2203
      %v2244 = vpack.c.b16 %v2206, %v2204
      %v2245 = vpack.c.b16 %v2209, %v2207
      %v2246 = vpack.c.b16 %v2210, %v2208
      %v2247 = vpack.c.b16 %v2213, %v2211
      %v2248 = vpack.c.b16 %v2214, %v2212
      %v2249 = vpack.c.b16 %v2217, %v2215
      %v2250 = vpack.c.b16 %v2218, %v2216
      %2283 = vmatprep.subr.bf16.mxu0 0
      %2284 = vmatpush1.bf16.msra.mxu0 %v1518
      %2285 = vmatprep.subr.bf16.mxu0 0
      %2286 = vmatpush1.bf16.msra.mxu0 %v1517
      %2287 = vmatprep.subr.bf16.mxu0 0
      %2288 = vmatpush1.bf16.msra.mxu0 %v1516
      %2289 = vmatprep.subr.bf16.mxu0 0
      %2290 = vmatpush1.bf16.msra.mxu0 %v1515
      %2291 = vmatprep.subr.bf16.mxu0 0
      %2292 = vmatpush1.bf16.msra.mxu0 %v1514
      %2293 = vmatprep.subr.bf16.mxu0 0
      %2294 = vmatpush1.bf16.msra.mxu0 %v1513
      %2295 = vmatprep.subr.bf16.mxu0 0
      %2296 = vmatpush1.bf16.msra.mxu0 %v1512
      %2297 = vmatprep.subr.bf16.mxu0 0
      %2298 = vmatpush1.bf16.msra.mxu0 %v1511
      %2299 = vmatprep.subr.bf16.mxu0 0
      %2300 = vmatpush2.bf16.msra.mxu0 %v1526
      %2301 = vmatprep.subr.bf16.mxu0 0
      %2302 = vmatpush2.bf16.msra.mxu0 %v1525
      %2303 = vmatprep.subr.bf16.mxu0 0
      %2304 = vmatpush2.bf16.msra.mxu0 %v1524
      %2305 = vmatprep.subr.bf16.mxu0 0
      %2306 = vmatpush2.bf16.msra.mxu0 %v1523
      %2307 = vmatprep.subr.bf16.mxu0 0
      %2308 = vmatpush2.bf16.msra.mxu0 %v1522
      %2309 = vmatprep.subr.bf16.mxu0 0
      %2310 = vmatpush2.bf16.msra.mxu0 %v1521
      %2311 = vmatprep.subr.bf16.mxu0 0
      %2312 = vmatpush2.bf16.msra.mxu0 %v1520
      %2313 = vmatprep.subr.bf16.mxu0 0
      %2314 = vmatpush2.bf16.msra.mxu0 %v1519
      %2315 = vmatprep.mubr.bf16.mxu0 %v2220
      %2316 = vmatmul.mubr.bf16.gmra.mxu0 %v2219
      %v2317 = vpop.f32.mrf.mxu0
      %v2318 = vadd.f32 %v1997, %v2317
      %v2319 = vpop.f32.mrf.mxu0
      %v2320 = vpop.f32.mrf.mxu0
      %v2321 = vadd.f32 %v2000, %v2320
      %v2322 = vpop.f32.mrf.mxu0
      %2323 = vmatprep.mubr.bf16.mxu0 %v2222
      %2324 = vmatmul.mubr.bf16.gmra.mxu0 %v2221
      %v2325 = vpop.f32.mrf.mxu0
      %v2326 = vadd.f32 %v2005, %v2325
      %v2327 = vpop.f32.mrf.mxu0
      %v2328 = vpop.f32.mrf.mxu0
      %v2329 = vadd.f32 %v2008, %v2328
      %v2330 = vpop.f32.mrf.mxu0
      %2331 = vmatprep.mubr.bf16.mxu0 %v2224
      %2332 = vmatmul.mubr.bf16.gmra.mxu0 %v2223
      %v2333 = vpop.f32.mrf.mxu0
      %v2334 = vadd.f32 %v2013, %v2333
      %v2335 = vpop.f32.mrf.mxu0
      %v2336 = vpop.f32.mrf.mxu0
      %v2337 = vadd.f32 %v2016, %v2336
      %v2338 = vpop.f32.mrf.mxu0
      %2339 = vmatprep.mubr.bf16.mxu0 %v2226
      %2340 = vmatmul.mubr.bf16.gmra.mxu0 %v2225
      %v2341 = vpop.f32.mrf.mxu0
      %v2342 = vadd.f32 %v2021, %v2341
      %v2343 = vpop.f32.mrf.mxu0
      %v2344 = vpop.f32.mrf.mxu0
      %v2345 = vadd.f32 %v2024, %v2344
      %v2346 = vpop.f32.mrf.mxu0
      %2347 = vmatprep.mubr.bf16.mxu0 %v2228
      %2348 = vmatmul.mubr.bf16.gmra.mxu0 %v2227
      %v2349 = vpop.f32.mrf.mxu0
      %v2350 = vadd.f32 %v2029, %v2349
      %v2351 = vpop.f32.mrf.mxu0
      %v2352 = vpop.f32.mrf.mxu0
      %v2353 = vadd.f32 %v2032, %v2352
      %v2354 = vpop.f32.mrf.mxu0
      %2355 = vmatprep.mubr.bf16.mxu0 %v2230
      %2356 = vmatmul.mubr.bf16.gmra.mxu0 %v2229
      %v2357 = vpop.f32.mrf.mxu0
      %v2358 = vadd.f32 %v2037, %v2357
      %v2359 = vpop.f32.mrf.mxu0
      %v2360 = vpop.f32.mrf.mxu0
      %v2361 = vadd.f32 %v2040, %v2360
      %v2362 = vpop.f32.mrf.mxu0
      %2363 = vmatprep.mubr.bf16.mxu0 %v2232
      %2364 = vmatmul.mubr.bf16.gmra.mxu0 %v2231
      %v2365 = vpop.f32.mrf.mxu0
      %v2366 = vadd.f32 %v2045, %v2365
      %v2367 = vpop.f32.mrf.mxu0
      %v2368 = vpop.f32.mrf.mxu0
      %v2369 = vadd.f32 %v2048, %v2368
      %v2370 = vpop.f32.mrf.mxu0
      %2371 = vmatprep.mubr.bf16.mxu0 %v2234
      %2372 = vmatmul.mubr.bf16.gmra.mxu0 %v2233
      %v2373 = vpop.f32.mrf.mxu0
      %v2374 = vadd.f32 %v2053, %v2373
      %v2375 = vpop.f32.mrf.mxu0
      %v2376 = vpop.f32.mrf.mxu0
      %v2377 = vadd.f32 %v2056, %v2376
      %v2378 = vpop.f32.mrf.mxu0
      %2379 = vmatprep.mubr.bf16.mxu0 %v2236
      %2380 = vmatmul.mubr.bf16.gmra.mxu0 %v2235
      %v2381 = vpop.f32.mrf.mxu0
      %v2382 = vadd.f32 %v2061, %v2381
      %v2383 = vpop.f32.mrf.mxu0
      %v2384 = vpop.f32.mrf.mxu0
      %v2385 = vadd.f32 %v2064, %v2384
      %v2386 = vpop.f32.mrf.mxu0
      %2387 = vmatprep.mubr.bf16.mxu0 %v2238
      %2388 = vmatmul.mubr.bf16.gmra.mxu0 %v2237
      %v2389 = vpop.f32.mrf.mxu0
      %v2390 = vadd.f32 %v2069, %v2389
      %v2391 = vpop.f32.mrf.mxu0
      %v2392 = vpop.f32.mrf.mxu0
      %v2393 = vadd.f32 %v2072, %v2392
      %v2394 = vpop.f32.mrf.mxu0
      %2395 = vmatprep.mubr.bf16.mxu0 %v2240
      %2396 = vmatmul.mubr.bf16.gmra.mxu0 %v2239
      %v2397 = vpop.f32.mrf.mxu0
      %v2398 = vadd.f32 %v2077, %v2397
      %v2399 = vpop.f32.mrf.mxu0
      %v2400 = vpop.f32.mrf.mxu0
      %v2401 = vadd.f32 %v2080, %v2400
      %v2402 = vpop.f32.mrf.mxu0
      %2403 = vmatprep.mubr.bf16.mxu0 %v2242
      %2404 = vmatmul.mubr.bf16.gmra.mxu0 %v2241
      %v2405 = vpop.f32.mrf.mxu0
      %v2406 = vadd.f32 %v2085, %v2405
      %v2407 = vpop.f32.mrf.mxu0
      %v2408 = vpop.f32.mrf.mxu0
      %v2409 = vadd.f32 %v2088, %v2408
      %v2410 = vpop.f32.mrf.mxu0
      %2411 = vmatprep.mubr.bf16.mxu0 %v2244
      %2412 = vmatmul.mubr.bf16.gmra.mxu0 %v2243
      %v2413 = vpop.f32.mrf.mxu0
      %v2414 = vadd.f32 %v2093, %v2413
      %v2415 = vpop.f32.mrf.mxu0
      %v2416 = vpop.f32.mrf.mxu0
      %v2417 = vadd.f32 %v2096, %v2416
      %v2418 = vpop.f32.mrf.mxu0
      %2419 = vmatprep.mubr.bf16.mxu0 %v2246
      %2420 = vmatmul.mubr.bf16.gmra.mxu0 %v2245
      %v2421 = vpop.f32.mrf.mxu0
      %v2422 = vadd.f32 %v2101, %v2421
      %v2423 = vpop.f32.mrf.mxu0
      %v2424 = vpop.f32.mrf.mxu0
      %v2425 = vadd.f32 %v2104, %v2424
      %v2426 = vpop.f32.mrf.mxu0
      %2427 = vmatprep.mubr.bf16.mxu0 %v2248
      %2428 = vmatmul.mubr.bf16.gmra.mxu0 %v2247
      %v2429 = vpop.f32.mrf.mxu0
      %v2430 = vadd.f32 %v2109, %v2429
      %v2431 = vpop.f32.mrf.mxu0
      %v2432 = vpop.f32.mrf.mxu0
      %v2433 = vadd.f32 %v2112, %v2432
      %v2434 = vpop.f32.mrf.mxu0
      %2435 = vmatprep.mubr.bf16.mxu0 %v2250
      %2436 = vmatmul.mubr.bf16.gmra.mxu0 %v2249
      %v2437 = vpop.f32.mrf.mxu0
      %v2438 = vadd.f32 %v2117, %v2437
      %v2439 = vpop.f32.mrf.mxu0
      %v2440 = vpop.f32.mrf.mxu0
      %v2441 = vadd.f32 %v2120, %v2440
      %v2442 = vpop.f32.mrf.mxu0
      %2443 = vdwg.mxu0
      %s2444 = scalar_lea.vmem %s2, 128
      %v2445 = vld [vmem:[%s2444] sm:$0xf]
      %v2446 = vld [vmem:[%s2444 + $0x4] sm:$0xf]
      %v2447 = vld [vmem:[%s2444 + $0x8] sm:$0xf]
      %v2448 = vld [vmem:[%s2444 + $0xc] sm:$0xf]
      %v2449 = vld [vmem:[%s2444 + $0x10] sm:$0xf]
      %v2450 = vld [vmem:[%s2444 + $0x14] sm:$0xf]
      %v2451 = vld [vmem:[%s2444 + $0x18] sm:$0xf]
      %v2452 = vld [vmem:[%s2444 + $0x1c] sm:$0xf]
      %v2453 = vld [vmem:[%s2444 + $0x20] sm:$0xf]
      %v2454 = vld [vmem:[%s2444 + $0x24] sm:$0xf]
      %v2455 = vld [vmem:[%s2444 + $0x28] sm:$0xf]
      %v2456 = vld [vmem:[%s2444 + $0x2c] sm:$0xf]
      %v2457 = vld [vmem:[%s2444 + $0x30] sm:$0xf]
      %v2458 = vld [vmem:[%s2444 + $0x34] sm:$0xf]
      %v2459 = vld [vmem:[%s2444 + $0x38] sm:$0xf]
      %v2460 = vld [vmem:[%s2444 + $0x3c] sm:$0xf]
      %v2477 = vunpack.c.l.b16 %v2445
      %v2478 = vunpack.c.l.b16 %v2446
      %v2479 = vunpack.c.l.b16 %v2447
      %v2480 = vunpack.c.l.b16 %v2448
      %v2481 = vunpack.c.l.b16 %v2449
      %v2482 = vunpack.c.l.b16 %v2450
      %v2483 = vunpack.c.l.b16 %v2451
      %v2484 = vunpack.c.l.b16 %v2452
      %v2485 = vunpack.c.l.b16 %v2453
      %v2486 = vunpack.c.l.b16 %v2454
      %v2487 = vunpack.c.l.b16 %v2455
      %v2488 = vunpack.c.l.b16 %v2456
      %v2489 = vunpack.c.l.b16 %v2457
      %v2490 = vunpack.c.l.b16 %v2458
      %v2491 = vunpack.c.l.b16 %v2459
      %v2492 = vunpack.c.l.b16 %v2460
      %v2493 = vpack.c.b16 %v2478, %v2477
      %v2494 = vpack.c.b16 %v2480, %v2479
      %v2495 = vpack.c.b16 %v2482, %v2481
      %v2496 = vpack.c.b16 %v2484, %v2483
      %v2497 = vpack.c.b16 %v2486, %v2485
      %v2498 = vpack.c.b16 %v2488, %v2487
      %v2499 = vpack.c.b16 %v2490, %v2489
      %v2500 = vpack.c.b16 %v2492, %v2491
      %2509 = vmatprep.subr.bf16.mxu0 0
      %2510 = vmatpush1.bf16.msra.mxu0 %v2500
      %2511 = vmatprep.subr.bf16.mxu0 0
      %2512 = vmatpush1.bf16.msra.mxu0 %v2499
      %2513 = vmatprep.subr.bf16.mxu0 0
      %2514 = vmatpush1.bf16.msra.mxu0 %v2498
      %2515 = vmatprep.subr.bf16.mxu0 0
      %2516 = vmatpush1.bf16.msra.mxu0 %v2497
      %2517 = vmatprep.subr.bf16.mxu0 0
      %2518 = vmatpush1.bf16.msra.mxu0 %v2496
      %2519 = vmatprep.subr.bf16.mxu0 0
      %2520 = vmatpush1.bf16.msra.mxu0 %v2495
      %2521 = vmatprep.subr.bf16.mxu0 0
      %2522 = vmatpush1.bf16.msra.mxu0 %v2494
      %2523 = vmatprep.subr.bf16.mxu0 0
      %2524 = vmatpush1.bf16.msra.mxu0 %v2493
      %2525 = vmatprep.subr.bf16.mxu0 0
      %2526 = vmatpush2.bf16.msra.mxu0 0
      %2527 = vmatprep.subr.bf16.mxu0 0
      %2528 = vmatpush2.bf16.msra.mxu0 0
      %2529 = vmatprep.subr.bf16.mxu0 0
      %2530 = vmatpush2.bf16.msra.mxu0 0
      %2531 = vmatprep.subr.bf16.mxu0 0
      %2532 = vmatpush2.bf16.msra.mxu0 0
      %2533 = vmatprep.subr.bf16.mxu0 0
      %2534 = vmatpush2.bf16.msra.mxu0 0
      %2535 = vmatprep.subr.bf16.mxu0 0
      %2536 = vmatpush2.bf16.msra.mxu0 0
      %2537 = vmatprep.subr.bf16.mxu0 0
      %2538 = vmatpush2.bf16.msra.mxu0 0
      %2539 = vmatprep.subr.bf16.mxu0 0
      %2540 = vmatpush2.bf16.msra.mxu0 0
      %2541 = vmatprep.mubr.bf16.mxu0 0
      %2542 = vmatmul.mubr.bf16.gmra.mxu0 %v1238
      %v2543 = vpop.f32.mrf.mxu0
      %v2544 = vadd.f32 0.0, %v2543
      %v2545 = vpop.f32.mrf.mxu0
      %v2546 = vpop.f32.mrf.mxu0
      %v2547 = vadd.f32 0.0, %v2546
      %v2548 = vpop.f32.mrf.mxu0
      %2549 = vmatprep.mubr.bf16.mxu0 0
      %2550 = vmatmul.mubr.bf16.gmra.mxu0 %v1239
      %v2551 = vpop.f32.mrf.mxu0
      %v2552 = vadd.f32 0.0, %v2551
      %v2553 = vpop.f32.mrf.mxu0
      %v2554 = vpop.f32.mrf.mxu0
      %v2555 = vadd.f32 0.0, %v2554
      %v2556 = vpop.f32.mrf.mxu0
      %2557 = vmatprep.mubr.bf16.mxu0 0
      %2558 = vmatmul.mubr.bf16.gmra.mxu0 %v1240
      %v2559 = vpop.f32.mrf.mxu0
      %v2560 = vadd.f32 0.0, %v2559
      %v2561 = vpop.f32.mrf.mxu0
      %v2562 = vpop.f32.mrf.mxu0
      %v2563 = vadd.f32 0.0, %v2562
      %v2564 = vpop.f32.mrf.mxu0
      %2565 = vmatprep.mubr.bf16.mxu0 0
      %2566 = vmatmul.mubr.bf16.gmra.mxu0 %v1241
      %v2567 = vpop.f32.mrf.mxu0
      %v2568 = vadd.f32 0.0, %v2567
      %v2569 = vpop.f32.mrf.mxu0
      %v2570 = vpop.f32.mrf.mxu0
      %v2571 = vadd.f32 0.0, %v2570
      %v2572 = vpop.f32.mrf.mxu0
      %2573 = vmatprep.mubr.bf16.mxu0 0
      %2574 = vmatmul.mubr.bf16.gmra.mxu0 %v1242
      %v2575 = vpop.f32.mrf.mxu0
      %v2576 = vadd.f32 0.0, %v2575
      %v2577 = vpop.f32.mrf.mxu0
      %v2578 = vpop.f32.mrf.mxu0
      %v2579 = vadd.f32 0.0, %v2578
      %v2580 = vpop.f32.mrf.mxu0
      %2581 = vmatprep.mubr.bf16.mxu0 0
      %2582 = vmatmul.mubr.bf16.gmra.mxu0 %v1243
      %v2583 = vpop.f32.mrf.mxu0
      %v2584 = vadd.f32 0.0, %v2583
      %v2585 = vpop.f32.mrf.mxu0
      %v2586 = vpop.f32.mrf.mxu0
      %v2587 = vadd.f32 0.0, %v2586
      %v2588 = vpop.f32.mrf.mxu0
      %2589 = vmatprep.mubr.bf16.mxu0 0
      %2590 = vmatmul.mubr.bf16.gmra.mxu0 %v1244
      %v2591 = vpop.f32.mrf.mxu0
      %v2592 = vadd.f32 0.0, %v2591
      %v2593 = vpop.f32.mrf.mxu0
      %v2594 = vpop.f32.mrf.mxu0
      %v2595 = vadd.f32 0.0, %v2594
      %v2596 = vpop.f32.mrf.mxu0
      %2597 = vmatprep.mubr.bf16.mxu0 0
      %2598 = vmatmul.mubr.bf16.gmra.mxu0 %v1245
      %v2599 = vpop.f32.mrf.mxu0
      %v2600 = vadd.f32 0.0, %v2599
      %v2601 = vpop.f32.mrf.mxu0
      %v2602 = vpop.f32.mrf.mxu0
      %v2603 = vadd.f32 0.0, %v2602
      %v2604 = vpop.f32.mrf.mxu0
      %2605 = vmatprep.mubr.bf16.mxu0 0
      %2606 = vmatmul.mubr.bf16.gmra.mxu0 %v1246
      %v2607 = vpop.f32.mrf.mxu0
      %v2608 = vadd.f32 0.0, %v2607
      %v2609 = vpop.f32.mrf.mxu0
      %v2610 = vpop.f32.mrf.mxu0
      %v2611 = vadd.f32 0.0, %v2610
      %v2612 = vpop.f32.mrf.mxu0
      %2613 = vmatprep.mubr.bf16.mxu0 0
      %2614 = vmatmul.mubr.bf16.gmra.mxu0 %v1247
      %v2615 = vpop.f32.mrf.mxu0
      %v2616 = vadd.f32 0.0, %v2615
      %v2617 = vpop.f32.mrf.mxu0
      %v2618 = vpop.f32.mrf.mxu0
      %v2619 = vadd.f32 0.0, %v2618
      %v2620 = vpop.f32.mrf.mxu0
      %2621 = vmatprep.mubr.bf16.mxu0 0
      %2622 = vmatmul.mubr.bf16.gmra.mxu0 %v1248
      %v2623 = vpop.f32.mrf.mxu0
      %v2624 = vadd.f32 0.0, %v2623
      %v2625 = vpop.f32.mrf.mxu0
      %v2626 = vpop.f32.mrf.mxu0
      %v2627 = vadd.f32 0.0, %v2626
      %v2628 = vpop.f32.mrf.mxu0
      %2629 = vmatprep.mubr.bf16.mxu0 0
      %2630 = vmatmul.mubr.bf16.gmra.mxu0 %v1249
      %v2631 = vpop.f32.mrf.mxu0
      %v2632 = vadd.f32 0.0, %v2631
      %v2633 = vpop.f32.mrf.mxu0
      %v2634 = vpop.f32.mrf.mxu0
      %v2635 = vadd.f32 0.0, %v2634
      %v2636 = vpop.f32.mrf.mxu0
      %2637 = vmatprep.mubr.bf16.mxu0 0
      %2638 = vmatmul.mubr.bf16.gmra.mxu0 %v1250
      %v2639 = vpop.f32.mrf.mxu0
      %v2640 = vadd.f32 0.0, %v2639
      %v2641 = vpop.f32.mrf.mxu0
      %v2642 = vpop.f32.mrf.mxu0
      %v2643 = vadd.f32 0.0, %v2642
      %v2644 = vpop.f32.mrf.mxu0
      %2645 = vmatprep.mubr.bf16.mxu0 0
      %2646 = vmatmul.mubr.bf16.gmra.mxu0 %v1251
      %v2647 = vpop.f32.mrf.mxu0
      %v2648 = vadd.f32 0.0, %v2647
      %v2649 = vpop.f32.mrf.mxu0
      %v2650 = vpop.f32.mrf.mxu0
      %v2651 = vadd.f32 0.0, %v2650
      %v2652 = vpop.f32.mrf.mxu0
      %2653 = vmatprep.mubr.bf16.mxu0 0
      %2654 = vmatmul.mubr.bf16.gmra.mxu0 %v1252
      %v2655 = vpop.f32.mrf.mxu0
      %v2656 = vadd.f32 0.0, %v2655
      %v2657 = vpop.f32.mrf.mxu0
      %v2658 = vpop.f32.mrf.mxu0
      %v2659 = vadd.f32 0.0, %v2658
      %v2660 = vpop.f32.mrf.mxu0
      %2661 = vmatprep.mubr.bf16.mxu0 0
      %2662 = vmatmul.mubr.bf16.gmra.mxu0 %v1253
      %v2663 = vpop.f32.mrf.mxu0
      %v2664 = vadd.f32 0.0, %v2663
      %v2665 = vpop.f32.mrf.mxu0
      %v2666 = vpop.f32.mrf.mxu0
      %v2667 = vadd.f32 0.0, %v2666
      %v2668 = vpop.f32.mrf.mxu0
      %2669 = vdwg.mxu0
      %s2670 = scalar_lea.vmem %s565, 512
      %v2671 = vld [vmem:[%s2670] sm:$0xff]
      %v2672 = vld [vmem:[%s2670 + $0x8] sm:$0xff]
      %v2673 = vld [vmem:[%s2670 + $0x10] sm:$0xff]
      %v2674 = vld [vmem:[%s2670 + $0x18] sm:$0xff]
      %v2675 = vld [vmem:[%s2670 + $0x20] sm:$0xff]
      %v2676 = vld [vmem:[%s2670 + $0x28] sm:$0xff]
      %v2677 = vld [vmem:[%s2670 + $0x30] sm:$0xff]
      %v2678 = vld [vmem:[%s2670 + $0x38] sm:$0xff]
      %v2679 = vld [vmem:[%s2670 + $0x40] sm:$0xff]
      %v2680 = vld [vmem:[%s2670 + $0x48] sm:$0xff]
      %v2681 = vld [vmem:[%s2670 + $0x50] sm:$0xff]
      %v2682 = vld [vmem:[%s2670 + $0x58] sm:$0xff]
      %v2683 = vld [vmem:[%s2670 + $0x60] sm:$0xff]
      %v2684 = vld [vmem:[%s2670 + $0x68] sm:$0xff]
      %v2685 = vld [vmem:[%s2670 + $0x70] sm:$0xff]
      %v2686 = vld [vmem:[%s2670 + $0x78] sm:$0xff]
      %v2687 = vld [vmem:[%s2670 + $0x80] sm:$0xff]
      %v2688 = vld [vmem:[%s2670 + $0x88] sm:$0xff]
      %v2689 = vld [vmem:[%s2670 + $0x90] sm:$0xff]
      %v2690 = vld [vmem:[%s2670 + $0x98] sm:$0xff]
      %v2691 = vld [vmem:[%s2670 + $0xa0] sm:$0xff]
      %v2692 = vld [vmem:[%s2670 + $0xa8] sm:$0xff]
      %v2693 = vld [vmem:[%s2670 + $0xb0] sm:$0xff]
      %v2694 = vld [vmem:[%s2670 + $0xb8] sm:$0xff]
      %v2695 = vld [vmem:[%s2670 + $0xc0] sm:$0xff]
      %v2696 = vld [vmem:[%s2670 + $0xc8] sm:$0xff]
      %v2697 = vld [vmem:[%s2670 + $0xd0] sm:$0xff]
      %v2698 = vld [vmem:[%s2670 + $0xd8] sm:$0xff]
      %v2699 = vld [vmem:[%s2670 + $0xe0] sm:$0xff]
      %v2700 = vld [vmem:[%s2670 + $0xe8] sm:$0xff]
      %v2701 = vld [vmem:[%s2670 + $0xf0] sm:$0xff]
      %v2702 = vld [vmem:[%s2670 + $0xf8] sm:$0xff]
      %v2703 = vpack.c.bf16 %v2547, %v2544
      %v2704 = vpack.c.bf16 %v2555, %v2552
      %v2705 = vpack.c.bf16 %v2563, %v2560
      %v2706 = vpack.c.bf16 %v2571, %v2568
      %v2707 = vpack.c.bf16 %v2579, %v2576
      %v2708 = vpack.c.bf16 %v2587, %v2584
      %v2709 = vpack.c.bf16 %v2595, %v2592
      %v2710 = vpack.c.bf16 %v2603, %v2600
      %v2711 = vpack.c.bf16 %v2611, %v2608
      %v2712 = vpack.c.bf16 %v2619, %v2616
      %v2713 = vpack.c.bf16 %v2627, %v2624
      %v2714 = vpack.c.bf16 %v2635, %v2632
      %v2715 = vpack.c.bf16 %v2643, %v2640
      %v2716 = vpack.c.bf16 %v2651, %v2648
      %v2717 = vpack.c.bf16 %v2659, %v2656
      %v2718 = vpack.c.bf16 %v2667, %v2664
      %v2751 = vunpack.c.l.b16 %v2671
      %v2752 = vunpack.c.h.b16 %v2671
      %v2753 = vunpack.c.l.b16 %v2672
      %v2754 = vunpack.c.h.b16 %v2672
      %v2755 = vunpack.c.l.b16 %v2673
      %v2756 = vunpack.c.h.b16 %v2673
      %v2757 = vunpack.c.l.b16 %v2674
      %v2758 = vunpack.c.h.b16 %v2674
      %v2759 = vunpack.c.l.b16 %v2675
      %v2760 = vunpack.c.h.b16 %v2675
      %v2761 = vunpack.c.l.b16 %v2676
      %v2762 = vunpack.c.h.b16 %v2676
      %v2763 = vunpack.c.l.b16 %v2677
      %v2764 = vunpack.c.h.b16 %v2677
      %v2765 = vunpack.c.l.b16 %v2678
      %v2766 = vunpack.c.h.b16 %v2678
      %v2767 = vunpack.c.l.b16 %v2679
      %v2768 = vunpack.c.h.b16 %v2679
      %v2769 = vunpack.c.l.b16 %v2680
      %v2770 = vunpack.c.h.b16 %v2680
      %v2771 = vunpack.c.l.b16 %v2681
      %v2772 = vunpack.c.h.b16 %v2681
      %v2773 = vunpack.c.l.b16 %v2682
      %v2774 = vunpack.c.h.b16 %v2682
      %v2775 = vunpack.c.l.b16 %v2683
      %v2776 = vunpack.c.h.b16 %v2683
      %v2777 = vunpack.c.l.b16 %v2684
      %v2778 = vunpack.c.h.b16 %v2684
      %v2779 = vunpack.c.l.b16 %v2685
      %v2780 = vunpack.c.h.b16 %v2685
      %v2781 = vunpack.c.l.b16 %v2686
      %v2782 = vunpack.c.h.b16 %v2686
      %v2783 = vunpack.c.l.b16 %v2687
      %v2784 = vunpack.c.h.b16 %v2687
      %v2785 = vunpack.c.l.b16 %v2688
      %v2786 = vunpack.c.h.b16 %v2688
      %v2787 = vunpack.c.l.b16 %v2689
      %v2788 = vunpack.c.h.b16 %v2689
      %v2789 = vunpack.c.l.b16 %v2690
      %v2790 = vunpack.c.h.b16 %v2690
      %v2791 = vunpack.c.l.b16 %v2691
      %v2792 = vunpack.c.h.b16 %v2691
      %v2793 = vunpack.c.l.b16 %v2692
      %v2794 = vunpack.c.h.b16 %v2692
      %v2795 = vunpack.c.l.b16 %v2693
      %v2796 = vunpack.c.h.b16 %v2693
      %v2797 = vunpack.c.l.b16 %v2694
      %v2798 = vunpack.c.h.b16 %v2694
      %v2799 = vunpack.c.l.b16 %v2695
      %v2800 = vunpack.c.h.b16 %v2695
      %v2801 = vunpack.c.l.b16 %v2696
      %v2802 = vunpack.c.h.b16 %v2696
      %v2803 = vunpack.c.l.b16 %v2697
      %v2804 = vunpack.c.h.b16 %v2697
      %v2805 = vunpack.c.l.b16 %v2698
      %v2806 = vunpack.c.h.b16 %v2698
      %v2807 = vunpack.c.l.b16 %v2699
      %v2808 = vunpack.c.h.b16 %v2699
      %v2809 = vunpack.c.l.b16 %v2700
      %v2810 = vunpack.c.h.b16 %v2700
      %v2811 = vunpack.c.l.b16 %v2701
      %v2812 = vunpack.c.h.b16 %v2701
      %v2813 = vunpack.c.l.b16 %v2702
      %v2814 = vunpack.c.h.b16 %v2702
      %v2815 = vpack.c.b16 %v2753, %v2751
      %v2816 = vpack.c.b16 %v2754, %v2752
      %v2817 = vpack.c.b16 %v2757, %v2755
      %v2818 = vpack.c.b16 %v2758, %v2756
      %v2819 = vpack.c.b16 %v2761, %v2759
      %v2820 = vpack.c.b16 %v2762, %v2760
      %v2821 = vpack.c.b16 %v2765, %v2763
      %v2822 = vpack.c.b16 %v2766, %v2764
      %v2823 = vpack.c.b16 %v2769, %v2767
      %v2824 = vpack.c.b16 %v2770, %v2768
      %v2825 = vpack.c.b16 %v2773, %v2771
      %v2826 = vpack.c.b16 %v2774, %v2772
      %v2827 = vpack.c.b16 %v2777, %v2775
      %v2828 = vpack.c.b16 %v2778, %v2776
      %v2829 = vpack.c.b16 %v2781, %v2779
      %v2830 = vpack.c.b16 %v2782, %v2780
      %v2831 = vpack.c.b16 %v2785, %v2783
      %v2832 = vpack.c.b16 %v2786, %v2784
      %v2833 = vpack.c.b16 %v2789, %v2787
      %v2834 = vpack.c.b16 %v2790, %v2788
      %v2835 = vpack.c.b16 %v2793, %v2791
      %v2836 = vpack.c.b16 %v2794, %v2792
      %v2837 = vpack.c.b16 %v2797, %v2795
      %v2838 = vpack.c.b16 %v2798, %v2796
      %v2839 = vpack.c.b16 %v2801, %v2799
      %v2840 = vpack.c.b16 %v2802, %v2800
      %v2841 = vpack.c.b16 %v2805, %v2803
      %v2842 = vpack.c.b16 %v2806, %v2804
      %v2843 = vpack.c.b16 %v2809, %v2807
      %v2844 = vpack.c.b16 %v2810, %v2808
      %v2845 = vpack.c.b16 %v2813, %v2811
      %v2846 = vpack.c.b16 %v2814, %v2812
      %2879 = vmatprep.subr.bf16.mxu0 0
      %2880 = vmatpush1.bf16.msra.mxu0 %v2710
      %2881 = vmatprep.subr.bf16.mxu0 0
      %2882 = vmatpush1.bf16.msra.mxu0 %v2709
      %2883 = vmatprep.subr.bf16.mxu0 0
      %2884 = vmatpush1.bf16.msra.mxu0 %v2708
      %2885 = vmatprep.subr.bf16.mxu0 0
      %2886 = vmatpush1.bf16.msra.mxu0 %v2707
      %2887 = vmatprep.subr.bf16.mxu0 0
      %2888 = vmatpush1.bf16.msra.mxu0 %v2706
      %2889 = vmatprep.subr.bf16.mxu0 0
      %2890 = vmatpush1.bf16.msra.mxu0 %v2705
      %2891 = vmatprep.subr.bf16.mxu0 0
      %2892 = vmatpush1.bf16.msra.mxu0 %v2704
      %2893 = vmatprep.subr.bf16.mxu0 0
      %2894 = vmatpush1.bf16.msra.mxu0 %v2703
      %2895 = vmatprep.subr.bf16.mxu0 0
      %2896 = vmatpush2.bf16.msra.mxu0 %v2718
      %2897 = vmatprep.subr.bf16.mxu0 0
      %2898 = vmatpush2.bf16.msra.mxu0 %v2717
      %2899 = vmatprep.subr.bf16.mxu0 0
      %2900 = vmatpush2.bf16.msra.mxu0 %v2716
      %2901 = vmatprep.subr.bf16.mxu0 0
      %2902 = vmatpush2.bf16.msra.mxu0 %v2715
      %2903 = vmatprep.subr.bf16.mxu0 0
      %2904 = vmatpush2.bf16.msra.mxu0 %v2714
      %2905 = vmatprep.subr.bf16.mxu0 0
      %2906 = vmatpush2.bf16.msra.mxu0 %v2713
      %2907 = vmatprep.subr.bf16.mxu0 0
      %2908 = vmatpush2.bf16.msra.mxu0 %v2712
      %2909 = vmatprep.subr.bf16.mxu0 0
      %2910 = vmatpush2.bf16.msra.mxu0 %v2711
      %2911 = vmatprep.mubr.bf16.mxu0 %v2816
      %2912 = vmatmul.mubr.bf16.gmra.mxu0 %v2815
      %v2913 = vpop.f32.mrf.mxu0
      %v2914 = vadd.f32 0.0, %v2913
      %v2915 = vpop.f32.mrf.mxu0
      %v2916 = vpop.f32.mrf.mxu0
      %v2917 = vadd.f32 0.0, %v2916
      %v2918 = vpop.f32.mrf.mxu0
      %2919 = vmatprep.mubr.bf16.mxu0 %v2818
      %2920 = vmatmul.mubr.bf16.gmra.mxu0 %v2817
      %v2921 = vpop.f32.mrf.mxu0
      %v2922 = vadd.f32 0.0, %v2921
      %v2923 = vpop.f32.mrf.mxu0
      %v2924 = vpop.f32.mrf.mxu0
      %v2925 = vadd.f32 0.0, %v2924
      %v2926 = vpop.f32.mrf.mxu0
      %2927 = vmatprep.mubr.bf16.mxu0 %v2820
      %2928 = vmatmul.mubr.bf16.gmra.mxu0 %v2819
      %v2929 = vpop.f32.mrf.mxu0
      %v2930 = vadd.f32 0.0, %v2929
      %v2931 = vpop.f32.mrf.mxu0
      %v2932 = vpop.f32.mrf.mxu0
      %v2933 = vadd.f32 0.0, %v2932
      %v2934 = vpop.f32.mrf.mxu0
      %2935 = vmatprep.mubr.bf16.mxu0 %v2822
      %2936 = vmatmul.mubr.bf16.gmra.mxu0 %v2821
      %v2937 = vpop.f32.mrf.mxu0
      %v2938 = vadd.f32 0.0, %v2937
      %v2939 = vpop.f32.mrf.mxu0
      %v2940 = vpop.f32.mrf.mxu0
      %v2941 = vadd.f32 0.0, %v2940
      %v2942 = vpop.f32.mrf.mxu0
      %2943 = vmatprep.mubr.bf16.mxu0 %v2824
      %2944 = vmatmul.mubr.bf16.gmra.mxu0 %v2823
      %v2945 = vpop.f32.mrf.mxu0
      %v2946 = vadd.f32 0.0, %v2945
      %v2947 = vpop.f32.mrf.mxu0
      %v2948 = vpop.f32.mrf.mxu0
      %v2949 = vadd.f32 0.0, %v2948
      %v2950 = vpop.f32.mrf.mxu0
      %2951 = vmatprep.mubr.bf16.mxu0 %v2826
      %2952 = vmatmul.mubr.bf16.gmra.mxu0 %v2825
      %v2953 = vpop.f32.mrf.mxu0
      %v2954 = vadd.f32 0.0, %v2953
      %v2955 = vpop.f32.mrf.mxu0
      %v2956 = vpop.f32.mrf.mxu0
      %v2957 = vadd.f32 0.0, %v2956
      %v2958 = vpop.f32.mrf.mxu0
      %2959 = vmatprep.mubr.bf16.mxu0 %v2828
      %2960 = vmatmul.mubr.bf16.gmra.mxu0 %v2827
      %v2961 = vpop.f32.mrf.mxu0
      %v2962 = vadd.f32 0.0, %v2961
      %v2963 = vpop.f32.mrf.mxu0
      %v2964 = vpop.f32.mrf.mxu0
      %v2965 = vadd.f32 0.0, %v2964
      %v2966 = vpop.f32.mrf.mxu0
      %2967 = vmatprep.mubr.bf16.mxu0 %v2830
      %2968 = vmatmul.mubr.bf16.gmra.mxu0 %v2829
      %v2969 = vpop.f32.mrf.mxu0
      %v2970 = vadd.f32 0.0, %v2969
      %v2971 = vpop.f32.mrf.mxu0
      %v2972 = vpop.f32.mrf.mxu0
      %v2973 = vadd.f32 0.0, %v2972
      %v2974 = vpop.f32.mrf.mxu0
      %2975 = vmatprep.mubr.bf16.mxu0 %v2832
      %2976 = vmatmul.mubr.bf16.gmra.mxu0 %v2831
      %v2977 = vpop.f32.mrf.mxu0
      %v2978 = vadd.f32 0.0, %v2977
      %v2979 = vpop.f32.mrf.mxu0
      %v2980 = vpop.f32.mrf.mxu0
      %v2981 = vadd.f32 0.0, %v2980
      %v2982 = vpop.f32.mrf.mxu0
      %2983 = vmatprep.mubr.bf16.mxu0 %v2834
      %2984 = vmatmul.mubr.bf16.gmra.mxu0 %v2833
      %v2985 = vpop.f32.mrf.mxu0
      %v2986 = vadd.f32 0.0, %v2985
      %v2987 = vpop.f32.mrf.mxu0
      %v2988 = vpop.f32.mrf.mxu0
      %v2989 = vadd.f32 0.0, %v2988
      %v2990 = vpop.f32.mrf.mxu0
      %2991 = vmatprep.mubr.bf16.mxu0 %v2836
      %2992 = vmatmul.mubr.bf16.gmra.mxu0 %v2835
      %v2993 = vpop.f32.mrf.mxu0
      %v2994 = vadd.f32 0.0, %v2993
      %v2995 = vpop.f32.mrf.mxu0
      %v2996 = vpop.f32.mrf.mxu0
      %v2997 = vadd.f32 0.0, %v2996
      %v2998 = vpop.f32.mrf.mxu0
      %2999 = vmatprep.mubr.bf16.mxu0 %v2838
      %3000 = vmatmul.mubr.bf16.gmra.mxu0 %v2837
      %v3001 = vpop.f32.mrf.mxu0
      %v3002 = vadd.f32 0.0, %v3001
      %v3003 = vpop.f32.mrf.mxu0
      %v3004 = vpop.f32.mrf.mxu0
      %v3005 = vadd.f32 0.0, %v3004
      %v3006 = vpop.f32.mrf.mxu0
      %3007 = vmatprep.mubr.bf16.mxu0 %v2840
      %3008 = vmatmul.mubr.bf16.gmra.mxu0 %v2839
      %v3009 = vpop.f32.mrf.mxu0
      %v3010 = vadd.f32 0.0, %v3009
      %v3011 = vpop.f32.mrf.mxu0
      %v3012 = vpop.f32.mrf.mxu0
      %v3013 = vadd.f32 0.0, %v3012
      %v3014 = vpop.f32.mrf.mxu0
      %3015 = vmatprep.mubr.bf16.mxu0 %v2842
      %3016 = vmatmul.mubr.bf16.gmra.mxu0 %v2841
      %v3017 = vpop.f32.mrf.mxu0
      %v3018 = vadd.f32 0.0, %v3017
      %v3019 = vpop.f32.mrf.mxu0
      %v3020 = vpop.f32.mrf.mxu0
      %v3021 = vadd.f32 0.0, %v3020
      %v3022 = vpop.f32.mrf.mxu0
      %3023 = vmatprep.mubr.bf16.mxu0 %v2844
      %3024 = vmatmul.mubr.bf16.gmra.mxu0 %v2843
      %v3025 = vpop.f32.mrf.mxu0
      %v3026 = vadd.f32 0.0, %v3025
      %v3027 = vpop.f32.mrf.mxu0
      %v3028 = vpop.f32.mrf.mxu0
      %v3029 = vadd.f32 0.0, %v3028
      %v3030 = vpop.f32.mrf.mxu0
      %3031 = vmatprep.mubr.bf16.mxu0 %v2846
      %3032 = vmatmul.mubr.bf16.gmra.mxu0 %v2845
      %v3033 = vpop.f32.mrf.mxu0
      %v3034 = vadd.f32 0.0, %v3033
      %v3035 = vpop.f32.mrf.mxu0
      %v3036 = vpop.f32.mrf.mxu0
      %v3037 = vadd.f32 0.0, %v3036
      %v3038 = vpop.f32.mrf.mxu0
      %3039 = vdwg.mxu0
      %v3040 = vadd.f32 %v2318, %v2914
      %v3041 = vadd.f32 %v2321, %v2917
      %v3042 = vadd.f32 %v2326, %v2922
      %v3043 = vadd.f32 %v2329, %v2925
      %v3044 = vadd.f32 %v2334, %v2930
      %v3045 = vadd.f32 %v2337, %v2933
      %v3046 = vadd.f32 %v2342, %v2938
      %v3047 = vadd.f32 %v2345, %v2941
      %v3048 = vadd.f32 %v2350, %v2946
      %v3049 = vadd.f32 %v2353, %v2949
      %v3050 = vadd.f32 %v2358, %v2954
      %v3051 = vadd.f32 %v2361, %v2957
      %v3052 = vadd.f32 %v2366, %v2962
      %v3053 = vadd.f32 %v2369, %v2965
      %v3054 = vadd.f32 %v2374, %v2970
      %v3055 = vadd.f32 %v2377, %v2973
      %v3056 = vadd.f32 %v2382, %v2978
      %v3057 = vadd.f32 %v2385, %v2981
      %v3058 = vadd.f32 %v2390, %v2986
      %v3059 = vadd.f32 %v2393, %v2989
      %v3060 = vadd.f32 %v2398, %v2994
      %v3061 = vadd.f32 %v2401, %v2997
      %v3062 = vadd.f32 %v2406, %v3002
      %v3063 = vadd.f32 %v2409, %v3005
      %v3064 = vadd.f32 %v2414, %v3010
      %v3065 = vadd.f32 %v2417, %v3013
      %v3066 = vadd.f32 %v2422, %v3018
      %v3067 = vadd.f32 %v2425, %v3021
      %v3068 = vadd.f32 %v2430, %v3026
      %v3069 = vadd.f32 %v2433, %v3029
      %v3070 = vadd.f32 %v2438, %v3034
      %v3071 = vadd.f32 %v2441, %v3037
      %s3072 = scalar_lea.vmem %s2, 192
      %v3073 = vld [vmem:[%s3072] sm:$0xf]
      %v3074 = vld [vmem:[%s3072 + $0x4] sm:$0xf]
      %v3075 = vld [vmem:[%s3072 + $0x8] sm:$0xf]
      %v3076 = vld [vmem:[%s3072 + $0xc] sm:$0xf]
      %v3077 = vld [vmem:[%s3072 + $0x10] sm:$0xf]
      %v3078 = vld [vmem:[%s3072 + $0x14] sm:$0xf]
      %v3079 = vld [vmem:[%s3072 + $0x18] sm:$0xf]
      %v3080 = vld [vmem:[%s3072 + $0x1c] sm:$0xf]
      %v3081 = vld [vmem:[%s3072 + $0x20] sm:$0xf]
      %v3082 = vld [vmem:[%s3072 + $0x24] sm:$0xf]
      %v3083 = vld [vmem:[%s3072 + $0x28] sm:$0xf]
      %v3084 = vld [vmem:[%s3072 + $0x2c] sm:$0xf]
      %v3085 = vld [vmem:[%s3072 + $0x30] sm:$0xf]
      %v3086 = vld [vmem:[%s3072 + $0x34] sm:$0xf]
      %v3087 = vld [vmem:[%s3072 + $0x38] sm:$0xf]
      %v3088 = vld [vmem:[%s3072 + $0x3c] sm:$0xf]
      %v3105 = vunpack.c.l.b16 %v3073
      %v3106 = vunpack.c.l.b16 %v3074
      %v3107 = vunpack.c.l.b16 %v3075
      %v3108 = vunpack.c.l.b16 %v3076
      %v3109 = vunpack.c.l.b16 %v3077
      %v3110 = vunpack.c.l.b16 %v3078
      %v3111 = vunpack.c.l.b16 %v3079
      %v3112 = vunpack.c.l.b16 %v3080
      %v3113 = vunpack.c.l.b16 %v3081
      %v3114 = vunpack.c.l.b16 %v3082
      %v3115 = vunpack.c.l.b16 %v3083
      %v3116 = vunpack.c.l.b16 %v3084
      %v3117 = vunpack.c.l.b16 %v3085
      %v3118 = vunpack.c.l.b16 %v3086
      %v3119 = vunpack.c.l.b16 %v3087
      %v3120 = vunpack.c.l.b16 %v3088
      %v3121 = vpack.c.b16 %v3106, %v3105
      %v3122 = vpack.c.b16 %v3108, %v3107
      %v3123 = vpack.c.b16 %v3110, %v3109
      %v3124 = vpack.c.b16 %v3112, %v3111
      %v3125 = vpack.c.b16 %v3114, %v3113
      %v3126 = vpack.c.b16 %v3116, %v3115
      %v3127 = vpack.c.b16 %v3118, %v3117
      %v3128 = vpack.c.b16 %v3120, %v3119
      %3137 = vmatprep.subr.bf16.mxu0 0
      %3138 = vmatpush1.bf16.msra.mxu0 %v3128
      %3139 = vmatprep.subr.bf16.mxu0 0
      %3140 = vmatpush1.bf16.msra.mxu0 %v3127
      %3141 = vmatprep.subr.bf16.mxu0 0
      %3142 = vmatpush1.bf16.msra.mxu0 %v3126
      %3143 = vmatprep.subr.bf16.mxu0 0
      %3144 = vmatpush1.bf16.msra.mxu0 %v3125
      %3145 = vmatprep.subr.bf16.mxu0 0
      %3146 = vmatpush1.bf16.msra.mxu0 %v3124
      %3147 = vmatprep.subr.bf16.mxu0 0
      %3148 = vmatpush1.bf16.msra.mxu0 %v3123
      %3149 = vmatprep.subr.bf16.mxu0 0
      %3150 = vmatpush1.bf16.msra.mxu0 %v3122
      %3151 = vmatprep.subr.bf16.mxu0 0
      %3152 = vmatpush1.bf16.msra.mxu0 %v3121
      %3153 = vmatprep.subr.bf16.mxu0 0
      %3154 = vmatpush2.bf16.msra.mxu0 0
      %3155 = vmatprep.subr.bf16.mxu0 0
      %3156 = vmatpush2.bf16.msra.mxu0 0
      %3157 = vmatprep.subr.bf16.mxu0 0
      %3158 = vmatpush2.bf16.msra.mxu0 0
      %3159 = vmatprep.subr.bf16.mxu0 0
      %3160 = vmatpush2.bf16.msra.mxu0 0
      %3161 = vmatprep.subr.bf16.mxu0 0
      %3162 = vmatpush2.bf16.msra.mxu0 0
      %3163 = vmatprep.subr.bf16.mxu0 0
      %3164 = vmatpush2.bf16.msra.mxu0 0
      %3165 = vmatprep.subr.bf16.mxu0 0
      %3166 = vmatpush2.bf16.msra.mxu0 0
      %3167 = vmatprep.subr.bf16.mxu0 0
      %3168 = vmatpush2.bf16.msra.mxu0 0
      %3169 = vmatprep.mubr.bf16.mxu0 0
      %3170 = vmatmul.mubr.bf16.gmra.mxu0 %v1238
      %v3171 = vpop.f32.mrf.mxu0
      %v3172 = vadd.f32 0.0, %v3171
      %v3173 = vpop.f32.mrf.mxu0
      %v3174 = vpop.f32.mrf.mxu0
      %v3175 = vadd.f32 0.0, %v3174
      %v3176 = vpop.f32.mrf.mxu0
      %3177 = vmatprep.mubr.bf16.mxu0 0
      %3178 = vmatmul.mubr.bf16.gmra.mxu0 %v1239
      %v3179 = vpop.f32.mrf.mxu0
      %v3180 = vadd.f32 0.0, %v3179
      %v3181 = vpop.f32.mrf.mxu0
      %v3182 = vpop.f32.mrf.mxu0
      %v3183 = vadd.f32 0.0, %v3182
      %v3184 = vpop.f32.mrf.mxu0
      %3185 = vmatprep.mubr.bf16.mxu0 0
      %3186 = vmatmul.mubr.bf16.gmra.mxu0 %v1240
      %v3187 = vpop.f32.mrf.mxu0
      %v3188 = vadd.f32 0.0, %v3187
      %v3189 = vpop.f32.mrf.mxu0
      %v3190 = vpop.f32.mrf.mxu0
      %v3191 = vadd.f32 0.0, %v3190
      %v3192 = vpop.f32.mrf.mxu0
      %3193 = vmatprep.mubr.bf16.mxu0 0
      %3194 = vmatmul.mubr.bf16.gmra.mxu0 %v1241
      %v3195 = vpop.f32.mrf.mxu0
      %v3196 = vadd.f32 0.0, %v3195
      %v3197 = vpop.f32.mrf.mxu0
      %v3198 = vpop.f32.mrf.mxu0
      %v3199 = vadd.f32 0.0, %v3198
      %v3200 = vpop.f32.mrf.mxu0
      %3201 = vmatprep.mubr.bf16.mxu0 0
      %3202 = vmatmul.mubr.bf16.gmra.mxu0 %v1242
      %v3203 = vpop.f32.mrf.mxu0
      %v3204 = vadd.f32 0.0, %v3203
      %v3205 = vpop.f32.mrf.mxu0
      %v3206 = vpop.f32.mrf.mxu0
      %v3207 = vadd.f32 0.0, %v3206
      %v3208 = vpop.f32.mrf.mxu0
      %3209 = vmatprep.mubr.bf16.mxu0 0
      %3210 = vmatmul.mubr.bf16.gmra.mxu0 %v1243
      %v3211 = vpop.f32.mrf.mxu0
      %v3212 = vadd.f32 0.0, %v3211
      %v3213 = vpop.f32.mrf.mxu0
      %v3214 = vpop.f32.mrf.mxu0
      %v3215 = vadd.f32 0.0, %v3214
      %v3216 = vpop.f32.mrf.mxu0
      %3217 = vmatprep.mubr.bf16.mxu0 0
      %3218 = vmatmul.mubr.bf16.gmra.mxu0 %v1244
      %v3219 = vpop.f32.mrf.mxu0
      %v3220 = vadd.f32 0.0, %v3219
      %v3221 = vpop.f32.mrf.mxu0
      %v3222 = vpop.f32.mrf.mxu0
      %v3223 = vadd.f32 0.0, %v3222
      %v3224 = vpop.f32.mrf.mxu0
      %3225 = vmatprep.mubr.bf16.mxu0 0
      %3226 = vmatmul.mubr.bf16.gmra.mxu0 %v1245
      %v3227 = vpop.f32.mrf.mxu0
      %v3228 = vadd.f32 0.0, %v3227
      %v3229 = vpop.f32.mrf.mxu0
      %v3230 = vpop.f32.mrf.mxu0
      %v3231 = vadd.f32 0.0, %v3230
      %v3232 = vpop.f32.mrf.mxu0
      %3233 = vmatprep.mubr.bf16.mxu0 0
      %3234 = vmatmul.mubr.bf16.gmra.mxu0 %v1246
      %v3235 = vpop.f32.mrf.mxu0
      %v3236 = vadd.f32 0.0, %v3235
      %v3237 = vpop.f32.mrf.mxu0
      %v3238 = vpop.f32.mrf.mxu0
      %v3239 = vadd.f32 0.0, %v3238
      %v3240 = vpop.f32.mrf.mxu0
      %3241 = vmatprep.mubr.bf16.mxu0 0
      %3242 = vmatmul.mubr.bf16.gmra.mxu0 %v1247
      %v3243 = vpop.f32.mrf.mxu0
      %v3244 = vadd.f32 0.0, %v3243
      %v3245 = vpop.f32.mrf.mxu0
      %v3246 = vpop.f32.mrf.mxu0
      %v3247 = vadd.f32 0.0, %v3246
      %v3248 = vpop.f32.mrf.mxu0
      %3249 = vmatprep.mubr.bf16.mxu0 0
      %3250 = vmatmul.mubr.bf16.gmra.mxu0 %v1248
      %v3251 = vpop.f32.mrf.mxu0
      %v3252 = vadd.f32 0.0, %v3251
      %v3253 = vpop.f32.mrf.mxu0
      %v3254 = vpop.f32.mrf.mxu0
      %v3255 = vadd.f32 0.0, %v3254
      %v3256 = vpop.f32.mrf.mxu0
      %3257 = vmatprep.mubr.bf16.mxu0 0
      %3258 = vmatmul.mubr.bf16.gmra.mxu0 %v1249
      %v3259 = vpop.f32.mrf.mxu0
      %v3260 = vadd.f32 0.0, %v3259
      %v3261 = vpop.f32.mrf.mxu0
      %v3262 = vpop.f32.mrf.mxu0
      %v3263 = vadd.f32 0.0, %v3262
      %v3264 = vpop.f32.mrf.mxu0
      %3265 = vmatprep.mubr.bf16.mxu0 0
      %3266 = vmatmul.mubr.bf16.gmra.mxu0 %v1250
      %v3267 = vpop.f32.mrf.mxu0
      %v3268 = vadd.f32 0.0, %v3267
      %v3269 = vpop.f32.mrf.mxu0
      %v3270 = vpop.f32.mrf.mxu0
      %v3271 = vadd.f32 0.0, %v3270
      %v3272 = vpop.f32.mrf.mxu0
      %3273 = vmatprep.mubr.bf16.mxu0 0
      %3274 = vmatmul.mubr.bf16.gmra.mxu0 %v1251
      %v3275 = vpop.f32.mrf.mxu0
      %v3276 = vadd.f32 0.0, %v3275
      %v3277 = vpop.f32.mrf.mxu0
      %v3278 = vpop.f32.mrf.mxu0
      %v3279 = vadd.f32 0.0, %v3278
      %v3280 = vpop.f32.mrf.mxu0
      %3281 = vmatprep.mubr.bf16.mxu0 0
      %3282 = vmatmul.mubr.bf16.gmra.mxu0 %v1252
      %v3283 = vpop.f32.mrf.mxu0
      %v3284 = vadd.f32 0.0, %v3283
      %v3285 = vpop.f32.mrf.mxu0
      %v3286 = vpop.f32.mrf.mxu0
      %v3287 = vadd.f32 0.0, %v3286
      %v3288 = vpop.f32.mrf.mxu0
      %3289 = vmatprep.mubr.bf16.mxu0 0
      %3290 = vmatmul.mubr.bf16.gmra.mxu0 %v1253
      %v3291 = vpop.f32.mrf.mxu0
      %v3292 = vadd.f32 0.0, %v3291
      %v3293 = vpop.f32.mrf.mxu0
      %v3294 = vpop.f32.mrf.mxu0
      %v3295 = vadd.f32 0.0, %v3294
      %v3296 = vpop.f32.mrf.mxu0
      %3297 = vdwg.mxu0
      %s3298 = scalar_lea.vmem %s565, 768
      %v3299 = vld [vmem:[%s3298] sm:$0xff]
      %v3300 = vld [vmem:[%s3298 + $0x8] sm:$0xff]
      %v3301 = vld [vmem:[%s3298 + $0x10] sm:$0xff]
      %v3302 = vld [vmem:[%s3298 + $0x18] sm:$0xff]
      %v3303 = vld [vmem:[%s3298 + $0x20] sm:$0xff]
      %v3304 = vld [vmem:[%s3298 + $0x28] sm:$0xff]
      %v3305 = vld [vmem:[%s3298 + $0x30] sm:$0xff]
      %v3306 = vld [vmem:[%s3298 + $0x38] sm:$0xff]
      %v3307 = vld [vmem:[%s3298 + $0x40] sm:$0xff]
      %v3308 = vld [vmem:[%s3298 + $0x48] sm:$0xff]
      %v3309 = vld [vmem:[%s3298 + $0x50] sm:$0xff]
      %v3310 = vld [vmem:[%s3298 + $0x58] sm:$0xff]
      %v3311 = vld [vmem:[%s3298 + $0x60] sm:$0xff]
      %v3312 = vld [vmem:[%s3298 + $0x68] sm:$0xff]
      %v3313 = vld [vmem:[%s3298 + $0x70] sm:$0xff]
      %v3314 = vld [vmem:[%s3298 + $0x78] sm:$0xff]
      %v3315 = vld [vmem:[%s3298 + $0x80] sm:$0xff]
      %v3316 = vld [vmem:[%s3298 + $0x88] sm:$0xff]
      %v3317 = vld [vmem:[%s3298 + $0x90] sm:$0xff]
      %v3318 = vld [vmem:[%s3298 + $0x98] sm:$0xff]
      %v3319 = vld [vmem:[%s3298 + $0xa0] sm:$0xff]
      %v3320 = vld [vmem:[%s3298 + $0xa8] sm:$0xff]
      %v3321 = vld [vmem:[%s3298 + $0xb0] sm:$0xff]
      %v3322 = vld [vmem:[%s3298 + $0xb8] sm:$0xff]
      %v3323 = vld [vmem:[%s3298 + $0xc0] sm:$0xff]
      %v3324 = vld [vmem:[%s3298 + $0xc8] sm:$0xff]
      %v3325 = vld [vmem:[%s3298 + $0xd0] sm:$0xff]
      %v3326 = vld [vmem:[%s3298 + $0xd8] sm:$0xff]
      %v3327 = vld [vmem:[%s3298 + $0xe0] sm:$0xff]
      %v3328 = vld [vmem:[%s3298 + $0xe8] sm:$0xff]
      %v3329 = vld [vmem:[%s3298 + $0xf0] sm:$0xff]
      %v3330 = vld [vmem:[%s3298 + $0xf8] sm:$0xff]
      %v3331 = vpack.c.bf16 %v3175, %v3172
      %v3332 = vpack.c.bf16 %v3183, %v3180
      %v3333 = vpack.c.bf16 %v3191, %v3188
      %v3334 = vpack.c.bf16 %v3199, %v3196
      %v3335 = vpack.c.bf16 %v3207, %v3204
      %v3336 = vpack.c.bf16 %v3215, %v3212
      %v3337 = vpack.c.bf16 %v3223, %v3220
      %v3338 = vpack.c.bf16 %v3231, %v3228
      %v3339 = vpack.c.bf16 %v3239, %v3236
      %v3340 = vpack.c.bf16 %v3247, %v3244
      %v3341 = vpack.c.bf16 %v3255, %v3252
      %v3342 = vpack.c.bf16 %v3263, %v3260
      %v3343 = vpack.c.bf16 %v3271, %v3268
      %v3344 = vpack.c.bf16 %v3279, %v3276
      %v3345 = vpack.c.bf16 %v3287, %v3284
      %v3346 = vpack.c.bf16 %v3295, %v3292
      %v3379 = vunpack.c.l.b16 %v3299
      %v3380 = vunpack.c.h.b16 %v3299
      %v3381 = vunpack.c.l.b16 %v3300
      %v3382 = vunpack.c.h.b16 %v3300
      %v3383 = vunpack.c.l.b16 %v3301
      %v3384 = vunpack.c.h.b16 %v3301
      %v3385 = vunpack.c.l.b16 %v3302
      %v3386 = vunpack.c.h.b16 %v3302
      %v3387 = vunpack.c.l.b16 %v3303
      %v3388 = vunpack.c.h.b16 %v3303
      %v3389 = vunpack.c.l.b16 %v3304
      %v3390 = vunpack.c.h.b16 %v3304
      %v3391 = vunpack.c.l.b16 %v3305
      %v3392 = vunpack.c.h.b16 %v3305
      %v3393 = vunpack.c.l.b16 %v3306
      %v3394 = vunpack.c.h.b16 %v3306
      %v3395 = vunpack.c.l.b16 %v3307
      %v3396 = vunpack.c.h.b16 %v3307
      %v3397 = vunpack.c.l.b16 %v3308
      %v3398 = vunpack.c.h.b16 %v3308
      %v3399 = vunpack.c.l.b16 %v3309
      %v3400 = vunpack.c.h.b16 %v3309
      %v3401 = vunpack.c.l.b16 %v3310
      %v3402 = vunpack.c.h.b16 %v3310
      %v3403 = vunpack.c.l.b16 %v3311
      %v3404 = vunpack.c.h.b16 %v3311
      %v3405 = vunpack.c.l.b16 %v3312
      %v3406 = vunpack.c.h.b16 %v3312
      %v3407 = vunpack.c.l.b16 %v3313
      %v3408 = vunpack.c.h.b16 %v3313
      %v3409 = vunpack.c.l.b16 %v3314
      %v3410 = vunpack.c.h.b16 %v3314
      %v3411 = vunpack.c.l.b16 %v3315
      %v3412 = vunpack.c.h.b16 %v3315
      %v3413 = vunpack.c.l.b16 %v3316
      %v3414 = vunpack.c.h.b16 %v3316
      %v3415 = vunpack.c.l.b16 %v3317
      %v3416 = vunpack.c.h.b16 %v3317
      %v3417 = vunpack.c.l.b16 %v3318
      %v3418 = vunpack.c.h.b16 %v3318
      %v3419 = vunpack.c.l.b16 %v3319
      %v3420 = vunpack.c.h.b16 %v3319
      %v3421 = vunpack.c.l.b16 %v3320
      %v3422 = vunpack.c.h.b16 %v3320
      %v3423 = vunpack.c.l.b16 %v3321
      %v3424 = vunpack.c.h.b16 %v3321
      %v3425 = vunpack.c.l.b16 %v3322
      %v3426 = vunpack.c.h.b16 %v3322
      %v3427 = vunpack.c.l.b16 %v3323
      %v3428 = vunpack.c.h.b16 %v3323
      %v3429 = vunpack.c.l.b16 %v3324
      %v3430 = vunpack.c.h.b16 %v3324
      %v3431 = vunpack.c.l.b16 %v3325
      %v3432 = vunpack.c.h.b16 %v3325
      %v3433 = vunpack.c.l.b16 %v3326
      %v3434 = vunpack.c.h.b16 %v3326
      %v3435 = vunpack.c.l.b16 %v3327
      %v3436 = vunpack.c.h.b16 %v3327
      %v3437 = vunpack.c.l.b16 %v3328
      %v3438 = vunpack.c.h.b16 %v3328
      %v3439 = vunpack.c.l.b16 %v3329
      %v3440 = vunpack.c.h.b16 %v3329
      %v3441 = vunpack.c.l.b16 %v3330
      %v3442 = vunpack.c.h.b16 %v3330
      %v3443 = vpack.c.b16 %v3381, %v3379
      %v3444 = vpack.c.b16 %v3382, %v3380
      %v3445 = vpack.c.b16 %v3385, %v3383
      %v3446 = vpack.c.b16 %v3386, %v3384
      %v3447 = vpack.c.b16 %v3389, %v3387
      %v3448 = vpack.c.b16 %v3390, %v3388
      %v3449 = vpack.c.b16 %v3393, %v3391
      %v3450 = vpack.c.b16 %v3394, %v3392
      %v3451 = vpack.c.b16 %v3397, %v3395
      %v3452 = vpack.c.b16 %v3398, %v3396
      %v3453 = vpack.c.b16 %v3401, %v3399
      %v3454 = vpack.c.b16 %v3402, %v3400
      %v3455 = vpack.c.b16 %v3405, %v3403
      %v3456 = vpack.c.b16 %v3406, %v3404
      %v3457 = vpack.c.b16 %v3409, %v3407
      %v3458 = vpack.c.b16 %v3410, %v3408
      %v3459 = vpack.c.b16 %v3413, %v3411
      %v3460 = vpack.c.b16 %v3414, %v3412
      %v3461 = vpack.c.b16 %v3417, %v3415
      %v3462 = vpack.c.b16 %v3418, %v3416
      %v3463 = vpack.c.b16 %v3421, %v3419
      %v3464 = vpack.c.b16 %v3422, %v3420
      %v3465 = vpack.c.b16 %v3425, %v3423
      %v3466 = vpack.c.b16 %v3426, %v3424
      %v3467 = vpack.c.b16 %v3429, %v3427
      %v3468 = vpack.c.b16 %v3430, %v3428
      %v3469 = vpack.c.b16 %v3433, %v3431
      %v3470 = vpack.c.b16 %v3434, %v3432
      %v3471 = vpack.c.b16 %v3437, %v3435
      %v3472 = vpack.c.b16 %v3438, %v3436
      %v3473 = vpack.c.b16 %v3441, %v3439
      %v3474 = vpack.c.b16 %v3442, %v3440
      %3507 = vmatprep.subr.bf16.mxu0 0
      %3508 = vmatpush1.bf16.msra.mxu0 %v3338
      %3509 = vmatprep.subr.bf16.mxu0 0
      %3510 = vmatpush1.bf16.msra.mxu0 %v3337
      %3511 = vmatprep.subr.bf16.mxu0 0
      %3512 = vmatpush1.bf16.msra.mxu0 %v3336
      %3513 = vmatprep.subr.bf16.mxu0 0
      %3514 = vmatpush1.bf16.msra.mxu0 %v3335
      %3515 = vmatprep.subr.bf16.mxu0 0
      %3516 = vmatpush1.bf16.msra.mxu0 %v3334
      %3517 = vmatprep.subr.bf16.mxu0 0
      %3518 = vmatpush1.bf16.msra.mxu0 %v3333
      %3519 = vmatprep.subr.bf16.mxu0 0
      %3520 = vmatpush1.bf16.msra.mxu0 %v3332
      %3521 = vmatprep.subr.bf16.mxu0 0
      %3522 = vmatpush1.bf16.msra.mxu0 %v3331
      %3523 = vmatprep.subr.bf16.mxu0 0
      %3524 = vmatpush2.bf16.msra.mxu0 %v3346
      %3525 = vmatprep.subr.bf16.mxu0 0
      %3526 = vmatpush2.bf16.msra.mxu0 %v3345
      %3527 = vmatprep.subr.bf16.mxu0 0
      %3528 = vmatpush2.bf16.msra.mxu0 %v3344
      %3529 = vmatprep.subr.bf16.mxu0 0
      %3530 = vmatpush2.bf16.msra.mxu0 %v3343
      %3531 = vmatprep.subr.bf16.mxu0 0
      %3532 = vmatpush2.bf16.msra.mxu0 %v3342
      %3533 = vmatprep.subr.bf16.mxu0 0
      %3534 = vmatpush2.bf16.msra.mxu0 %v3341
      %3535 = vmatprep.subr.bf16.mxu0 0
      %3536 = vmatpush2.bf16.msra.mxu0 %v3340
      %3537 = vmatprep.subr.bf16.mxu0 0
      %3538 = vmatpush2.bf16.msra.mxu0 %v3339
      %3539 = vmatprep.mubr.bf16.mxu0 %v3444
      %3540 = vmatmul.mubr.bf16.gmra.mxu0 %v3443
      %v3541 = vpop.f32.mrf.mxu0
      %v3542 = vadd.f32 0.0, %v3541
      %v3543 = vpop.f32.mrf.mxu0
      %v3544 = vpop.f32.mrf.mxu0
      %v3545 = vadd.f32 0.0, %v3544
      %v3546 = vpop.f32.mrf.mxu0
      %3547 = vmatprep.mubr.bf16.mxu0 %v3446
      %3548 = vmatmul.mubr.bf16.gmra.mxu0 %v3445
      %v3549 = vpop.f32.mrf.mxu0
      %v3550 = vadd.f32 0.0, %v3549
      %v3551 = vpop.f32.mrf.mxu0
      %v3552 = vpop.f32.mrf.mxu0
      %v3553 = vadd.f32 0.0, %v3552
      %v3554 = vpop.f32.mrf.mxu0
      %3555 = vmatprep.mubr.bf16.mxu0 %v3448
      %3556 = vmatmul.mubr.bf16.gmra.mxu0 %v3447
      %v3557 = vpop.f32.mrf.mxu0
      %v3558 = vadd.f32 0.0, %v3557
      %v3559 = vpop.f32.mrf.mxu0
      %v3560 = vpop.f32.mrf.mxu0
      %v3561 = vadd.f32 0.0, %v3560
      %v3562 = vpop.f32.mrf.mxu0
      %3563 = vmatprep.mubr.bf16.mxu0 %v3450
      %3564 = vmatmul.mubr.bf16.gmra.mxu0 %v3449
      %v3565 = vpop.f32.mrf.mxu0
      %v3566 = vadd.f32 0.0, %v3565
      %v3567 = vpop.f32.mrf.mxu0
      %v3568 = vpop.f32.mrf.mxu0
      %v3569 = vadd.f32 0.0, %v3568
      %v3570 = vpop.f32.mrf.mxu0
      %3571 = vmatprep.mubr.bf16.mxu0 %v3452
      %3572 = vmatmul.mubr.bf16.gmra.mxu0 %v3451
      %v3573 = vpop.f32.mrf.mxu0
      %v3574 = vadd.f32 0.0, %v3573
      %v3575 = vpop.f32.mrf.mxu0
      %v3576 = vpop.f32.mrf.mxu0
      %v3577 = vadd.f32 0.0, %v3576
      %v3578 = vpop.f32.mrf.mxu0
      %3579 = vmatprep.mubr.bf16.mxu0 %v3454
      %3580 = vmatmul.mubr.bf16.gmra.mxu0 %v3453
      %v3581 = vpop.f32.mrf.mxu0
      %v3582 = vadd.f32 0.0, %v3581
      %v3583 = vpop.f32.mrf.mxu0
      %v3584 = vpop.f32.mrf.mxu0
      %v3585 = vadd.f32 0.0, %v3584
      %v3586 = vpop.f32.mrf.mxu0
      %3587 = vmatprep.mubr.bf16.mxu0 %v3456
      %3588 = vmatmul.mubr.bf16.gmra.mxu0 %v3455
      %v3589 = vpop.f32.mrf.mxu0
      %v3590 = vadd.f32 0.0, %v3589
      %v3591 = vpop.f32.mrf.mxu0
      %v3592 = vpop.f32.mrf.mxu0
      %v3593 = vadd.f32 0.0, %v3592
      %v3594 = vpop.f32.mrf.mxu0
      %3595 = vmatprep.mubr.bf16.mxu0 %v3458
      %3596 = vmatmul.mubr.bf16.gmra.mxu0 %v3457
      %v3597 = vpop.f32.mrf.mxu0
      %v3598 = vadd.f32 0.0, %v3597
      %v3599 = vpop.f32.mrf.mxu0
      %v3600 = vpop.f32.mrf.mxu0
      %v3601 = vadd.f32 0.0, %v3600
      %v3602 = vpop.f32.mrf.mxu0
      %3603 = vmatprep.mubr.bf16.mxu0 %v3460
      %3604 = vmatmul.mubr.bf16.gmra.mxu0 %v3459
      %v3605 = vpop.f32.mrf.mxu0
      %v3606 = vadd.f32 0.0, %v3605
      %v3607 = vpop.f32.mrf.mxu0
      %v3608 = vpop.f32.mrf.mxu0
      %v3609 = vadd.f32 0.0, %v3608
      %v3610 = vpop.f32.mrf.mxu0
      %3611 = vmatprep.mubr.bf16.mxu0 %v3462
      %3612 = vmatmul.mubr.bf16.gmra.mxu0 %v3461
      %v3613 = vpop.f32.mrf.mxu0
      %v3614 = vadd.f32 0.0, %v3613
      %v3615 = vpop.f32.mrf.mxu0
      %v3616 = vpop.f32.mrf.mxu0
      %v3617 = vadd.f32 0.0, %v3616
      %v3618 = vpop.f32.mrf.mxu0
      %3619 = vmatprep.mubr.bf16.mxu0 %v3464
      %3620 = vmatmul.mubr.bf16.gmra.mxu0 %v3463
      %v3621 = vpop.f32.mrf.mxu0
      %v3622 = vadd.f32 0.0, %v3621
      %v3623 = vpop.f32.mrf.mxu0
      %v3624 = vpop.f32.mrf.mxu0
      %v3625 = vadd.f32 0.0, %v3624
      %v3626 = vpop.f32.mrf.mxu0
      %3627 = vmatprep.mubr.bf16.mxu0 %v3466
      %3628 = vmatmul.mubr.bf16.gmra.mxu0 %v3465
      %v3629 = vpop.f32.mrf.mxu0
      %v3630 = vadd.f32 0.0, %v3629
      %v3631 = vpop.f32.mrf.mxu0
      %v3632 = vpop.f32.mrf.mxu0
      %v3633 = vadd.f32 0.0, %v3632
      %v3634 = vpop.f32.mrf.mxu0
      %3635 = vmatprep.mubr.bf16.mxu0 %v3468
      %3636 = vmatmul.mubr.bf16.gmra.mxu0 %v3467
      %v3637 = vpop.f32.mrf.mxu0
      %v3638 = vadd.f32 0.0, %v3637
      %v3639 = vpop.f32.mrf.mxu0
      %v3640 = vpop.f32.mrf.mxu0
      %v3641 = vadd.f32 0.0, %v3640
      %v3642 = vpop.f32.mrf.mxu0
      %3643 = vmatprep.mubr.bf16.mxu0 %v3470
      %3644 = vmatmul.mubr.bf16.gmra.mxu0 %v3469
      %v3645 = vpop.f32.mrf.mxu0
      %v3646 = vadd.f32 0.0, %v3645
      %v3647 = vpop.f32.mrf.mxu0
      %v3648 = vpop.f32.mrf.mxu0
      %v3649 = vadd.f32 0.0, %v3648
      %v3650 = vpop.f32.mrf.mxu0
      %3651 = vmatprep.mubr.bf16.mxu0 %v3472
      %3652 = vmatmul.mubr.bf16.gmra.mxu0 %v3471
      %v3653 = vpop.f32.mrf.mxu0
      %v3654 = vadd.f32 0.0, %v3653
      %v3655 = vpop.f32.mrf.mxu0
      %v3656 = vpop.f32.mrf.mxu0
      %v3657 = vadd.f32 0.0, %v3656
      %v3658 = vpop.f32.mrf.mxu0
      %3659 = vmatprep.mubr.bf16.mxu0 %v3474
      %3660 = vmatmul.mubr.bf16.gmra.mxu0 %v3473
      %v3661 = vpop.f32.mrf.mxu0
      %v3662 = vadd.f32 0.0, %v3661
      %v3663 = vpop.f32.mrf.mxu0
      %v3664 = vpop.f32.mrf.mxu0
      %v3665 = vadd.f32 0.0, %v3664
      %v3666 = vpop.f32.mrf.mxu0
      %3667 = vdwg.mxu0
      %v3668 = vadd.f32 %v3040, %v3542
      %v3669 = vadd.f32 %v3041, %v3545
      %v3670 = vadd.f32 %v3042, %v3550
      %v3671 = vadd.f32 %v3043, %v3553
      %v3672 = vadd.f32 %v3044, %v3558
      %v3673 = vadd.f32 %v3045, %v3561
      %v3674 = vadd.f32 %v3046, %v3566
      %v3675 = vadd.f32 %v3047, %v3569
      %v3676 = vadd.f32 %v3048, %v3574
      %v3677 = vadd.f32 %v3049, %v3577
      %v3678 = vadd.f32 %v3050, %v3582
      %v3679 = vadd.f32 %v3051, %v3585
      %v3680 = vadd.f32 %v3052, %v3590
      %v3681 = vadd.f32 %v3053, %v3593
      %v3682 = vadd.f32 %v3054, %v3598
      %v3683 = vadd.f32 %v3055, %v3601
      %v3684 = vadd.f32 %v3056, %v3606
      %v3685 = vadd.f32 %v3057, %v3609
      %v3686 = vadd.f32 %v3058, %v3614
      %v3687 = vadd.f32 %v3059, %v3617
      %v3688 = vadd.f32 %v3060, %v3622
      %v3689 = vadd.f32 %v3061, %v3625
      %v3690 = vadd.f32 %v3062, %v3630
      %v3691 = vadd.f32 %v3063, %v3633
      %v3692 = vadd.f32 %v3064, %v3638
      %v3693 = vadd.f32 %v3065, %v3641
      %v3694 = vadd.f32 %v3066, %v3646
      %v3695 = vadd.f32 %v3067, %v3649
      %v3696 = vadd.f32 %v3068, %v3654
      %v3697 = vadd.f32 %v3069, %v3657
      %v3698 = vadd.f32 %v3070, %v3662
      %v3699 = vadd.f32 %v3071, %v3665
      %s3700 = scalar_lea.vmem %s2, 256
      %v3701 = vld [vmem:[%s3700] sm:$0xf]
      %v3702 = vld [vmem:[%s3700 + $0x4] sm:$0xf]
      %v3703 = vld [vmem:[%s3700 + $0x8] sm:$0xf]
      %v3704 = vld [vmem:[%s3700 + $0xc] sm:$0xf]
      %v3705 = vld [vmem:[%s3700 + $0x10] sm:$0xf]
      %v3706 = vld [vmem:[%s3700 + $0x14] sm:$0xf]
      %v3707 = vld [vmem:[%s3700 + $0x18] sm:$0xf]
      %v3708 = vld [vmem:[%s3700 + $0x1c] sm:$0xf]
      %v3709 = vld [vmem:[%s3700 + $0x20] sm:$0xf]
      %v3710 = vld [vmem:[%s3700 + $0x24] sm:$0xf]
      %v3711 = vld [vmem:[%s3700 + $0x28] sm:$0xf]
      %v3712 = vld [vmem:[%s3700 + $0x2c] sm:$0xf]
      %v3713 = vld [vmem:[%s3700 + $0x30] sm:$0xf]
      %v3714 = vld [vmem:[%s3700 + $0x34] sm:$0xf]
      %v3715 = vld [vmem:[%s3700 + $0x38] sm:$0xf]
      %v3716 = vld [vmem:[%s3700 + $0x3c] sm:$0xf]
      %v3733 = vunpack.c.l.b16 %v3701
      %v3734 = vunpack.c.l.b16 %v3702
      %v3735 = vunpack.c.l.b16 %v3703
      %v3736 = vunpack.c.l.b16 %v3704
      %v3737 = vunpack.c.l.b16 %v3705
      %v3738 = vunpack.c.l.b16 %v3706
      %v3739 = vunpack.c.l.b16 %v3707
      %v3740 = vunpack.c.l.b16 %v3708
      %v3741 = vunpack.c.l.b16 %v3709
      %v3742 = vunpack.c.l.b16 %v3710
      %v3743 = vunpack.c.l.b16 %v3711
      %v3744 = vunpack.c.l.b16 %v3712
      %v3745 = vunpack.c.l.b16 %v3713
      %v3746 = vunpack.c.l.b16 %v3714
      %v3747 = vunpack.c.l.b16 %v3715
      %v3748 = vunpack.c.l.b16 %v3716
      %v3749 = vpack.c.b16 %v3734, %v3733
      %v3750 = vpack.c.b16 %v3736, %v3735
      %v3751 = vpack.c.b16 %v3738, %v3737
      %v3752 = vpack.c.b16 %v3740, %v3739
      %v3753 = vpack.c.b16 %v3742, %v3741
      %v3754 = vpack.c.b16 %v3744, %v3743
      %v3755 = vpack.c.b16 %v3746, %v3745
      %v3756 = vpack.c.b16 %v3748, %v3747
      %3765 = vmatprep.subr.bf16.mxu0 0
      %3766 = vmatpush1.bf16.msra.mxu0 %v3756
      %3767 = vmatprep.subr.bf16.mxu0 0
      %3768 = vmatpush1.bf16.msra.mxu0 %v3755
      %3769 = vmatprep.subr.bf16.mxu0 0
      %3770 = vmatpush1.bf16.msra.mxu0 %v3754
      %3771 = vmatprep.subr.bf16.mxu0 0
      %3772 = vmatpush1.bf16.msra.mxu0 %v3753
      %3773 = vmatprep.subr.bf16.mxu0 0
      %3774 = vmatpush1.bf16.msra.mxu0 %v3752
      %3775 = vmatprep.subr.bf16.mxu0 0
      %3776 = vmatpush1.bf16.msra.mxu0 %v3751
      %3777 = vmatprep.subr.bf16.mxu0 0
      %3778 = vmatpush1.bf16.msra.mxu0 %v3750
      %3779 = vmatprep.subr.bf16.mxu0 0
      %3780 = vmatpush1.bf16.msra.mxu0 %v3749
      %3781 = vmatprep.subr.bf16.mxu0 0
      %3782 = vmatpush2.bf16.msra.mxu0 0
      %3783 = vmatprep.subr.bf16.mxu0 0
      %3784 = vmatpush2.bf16.msra.mxu0 0
      %3785 = vmatprep.subr.bf16.mxu0 0
      %3786 = vmatpush2.bf16.msra.mxu0 0
      %3787 = vmatprep.subr.bf16.mxu0 0
      %3788 = vmatpush2.bf16.msra.mxu0 0
      %3789 = vmatprep.subr.bf16.mxu0 0
      %3790 = vmatpush2.bf16.msra.mxu0 0
      %3791 = vmatprep.subr.bf16.mxu0 0
      %3792 = vmatpush2.bf16.msra.mxu0 0
      %3793 = vmatprep.subr.bf16.mxu0 0
      %3794 = vmatpush2.bf16.msra.mxu0 0
      %3795 = vmatprep.subr.bf16.mxu0 0
      %3796 = vmatpush2.bf16.msra.mxu0 0
      %3797 = vmatprep.mubr.bf16.mxu0 0
      %3798 = vmatmul.mubr.bf16.gmra.mxu0 %v1238
      %v3799 = vpop.f32.mrf.mxu0
      %v3800 = vadd.f32 0.0, %v3799
      %v3801 = vpop.f32.mrf.mxu0
      %v3802 = vpop.f32.mrf.mxu0
      %v3803 = vadd.f32 0.0, %v3802
      %v3804 = vpop.f32.mrf.mxu0
      %3805 = vmatprep.mubr.bf16.mxu0 0
      %3806 = vmatmul.mubr.bf16.gmra.mxu0 %v1239
      %v3807 = vpop.f32.mrf.mxu0
      %v3808 = vadd.f32 0.0, %v3807
      %v3809 = vpop.f32.mrf.mxu0
      %v3810 = vpop.f32.mrf.mxu0
      %v3811 = vadd.f32 0.0, %v3810
      %v3812 = vpop.f32.mrf.mxu0
      %3813 = vmatprep.mubr.bf16.mxu0 0
      %3814 = vmatmul.mubr.bf16.gmra.mxu0 %v1240
      %v3815 = vpop.f32.mrf.mxu0
      %v3816 = vadd.f32 0.0, %v3815
      %v3817 = vpop.f32.mrf.mxu0
      %v3818 = vpop.f32.mrf.mxu0
      %v3819 = vadd.f32 0.0, %v3818
      %v3820 = vpop.f32.mrf.mxu0
      %3821 = vmatprep.mubr.bf16.mxu0 0
      %3822 = vmatmul.mubr.bf16.gmra.mxu0 %v1241
      %v3823 = vpop.f32.mrf.mxu0
      %v3824 = vadd.f32 0.0, %v3823
      %v3825 = vpop.f32.mrf.mxu0
      %v3826 = vpop.f32.mrf.mxu0
      %v3827 = vadd.f32 0.0, %v3826
      %v3828 = vpop.f32.mrf.mxu0
      %3829 = vmatprep.mubr.bf16.mxu0 0
      %3830 = vmatmul.mubr.bf16.gmra.mxu0 %v1242
      %v3831 = vpop.f32.mrf.mxu0
      %v3832 = vadd.f32 0.0, %v3831
      %v3833 = vpop.f32.mrf.mxu0
      %v3834 = vpop.f32.mrf.mxu0
      %v3835 = vadd.f32 0.0, %v3834
      %v3836 = vpop.f32.mrf.mxu0
      %3837 = vmatprep.mubr.bf16.mxu0 0
      %3838 = vmatmul.mubr.bf16.gmra.mxu0 %v1243
      %v3839 = vpop.f32.mrf.mxu0
      %v3840 = vadd.f32 0.0, %v3839
      %v3841 = vpop.f32.mrf.mxu0
      %v3842 = vpop.f32.mrf.mxu0
      %v3843 = vadd.f32 0.0, %v3842
      %v3844 = vpop.f32.mrf.mxu0
      %3845 = vmatprep.mubr.bf16.mxu0 0
      %3846 = vmatmul.mubr.bf16.gmra.mxu0 %v1244
      %v3847 = vpop.f32.mrf.mxu0
      %v3848 = vadd.f32 0.0, %v3847
      %v3849 = vpop.f32.mrf.mxu0
      %v3850 = vpop.f32.mrf.mxu0
      %v3851 = vadd.f32 0.0, %v3850
      %v3852 = vpop.f32.mrf.mxu0
      %3853 = vmatprep.mubr.bf16.mxu0 0
      %3854 = vmatmul.mubr.bf16.gmra.mxu0 %v1245
      %v3855 = vpop.f32.mrf.mxu0
      %v3856 = vadd.f32 0.0, %v3855
      %v3857 = vpop.f32.mrf.mxu0
      %v3858 = vpop.f32.mrf.mxu0
      %v3859 = vadd.f32 0.0, %v3858
      %v3860 = vpop.f32.mrf.mxu0
      %3861 = vmatprep.mubr.bf16.mxu0 0
      %3862 = vmatmul.mubr.bf16.gmra.mxu0 %v1246
      %v3863 = vpop.f32.mrf.mxu0
      %v3864 = vadd.f32 0.0, %v3863
      %v3865 = vpop.f32.mrf.mxu0
      %v3866 = vpop.f32.mrf.mxu0
      %v3867 = vadd.f32 0.0, %v3866
      %v3868 = vpop.f32.mrf.mxu0
      %3869 = vmatprep.mubr.bf16.mxu0 0
      %3870 = vmatmul.mubr.bf16.gmra.mxu0 %v1247
      %v3871 = vpop.f32.mrf.mxu0
      %v3872 = vadd.f32 0.0, %v3871
      %v3873 = vpop.f32.mrf.mxu0
      %v3874 = vpop.f32.mrf.mxu0
      %v3875 = vadd.f32 0.0, %v3874
      %v3876 = vpop.f32.mrf.mxu0
      %3877 = vmatprep.mubr.bf16.mxu0 0
      %3878 = vmatmul.mubr.bf16.gmra.mxu0 %v1248
      %v3879 = vpop.f32.mrf.mxu0
      %v3880 = vadd.f32 0.0, %v3879
      %v3881 = vpop.f32.mrf.mxu0
      %v3882 = vpop.f32.mrf.mxu0
      %v3883 = vadd.f32 0.0, %v3882
      %v3884 = vpop.f32.mrf.mxu0
      %3885 = vmatprep.mubr.bf16.mxu0 0
      %3886 = vmatmul.mubr.bf16.gmra.mxu0 %v1249
      %v3887 = vpop.f32.mrf.mxu0
      %v3888 = vadd.f32 0.0, %v3887
      %v3889 = vpop.f32.mrf.mxu0
      %v3890 = vpop.f32.mrf.mxu0
      %v3891 = vadd.f32 0.0, %v3890
      %v3892 = vpop.f32.mrf.mxu0
      %3893 = vmatprep.mubr.bf16.mxu0 0
      %3894 = vmatmul.mubr.bf16.gmra.mxu0 %v1250
      %v3895 = vpop.f32.mrf.mxu0
      %v3896 = vadd.f32 0.0, %v3895
      %v3897 = vpop.f32.mrf.mxu0
      %v3898 = vpop.f32.mrf.mxu0
      %v3899 = vadd.f32 0.0, %v3898
      %v3900 = vpop.f32.mrf.mxu0
      %3901 = vmatprep.mubr.bf16.mxu0 0
      %3902 = vmatmul.mubr.bf16.gmra.mxu0 %v1251
      %v3903 = vpop.f32.mrf.mxu0
      %v3904 = vadd.f32 0.0, %v3903
      %v3905 = vpop.f32.mrf.mxu0
      %v3906 = vpop.f32.mrf.mxu0
      %v3907 = vadd.f32 0.0, %v3906
      %v3908 = vpop.f32.mrf.mxu0
      %3909 = vmatprep.mubr.bf16.mxu0 0
      %3910 = vmatmul.mubr.bf16.gmra.mxu0 %v1252
      %v3911 = vpop.f32.mrf.mxu0
      %v3912 = vadd.f32 0.0, %v3911
      %v3913 = vpop.f32.mrf.mxu0
      %v3914 = vpop.f32.mrf.mxu0
      %v3915 = vadd.f32 0.0, %v3914
      %v3916 = vpop.f32.mrf.mxu0
      %3917 = vmatprep.mubr.bf16.mxu0 0
      %3918 = vmatmul.mubr.bf16.gmra.mxu0 %v1253
      %v3919 = vpop.f32.mrf.mxu0
      %v3920 = vadd.f32 0.0, %v3919
      %v3921 = vpop.f32.mrf.mxu0
      %v3922 = vpop.f32.mrf.mxu0
      %v3923 = vadd.f32 0.0, %v3922
      %v3924 = vpop.f32.mrf.mxu0
      %3925 = vdwg.mxu0
      %s3926 = scalar_lea.vmem %s565, 1024
      %v3927 = vld [vmem:[%s3926] sm:$0xff]
      %v3928 = vld [vmem:[%s3926 + $0x8] sm:$0xff]
      %v3929 = vld [vmem:[%s3926 + $0x10] sm:$0xff]
      %v3930 = vld [vmem:[%s3926 + $0x18] sm:$0xff]
      %v3931 = vld [vmem:[%s3926 + $0x20] sm:$0xff]
      %v3932 = vld [vmem:[%s3926 + $0x28] sm:$0xff]
      %v3933 = vld [vmem:[%s3926 + $0x30] sm:$0xff]
      %v3934 = vld [vmem:[%s3926 + $0x38] sm:$0xff]
      %v3935 = vld [vmem:[%s3926 + $0x40] sm:$0xff]
      %v3936 = vld [vmem:[%s3926 + $0x48] sm:$0xff]
      %v3937 = vld [vmem:[%s3926 + $0x50] sm:$0xff]
      %v3938 = vld [vmem:[%s3926 + $0x58] sm:$0xff]
      %v3939 = vld [vmem:[%s3926 + $0x60] sm:$0xff]
      %v3940 = vld [vmem:[%s3926 + $0x68] sm:$0xff]
      %v3941 = vld [vmem:[%s3926 + $0x70] sm:$0xff]
      %v3942 = vld [vmem:[%s3926 + $0x78] sm:$0xff]
      %v3943 = vld [vmem:[%s3926 + $0x80] sm:$0xff]
      %v3944 = vld [vmem:[%s3926 + $0x88] sm:$0xff]
      %v3945 = vld [vmem:[%s3926 + $0x90] sm:$0xff]
      %v3946 = vld [vmem:[%s3926 + $0x98] sm:$0xff]
      %v3947 = vld [vmem:[%s3926 + $0xa0] sm:$0xff]
      %v3948 = vld [vmem:[%s3926 + $0xa8] sm:$0xff]
      %v3949 = vld [vmem:[%s3926 + $0xb0] sm:$0xff]
      %v3950 = vld [vmem:[%s3926 + $0xb8] sm:$0xff]
      %v3951 = vld [vmem:[%s3926 + $0xc0] sm:$0xff]
      %v3952 = vld [vmem:[%s3926 + $0xc8] sm:$0xff]
      %v3953 = vld [vmem:[%s3926 + $0xd0] sm:$0xff]
      %v3954 = vld [vmem:[%s3926 + $0xd8] sm:$0xff]
      %v3955 = vld [vmem:[%s3926 + $0xe0] sm:$0xff]
      %v3956 = vld [vmem:[%s3926 + $0xe8] sm:$0xff]
      %v3957 = vld [vmem:[%s3926 + $0xf0] sm:$0xff]
      %v3958 = vld [vmem:[%s3926 + $0xf8] sm:$0xff]
      %v3959 = vpack.c.bf16 %v3803, %v3800
      %v3960 = vpack.c.bf16 %v3811, %v3808
      %v3961 = vpack.c.bf16 %v3819, %v3816
      %v3962 = vpack.c.bf16 %v3827, %v3824
      %v3963 = vpack.c.bf16 %v3835, %v3832
      %v3964 = vpack.c.bf16 %v3843, %v3840
      %v3965 = vpack.c.bf16 %v3851, %v3848
      %v3966 = vpack.c.bf16 %v3859, %v3856
      %v3967 = vpack.c.bf16 %v3867, %v3864
      %v3968 = vpack.c.bf16 %v3875, %v3872
      %v3969 = vpack.c.bf16 %v3883, %v3880
      %v3970 = vpack.c.bf16 %v3891, %v3888
      %v3971 = vpack.c.bf16 %v3899, %v3896
      %v3972 = vpack.c.bf16 %v3907, %v3904
      %v3973 = vpack.c.bf16 %v3915, %v3912
      %v3974 = vpack.c.bf16 %v3923, %v3920
      %v4007 = vunpack.c.l.b16 %v3927
      %v4008 = vunpack.c.h.b16 %v3927
      %v4009 = vunpack.c.l.b16 %v3928
      %v4010 = vunpack.c.h.b16 %v3928
      %v4011 = vunpack.c.l.b16 %v3929
      %v4012 = vunpack.c.h.b16 %v3929
      %v4013 = vunpack.c.l.b16 %v3930
      %v4014 = vunpack.c.h.b16 %v3930
      %v4015 = vunpack.c.l.b16 %v3931
      %v4016 = vunpack.c.h.b16 %v3931
      %v4017 = vunpack.c.l.b16 %v3932
      %v4018 = vunpack.c.h.b16 %v3932
      %v4019 = vunpack.c.l.b16 %v3933
      %v4020 = vunpack.c.h.b16 %v3933
      %v4021 = vunpack.c.l.b16 %v3934
      %v4022 = vunpack.c.h.b16 %v3934
      %v4023 = vunpack.c.l.b16 %v3935
      %v4024 = vunpack.c.h.b16 %v3935
      %v4025 = vunpack.c.l.b16 %v3936
      %v4026 = vunpack.c.h.b16 %v3936
      %v4027 = vunpack.c.l.b16 %v3937
      %v4028 = vunpack.c.h.b16 %v3937
      %v4029 = vunpack.c.l.b16 %v3938
      %v4030 = vunpack.c.h.b16 %v3938
      %v4031 = vunpack.c.l.b16 %v3939
      %v4032 = vunpack.c.h.b16 %v3939
      %v4033 = vunpack.c.l.b16 %v3940
      %v4034 = vunpack.c.h.b16 %v3940
      %v4035 = vunpack.c.l.b16 %v3941
      %v4036 = vunpack.c.h.b16 %v3941
      %v4037 = vunpack.c.l.b16 %v3942
      %v4038 = vunpack.c.h.b16 %v3942
      %v4039 = vunpack.c.l.b16 %v3943
      %v4040 = vunpack.c.h.b16 %v3943
      %v4041 = vunpack.c.l.b16 %v3944
      %v4042 = vunpack.c.h.b16 %v3944
      %v4043 = vunpack.c.l.b16 %v3945
      %v4044 = vunpack.c.h.b16 %v3945
      %v4045 = vunpack.c.l.b16 %v3946
      %v4046 = vunpack.c.h.b16 %v3946
      %v4047 = vunpack.c.l.b16 %v3947
      %v4048 = vunpack.c.h.b16 %v3947
      %v4049 = vunpack.c.l.b16 %v3948
      %v4050 = vunpack.c.h.b16 %v3948
      %v4051 = vunpack.c.l.b16 %v3949
      %v4052 = vunpack.c.h.b16 %v3949
      %v4053 = vunpack.c.l.b16 %v3950
      %v4054 = vunpack.c.h.b16 %v3950
      %v4055 = vunpack.c.l.b16 %v3951
      %v4056 = vunpack.c.h.b16 %v3951
      %v4057 = vunpack.c.l.b16 %v3952
      %v4058 = vunpack.c.h.b16 %v3952
      %v4059 = vunpack.c.l.b16 %v3953
      %v4060 = vunpack.c.h.b16 %v3953
      %v4061 = vunpack.c.l.b16 %v3954
      %v4062 = vunpack.c.h.b16 %v3954
      %v4063 = vunpack.c.l.b16 %v3955
      %v4064 = vunpack.c.h.b16 %v3955
      %v4065 = vunpack.c.l.b16 %v3956
      %v4066 = vunpack.c.h.b16 %v3956
      %v4067 = vunpack.c.l.b16 %v3957
      %v4068 = vunpack.c.h.b16 %v3957
      %v4069 = vunpack.c.l.b16 %v3958
      %v4070 = vunpack.c.h.b16 %v3958
      %v4071 = vpack.c.b16 %v4009, %v4007
      %v4072 = vpack.c.b16 %v4010, %v4008
      %v4073 = vpack.c.b16 %v4013, %v4011
      %v4074 = vpack.c.b16 %v4014, %v4012
      %v4075 = vpack.c.b16 %v4017, %v4015
      %v4076 = vpack.c.b16 %v4018, %v4016
      %v4077 = vpack.c.b16 %v4021, %v4019
      %v4078 = vpack.c.b16 %v4022, %v4020
      %v4079 = vpack.c.b16 %v4025, %v4023
      %v4080 = vpack.c.b16 %v4026, %v4024
      %v4081 = vpack.c.b16 %v4029, %v4027
      %v4082 = vpack.c.b16 %v4030, %v4028
      %v4083 = vpack.c.b16 %v4033, %v4031
      %v4084 = vpack.c.b16 %v4034, %v4032
      %v4085 = vpack.c.b16 %v4037, %v4035
      %v4086 = vpack.c.b16 %v4038, %v4036
      %v4087 = vpack.c.b16 %v4041, %v4039
      %v4088 = vpack.c.b16 %v4042, %v4040
      %v4089 = vpack.c.b16 %v4045, %v4043
      %v4090 = vpack.c.b16 %v4046, %v4044
      %v4091 = vpack.c.b16 %v4049, %v4047
      %v4092 = vpack.c.b16 %v4050, %v4048
      %v4093 = vpack.c.b16 %v4053, %v4051
      %v4094 = vpack.c.b16 %v4054, %v4052
      %v4095 = vpack.c.b16 %v4057, %v4055
      %v4096 = vpack.c.b16 %v4058, %v4056
      %v4097 = vpack.c.b16 %v4061, %v4059
      %v4098 = vpack.c.b16 %v4062, %v4060
      %v4099 = vpack.c.b16 %v4065, %v4063
      %v4100 = vpack.c.b16 %v4066, %v4064
      %v4101 = vpack.c.b16 %v4069, %v4067
      %v4102 = vpack.c.b16 %v4070, %v4068
      %4135 = vmatprep.subr.bf16.mxu0 0
      %4136 = vmatpush1.bf16.msra.mxu0 %v3966
      %4137 = vmatprep.subr.bf16.mxu0 0
      %4138 = vmatpush1.bf16.msra.mxu0 %v3965
      %4139 = vmatprep.subr.bf16.mxu0 0
      %4140 = vmatpush1.bf16.msra.mxu0 %v3964
      %4141 = vmatprep.subr.bf16.mxu0 0
      %4142 = vmatpush1.bf16.msra.mxu0 %v3963
      %4143 = vmatprep.subr.bf16.mxu0 0
      %4144 = vmatpush1.bf16.msra.mxu0 %v3962
      %4145 = vmatprep.subr.bf16.mxu0 0
      %4146 = vmatpush1.bf16.msra.mxu0 %v3961
      %4147 = vmatprep.subr.bf16.mxu0 0
      %4148 = vmatpush1.bf16.msra.mxu0 %v3960
      %4149 = vmatprep.subr.bf16.mxu0 0
      %4150 = vmatpush1.bf16.msra.mxu0 %v3959
      %4151 = vmatprep.subr.bf16.mxu0 0
      %4152 = vmatpush2.bf16.msra.mxu0 %v3974
      %4153 = vmatprep.subr.bf16.mxu0 0
      %4154 = vmatpush2.bf16.msra.mxu0 %v3973
      %4155 = vmatprep.subr.bf16.mxu0 0
      %4156 = vmatpush2.bf16.msra.mxu0 %v3972
      %4157 = vmatprep.subr.bf16.mxu0 0
      %4158 = vmatpush2.bf16.msra.mxu0 %v3971
      %4159 = vmatprep.subr.bf16.mxu0 0
      %4160 = vmatpush2.bf16.msra.mxu0 %v3970
      %4161 = vmatprep.subr.bf16.mxu0 0
      %4162 = vmatpush2.bf16.msra.mxu0 %v3969
      %4163 = vmatprep.subr.bf16.mxu0 0
      %4164 = vmatpush2.bf16.msra.mxu0 %v3968
      %4165 = vmatprep.subr.bf16.mxu0 0
      %4166 = vmatpush2.bf16.msra.mxu0 %v3967
      %4167 = vmatprep.mubr.bf16.mxu0 %v4072
      %4168 = vmatmul.mubr.bf16.gmra.mxu0 %v4071
      %v4169 = vpop.f32.mrf.mxu0
      %v4170 = vadd.f32 0.0, %v4169
      %v4171 = vpop.f32.mrf.mxu0
      %v4172 = vpop.f32.mrf.mxu0
      %v4173 = vadd.f32 0.0, %v4172
      %v4174 = vpop.f32.mrf.mxu0
      %4175 = vmatprep.mubr.bf16.mxu0 %v4074
      %4176 = vmatmul.mubr.bf16.gmra.mxu0 %v4073
      %v4177 = vpop.f32.mrf.mxu0
      %v4178 = vadd.f32 0.0, %v4177
      %v4179 = vpop.f32.mrf.mxu0
      %v4180 = vpop.f32.mrf.mxu0
      %v4181 = vadd.f32 0.0, %v4180
      %v4182 = vpop.f32.mrf.mxu0
      %4183 = vmatprep.mubr.bf16.mxu0 %v4076
      %4184 = vmatmul.mubr.bf16.gmra.mxu0 %v4075
      %v4185 = vpop.f32.mrf.mxu0
      %v4186 = vadd.f32 0.0, %v4185
      %v4187 = vpop.f32.mrf.mxu0
      %v4188 = vpop.f32.mrf.mxu0
      %v4189 = vadd.f32 0.0, %v4188
      %v4190 = vpop.f32.mrf.mxu0
      %4191 = vmatprep.mubr.bf16.mxu0 %v4078
      %4192 = vmatmul.mubr.bf16.gmra.mxu0 %v4077
      %v4193 = vpop.f32.mrf.mxu0
      %v4194 = vadd.f32 0.0, %v4193
      %v4195 = vpop.f32.mrf.mxu0
      %v4196 = vpop.f32.mrf.mxu0
      %v4197 = vadd.f32 0.0, %v4196
      %v4198 = vpop.f32.mrf.mxu0
      %4199 = vmatprep.mubr.bf16.mxu0 %v4080
      %4200 = vmatmul.mubr.bf16.gmra.mxu0 %v4079
      %v4201 = vpop.f32.mrf.mxu0
      %v4202 = vadd.f32 0.0, %v4201
      %v4203 = vpop.f32.mrf.mxu0
      %v4204 = vpop.f32.mrf.mxu0
      %v4205 = vadd.f32 0.0, %v4204
      %v4206 = vpop.f32.mrf.mxu0
      %4207 = vmatprep.mubr.bf16.mxu0 %v4082
      %4208 = vmatmul.mubr.bf16.gmra.mxu0 %v4081
      %v4209 = vpop.f32.mrf.mxu0
      %v4210 = vadd.f32 0.0, %v4209
      %v4211 = vpop.f32.mrf.mxu0
      %v4212 = vpop.f32.mrf.mxu0
      %v4213 = vadd.f32 0.0, %v4212
      %v4214 = vpop.f32.mrf.mxu0
      %4215 = vmatprep.mubr.bf16.mxu0 %v4084
      %4216 = vmatmul.mubr.bf16.gmra.mxu0 %v4083
      %v4217 = vpop.f32.mrf.mxu0
      %v4218 = vadd.f32 0.0, %v4217
      %v4219 = vpop.f32.mrf.mxu0
      %v4220 = vpop.f32.mrf.mxu0
      %v4221 = vadd.f32 0.0, %v4220
      %v4222 = vpop.f32.mrf.mxu0
      %4223 = vmatprep.mubr.bf16.mxu0 %v4086
      %4224 = vmatmul.mubr.bf16.gmra.mxu0 %v4085
      %v4225 = vpop.f32.mrf.mxu0
      %v4226 = vadd.f32 0.0, %v4225
      %v4227 = vpop.f32.mrf.mxu0
      %v4228 = vpop.f32.mrf.mxu0
      %v4229 = vadd.f32 0.0, %v4228
      %v4230 = vpop.f32.mrf.mxu0
      %4231 = vmatprep.mubr.bf16.mxu0 %v4088
      %4232 = vmatmul.mubr.bf16.gmra.mxu0 %v4087
      %v4233 = vpop.f32.mrf.mxu0
      %v4234 = vadd.f32 0.0, %v4233
      %v4235 = vpop.f32.mrf.mxu0
      %v4236 = vpop.f32.mrf.mxu0
      %v4237 = vadd.f32 0.0, %v4236
      %v4238 = vpop.f32.mrf.mxu0
      %4239 = vmatprep.mubr.bf16.mxu0 %v4090
      %4240 = vmatmul.mubr.bf16.gmra.mxu0 %v4089
      %v4241 = vpop.f32.mrf.mxu0
      %v4242 = vadd.f32 0.0, %v4241
      %v4243 = vpop.f32.mrf.mxu0
      %v4244 = vpop.f32.mrf.mxu0
      %v4245 = vadd.f32 0.0, %v4244
      %v4246 = vpop.f32.mrf.mxu0
      %4247 = vmatprep.mubr.bf16.mxu0 %v4092
      %4248 = vmatmul.mubr.bf16.gmra.mxu0 %v4091
      %v4249 = vpop.f32.mrf.mxu0
      %v4250 = vadd.f32 0.0, %v4249
      %v4251 = vpop.f32.mrf.mxu0
      %v4252 = vpop.f32.mrf.mxu0
      %v4253 = vadd.f32 0.0, %v4252
      %v4254 = vpop.f32.mrf.mxu0
      %4255 = vmatprep.mubr.bf16.mxu0 %v4094
      %4256 = vmatmul.mubr.bf16.gmra.mxu0 %v4093
      %v4257 = vpop.f32.mrf.mxu0
      %v4258 = vadd.f32 0.0, %v4257
      %v4259 = vpop.f32.mrf.mxu0
      %v4260 = vpop.f32.mrf.mxu0
      %v4261 = vadd.f32 0.0, %v4260
      %v4262 = vpop.f32.mrf.mxu0
      %4263 = vmatprep.mubr.bf16.mxu0 %v4096
      %4264 = vmatmul.mubr.bf16.gmra.mxu0 %v4095
      %v4265 = vpop.f32.mrf.mxu0
      %v4266 = vadd.f32 0.0, %v4265
      %v4267 = vpop.f32.mrf.mxu0
      %v4268 = vpop.f32.mrf.mxu0
      %v4269 = vadd.f32 0.0, %v4268
      %v4270 = vpop.f32.mrf.mxu0
      %4271 = vmatprep.mubr.bf16.mxu0 %v4098
      %4272 = vmatmul.mubr.bf16.gmra.mxu0 %v4097
      %v4273 = vpop.f32.mrf.mxu0
      %v4274 = vadd.f32 0.0, %v4273
      %v4275 = vpop.f32.mrf.mxu0
      %v4276 = vpop.f32.mrf.mxu0
      %v4277 = vadd.f32 0.0, %v4276
      %v4278 = vpop.f32.mrf.mxu0
      %4279 = vmatprep.mubr.bf16.mxu0 %v4100
      %4280 = vmatmul.mubr.bf16.gmra.mxu0 %v4099
      %v4281 = vpop.f32.mrf.mxu0
      %v4282 = vadd.f32 0.0, %v4281
      %v4283 = vpop.f32.mrf.mxu0
      %v4284 = vpop.f32.mrf.mxu0
      %v4285 = vadd.f32 0.0, %v4284
      %v4286 = vpop.f32.mrf.mxu0
      %4287 = vmatprep.mubr.bf16.mxu0 %v4102
      %4288 = vmatmul.mubr.bf16.gmra.mxu0 %v4101
      %v4289 = vpop.f32.mrf.mxu0
      %v4290 = vadd.f32 0.0, %v4289
      %v4291 = vpop.f32.mrf.mxu0
      %v4292 = vpop.f32.mrf.mxu0
      %v4293 = vadd.f32 0.0, %v4292
      %v4294 = vpop.f32.mrf.mxu0
      %4295 = vdwg.mxu0
      %v4296 = vadd.f32 %v3668, %v4170
      %v4297 = vadd.f32 %v3669, %v4173
      %v4298 = vadd.f32 %v3670, %v4178
      %v4299 = vadd.f32 %v3671, %v4181
      %v4300 = vadd.f32 %v3672, %v4186
      %v4301 = vadd.f32 %v3673, %v4189
      %v4302 = vadd.f32 %v3674, %v4194
      %v4303 = vadd.f32 %v3675, %v4197
      %v4304 = vadd.f32 %v3676, %v4202
      %v4305 = vadd.f32 %v3677, %v4205
      %v4306 = vadd.f32 %v3678, %v4210
      %v4307 = vadd.f32 %v3679, %v4213
      %v4308 = vadd.f32 %v3680, %v4218
      %v4309 = vadd.f32 %v3681, %v4221
      %v4310 = vadd.f32 %v3682, %v4226
      %v4311 = vadd.f32 %v3683, %v4229
      %v4312 = vadd.f32 %v3684, %v4234
      %v4313 = vadd.f32 %v3685, %v4237
      %v4314 = vadd.f32 %v3686, %v4242
      %v4315 = vadd.f32 %v3687, %v4245
      %v4316 = vadd.f32 %v3688, %v4250
      %v4317 = vadd.f32 %v3689, %v4253
      %v4318 = vadd.f32 %v3690, %v4258
      %v4319 = vadd.f32 %v3691, %v4261
      %v4320 = vadd.f32 %v3692, %v4266
      %v4321 = vadd.f32 %v3693, %v4269
      %v4322 = vadd.f32 %v3694, %v4274
      %v4323 = vadd.f32 %v3695, %v4277
      %v4324 = vadd.f32 %v3696, %v4282
      %v4325 = vadd.f32 %v3697, %v4285
      %v4326 = vadd.f32 %v3698, %v4290
      %v4327 = vadd.f32 %v3699, %v4293
      %s4328 = scalar_lea.vmem %s2, 320
      %v4329 = vld [vmem:[%s4328] sm:$0xf]
      %v4330 = vld [vmem:[%s4328 + $0x4] sm:$0xf]
      %v4331 = vld [vmem:[%s4328 + $0x8] sm:$0xf]
      %v4332 = vld [vmem:[%s4328 + $0xc] sm:$0xf]
      %v4333 = vld [vmem:[%s4328 + $0x10] sm:$0xf]
      %v4334 = vld [vmem:[%s4328 + $0x14] sm:$0xf]
      %v4335 = vld [vmem:[%s4328 + $0x18] sm:$0xf]
      %v4336 = vld [vmem:[%s4328 + $0x1c] sm:$0xf]
      %v4337 = vld [vmem:[%s4328 + $0x20] sm:$0xf]
      %v4338 = vld [vmem:[%s4328 + $0x24] sm:$0xf]
      %v4339 = vld [vmem:[%s4328 + $0x28] sm:$0xf]
      %v4340 = vld [vmem:[%s4328 + $0x2c] sm:$0xf]
      %v4341 = vld [vmem:[%s4328 + $0x30] sm:$0xf]
      %v4342 = vld [vmem:[%s4328 + $0x34] sm:$0xf]
      %v4343 = vld [vmem:[%s4328 + $0x38] sm:$0xf]
      %v4344 = vld [vmem:[%s4328 + $0x3c] sm:$0xf]
      %v4361 = vunpack.c.l.b16 %v4329
      %v4362 = vunpack.c.l.b16 %v4330
      %v4363 = vunpack.c.l.b16 %v4331
      %v4364 = vunpack.c.l.b16 %v4332
      %v4365 = vunpack.c.l.b16 %v4333
      %v4366 = vunpack.c.l.b16 %v4334
      %v4367 = vunpack.c.l.b16 %v4335
      %v4368 = vunpack.c.l.b16 %v4336
      %v4369 = vunpack.c.l.b16 %v4337
      %v4370 = vunpack.c.l.b16 %v4338
      %v4371 = vunpack.c.l.b16 %v4339
      %v4372 = vunpack.c.l.b16 %v4340
      %v4373 = vunpack.c.l.b16 %v4341
      %v4374 = vunpack.c.l.b16 %v4342
      %v4375 = vunpack.c.l.b16 %v4343
      %v4376 = vunpack.c.l.b16 %v4344
      %v4377 = vpack.c.b16 %v4362, %v4361
      %v4378 = vpack.c.b16 %v4364, %v4363
      %v4379 = vpack.c.b16 %v4366, %v4365
      %v4380 = vpack.c.b16 %v4368, %v4367
      %v4381 = vpack.c.b16 %v4370, %v4369
      %v4382 = vpack.c.b16 %v4372, %v4371
      %v4383 = vpack.c.b16 %v4374, %v4373
      %v4384 = vpack.c.b16 %v4376, %v4375
      %4393 = vmatprep.subr.bf16.mxu0 0
      %4394 = vmatpush1.bf16.msra.mxu0 %v4384
      %4395 = vmatprep.subr.bf16.mxu0 0
      %4396 = vmatpush1.bf16.msra.mxu0 %v4383
      %4397 = vmatprep.subr.bf16.mxu0 0
      %4398 = vmatpush1.bf16.msra.mxu0 %v4382
      %4399 = vmatprep.subr.bf16.mxu0 0
      %4400 = vmatpush1.bf16.msra.mxu0 %v4381
      %4401 = vmatprep.subr.bf16.mxu0 0
      %4402 = vmatpush1.bf16.msra.mxu0 %v4380
      %4403 = vmatprep.subr.bf16.mxu0 0
      %4404 = vmatpush1.bf16.msra.mxu0 %v4379
      %4405 = vmatprep.subr.bf16.mxu0 0
      %4406 = vmatpush1.bf16.msra.mxu0 %v4378
      %4407 = vmatprep.subr.bf16.mxu0 0
      %4408 = vmatpush1.bf16.msra.mxu0 %v4377
      %4409 = vmatprep.subr.bf16.mxu0 0
      %4410 = vmatpush2.bf16.msra.mxu0 0
      %4411 = vmatprep.subr.bf16.mxu0 0
      %4412 = vmatpush2.bf16.msra.mxu0 0
      %4413 = vmatprep.subr.bf16.mxu0 0
      %4414 = vmatpush2.bf16.msra.mxu0 0
      %4415 = vmatprep.subr.bf16.mxu0 0
      %4416 = vmatpush2.bf16.msra.mxu0 0
      %4417 = vmatprep.subr.bf16.mxu0 0
      %4418 = vmatpush2.bf16.msra.mxu0 0
      %4419 = vmatprep.subr.bf16.mxu0 0
      %4420 = vmatpush2.bf16.msra.mxu0 0
      %4421 = vmatprep.subr.bf16.mxu0 0
      %4422 = vmatpush2.bf16.msra.mxu0 0
      %4423 = vmatprep.subr.bf16.mxu0 0
      %4424 = vmatpush2.bf16.msra.mxu0 0
      %4425 = vmatprep.mubr.bf16.mxu0 0
      %4426 = vmatmul.mubr.bf16.gmra.mxu0 %v1238
      %v4427 = vpop.f32.mrf.mxu0
      %v4428 = vadd.f32 0.0, %v4427
      %v4429 = vpop.f32.mrf.mxu0
      %v4430 = vpop.f32.mrf.mxu0
      %v4431 = vadd.f32 0.0, %v4430
      %v4432 = vpop.f32.mrf.mxu0
      %4433 = vmatprep.mubr.bf16.mxu0 0
      %4434 = vmatmul.mubr.bf16.gmra.mxu0 %v1239
      %v4435 = vpop.f32.mrf.mxu0
      %v4436 = vadd.f32 0.0, %v4435
      %v4437 = vpop.f32.mrf.mxu0
      %v4438 = vpop.f32.mrf.mxu0
      %v4439 = vadd.f32 0.0, %v4438
      %v4440 = vpop.f32.mrf.mxu0
      %4441 = vmatprep.mubr.bf16.mxu0 0
      %4442 = vmatmul.mubr.bf16.gmra.mxu0 %v1240
      %v4443 = vpop.f32.mrf.mxu0
      %v4444 = vadd.f32 0.0, %v4443
      %v4445 = vpop.f32.mrf.mxu0
      %v4446 = vpop.f32.mrf.mxu0
      %v4447 = vadd.f32 0.0, %v4446
      %v4448 = vpop.f32.mrf.mxu0
      %4449 = vmatprep.mubr.bf16.mxu0 0
      %4450 = vmatmul.mubr.bf16.gmra.mxu0 %v1241
      %v4451 = vpop.f32.mrf.mxu0
      %v4452 = vadd.f32 0.0, %v4451
      %v4453 = vpop.f32.mrf.mxu0
      %v4454 = vpop.f32.mrf.mxu0
      %v4455 = vadd.f32 0.0, %v4454
      %v4456 = vpop.f32.mrf.mxu0
      %4457 = vmatprep.mubr.bf16.mxu0 0
      %4458 = vmatmul.mubr.bf16.gmra.mxu0 %v1242
      %v4459 = vpop.f32.mrf.mxu0
      %v4460 = vadd.f32 0.0, %v4459
      %v4461 = vpop.f32.mrf.mxu0
      %v4462 = vpop.f32.mrf.mxu0
      %v4463 = vadd.f32 0.0, %v4462
      %v4464 = vpop.f32.mrf.mxu0
      %4465 = vmatprep.mubr.bf16.mxu0 0
      %4466 = vmatmul.mubr.bf16.gmra.mxu0 %v1243
      %v4467 = vpop.f32.mrf.mxu0
      %v4468 = vadd.f32 0.0, %v4467
      %v4469 = vpop.f32.mrf.mxu0
      %v4470 = vpop.f32.mrf.mxu0
      %v4471 = vadd.f32 0.0, %v4470
      %v4472 = vpop.f32.mrf.mxu0
      %4473 = vmatprep.mubr.bf16.mxu0 0
      %4474 = vmatmul.mubr.bf16.gmra.mxu0 %v1244
      %v4475 = vpop.f32.mrf.mxu0
      %v4476 = vadd.f32 0.0, %v4475
      %v4477 = vpop.f32.mrf.mxu0
      %v4478 = vpop.f32.mrf.mxu0
      %v4479 = vadd.f32 0.0, %v4478
      %v4480 = vpop.f32.mrf.mxu0
      %4481 = vmatprep.mubr.bf16.mxu0 0
      %4482 = vmatmul.mubr.bf16.gmra.mxu0 %v1245
      %v4483 = vpop.f32.mrf.mxu0
      %v4484 = vadd.f32 0.0, %v4483
      %v4485 = vpop.f32.mrf.mxu0
      %v4486 = vpop.f32.mrf.mxu0
      %v4487 = vadd.f32 0.0, %v4486
      %v4488 = vpop.f32.mrf.mxu0
      %4489 = vmatprep.mubr.bf16.mxu0 0
      %4490 = vmatmul.mubr.bf16.gmra.mxu0 %v1246
      %v4491 = vpop.f32.mrf.mxu0
      %v4492 = vadd.f32 0.0, %v4491
      %v4493 = vpop.f32.mrf.mxu0
      %v4494 = vpop.f32.mrf.mxu0
      %v4495 = vadd.f32 0.0, %v4494
      %v4496 = vpop.f32.mrf.mxu0
      %4497 = vmatprep.mubr.bf16.mxu0 0
      %4498 = vmatmul.mubr.bf16.gmra.mxu0 %v1247
      %v4499 = vpop.f32.mrf.mxu0
      %v4500 = vadd.f32 0.0, %v4499
      %v4501 = vpop.f32.mrf.mxu0
      %v4502 = vpop.f32.mrf.mxu0
      %v4503 = vadd.f32 0.0, %v4502
      %v4504 = vpop.f32.mrf.mxu0
      %4505 = vmatprep.mubr.bf16.mxu0 0
      %4506 = vmatmul.mubr.bf16.gmra.mxu0 %v1248
      %v4507 = vpop.f32.mrf.mxu0
      %v4508 = vadd.f32 0.0, %v4507
      %v4509 = vpop.f32.mrf.mxu0
      %v4510 = vpop.f32.mrf.mxu0
      %v4511 = vadd.f32 0.0, %v4510
      %v4512 = vpop.f32.mrf.mxu0
      %4513 = vmatprep.mubr.bf16.mxu0 0
      %4514 = vmatmul.mubr.bf16.gmra.mxu0 %v1249
      %v4515 = vpop.f32.mrf.mxu0
      %v4516 = vadd.f32 0.0, %v4515
      %v4517 = vpop.f32.mrf.mxu0
      %v4518 = vpop.f32.mrf.mxu0
      %v4519 = vadd.f32 0.0, %v4518
      %v4520 = vpop.f32.mrf.mxu0
      %4521 = vmatprep.mubr.bf16.mxu0 0
      %4522 = vmatmul.mubr.bf16.gmra.mxu0 %v1250
      %v4523 = vpop.f32.mrf.mxu0
      %v4524 = vadd.f32 0.0, %v4523
      %v4525 = vpop.f32.mrf.mxu0
      %v4526 = vpop.f32.mrf.mxu0
      %v4527 = vadd.f32 0.0, %v4526
      %v4528 = vpop.f32.mrf.mxu0
      %4529 = vmatprep.mubr.bf16.mxu0 0
      %4530 = vmatmul.mubr.bf16.gmra.mxu0 %v1251
      %v4531 = vpop.f32.mrf.mxu0
      %v4532 = vadd.f32 0.0, %v4531
      %v4533 = vpop.f32.mrf.mxu0
      %v4534 = vpop.f32.mrf.mxu0
      %v4535 = vadd.f32 0.0, %v4534
      %v4536 = vpop.f32.mrf.mxu0
      %4537 = vmatprep.mubr.bf16.mxu0 0
      %4538 = vmatmul.mubr.bf16.gmra.mxu0 %v1252
      %v4539 = vpop.f32.mrf.mxu0
      %v4540 = vadd.f32 0.0, %v4539
      %v4541 = vpop.f32.mrf.mxu0
      %v4542 = vpop.f32.mrf.mxu0
      %v4543 = vadd.f32 0.0, %v4542
      %v4544 = vpop.f32.mrf.mxu0
      %4545 = vmatprep.mubr.bf16.mxu0 0
      %4546 = vmatmul.mubr.bf16.gmra.mxu0 %v1253
      %v4547 = vpop.f32.mrf.mxu0
      %v4548 = vadd.f32 0.0, %v4547
      %v4549 = vpop.f32.mrf.mxu0
      %v4550 = vpop.f32.mrf.mxu0
      %v4551 = vadd.f32 0.0, %v4550
      %v4552 = vpop.f32.mrf.mxu0
      %4553 = vdwg.mxu0
      %s4554 = scalar_lea.vmem %s565, 1280
      %v4555 = vld [vmem:[%s4554] sm:$0xff]
      %v4556 = vld [vmem:[%s4554 + $0x8] sm:$0xff]
      %v4557 = vld [vmem:[%s4554 + $0x10] sm:$0xff]
      %v4558 = vld [vmem:[%s4554 + $0x18] sm:$0xff]
      %v4559 = vld [vmem:[%s4554 + $0x20] sm:$0xff]
      %v4560 = vld [vmem:[%s4554 + $0x28] sm:$0xff]
      %v4561 = vld [vmem:[%s4554 + $0x30] sm:$0xff]
      %v4562 = vld [vmem:[%s4554 + $0x38] sm:$0xff]
      %v4563 = vld [vmem:[%s4554 + $0x40] sm:$0xff]
      %v4564 = vld [vmem:[%s4554 + $0x48] sm:$0xff]
      %v4565 = vld [vmem:[%s4554 + $0x50] sm:$0xff]
      %v4566 = vld [vmem:[%s4554 + $0x58] sm:$0xff]
      %v4567 = vld [vmem:[%s4554 + $0x60] sm:$0xff]
      %v4568 = vld [vmem:[%s4554 + $0x68] sm:$0xff]
      %v4569 = vld [vmem:[%s4554 + $0x70] sm:$0xff]
      %v4570 = vld [vmem:[%s4554 + $0x78] sm:$0xff]
      %v4571 = vld [vmem:[%s4554 + $0x80] sm:$0xff]
      %v4572 = vld [vmem:[%s4554 + $0x88] sm:$0xff]
      %v4573 = vld [vmem:[%s4554 + $0x90] sm:$0xff]
      %v4574 = vld [vmem:[%s4554 + $0x98] sm:$0xff]
      %v4575 = vld [vmem:[%s4554 + $0xa0] sm:$0xff]
      %v4576 = vld [vmem:[%s4554 + $0xa8] sm:$0xff]
      %v4577 = vld [vmem:[%s4554 + $0xb0] sm:$0xff]
      %v4578 = vld [vmem:[%s4554 + $0xb8] sm:$0xff]
      %v4579 = vld [vmem:[%s4554 + $0xc0] sm:$0xff]
      %v4580 = vld [vmem:[%s4554 + $0xc8] sm:$0xff]
      %v4581 = vld [vmem:[%s4554 + $0xd0] sm:$0xff]
      %v4582 = vld [vmem:[%s4554 + $0xd8] sm:$0xff]
      %v4583 = vld [vmem:[%s4554 + $0xe0] sm:$0xff]
      %v4584 = vld [vmem:[%s4554 + $0xe8] sm:$0xff]
      %v4585 = vld [vmem:[%s4554 + $0xf0] sm:$0xff]
      %v4586 = vld [vmem:[%s4554 + $0xf8] sm:$0xff]
      %v4587 = vpack.c.bf16 %v4431, %v4428
      %v4588 = vpack.c.bf16 %v4439, %v4436
      %v4589 = vpack.c.bf16 %v4447, %v4444
      %v4590 = vpack.c.bf16 %v4455, %v4452
      %v4591 = vpack.c.bf16 %v4463, %v4460
      %v4592 = vpack.c.bf16 %v4471, %v4468
      %v4593 = vpack.c.bf16 %v4479, %v4476
      %v4594 = vpack.c.bf16 %v4487, %v4484
      %v4595 = vpack.c.bf16 %v4495, %v4492
      %v4596 = vpack.c.bf16 %v4503, %v4500
      %v4597 = vpack.c.bf16 %v4511, %v4508
      %v4598 = vpack.c.bf16 %v4519, %v4516
      %v4599 = vpack.c.bf16 %v4527, %v4524
      %v4600 = vpack.c.bf16 %v4535, %v4532
      %v4601 = vpack.c.bf16 %v4543, %v4540
      %v4602 = vpack.c.bf16 %v4551, %v4548
      %v4635 = vunpack.c.l.b16 %v4555
      %v4636 = vunpack.c.h.b16 %v4555
      %v4637 = vunpack.c.l.b16 %v4556
      %v4638 = vunpack.c.h.b16 %v4556
      %v4639 = vunpack.c.l.b16 %v4557
      %v4640 = vunpack.c.h.b16 %v4557
      %v4641 = vunpack.c.l.b16 %v4558
      %v4642 = vunpack.c.h.b16 %v4558
      %v4643 = vunpack.c.l.b16 %v4559
      %v4644 = vunpack.c.h.b16 %v4559
      %v4645 = vunpack.c.l.b16 %v4560
      %v4646 = vunpack.c.h.b16 %v4560
      %v4647 = vunpack.c.l.b16 %v4561
      %v4648 = vunpack.c.h.b16 %v4561
      %v4649 = vunpack.c.l.b16 %v4562
      %v4650 = vunpack.c.h.b16 %v4562
      %v4651 = vunpack.c.l.b16 %v4563
      %v4652 = vunpack.c.h.b16 %v4563
      %v4653 = vunpack.c.l.b16 %v4564
      %v4654 = vunpack.c.h.b16 %v4564
      %v4655 = vunpack.c.l.b16 %v4565
      %v4656 = vunpack.c.h.b16 %v4565
      %v4657 = vunpack.c.l.b16 %v4566
      %v4658 = vunpack.c.h.b16 %v4566
      %v4659 = vunpack.c.l.b16 %v4567
      %v4660 = vunpack.c.h.b16 %v4567
      %v4661 = vunpack.c.l.b16 %v4568
      %v4662 = vunpack.c.h.b16 %v4568
      %v4663 = vunpack.c.l.b16 %v4569
      %v4664 = vunpack.c.h.b16 %v4569
      %v4665 = vunpack.c.l.b16 %v4570
      %v4666 = vunpack.c.h.b16 %v4570
      %v4667 = vunpack.c.l.b16 %v4571
      %v4668 = vunpack.c.h.b16 %v4571
      %v4669 = vunpack.c.l.b16 %v4572
      %v4670 = vunpack.c.h.b16 %v4572
      %v4671 = vunpack.c.l.b16 %v4573
      %v4672 = vunpack.c.h.b16 %v4573
      %v4673 = vunpack.c.l.b16 %v4574
      %v4674 = vunpack.c.h.b16 %v4574
      %v4675 = vunpack.c.l.b16 %v4575
      %v4676 = vunpack.c.h.b16 %v4575
      %v4677 = vunpack.c.l.b16 %v4576
      %v4678 = vunpack.c.h.b16 %v4576
      %v4679 = vunpack.c.l.b16 %v4577
      %v4680 = vunpack.c.h.b16 %v4577
      %v4681 = vunpack.c.l.b16 %v4578
      %v4682 = vunpack.c.h.b16 %v4578
      %v4683 = vunpack.c.l.b16 %v4579
      %v4684 = vunpack.c.h.b16 %v4579
      %v4685 = vunpack.c.l.b16 %v4580
      %v4686 = vunpack.c.h.b16 %v4580
      %v4687 = vunpack.c.l.b16 %v4581
      %v4688 = vunpack.c.h.b16 %v4581
      %v4689 = vunpack.c.l.b16 %v4582
      %v4690 = vunpack.c.h.b16 %v4582
      %v4691 = vunpack.c.l.b16 %v4583
      %v4692 = vunpack.c.h.b16 %v4583
      %v4693 = vunpack.c.l.b16 %v4584
      %v4694 = vunpack.c.h.b16 %v4584
      %v4695 = vunpack.c.l.b16 %v4585
      %v4696 = vunpack.c.h.b16 %v4585
      %v4697 = vunpack.c.l.b16 %v4586
      %v4698 = vunpack.c.h.b16 %v4586
      %v4699 = vpack.c.b16 %v4637, %v4635
      %v4700 = vpack.c.b16 %v4638, %v4636
      %v4701 = vpack.c.b16 %v4641, %v4639
      %v4702 = vpack.c.b16 %v4642, %v4640
      %v4703 = vpack.c.b16 %v4645, %v4643
      %v4704 = vpack.c.b16 %v4646, %v4644
      %v4705 = vpack.c.b16 %v4649, %v4647
      %v4706 = vpack.c.b16 %v4650, %v4648
      %v4707 = vpack.c.b16 %v4653, %v4651
      %v4708 = vpack.c.b16 %v4654, %v4652
      %v4709 = vpack.c.b16 %v4657, %v4655
      %v4710 = vpack.c.b16 %v4658, %v4656
      %v4711 = vpack.c.b16 %v4661, %v4659
      %v4712 = vpack.c.b16 %v4662, %v4660
      %v4713 = vpack.c.b16 %v4665, %v4663
      %v4714 = vpack.c.b16 %v4666, %v4664
      %v4715 = vpack.c.b16 %v4669, %v4667
      %v4716 = vpack.c.b16 %v4670, %v4668
      %v4717 = vpack.c.b16 %v4673, %v4671
      %v4718 = vpack.c.b16 %v4674, %v4672
      %v4719 = vpack.c.b16 %v4677, %v4675
      %v4720 = vpack.c.b16 %v4678, %v4676
      %v4721 = vpack.c.b16 %v4681, %v4679
      %v4722 = vpack.c.b16 %v4682, %v4680
      %v4723 = vpack.c.b16 %v4685, %v4683
      %v4724 = vpack.c.b16 %v4686, %v4684
      %v4725 = vpack.c.b16 %v4689, %v4687
      %v4726 = vpack.c.b16 %v4690, %v4688
      %v4727 = vpack.c.b16 %v4693, %v4691
      %v4728 = vpack.c.b16 %v4694, %v4692
      %v4729 = vpack.c.b16 %v4697, %v4695
      %v4730 = vpack.c.b16 %v4698, %v4696
      %4763 = vmatprep.subr.bf16.mxu0 0
      %4764 = vmatpush1.bf16.msra.mxu0 %v4594
      %4765 = vmatprep.subr.bf16.mxu0 0
      %4766 = vmatpush1.bf16.msra.mxu0 %v4593
      %4767 = vmatprep.subr.bf16.mxu0 0
      %4768 = vmatpush1.bf16.msra.mxu0 %v4592
      %4769 = vmatprep.subr.bf16.mxu0 0
      %4770 = vmatpush1.bf16.msra.mxu0 %v4591
      %4771 = vmatprep.subr.bf16.mxu0 0
      %4772 = vmatpush1.bf16.msra.mxu0 %v4590
      %4773 = vmatprep.subr.bf16.mxu0 0
      %4774 = vmatpush1.bf16.msra.mxu0 %v4589
      %4775 = vmatprep.subr.bf16.mxu0 0
      %4776 = vmatpush1.bf16.msra.mxu0 %v4588
      %4777 = vmatprep.subr.bf16.mxu0 0
      %4778 = vmatpush1.bf16.msra.mxu0 %v4587
      %4779 = vmatprep.subr.bf16.mxu0 0
      %4780 = vmatpush2.bf16.msra.mxu0 %v4602
      %4781 = vmatprep.subr.bf16.mxu0 0
      %4782 = vmatpush2.bf16.msra.mxu0 %v4601
      %4783 = vmatprep.subr.bf16.mxu0 0
      %4784 = vmatpush2.bf16.msra.mxu0 %v4600
      %4785 = vmatprep.subr.bf16.mxu0 0
      %4786 = vmatpush2.bf16.msra.mxu0 %v4599
      %4787 = vmatprep.subr.bf16.mxu0 0
      %4788 = vmatpush2.bf16.msra.mxu0 %v4598
      %4789 = vmatprep.subr.bf16.mxu0 0
      %4790 = vmatpush2.bf16.msra.mxu0 %v4597
      %4791 = vmatprep.subr.bf16.mxu0 0
      %4792 = vmatpush2.bf16.msra.mxu0 %v4596
      %4793 = vmatprep.subr.bf16.mxu0 0
      %4794 = vmatpush2.bf16.msra.mxu0 %v4595
      %4795 = vmatprep.mubr.bf16.mxu0 %v4700
      %4796 = vmatmul.mubr.bf16.gmra.mxu0 %v4699
      %v4797 = vpop.f32.mrf.mxu0
      %v4798 = vadd.f32 0.0, %v4797
      %v4799 = vpop.f32.mrf.mxu0
      %v4800 = vpop.f32.mrf.mxu0
      %v4801 = vadd.f32 0.0, %v4800
      %v4802 = vpop.f32.mrf.mxu0
      %4803 = vmatprep.mubr.bf16.mxu0 %v4702
      %4804 = vmatmul.mubr.bf16.gmra.mxu0 %v4701
      %v4805 = vpop.f32.mrf.mxu0
      %v4806 = vadd.f32 0.0, %v4805
      %v4807 = vpop.f32.mrf.mxu0
      %v4808 = vpop.f32.mrf.mxu0
      %v4809 = vadd.f32 0.0, %v4808
      %v4810 = vpop.f32.mrf.mxu0
      %4811 = vmatprep.mubr.bf16.mxu0 %v4704
      %4812 = vmatmul.mubr.bf16.gmra.mxu0 %v4703
      %v4813 = vpop.f32.mrf.mxu0
      %v4814 = vadd.f32 0.0, %v4813
      %v4815 = vpop.f32.mrf.mxu0
      %v4816 = vpop.f32.mrf.mxu0
      %v4817 = vadd.f32 0.0, %v4816
      %v4818 = vpop.f32.mrf.mxu0
      %4819 = vmatprep.mubr.bf16.mxu0 %v4706
      %4820 = vmatmul.mubr.bf16.gmra.mxu0 %v4705
      %v4821 = vpop.f32.mrf.mxu0
      %v4822 = vadd.f32 0.0, %v4821
      %v4823 = vpop.f32.mrf.mxu0
      %v4824 = vpop.f32.mrf.mxu0
      %v4825 = vadd.f32 0.0, %v4824
      %v4826 = vpop.f32.mrf.mxu0
      %4827 = vmatprep.mubr.bf16.mxu0 %v4708
      %4828 = vmatmul.mubr.bf16.gmra.mxu0 %v4707
      %v4829 = vpop.f32.mrf.mxu0
      %v4830 = vadd.f32 0.0, %v4829
      %v4831 = vpop.f32.mrf.mxu0
      %v4832 = vpop.f32.mrf.mxu0
      %v4833 = vadd.f32 0.0, %v4832
      %v4834 = vpop.f32.mrf.mxu0
      %4835 = vmatprep.mubr.bf16.mxu0 %v4710
      %4836 = vmatmul.mubr.bf16.gmra.mxu0 %v4709
      %v4837 = vpop.f32.mrf.mxu0
      %v4838 = vadd.f32 0.0, %v4837
      %v4839 = vpop.f32.mrf.mxu0
      %v4840 = vpop.f32.mrf.mxu0
      %v4841 = vadd.f32 0.0, %v4840
      %v4842 = vpop.f32.mrf.mxu0
      %4843 = vmatprep.mubr.bf16.mxu0 %v4712
      %4844 = vmatmul.mubr.bf16.gmra.mxu0 %v4711
      %v4845 = vpop.f32.mrf.mxu0
      %v4846 = vadd.f32 0.0, %v4845
      %v4847 = vpop.f32.mrf.mxu0
      %v4848 = vpop.f32.mrf.mxu0
      %v4849 = vadd.f32 0.0, %v4848
      %v4850 = vpop.f32.mrf.mxu0
      %4851 = vmatprep.mubr.bf16.mxu0 %v4714
      %4852 = vmatmul.mubr.bf16.gmra.mxu0 %v4713
      %v4853 = vpop.f32.mrf.mxu0
      %v4854 = vadd.f32 0.0, %v4853
      %v4855 = vpop.f32.mrf.mxu0
      %v4856 = vpop.f32.mrf.mxu0
      %v4857 = vadd.f32 0.0, %v4856
      %v4858 = vpop.f32.mrf.mxu0
      %4859 = vmatprep.mubr.bf16.mxu0 %v4716
      %4860 = vmatmul.mubr.bf16.gmra.mxu0 %v4715
      %v4861 = vpop.f32.mrf.mxu0
      %v4862 = vadd.f32 0.0, %v4861
      %v4863 = vpop.f32.mrf.mxu0
      %v4864 = vpop.f32.mrf.mxu0
      %v4865 = vadd.f32 0.0, %v4864
      %v4866 = vpop.f32.mrf.mxu0
      %4867 = vmatprep.mubr.bf16.mxu0 %v4718
      %4868 = vmatmul.mubr.bf16.gmra.mxu0 %v4717
      %v4869 = vpop.f32.mrf.mxu0
      %v4870 = vadd.f32 0.0, %v4869
      %v4871 = vpop.f32.mrf.mxu0
      %v4872 = vpop.f32.mrf.mxu0
      %v4873 = vadd.f32 0.0, %v4872
      %v4874 = vpop.f32.mrf.mxu0
      %4875 = vmatprep.mubr.bf16.mxu0 %v4720
      %4876 = vmatmul.mubr.bf16.gmra.mxu0 %v4719
      %v4877 = vpop.f32.mrf.mxu0
      %v4878 = vadd.f32 0.0, %v4877
      %v4879 = vpop.f32.mrf.mxu0
      %v4880 = vpop.f32.mrf.mxu0
      %v4881 = vadd.f32 0.0, %v4880
      %v4882 = vpop.f32.mrf.mxu0
      %4883 = vmatprep.mubr.bf16.mxu0 %v4722
      %4884 = vmatmul.mubr.bf16.gmra.mxu0 %v4721
      %v4885 = vpop.f32.mrf.mxu0
      %v4886 = vadd.f32 0.0, %v4885
      %v4887 = vpop.f32.mrf.mxu0
      %v4888 = vpop.f32.mrf.mxu0
      %v4889 = vadd.f32 0.0, %v4888
      %v4890 = vpop.f32.mrf.mxu0
      %4891 = vmatprep.mubr.bf16.mxu0 %v4724
      %4892 = vmatmul.mubr.bf16.gmra.mxu0 %v4723
      %v4893 = vpop.f32.mrf.mxu0
      %v4894 = vadd.f32 0.0, %v4893
      %v4895 = vpop.f32.mrf.mxu0
      %v4896 = vpop.f32.mrf.mxu0
      %v4897 = vadd.f32 0.0, %v4896
      %v4898 = vpop.f32.mrf.mxu0
      %4899 = vmatprep.mubr.bf16.mxu0 %v4726
      %4900 = vmatmul.mubr.bf16.gmra.mxu0 %v4725
      %v4901 = vpop.f32.mrf.mxu0
      %v4902 = vadd.f32 0.0, %v4901
      %v4903 = vpop.f32.mrf.mxu0
      %v4904 = vpop.f32.mrf.mxu0
      %v4905 = vadd.f32 0.0, %v4904
      %v4906 = vpop.f32.mrf.mxu0
      %4907 = vmatprep.mubr.bf16.mxu0 %v4728
      %4908 = vmatmul.mubr.bf16.gmra.mxu0 %v4727
      %v4909 = vpop.f32.mrf.mxu0
      %v4910 = vadd.f32 0.0, %v4909
      %v4911 = vpop.f32.mrf.mxu0
      %v4912 = vpop.f32.mrf.mxu0
      %v4913 = vadd.f32 0.0, %v4912
      %v4914 = vpop.f32.mrf.mxu0
      %4915 = vmatprep.mubr.bf16.mxu0 %v4730
      %4916 = vmatmul.mubr.bf16.gmra.mxu0 %v4729
      %v4917 = vpop.f32.mrf.mxu0
      %v4918 = vadd.f32 0.0, %v4917
      %v4919 = vpop.f32.mrf.mxu0
      %v4920 = vpop.f32.mrf.mxu0
      %v4921 = vadd.f32 0.0, %v4920
      %v4922 = vpop.f32.mrf.mxu0
      %4923 = vdwg.mxu0
      %v4924 = vadd.f32 %v4296, %v4798
      %v4925 = vadd.f32 %v4297, %v4801
      %v4926 = vadd.f32 %v4298, %v4806
      %v4927 = vadd.f32 %v4299, %v4809
      %v4928 = vadd.f32 %v4300, %v4814
      %v4929 = vadd.f32 %v4301, %v4817
      %v4930 = vadd.f32 %v4302, %v4822
      %v4931 = vadd.f32 %v4303, %v4825
      %v4932 = vadd.f32 %v4304, %v4830
      %v4933 = vadd.f32 %v4305, %v4833
      %v4934 = vadd.f32 %v4306, %v4838
      %v4935 = vadd.f32 %v4307, %v4841
      %v4936 = vadd.f32 %v4308, %v4846
      %v4937 = vadd.f32 %v4309, %v4849
      %v4938 = vadd.f32 %v4310, %v4854
      %v4939 = vadd.f32 %v4311, %v4857
      %v4940 = vadd.f32 %v4312, %v4862
      %v4941 = vadd.f32 %v4313, %v4865
      %v4942 = vadd.f32 %v4314, %v4870
      %v4943 = vadd.f32 %v4315, %v4873
      %v4944 = vadd.f32 %v4316, %v4878
      %v4945 = vadd.f32 %v4317, %v4881
      %v4946 = vadd.f32 %v4318, %v4886
      %v4947 = vadd.f32 %v4319, %v4889
      %v4948 = vadd.f32 %v4320, %v4894
      %v4949 = vadd.f32 %v4321, %v4897
      %v4950 = vadd.f32 %v4322, %v4902
      %v4951 = vadd.f32 %v4323, %v4905
      %v4952 = vadd.f32 %v4324, %v4910
      %v4953 = vadd.f32 %v4325, %v4913
      %v4954 = vadd.f32 %v4326, %v4918
      %v4955 = vadd.f32 %v4327, %v4921
      %s4956 = scalar_lea.vmem %s2, 384
      %v4957 = vld [vmem:[%s4956] sm:$0xf]
      %v4958 = vld [vmem:[%s4956 + $0x4] sm:$0xf]
      %v4959 = vld [vmem:[%s4956 + $0x8] sm:$0xf]
      %v4960 = vld [vmem:[%s4956 + $0xc] sm:$0xf]
      %v4961 = vld [vmem:[%s4956 + $0x10] sm:$0xf]
      %v4962 = vld [vmem:[%s4956 + $0x14] sm:$0xf]
      %v4963 = vld [vmem:[%s4956 + $0x18] sm:$0xf]
      %v4964 = vld [vmem:[%s4956 + $0x1c] sm:$0xf]
      %v4965 = vld [vmem:[%s4956 + $0x20] sm:$0xf]
      %v4966 = vld [vmem:[%s4956 + $0x24] sm:$0xf]
      %v4967 = vld [vmem:[%s4956 + $0x28] sm:$0xf]
      %v4968 = vld [vmem:[%s4956 + $0x2c] sm:$0xf]
      %v4969 = vld [vmem:[%s4956 + $0x30] sm:$0xf]
      %v4970 = vld [vmem:[%s4956 + $0x34] sm:$0xf]
      %v4971 = vld [vmem:[%s4956 + $0x38] sm:$0xf]
      %v4972 = vld [vmem:[%s4956 + $0x3c] sm:$0xf]
      %v4989 = vunpack.c.l.b16 %v4957
      %v4990 = vunpack.c.l.b16 %v4958
      %v4991 = vunpack.c.l.b16 %v4959
      %v4992 = vunpack.c.l.b16 %v4960
      %v4993 = vunpack.c.l.b16 %v4961
      %v4994 = vunpack.c.l.b16 %v4962
      %v4995 = vunpack.c.l.b16 %v4963
      %v4996 = vunpack.c.l.b16 %v4964
      %v4997 = vunpack.c.l.b16 %v4965
      %v4998 = vunpack.c.l.b16 %v4966
      %v4999 = vunpack.c.l.b16 %v4967
      %v5000 = vunpack.c.l.b16 %v4968
      %v5001 = vunpack.c.l.b16 %v4969
      %v5002 = vunpack.c.l.b16 %v4970
      %v5003 = vunpack.c.l.b16 %v4971
      %v5004 = vunpack.c.l.b16 %v4972
      %v5005 = vpack.c.b16 %v4990, %v4989
      %v5006 = vpack.c.b16 %v4992, %v4991
      %v5007 = vpack.c.b16 %v4994, %v4993
      %v5008 = vpack.c.b16 %v4996, %v4995
      %v5009 = vpack.c.b16 %v4998, %v4997
      %v5010 = vpack.c.b16 %v5000, %v4999
      %v5011 = vpack.c.b16 %v5002, %v5001
      %v5012 = vpack.c.b16 %v5004, %v5003
      %5021 = vmatprep.subr.bf16.mxu0 0
      %5022 = vmatpush1.bf16.msra.mxu0 %v5012
      %5023 = vmatprep.subr.bf16.mxu0 0
      %5024 = vmatpush1.bf16.msra.mxu0 %v5011
      %5025 = vmatprep.subr.bf16.mxu0 0
      %5026 = vmatpush1.bf16.msra.mxu0 %v5010
      %5027 = vmatprep.subr.bf16.mxu0 0
      %5028 = vmatpush1.bf16.msra.mxu0 %v5009
      %5029 = vmatprep.subr.bf16.mxu0 0
      %5030 = vmatpush1.bf16.msra.mxu0 %v5008
      %5031 = vmatprep.subr.bf16.mxu0 0
      %5032 = vmatpush1.bf16.msra.mxu0 %v5007
      %5033 = vmatprep.subr.bf16.mxu0 0
      %5034 = vmatpush1.bf16.msra.mxu0 %v5006
      %5035 = vmatprep.subr.bf16.mxu0 0
      %5036 = vmatpush1.bf16.msra.mxu0 %v5005
      %5037 = vmatprep.subr.bf16.mxu0 0
      %5038 = vmatpush2.bf16.msra.mxu0 0
      %5039 = vmatprep.subr.bf16.mxu0 0
      %5040 = vmatpush2.bf16.msra.mxu0 0
      %5041 = vmatprep.subr.bf16.mxu0 0
      %5042 = vmatpush2.bf16.msra.mxu0 0
      %5043 = vmatprep.subr.bf16.mxu0 0
      %5044 = vmatpush2.bf16.msra.mxu0 0
      %5045 = vmatprep.subr.bf16.mxu0 0
      %5046 = vmatpush2.bf16.msra.mxu0 0
      %5047 = vmatprep.subr.bf16.mxu0 0
      %5048 = vmatpush2.bf16.msra.mxu0 0
      %5049 = vmatprep.subr.bf16.mxu0 0
      %5050 = vmatpush2.bf16.msra.mxu0 0
      %5051 = vmatprep.subr.bf16.mxu0 0
      %5052 = vmatpush2.bf16.msra.mxu0 0
      %5053 = vmatprep.mubr.bf16.mxu0 0
      %5054 = vmatmul.mubr.bf16.gmra.mxu0 %v1238
      %v5055 = vpop.f32.mrf.mxu0
      %v5056 = vadd.f32 0.0, %v5055
      %v5057 = vpop.f32.mrf.mxu0
      %v5058 = vpop.f32.mrf.mxu0
      %v5059 = vadd.f32 0.0, %v5058
      %v5060 = vpop.f32.mrf.mxu0
      %5061 = vmatprep.mubr.bf16.mxu0 0
      %5062 = vmatmul.mubr.bf16.gmra.mxu0 %v1239
      %v5063 = vpop.f32.mrf.mxu0
      %v5064 = vadd.f32 0.0, %v5063
      %v5065 = vpop.f32.mrf.mxu0
      %v5066 = vpop.f32.mrf.mxu0
      %v5067 = vadd.f32 0.0, %v5066
      %v5068 = vpop.f32.mrf.mxu0
      %5069 = vmatprep.mubr.bf16.mxu0 0
      %5070 = vmatmul.mubr.bf16.gmra.mxu0 %v1240
      %v5071 = vpop.f32.mrf.mxu0
      %v5072 = vadd.f32 0.0, %v5071
      %v5073 = vpop.f32.mrf.mxu0
      %v5074 = vpop.f32.mrf.mxu0
      %v5075 = vadd.f32 0.0, %v5074
      %v5076 = vpop.f32.mrf.mxu0
      %5077 = vmatprep.mubr.bf16.mxu0 0
      %5078 = vmatmul.mubr.bf16.gmra.mxu0 %v1241
      %v5079 = vpop.f32.mrf.mxu0
      %v5080 = vadd.f32 0.0, %v5079
      %v5081 = vpop.f32.mrf.mxu0
      %v5082 = vpop.f32.mrf.mxu0
      %v5083 = vadd.f32 0.0, %v5082
      %v5084 = vpop.f32.mrf.mxu0
      %5085 = vmatprep.mubr.bf16.mxu0 0
      %5086 = vmatmul.mubr.bf16.gmra.mxu0 %v1242
      %v5087 = vpop.f32.mrf.mxu0
      %v5088 = vadd.f32 0.0, %v5087
      %v5089 = vpop.f32.mrf.mxu0
      %v5090 = vpop.f32.mrf.mxu0
      %v5091 = vadd.f32 0.0, %v5090
      %v5092 = vpop.f32.mrf.mxu0
      %5093 = vmatprep.mubr.bf16.mxu0 0
      %5094 = vmatmul.mubr.bf16.gmra.mxu0 %v1243
      %v5095 = vpop.f32.mrf.mxu0
      %v5096 = vadd.f32 0.0, %v5095
      %v5097 = vpop.f32.mrf.mxu0
      %v5098 = vpop.f32.mrf.mxu0
      %v5099 = vadd.f32 0.0, %v5098
      %v5100 = vpop.f32.mrf.mxu0
      %5101 = vmatprep.mubr.bf16.mxu0 0
      %5102 = vmatmul.mubr.bf16.gmra.mxu0 %v1244
      %v5103 = vpop.f32.mrf.mxu0
      %v5104 = vadd.f32 0.0, %v5103
      %v5105 = vpop.f32.mrf.mxu0
      %v5106 = vpop.f32.mrf.mxu0
      %v5107 = vadd.f32 0.0, %v5106
      %v5108 = vpop.f32.mrf.mxu0
      %5109 = vmatprep.mubr.bf16.mxu0 0
      %5110 = vmatmul.mubr.bf16.gmra.mxu0 %v1245
      %v5111 = vpop.f32.mrf.mxu0
      %v5112 = vadd.f32 0.0, %v5111
      %v5113 = vpop.f32.mrf.mxu0
      %v5114 = vpop.f32.mrf.mxu0
      %v5115 = vadd.f32 0.0, %v5114
      %v5116 = vpop.f32.mrf.mxu0
      %5117 = vmatprep.mubr.bf16.mxu0 0
      %5118 = vmatmul.mubr.bf16.gmra.mxu0 %v1246
      %v5119 = vpop.f32.mrf.mxu0
      %v5120 = vadd.f32 0.0, %v5119
      %v5121 = vpop.f32.mrf.mxu0
      %v5122 = vpop.f32.mrf.mxu0
      %v5123 = vadd.f32 0.0, %v5122
      %v5124 = vpop.f32.mrf.mxu0
      %5125 = vmatprep.mubr.bf16.mxu0 0
      %5126 = vmatmul.mubr.bf16.gmra.mxu0 %v1247
      %v5127 = vpop.f32.mrf.mxu0
      %v5128 = vadd.f32 0.0, %v5127
      %v5129 = vpop.f32.mrf.mxu0
      %v5130 = vpop.f32.mrf.mxu0
      %v5131 = vadd.f32 0.0, %v5130
      %v5132 = vpop.f32.mrf.mxu0
      %5133 = vmatprep.mubr.bf16.mxu0 0
      %5134 = vmatmul.mubr.bf16.gmra.mxu0 %v1248
      %v5135 = vpop.f32.mrf.mxu0
      %v5136 = vadd.f32 0.0, %v5135
      %v5137 = vpop.f32.mrf.mxu0
      %v5138 = vpop.f32.mrf.mxu0
      %v5139 = vadd.f32 0.0, %v5138
      %v5140 = vpop.f32.mrf.mxu0
      %5141 = vmatprep.mubr.bf16.mxu0 0
      %5142 = vmatmul.mubr.bf16.gmra.mxu0 %v1249
      %v5143 = vpop.f32.mrf.mxu0
      %v5144 = vadd.f32 0.0, %v5143
      %v5145 = vpop.f32.mrf.mxu0
      %v5146 = vpop.f32.mrf.mxu0
      %v5147 = vadd.f32 0.0, %v5146
      %v5148 = vpop.f32.mrf.mxu0
      %5149 = vmatprep.mubr.bf16.mxu0 0
      %5150 = vmatmul.mubr.bf16.gmra.mxu0 %v1250
      %v5151 = vpop.f32.mrf.mxu0
      %v5152 = vadd.f32 0.0, %v5151
      %v5153 = vpop.f32.mrf.mxu0
      %v5154 = vpop.f32.mrf.mxu0
      %v5155 = vadd.f32 0.0, %v5154
      %v5156 = vpop.f32.mrf.mxu0
      %5157 = vmatprep.mubr.bf16.mxu0 0
      %5158 = vmatmul.mubr.bf16.gmra.mxu0 %v1251
      %v5159 = vpop.f32.mrf.mxu0
      %v5160 = vadd.f32 0.0, %v5159
      %v5161 = vpop.f32.mrf.mxu0
      %v5162 = vpop.f32.mrf.mxu0
      %v5163 = vadd.f32 0.0, %v5162
      %v5164 = vpop.f32.mrf.mxu0
      %5165 = vmatprep.mubr.bf16.mxu0 0
      %5166 = vmatmul.mubr.bf16.gmra.mxu0 %v1252
      %v5167 = vpop.f32.mrf.mxu0
      %v5168 = vadd.f32 0.0, %v5167
      %v5169 = vpop.f32.mrf.mxu0
      %v5170 = vpop.f32.mrf.mxu0
      %v5171 = vadd.f32 0.0, %v5170
      %v5172 = vpop.f32.mrf.mxu0
      %5173 = vmatprep.mubr.bf16.mxu0 0
      %5174 = vmatmul.mubr.bf16.gmra.mxu0 %v1253
      %v5175 = vpop.f32.mrf.mxu0
      %v5176 = vadd.f32 0.0, %v5175
      %v5177 = vpop.f32.mrf.mxu0
      %v5178 = vpop.f32.mrf.mxu0
      %v5179 = vadd.f32 0.0, %v5178
      %v5180 = vpop.f32.mrf.mxu0
      %5181 = vdwg.mxu0
      %s5182 = scalar_lea.vmem %s565, 1536
      %v5183 = vld [vmem:[%s5182] sm:$0xff]
      %v5184 = vld [vmem:[%s5182 + $0x8] sm:$0xff]
      %v5185 = vld [vmem:[%s5182 + $0x10] sm:$0xff]
      %v5186 = vld [vmem:[%s5182 + $0x18] sm:$0xff]
      %v5187 = vld [vmem:[%s5182 + $0x20] sm:$0xff]
      %v5188 = vld [vmem:[%s5182 + $0x28] sm:$0xff]
      %v5189 = vld [vmem:[%s5182 + $0x30] sm:$0xff]
      %v5190 = vld [vmem:[%s5182 + $0x38] sm:$0xff]
      %v5191 = vld [vmem:[%s5182 + $0x40] sm:$0xff]
      %v5192 = vld [vmem:[%s5182 + $0x48] sm:$0xff]
      %v5193 = vld [vmem:[%s5182 + $0x50] sm:$0xff]
      %v5194 = vld [vmem:[%s5182 + $0x58] sm:$0xff]
      %v5195 = vld [vmem:[%s5182 + $0x60] sm:$0xff]
      %v5196 = vld [vmem:[%s5182 + $0x68] sm:$0xff]
      %v5197 = vld [vmem:[%s5182 + $0x70] sm:$0xff]
      %v5198 = vld [vmem:[%s5182 + $0x78] sm:$0xff]
      %v5199 = vld [vmem:[%s5182 + $0x80] sm:$0xff]
      %v5200 = vld [vmem:[%s5182 + $0x88] sm:$0xff]
      %v5201 = vld [vmem:[%s5182 + $0x90] sm:$0xff]
      %v5202 = vld [vmem:[%s5182 + $0x98] sm:$0xff]
      %v5203 = vld [vmem:[%s5182 + $0xa0] sm:$0xff]
      %v5204 = vld [vmem:[%s5182 + $0xa8] sm:$0xff]
      %v5205 = vld [vmem:[%s5182 + $0xb0] sm:$0xff]
      %v5206 = vld [vmem:[%s5182 + $0xb8] sm:$0xff]
      %v5207 = vld [vmem:[%s5182 + $0xc0] sm:$0xff]
      %v5208 = vld [vmem:[%s5182 + $0xc8] sm:$0xff]
      %v5209 = vld [vmem:[%s5182 + $0xd0] sm:$0xff]
      %v5210 = vld [vmem:[%s5182 + $0xd8] sm:$0xff]
      %v5211 = vld [vmem:[%s5182 + $0xe0] sm:$0xff]
      %v5212 = vld [vmem:[%s5182 + $0xe8] sm:$0xff]
      %v5213 = vld [vmem:[%s5182 + $0xf0] sm:$0xff]
      %v5214 = vld [vmem:[%s5182 + $0xf8] sm:$0xff]
      %v5215 = vpack.c.bf16 %v5059, %v5056
      %v5216 = vpack.c.bf16 %v5067, %v5064
      %v5217 = vpack.c.bf16 %v5075, %v5072
      %v5218 = vpack.c.bf16 %v5083, %v5080
      %v5219 = vpack.c.bf16 %v5091, %v5088
      %v5220 = vpack.c.bf16 %v5099, %v5096
      %v5221 = vpack.c.bf16 %v5107, %v5104
      %v5222 = vpack.c.bf16 %v5115, %v5112
      %v5223 = vpack.c.bf16 %v5123, %v5120
      %v5224 = vpack.c.bf16 %v5131, %v5128
      %v5225 = vpack.c.bf16 %v5139, %v5136
      %v5226 = vpack.c.bf16 %v5147, %v5144
      %v5227 = vpack.c.bf16 %v5155, %v5152
      %v5228 = vpack.c.bf16 %v5163, %v5160
      %v5229 = vpack.c.bf16 %v5171, %v5168
      %v5230 = vpack.c.bf16 %v5179, %v5176
      %v5263 = vunpack.c.l.b16 %v5183
      %v5264 = vunpack.c.h.b16 %v5183
      %v5265 = vunpack.c.l.b16 %v5184
      %v5266 = vunpack.c.h.b16 %v5184
      %v5267 = vunpack.c.l.b16 %v5185
      %v5268 = vunpack.c.h.b16 %v5185
      %v5269 = vunpack.c.l.b16 %v5186
      %v5270 = vunpack.c.h.b16 %v5186
      %v5271 = vunpack.c.l.b16 %v5187
      %v5272 = vunpack.c.h.b16 %v5187
      %v5273 = vunpack.c.l.b16 %v5188
      %v5274 = vunpack.c.h.b16 %v5188
      %v5275 = vunpack.c.l.b16 %v5189
      %v5276 = vunpack.c.h.b16 %v5189
      %v5277 = vunpack.c.l.b16 %v5190
      %v5278 = vunpack.c.h.b16 %v5190
      %v5279 = vunpack.c.l.b16 %v5191
      %v5280 = vunpack.c.h.b16 %v5191
      %v5281 = vunpack.c.l.b16 %v5192
      %v5282 = vunpack.c.h.b16 %v5192
      %v5283 = vunpack.c.l.b16 %v5193
      %v5284 = vunpack.c.h.b16 %v5193
      %v5285 = vunpack.c.l.b16 %v5194
      %v5286 = vunpack.c.h.b16 %v5194
      %v5287 = vunpack.c.l.b16 %v5195
      %v5288 = vunpack.c.h.b16 %v5195
      %v5289 = vunpack.c.l.b16 %v5196
      %v5290 = vunpack.c.h.b16 %v5196
      %v5291 = vunpack.c.l.b16 %v5197
      %v5292 = vunpack.c.h.b16 %v5197
      %v5293 = vunpack.c.l.b16 %v5198
      %v5294 = vunpack.c.h.b16 %v5198
      %v5295 = vunpack.c.l.b16 %v5199
      %v5296 = vunpack.c.h.b16 %v5199
      %v5297 = vunpack.c.l.b16 %v5200
      %v5298 = vunpack.c.h.b16 %v5200
      %v5299 = vunpack.c.l.b16 %v5201
      %v5300 = vunpack.c.h.b16 %v5201
      %v5301 = vunpack.c.l.b16 %v5202
      %v5302 = vunpack.c.h.b16 %v5202
      %v5303 = vunpack.c.l.b16 %v5203
      %v5304 = vunpack.c.h.b16 %v5203
      %v5305 = vunpack.c.l.b16 %v5204
      %v5306 = vunpack.c.h.b16 %v5204
      %v5307 = vunpack.c.l.b16 %v5205
      %v5308 = vunpack.c.h.b16 %v5205
      %v5309 = vunpack.c.l.b16 %v5206
      %v5310 = vunpack.c.h.b16 %v5206
      %v5311 = vunpack.c.l.b16 %v5207
      %v5312 = vunpack.c.h.b16 %v5207
      %v5313 = vunpack.c.l.b16 %v5208
      %v5314 = vunpack.c.h.b16 %v5208
      %v5315 = vunpack.c.l.b16 %v5209
      %v5316 = vunpack.c.h.b16 %v5209
      %v5317 = vunpack.c.l.b16 %v5210
      %v5318 = vunpack.c.h.b16 %v5210
      %v5319 = vunpack.c.l.b16 %v5211
      %v5320 = vunpack.c.h.b16 %v5211
      %v5321 = vunpack.c.l.b16 %v5212
      %v5322 = vunpack.c.h.b16 %v5212
      %v5323 = vunpack.c.l.b16 %v5213
      %v5324 = vunpack.c.h.b16 %v5213
      %v5325 = vunpack.c.l.b16 %v5214
      %v5326 = vunpack.c.h.b16 %v5214
      %v5327 = vpack.c.b16 %v5265, %v5263
      %v5328 = vpack.c.b16 %v5266, %v5264
      %v5329 = vpack.c.b16 %v5269, %v5267
      %v5330 = vpack.c.b16 %v5270, %v5268
      %v5331 = vpack.c.b16 %v5273, %v5271
      %v5332 = vpack.c.b16 %v5274, %v5272
      %v5333 = vpack.c.b16 %v5277, %v5275
      %v5334 = vpack.c.b16 %v5278, %v5276
      %v5335 = vpack.c.b16 %v5281, %v5279
      %v5336 = vpack.c.b16 %v5282, %v5280
      %v5337 = vpack.c.b16 %v5285, %v5283
      %v5338 = vpack.c.b16 %v5286, %v5284
      %v5339 = vpack.c.b16 %v5289, %v5287
      %v5340 = vpack.c.b16 %v5290, %v5288
      %v5341 = vpack.c.b16 %v5293, %v5291
      %v5342 = vpack.c.b16 %v5294, %v5292
      %v5343 = vpack.c.b16 %v5297, %v5295
      %v5344 = vpack.c.b16 %v5298, %v5296
      %v5345 = vpack.c.b16 %v5301, %v5299
      %v5346 = vpack.c.b16 %v5302, %v5300
      %v5347 = vpack.c.b16 %v5305, %v5303
      %v5348 = vpack.c.b16 %v5306, %v5304
      %v5349 = vpack.c.b16 %v5309, %v5307
      %v5350 = vpack.c.b16 %v5310, %v5308
      %v5351 = vpack.c.b16 %v5313, %v5311
      %v5352 = vpack.c.b16 %v5314, %v5312
      %v5353 = vpack.c.b16 %v5317, %v5315
      %v5354 = vpack.c.b16 %v5318, %v5316
      %v5355 = vpack.c.b16 %v5321, %v5319
      %v5356 = vpack.c.b16 %v5322, %v5320
      %v5357 = vpack.c.b16 %v5325, %v5323
      %v5358 = vpack.c.b16 %v5326, %v5324
      %5391 = vmatprep.subr.bf16.mxu0 0
      %5392 = vmatpush1.bf16.msra.mxu0 %v5222
      %5393 = vmatprep.subr.bf16.mxu0 0
      %5394 = vmatpush1.bf16.msra.mxu0 %v5221
      %5395 = vmatprep.subr.bf16.mxu0 0
      %5396 = vmatpush1.bf16.msra.mxu0 %v5220
      %5397 = vmatprep.subr.bf16.mxu0 0
      %5398 = vmatpush1.bf16.msra.mxu0 %v5219
      %5399 = vmatprep.subr.bf16.mxu0 0
      %5400 = vmatpush1.bf16.msra.mxu0 %v5218
      %5401 = vmatprep.subr.bf16.mxu0 0
      %5402 = vmatpush1.bf16.msra.mxu0 %v5217
      %5403 = vmatprep.subr.bf16.mxu0 0
      %5404 = vmatpush1.bf16.msra.mxu0 %v5216
      %5405 = vmatprep.subr.bf16.mxu0 0
      %5406 = vmatpush1.bf16.msra.mxu0 %v5215
      %5407 = vmatprep.subr.bf16.mxu0 0
      %5408 = vmatpush2.bf16.msra.mxu0 %v5230
      %5409 = vmatprep.subr.bf16.mxu0 0
      %5410 = vmatpush2.bf16.msra.mxu0 %v5229
      %5411 = vmatprep.subr.bf16.mxu0 0
      %5412 = vmatpush2.bf16.msra.mxu0 %v5228
      %5413 = vmatprep.subr.bf16.mxu0 0
      %5414 = vmatpush2.bf16.msra.mxu0 %v5227
      %5415 = vmatprep.subr.bf16.mxu0 0
      %5416 = vmatpush2.bf16.msra.mxu0 %v5226
      %5417 = vmatprep.subr.bf16.mxu0 0
      %5418 = vmatpush2.bf16.msra.mxu0 %v5225
      %5419 = vmatprep.subr.bf16.mxu0 0
      %5420 = vmatpush2.bf16.msra.mxu0 %v5224
      %5421 = vmatprep.subr.bf16.mxu0 0
      %5422 = vmatpush2.bf16.msra.mxu0 %v5223
      %5423 = vmatprep.mubr.bf16.mxu0 %v5328
      %5424 = vmatmul.mubr.bf16.gmra.mxu0 %v5327
      %v5425 = vpop.f32.mrf.mxu0
      %v5426 = vadd.f32 0.0, %v5425
      %v5427 = vpop.f32.mrf.mxu0
      %v5428 = vpop.f32.mrf.mxu0
      %v5429 = vadd.f32 0.0, %v5428
      %v5430 = vpop.f32.mrf.mxu0
      %5431 = vmatprep.mubr.bf16.mxu0 %v5330
      %5432 = vmatmul.mubr.bf16.gmra.mxu0 %v5329
      %v5433 = vpop.f32.mrf.mxu0
      %v5434 = vadd.f32 0.0, %v5433
      %v5435 = vpop.f32.mrf.mxu0
      %v5436 = vpop.f32.mrf.mxu0
      %v5437 = vadd.f32 0.0, %v5436
      %v5438 = vpop.f32.mrf.mxu0
      %5439 = vmatprep.mubr.bf16.mxu0 %v5332
      %5440 = vmatmul.mubr.bf16.gmra.mxu0 %v5331
      %v5441 = vpop.f32.mrf.mxu0
      %v5442 = vadd.f32 0.0, %v5441
      %v5443 = vpop.f32.mrf.mxu0
      %v5444 = vpop.f32.mrf.mxu0
      %v5445 = vadd.f32 0.0, %v5444
      %v5446 = vpop.f32.mrf.mxu0
      %5447 = vmatprep.mubr.bf16.mxu0 %v5334
      %5448 = vmatmul.mubr.bf16.gmra.mxu0 %v5333
      %v5449 = vpop.f32.mrf.mxu0
      %v5450 = vadd.f32 0.0, %v5449
      %v5451 = vpop.f32.mrf.mxu0
      %v5452 = vpop.f32.mrf.mxu0
      %v5453 = vadd.f32 0.0, %v5452
      %v5454 = vpop.f32.mrf.mxu0
      %5455 = vmatprep.mubr.bf16.mxu0 %v5336
      %5456 = vmatmul.mubr.bf16.gmra.mxu0 %v5335
      %v5457 = vpop.f32.mrf.mxu0
      %v5458 = vadd.f32 0.0, %v5457
      %v5459 = vpop.f32.mrf.mxu0
      %v5460 = vpop.f32.mrf.mxu0
      %v5461 = vadd.f32 0.0, %v5460
      %v5462 = vpop.f32.mrf.mxu0
      %5463 = vmatprep.mubr.bf16.mxu0 %v5338
      %5464 = vmatmul.mubr.bf16.gmra.mxu0 %v5337
      %v5465 = vpop.f32.mrf.mxu0
      %v5466 = vadd.f32 0.0, %v5465
      %v5467 = vpop.f32.mrf.mxu0
      %v5468 = vpop.f32.mrf.mxu0
      %v5469 = vadd.f32 0.0, %v5468
      %v5470 = vpop.f32.mrf.mxu0
      %5471 = vmatprep.mubr.bf16.mxu0 %v5340
      %5472 = vmatmul.mubr.bf16.gmra.mxu0 %v5339
      %v5473 = vpop.f32.mrf.mxu0
      %v5474 = vadd.f32 0.0, %v5473
      %v5475 = vpop.f32.mrf.mxu0
      %v5476 = vpop.f32.mrf.mxu0
      %v5477 = vadd.f32 0.0, %v5476
      %v5478 = vpop.f32.mrf.mxu0
      %5479 = vmatprep.mubr.bf16.mxu0 %v5342
      %5480 = vmatmul.mubr.bf16.gmra.mxu0 %v5341
      %v5481 = vpop.f32.mrf.mxu0
      %v5482 = vadd.f32 0.0, %v5481
      %v5483 = vpop.f32.mrf.mxu0
      %v5484 = vpop.f32.mrf.mxu0
      %v5485 = vadd.f32 0.0, %v5484
      %v5486 = vpop.f32.mrf.mxu0
      %5487 = vmatprep.mubr.bf16.mxu0 %v5344
      %5488 = vmatmul.mubr.bf16.gmra.mxu0 %v5343
      %v5489 = vpop.f32.mrf.mxu0
      %v5490 = vadd.f32 0.0, %v5489
      %v5491 = vpop.f32.mrf.mxu0
      %v5492 = vpop.f32.mrf.mxu0
      %v5493 = vadd.f32 0.0, %v5492
      %v5494 = vpop.f32.mrf.mxu0
      %5495 = vmatprep.mubr.bf16.mxu0 %v5346
      %5496 = vmatmul.mubr.bf16.gmra.mxu0 %v5345
      %v5497 = vpop.f32.mrf.mxu0
      %v5498 = vadd.f32 0.0, %v5497
      %v5499 = vpop.f32.mrf.mxu0
      %v5500 = vpop.f32.mrf.mxu0
      %v5501 = vadd.f32 0.0, %v5500
      %v5502 = vpop.f32.mrf.mxu0
      %5503 = vmatprep.mubr.bf16.mxu0 %v5348
      %5504 = vmatmul.mubr.bf16.gmra.mxu0 %v5347
      %v5505 = vpop.f32.mrf.mxu0
      %v5506 = vadd.f32 0.0, %v5505
      %v5507 = vpop.f32.mrf.mxu0
      %v5508 = vpop.f32.mrf.mxu0
      %v5509 = vadd.f32 0.0, %v5508
      %v5510 = vpop.f32.mrf.mxu0
      %5511 = vmatprep.mubr.bf16.mxu0 %v5350
      %5512 = vmatmul.mubr.bf16.gmra.mxu0 %v5349
      %v5513 = vpop.f32.mrf.mxu0
      %v5514 = vadd.f32 0.0, %v5513
      %v5515 = vpop.f32.mrf.mxu0
      %v5516 = vpop.f32.mrf.mxu0
      %v5517 = vadd.f32 0.0, %v5516
      %v5518 = vpop.f32.mrf.mxu0
      %5519 = vmatprep.mubr.bf16.mxu0 %v5352
      %5520 = vmatmul.mubr.bf16.gmra.mxu0 %v5351
      %v5521 = vpop.f32.mrf.mxu0
      %v5522 = vadd.f32 0.0, %v5521
      %v5523 = vpop.f32.mrf.mxu0
      %v5524 = vpop.f32.mrf.mxu0
      %v5525 = vadd.f32 0.0, %v5524
      %v5526 = vpop.f32.mrf.mxu0
      %5527 = vmatprep.mubr.bf16.mxu0 %v5354
      %5528 = vmatmul.mubr.bf16.gmra.mxu0 %v5353
      %v5529 = vpop.f32.mrf.mxu0
      %v5530 = vadd.f32 0.0, %v5529
      %v5531 = vpop.f32.mrf.mxu0
      %v5532 = vpop.f32.mrf.mxu0
      %v5533 = vadd.f32 0.0, %v5532
      %v5534 = vpop.f32.mrf.mxu0
      %5535 = vmatprep.mubr.bf16.mxu0 %v5356
      %5536 = vmatmul.mubr.bf16.gmra.mxu0 %v5355
      %v5537 = vpop.f32.mrf.mxu0
      %v5538 = vadd.f32 0.0, %v5537
      %v5539 = vpop.f32.mrf.mxu0
      %v5540 = vpop.f32.mrf.mxu0
      %v5541 = vadd.f32 0.0, %v5540
      %v5542 = vpop.f32.mrf.mxu0
      %5543 = vmatprep.mubr.bf16.mxu0 %v5358
      %5544 = vmatmul.mubr.bf16.gmra.mxu0 %v5357
      %v5545 = vpop.f32.mrf.mxu0
      %v5546 = vadd.f32 0.0, %v5545
      %v5547 = vpop.f32.mrf.mxu0
      %v5548 = vpop.f32.mrf.mxu0
      %v5549 = vadd.f32 0.0, %v5548
      %v5550 = vpop.f32.mrf.mxu0
      %5551 = vdwg.mxu0
      %v5552 = vadd.f32 %v4924, %v5426
      %v5553 = vadd.f32 %v4925, %v5429
      %v5554 = vadd.f32 %v4926, %v5434
      %v5555 = vadd.f32 %v4927, %v5437
      %v5556 = vadd.f32 %v4928, %v5442
      %v5557 = vadd.f32 %v4929, %v5445
      %v5558 = vadd.f32 %v4930, %v5450
      %v5559 = vadd.f32 %v4931, %v5453
      %v5560 = vadd.f32 %v4932, %v5458
      %v5561 = vadd.f32 %v4933, %v5461
      %v5562 = vadd.f32 %v4934, %v5466
      %v5563 = vadd.f32 %v4935, %v5469
      %v5564 = vadd.f32 %v4936, %v5474
      %v5565 = vadd.f32 %v4937, %v5477
      %v5566 = vadd.f32 %v4938, %v5482
      %v5567 = vadd.f32 %v4939, %v5485
      %v5568 = vadd.f32 %v4940, %v5490
      %v5569 = vadd.f32 %v4941, %v5493
      %v5570 = vadd.f32 %v4942, %v5498
      %v5571 = vadd.f32 %v4943, %v5501
      %v5572 = vadd.f32 %v4944, %v5506
      %v5573 = vadd.f32 %v4945, %v5509
      %v5574 = vadd.f32 %v4946, %v5514
      %v5575 = vadd.f32 %v4947, %v5517
      %v5576 = vadd.f32 %v4948, %v5522
      %v5577 = vadd.f32 %v4949, %v5525
      %v5578 = vadd.f32 %v4950, %v5530
      %v5579 = vadd.f32 %v4951, %v5533
      %v5580 = vadd.f32 %v4952, %v5538
      %v5581 = vadd.f32 %v4953, %v5541
      %v5582 = vadd.f32 %v4954, %v5546
      %v5583 = vadd.f32 %v4955, %v5549
      %s5584 = scalar_lea.vmem %s2, 448
      %v5585 = vld [vmem:[%s5584] sm:$0xf]
      %v5586 = vld [vmem:[%s5584 + $0x4] sm:$0xf]
      %v5587 = vld [vmem:[%s5584 + $0x8] sm:$0xf]
      %v5588 = vld [vmem:[%s5584 + $0xc] sm:$0xf]
      %v5589 = vld [vmem:[%s5584 + $0x10] sm:$0xf]
      %v5590 = vld [vmem:[%s5584 + $0x14] sm:$0xf]
      %v5591 = vld [vmem:[%s5584 + $0x18] sm:$0xf]
      %v5592 = vld [vmem:[%s5584 + $0x1c] sm:$0xf]
      %v5593 = vld [vmem:[%s5584 + $0x20] sm:$0xf]
      %v5594 = vld [vmem:[%s5584 + $0x24] sm:$0xf]
      %v5595 = vld [vmem:[%s5584 + $0x28] sm:$0xf]
      %v5596 = vld [vmem:[%s5584 + $0x2c] sm:$0xf]
      %v5597 = vld [vmem:[%s5584 + $0x30] sm:$0xf]
      %v5598 = vld [vmem:[%s5584 + $0x34] sm:$0xf]
      %v5599 = vld [vmem:[%s5584 + $0x38] sm:$0xf]
      %v5600 = vld [vmem:[%s5584 + $0x3c] sm:$0xf]
      %v5617 = vunpack.c.l.b16 %v5585
      %v5618 = vunpack.c.l.b16 %v5586
      %v5619 = vunpack.c.l.b16 %v5587
      %v5620 = vunpack.c.l.b16 %v5588
      %v5621 = vunpack.c.l.b16 %v5589
      %v5622 = vunpack.c.l.b16 %v5590
      %v5623 = vunpack.c.l.b16 %v5591
      %v5624 = vunpack.c.l.b16 %v5592
      %v5625 = vunpack.c.l.b16 %v5593
      %v5626 = vunpack.c.l.b16 %v5594
      %v5627 = vunpack.c.l.b16 %v5595
      %v5628 = vunpack.c.l.b16 %v5596
      %v5629 = vunpack.c.l.b16 %v5597
      %v5630 = vunpack.c.l.b16 %v5598
      %v5631 = vunpack.c.l.b16 %v5599
      %v5632 = vunpack.c.l.b16 %v5600
      %v5633 = vpack.c.b16 %v5618, %v5617
      %v5634 = vpack.c.b16 %v5620, %v5619
      %v5635 = vpack.c.b16 %v5622, %v5621
      %v5636 = vpack.c.b16 %v5624, %v5623
      %v5637 = vpack.c.b16 %v5626, %v5625
      %v5638 = vpack.c.b16 %v5628, %v5627
      %v5639 = vpack.c.b16 %v5630, %v5629
      %v5640 = vpack.c.b16 %v5632, %v5631
      %5649 = vmatprep.subr.bf16.mxu0 0
      %5650 = vmatpush1.bf16.msra.mxu0 %v5640
      %5651 = vmatprep.subr.bf16.mxu0 0
      %5652 = vmatpush1.bf16.msra.mxu0 %v5639
      %5653 = vmatprep.subr.bf16.mxu0 0
      %5654 = vmatpush1.bf16.msra.mxu0 %v5638
      %5655 = vmatprep.subr.bf16.mxu0 0
      %5656 = vmatpush1.bf16.msra.mxu0 %v5637
      %5657 = vmatprep.subr.bf16.mxu0 0
      %5658 = vmatpush1.bf16.msra.mxu0 %v5636
      %5659 = vmatprep.subr.bf16.mxu0 0
      %5660 = vmatpush1.bf16.msra.mxu0 %v5635
      %5661 = vmatprep.subr.bf16.mxu0 0
      %5662 = vmatpush1.bf16.msra.mxu0 %v5634
      %5663 = vmatprep.subr.bf16.mxu0 0
      %5664 = vmatpush1.bf16.msra.mxu0 %v5633
      %5665 = vmatprep.subr.bf16.mxu0 0
      %5666 = vmatpush2.bf16.msra.mxu0 0
      %5667 = vmatprep.subr.bf16.mxu0 0
      %5668 = vmatpush2.bf16.msra.mxu0 0
      %5669 = vmatprep.subr.bf16.mxu0 0
      %5670 = vmatpush2.bf16.msra.mxu0 0
      %5671 = vmatprep.subr.bf16.mxu0 0
      %5672 = vmatpush2.bf16.msra.mxu0 0
      %5673 = vmatprep.subr.bf16.mxu0 0
      %5674 = vmatpush2.bf16.msra.mxu0 0
      %5675 = vmatprep.subr.bf16.mxu0 0
      %5676 = vmatpush2.bf16.msra.mxu0 0
      %5677 = vmatprep.subr.bf16.mxu0 0
      %5678 = vmatpush2.bf16.msra.mxu0 0
      %5679 = vmatprep.subr.bf16.mxu0 0
      %5680 = vmatpush2.bf16.msra.mxu0 0
      %5681 = vmatprep.mubr.bf16.mxu0 0
      %5682 = vmatmul.mubr.bf16.gmra.mxu0 %v1238
      %v5683 = vpop.f32.mrf.mxu0
      %v5684 = vadd.f32 0.0, %v5683
      %v5685 = vpop.f32.mrf.mxu0
      %v5686 = vpop.f32.mrf.mxu0
      %v5687 = vadd.f32 0.0, %v5686
      %v5688 = vpop.f32.mrf.mxu0
      %5689 = vmatprep.mubr.bf16.mxu0 0
      %5690 = vmatmul.mubr.bf16.gmra.mxu0 %v1239
      %v5691 = vpop.f32.mrf.mxu0
      %v5692 = vadd.f32 0.0, %v5691
      %v5693 = vpop.f32.mrf.mxu0
      %v5694 = vpop.f32.mrf.mxu0
      %v5695 = vadd.f32 0.0, %v5694
      %v5696 = vpop.f32.mrf.mxu0
      %5697 = vmatprep.mubr.bf16.mxu0 0
      %5698 = vmatmul.mubr.bf16.gmra.mxu0 %v1240
      %v5699 = vpop.f32.mrf.mxu0
      %v5700 = vadd.f32 0.0, %v5699
      %v5701 = vpop.f32.mrf.mxu0
      %v5702 = vpop.f32.mrf.mxu0
      %v5703 = vadd.f32 0.0, %v5702
      %v5704 = vpop.f32.mrf.mxu0
      %5705 = vmatprep.mubr.bf16.mxu0 0
      %5706 = vmatmul.mubr.bf16.gmra.mxu0 %v1241
      %v5707 = vpop.f32.mrf.mxu0
      %v5708 = vadd.f32 0.0, %v5707
      %v5709 = vpop.f32.mrf.mxu0
      %v5710 = vpop.f32.mrf.mxu0
      %v5711 = vadd.f32 0.0, %v5710
      %v5712 = vpop.f32.mrf.mxu0
      %5713 = vmatprep.mubr.bf16.mxu0 0
      %5714 = vmatmul.mubr.bf16.gmra.mxu0 %v1242
      %v5715 = vpop.f32.mrf.mxu0
      %v5716 = vadd.f32 0.0, %v5715
      %v5717 = vpop.f32.mrf.mxu0
      %v5718 = vpop.f32.mrf.mxu0
      %v5719 = vadd.f32 0.0, %v5718
      %v5720 = vpop.f32.mrf.mxu0
      %5721 = vmatprep.mubr.bf16.mxu0 0
      %5722 = vmatmul.mubr.bf16.gmra.mxu0 %v1243
      %v5723 = vpop.f32.mrf.mxu0
      %v5724 = vadd.f32 0.0, %v5723
      %v5725 = vpop.f32.mrf.mxu0
      %v5726 = vpop.f32.mrf.mxu0
      %v5727 = vadd.f32 0.0, %v5726
      %v5728 = vpop.f32.mrf.mxu0
      %5729 = vmatprep.mubr.bf16.mxu0 0
      %5730 = vmatmul.mubr.bf16.gmra.mxu0 %v1244
      %v5731 = vpop.f32.mrf.mxu0
      %v5732 = vadd.f32 0.0, %v5731
      %v5733 = vpop.f32.mrf.mxu0
      %v5734 = vpop.f32.mrf.mxu0
      %v5735 = vadd.f32 0.0, %v5734
      %v5736 = vpop.f32.mrf.mxu0
      %5737 = vmatprep.mubr.bf16.mxu0 0
      %5738 = vmatmul.mubr.bf16.gmra.mxu0 %v1245
      %v5739 = vpop.f32.mrf.mxu0
      %v5740 = vadd.f32 0.0, %v5739
      %v5741 = vpop.f32.mrf.mxu0
      %v5742 = vpop.f32.mrf.mxu0
      %v5743 = vadd.f32 0.0, %v5742
      %v5744 = vpop.f32.mrf.mxu0
      %5745 = vmatprep.mubr.bf16.mxu0 0
      %5746 = vmatmul.mubr.bf16.gmra.mxu0 %v1246
      %v5747 = vpop.f32.mrf.mxu0
      %v5748 = vadd.f32 0.0, %v5747
      %v5749 = vpop.f32.mrf.mxu0
      %v5750 = vpop.f32.mrf.mxu0
      %v5751 = vadd.f32 0.0, %v5750
      %v5752 = vpop.f32.mrf.mxu0
      %5753 = vmatprep.mubr.bf16.mxu0 0
      %5754 = vmatmul.mubr.bf16.gmra.mxu0 %v1247
      %v5755 = vpop.f32.mrf.mxu0
      %v5756 = vadd.f32 0.0, %v5755
      %v5757 = vpop.f32.mrf.mxu0
      %v5758 = vpop.f32.mrf.mxu0
      %v5759 = vadd.f32 0.0, %v5758
      %v5760 = vpop.f32.mrf.mxu0
      %5761 = vmatprep.mubr.bf16.mxu0 0
      %5762 = vmatmul.mubr.bf16.gmra.mxu0 %v1248
      %v5763 = vpop.f32.mrf.mxu0
      %v5764 = vadd.f32 0.0, %v5763
      %v5765 = vpop.f32.mrf.mxu0
      %v5766 = vpop.f32.mrf.mxu0
      %v5767 = vadd.f32 0.0, %v5766
      %v5768 = vpop.f32.mrf.mxu0
      %5769 = vmatprep.mubr.bf16.mxu0 0
      %5770 = vmatmul.mubr.bf16.gmra.mxu0 %v1249
      %v5771 = vpop.f32.mrf.mxu0
      %v5772 = vadd.f32 0.0, %v5771
      %v5773 = vpop.f32.mrf.mxu0
      %v5774 = vpop.f32.mrf.mxu0
      %v5775 = vadd.f32 0.0, %v5774
      %v5776 = vpop.f32.mrf.mxu0
      %5777 = vmatprep.mubr.bf16.mxu0 0
      %5778 = vmatmul.mubr.bf16.gmra.mxu0 %v1250
      %v5779 = vpop.f32.mrf.mxu0
      %v5780 = vadd.f32 0.0, %v5779
      %v5781 = vpop.f32.mrf.mxu0
      %v5782 = vpop.f32.mrf.mxu0
      %v5783 = vadd.f32 0.0, %v5782
      %v5784 = vpop.f32.mrf.mxu0
      %5785 = vmatprep.mubr.bf16.mxu0 0
      %5786 = vmatmul.mubr.bf16.gmra.mxu0 %v1251
      %v5787 = vpop.f32.mrf.mxu0
      %v5788 = vadd.f32 0.0, %v5787
      %v5789 = vpop.f32.mrf.mxu0
      %v5790 = vpop.f32.mrf.mxu0
      %v5791 = vadd.f32 0.0, %v5790
      %v5792 = vpop.f32.mrf.mxu0
      %5793 = vmatprep.mubr.bf16.mxu0 0
      %5794 = vmatmul.mubr.bf16.gmra.mxu0 %v1252
      %v5795 = vpop.f32.mrf.mxu0
      %v5796 = vadd.f32 0.0, %v5795
      %v5797 = vpop.f32.mrf.mxu0
      %v5798 = vpop.f32.mrf.mxu0
      %v5799 = vadd.f32 0.0, %v5798
      %v5800 = vpop.f32.mrf.mxu0
      %5801 = vmatprep.mubr.bf16.mxu0 0
      %5802 = vmatmul.mubr.bf16.gmra.mxu0 %v1253
      %v5803 = vpop.f32.mrf.mxu0
      %v5804 = vadd.f32 0.0, %v5803
      %v5805 = vpop.f32.mrf.mxu0
      %v5806 = vpop.f32.mrf.mxu0
      %v5807 = vadd.f32 0.0, %v5806
      %v5808 = vpop.f32.mrf.mxu0
      %5809 = vdwg.mxu0
      %s5810 = scalar_lea.vmem %s565, 1792
      %v5811 = vld [vmem:[%s5810] sm:$0xff]
      %v5812 = vld [vmem:[%s5810 + $0x8] sm:$0xff]
      %v5813 = vld [vmem:[%s5810 + $0x10] sm:$0xff]
      %v5814 = vld [vmem:[%s5810 + $0x18] sm:$0xff]
      %v5815 = vld [vmem:[%s5810 + $0x20] sm:$0xff]
      %v5816 = vld [vmem:[%s5810 + $0x28] sm:$0xff]
      %v5817 = vld [vmem:[%s5810 + $0x30] sm:$0xff]
      %v5818 = vld [vmem:[%s5810 + $0x38] sm:$0xff]
      %v5819 = vld [vmem:[%s5810 + $0x40] sm:$0xff]
      %v5820 = vld [vmem:[%s5810 + $0x48] sm:$0xff]
      %v5821 = vld [vmem:[%s5810 + $0x50] sm:$0xff]
      %v5822 = vld [vmem:[%s5810 + $0x58] sm:$0xff]
      %v5823 = vld [vmem:[%s5810 + $0x60] sm:$0xff]
      %v5824 = vld [vmem:[%s5810 + $0x68] sm:$0xff]
      %v5825 = vld [vmem:[%s5810 + $0x70] sm:$0xff]
      %v5826 = vld [vmem:[%s5810 + $0x78] sm:$0xff]
      %v5827 = vld [vmem:[%s5810 + $0x80] sm:$0xff]
      %v5828 = vld [vmem:[%s5810 + $0x88] sm:$0xff]
      %v5829 = vld [vmem:[%s5810 + $0x90] sm:$0xff]
      %v5830 = vld [vmem:[%s5810 + $0x98] sm:$0xff]
      %v5831 = vld [vmem:[%s5810 + $0xa0] sm:$0xff]
      %v5832 = vld [vmem:[%s5810 + $0xa8] sm:$0xff]
      %v5833 = vld [vmem:[%s5810 + $0xb0] sm:$0xff]
      %v5834 = vld [vmem:[%s5810 + $0xb8] sm:$0xff]
      %v5835 = vld [vmem:[%s5810 + $0xc0] sm:$0xff]
      %v5836 = vld [vmem:[%s5810 + $0xc8] sm:$0xff]
      %v5837 = vld [vmem:[%s5810 + $0xd0] sm:$0xff]
      %v5838 = vld [vmem:[%s5810 + $0xd8] sm:$0xff]
      %v5839 = vld [vmem:[%s5810 + $0xe0] sm:$0xff]
      %v5840 = vld [vmem:[%s5810 + $0xe8] sm:$0xff]
      %v5841 = vld [vmem:[%s5810 + $0xf0] sm:$0xff]
      %v5842 = vld [vmem:[%s5810 + $0xf8] sm:$0xff]
      %v5843 = vpack.c.bf16 %v5687, %v5684
      %v5844 = vpack.c.bf16 %v5695, %v5692
      %v5845 = vpack.c.bf16 %v5703, %v5700
      %v5846 = vpack.c.bf16 %v5711, %v5708
      %v5847 = vpack.c.bf16 %v5719, %v5716
      %v5848 = vpack.c.bf16 %v5727, %v5724
      %v5849 = vpack.c.bf16 %v5735, %v5732
      %v5850 = vpack.c.bf16 %v5743, %v5740
      %v5851 = vpack.c.bf16 %v5751, %v5748
      %v5852 = vpack.c.bf16 %v5759, %v5756
      %v5853 = vpack.c.bf16 %v5767, %v5764
      %v5854 = vpack.c.bf16 %v5775, %v5772
      %v5855 = vpack.c.bf16 %v5783, %v5780
      %v5856 = vpack.c.bf16 %v5791, %v5788
      %v5857 = vpack.c.bf16 %v5799, %v5796
      %v5858 = vpack.c.bf16 %v5807, %v5804
      %v5891 = vunpack.c.l.b16 %v5811
      %v5892 = vunpack.c.h.b16 %v5811
      %v5893 = vunpack.c.l.b16 %v5812
      %v5894 = vunpack.c.h.b16 %v5812
      %v5895 = vunpack.c.l.b16 %v5813
      %v5896 = vunpack.c.h.b16 %v5813
      %v5897 = vunpack.c.l.b16 %v5814
      %v5898 = vunpack.c.h.b16 %v5814
      %v5899 = vunpack.c.l.b16 %v5815
      %v5900 = vunpack.c.h.b16 %v5815
      %v5901 = vunpack.c.l.b16 %v5816
      %v5902 = vunpack.c.h.b16 %v5816
      %v5903 = vunpack.c.l.b16 %v5817
      %v5904 = vunpack.c.h.b16 %v5817
      %v5905 = vunpack.c.l.b16 %v5818
      %v5906 = vunpack.c.h.b16 %v5818
      %v5907 = vunpack.c.l.b16 %v5819
      %v5908 = vunpack.c.h.b16 %v5819
      %v5909 = vunpack.c.l.b16 %v5820
      %v5910 = vunpack.c.h.b16 %v5820
      %v5911 = vunpack.c.l.b16 %v5821
      %v5912 = vunpack.c.h.b16 %v5821
      %v5913 = vunpack.c.l.b16 %v5822
      %v5914 = vunpack.c.h.b16 %v5822
      %v5915 = vunpack.c.l.b16 %v5823
      %v5916 = vunpack.c.h.b16 %v5823
      %v5917 = vunpack.c.l.b16 %v5824
      %v5918 = vunpack.c.h.b16 %v5824
      %v5919 = vunpack.c.l.b16 %v5825
      %v5920 = vunpack.c.h.b16 %v5825
      %v5921 = vunpack.c.l.b16 %v5826
      %v5922 = vunpack.c.h.b16 %v5826
      %v5923 = vunpack.c.l.b16 %v5827
      %v5924 = vunpack.c.h.b16 %v5827
      %v5925 = vunpack.c.l.b16 %v5828
      %v5926 = vunpack.c.h.b16 %v5828
      %v5927 = vunpack.c.l.b16 %v5829
      %v5928 = vunpack.c.h.b16 %v5829
      %v5929 = vunpack.c.l.b16 %v5830
      %v5930 = vunpack.c.h.b16 %v5830
      %v5931 = vunpack.c.l.b16 %v5831
      %v5932 = vunpack.c.h.b16 %v5831
      %v5933 = vunpack.c.l.b16 %v5832
      %v5934 = vunpack.c.h.b16 %v5832
      %v5935 = vunpack.c.l.b16 %v5833
      %v5936 = vunpack.c.h.b16 %v5833
      %v5937 = vunpack.c.l.b16 %v5834
      %v5938 = vunpack.c.h.b16 %v5834
      %v5939 = vunpack.c.l.b16 %v5835
      %v5940 = vunpack.c.h.b16 %v5835
      %v5941 = vunpack.c.l.b16 %v5836
      %v5942 = vunpack.c.h.b16 %v5836
      %v5943 = vunpack.c.l.b16 %v5837
      %v5944 = vunpack.c.h.b16 %v5837
      %v5945 = vunpack.c.l.b16 %v5838
      %v5946 = vunpack.c.h.b16 %v5838
      %v5947 = vunpack.c.l.b16 %v5839
      %v5948 = vunpack.c.h.b16 %v5839
      %v5949 = vunpack.c.l.b16 %v5840
      %v5950 = vunpack.c.h.b16 %v5840
      %v5951 = vunpack.c.l.b16 %v5841
      %v5952 = vunpack.c.h.b16 %v5841
      %v5953 = vunpack.c.l.b16 %v5842
      %v5954 = vunpack.c.h.b16 %v5842
      %v5955 = vpack.c.b16 %v5893, %v5891
      %v5956 = vpack.c.b16 %v5894, %v5892
      %v5957 = vpack.c.b16 %v5897, %v5895
      %v5958 = vpack.c.b16 %v5898, %v5896
      %v5959 = vpack.c.b16 %v5901, %v5899
      %v5960 = vpack.c.b16 %v5902, %v5900
      %v5961 = vpack.c.b16 %v5905, %v5903
      %v5962 = vpack.c.b16 %v5906, %v5904
      %v5963 = vpack.c.b16 %v5909, %v5907
      %v5964 = vpack.c.b16 %v5910, %v5908
      %v5965 = vpack.c.b16 %v5913, %v5911
      %v5966 = vpack.c.b16 %v5914, %v5912
      %v5967 = vpack.c.b16 %v5917, %v5915
      %v5968 = vpack.c.b16 %v5918, %v5916
      %v5969 = vpack.c.b16 %v5921, %v5919
      %v5970 = vpack.c.b16 %v5922, %v5920
      %v5971 = vpack.c.b16 %v5925, %v5923
      %v5972 = vpack.c.b16 %v5926, %v5924
      %v5973 = vpack.c.b16 %v5929, %v5927
      %v5974 = vpack.c.b16 %v5930, %v5928
      %v5975 = vpack.c.b16 %v5933, %v5931
      %v5976 = vpack.c.b16 %v5934, %v5932
      %v5977 = vpack.c.b16 %v5937, %v5935
      %v5978 = vpack.c.b16 %v5938, %v5936
      %v5979 = vpack.c.b16 %v5941, %v5939
      %v5980 = vpack.c.b16 %v5942, %v5940
      %v5981 = vpack.c.b16 %v5945, %v5943
      %v5982 = vpack.c.b16 %v5946, %v5944
      %v5983 = vpack.c.b16 %v5949, %v5947
      %v5984 = vpack.c.b16 %v5950, %v5948
      %v5985 = vpack.c.b16 %v5953, %v5951
      %v5986 = vpack.c.b16 %v5954, %v5952
      %6019 = vmatprep.subr.bf16.mxu0 0
      %6020 = vmatpush1.bf16.msra.mxu0 %v5850
      %6021 = vmatprep.subr.bf16.mxu0 0
      %6022 = vmatpush1.bf16.msra.mxu0 %v5849
      %6023 = vmatprep.subr.bf16.mxu0 0
      %6024 = vmatpush1.bf16.msra.mxu0 %v5848
      %6025 = vmatprep.subr.bf16.mxu0 0
      %6026 = vmatpush1.bf16.msra.mxu0 %v5847
      %6027 = vmatprep.subr.bf16.mxu0 0
      %6028 = vmatpush1.bf16.msra.mxu0 %v5846
      %6029 = vmatprep.subr.bf16.mxu0 0
      %6030 = vmatpush1.bf16.msra.mxu0 %v5845
      %6031 = vmatprep.subr.bf16.mxu0 0
      %6032 = vmatpush1.bf16.msra.mxu0 %v5844
      %6033 = vmatprep.subr.bf16.mxu0 0
      %6034 = vmatpush1.bf16.msra.mxu0 %v5843
      %6035 = vmatprep.subr.bf16.mxu0 0
      %6036 = vmatpush2.bf16.msra.mxu0 %v5858
      %6037 = vmatprep.subr.bf16.mxu0 0
      %6038 = vmatpush2.bf16.msra.mxu0 %v5857
      %6039 = vmatprep.subr.bf16.mxu0 0
      %6040 = vmatpush2.bf16.msra.mxu0 %v5856
      %6041 = vmatprep.subr.bf16.mxu0 0
      %6042 = vmatpush2.bf16.msra.mxu0 %v5855
      %6043 = vmatprep.subr.bf16.mxu0 0
      %6044 = vmatpush2.bf16.msra.mxu0 %v5854
      %6045 = vmatprep.subr.bf16.mxu0 0
      %6046 = vmatpush2.bf16.msra.mxu0 %v5853
      %6047 = vmatprep.subr.bf16.mxu0 0
      %6048 = vmatpush2.bf16.msra.mxu0 %v5852
      %6049 = vmatprep.subr.bf16.mxu0 0
      %6050 = vmatpush2.bf16.msra.mxu0 %v5851
      %6051 = vmatprep.mubr.bf16.mxu0 %v5956
      %6052 = vmatmul.mubr.bf16.gmra.mxu0 %v5955
      %v6053 = vpop.f32.mrf.mxu0
      %v6054 = vadd.f32 0.0, %v6053
      %v6055 = vpop.f32.mrf.mxu0
      %v6056 = vpop.f32.mrf.mxu0
      %v6057 = vadd.f32 0.0, %v6056
      %v6058 = vpop.f32.mrf.mxu0
      %6059 = vmatprep.mubr.bf16.mxu0 %v5958
      %6060 = vmatmul.mubr.bf16.gmra.mxu0 %v5957
      %v6061 = vpop.f32.mrf.mxu0
      %v6062 = vadd.f32 0.0, %v6061
      %v6063 = vpop.f32.mrf.mxu0
      %v6064 = vpop.f32.mrf.mxu0
      %v6065 = vadd.f32 0.0, %v6064
      %v6066 = vpop.f32.mrf.mxu0
      %6067 = vmatprep.mubr.bf16.mxu0 %v5960
      %6068 = vmatmul.mubr.bf16.gmra.mxu0 %v5959
      %v6069 = vpop.f32.mrf.mxu0
      %v6070 = vadd.f32 0.0, %v6069
      %v6071 = vpop.f32.mrf.mxu0
      %v6072 = vpop.f32.mrf.mxu0
      %v6073 = vadd.f32 0.0, %v6072
      %v6074 = vpop.f32.mrf.mxu0
      %6075 = vmatprep.mubr.bf16.mxu0 %v5962
      %6076 = vmatmul.mubr.bf16.gmra.mxu0 %v5961
      %v6077 = vpop.f32.mrf.mxu0
      %v6078 = vadd.f32 0.0, %v6077
      %v6079 = vpop.f32.mrf.mxu0
      %v6080 = vpop.f32.mrf.mxu0
      %v6081 = vadd.f32 0.0, %v6080
      %v6082 = vpop.f32.mrf.mxu0
      %6083 = vmatprep.mubr.bf16.mxu0 %v5964
      %6084 = vmatmul.mubr.bf16.gmra.mxu0 %v5963
      %v6085 = vpop.f32.mrf.mxu0
      %v6086 = vadd.f32 0.0, %v6085
      %v6087 = vpop.f32.mrf.mxu0
      %v6088 = vpop.f32.mrf.mxu0
      %v6089 = vadd.f32 0.0, %v6088
      %v6090 = vpop.f32.mrf.mxu0
      %6091 = vmatprep.mubr.bf16.mxu0 %v5966
      %6092 = vmatmul.mubr.bf16.gmra.mxu0 %v5965
      %v6093 = vpop.f32.mrf.mxu0
      %v6094 = vadd.f32 0.0, %v6093
      %v6095 = vpop.f32.mrf.mxu0
      %v6096 = vpop.f32.mrf.mxu0
      %v6097 = vadd.f32 0.0, %v6096
      %v6098 = vpop.f32.mrf.mxu0
      %6099 = vmatprep.mubr.bf16.mxu0 %v5968
      %6100 = vmatmul.mubr.bf16.gmra.mxu0 %v5967
      %v6101 = vpop.f32.mrf.mxu0
      %v6102 = vadd.f32 0.0, %v6101
      %v6103 = vpop.f32.mrf.mxu0
      %v6104 = vpop.f32.mrf.mxu0
      %v6105 = vadd.f32 0.0, %v6104
      %v6106 = vpop.f32.mrf.mxu0
      %6107 = vmatprep.mubr.bf16.mxu0 %v5970
      %6108 = vmatmul.mubr.bf16.gmra.mxu0 %v5969
      %v6109 = vpop.f32.mrf.mxu0
      %v6110 = vadd.f32 0.0, %v6109
      %v6111 = vpop.f32.mrf.mxu0
      %v6112 = vpop.f32.mrf.mxu0
      %v6113 = vadd.f32 0.0, %v6112
      %v6114 = vpop.f32.mrf.mxu0
      %6115 = vmatprep.mubr.bf16.mxu0 %v5972
      %6116 = vmatmul.mubr.bf16.gmra.mxu0 %v5971
      %v6117 = vpop.f32.mrf.mxu0
      %v6118 = vadd.f32 0.0, %v6117
      %v6119 = vpop.f32.mrf.mxu0
      %v6120 = vpop.f32.mrf.mxu0
      %v6121 = vadd.f32 0.0, %v6120
      %v6122 = vpop.f32.mrf.mxu0
      %6123 = vmatprep.mubr.bf16.mxu0 %v5974
      %6124 = vmatmul.mubr.bf16.gmra.mxu0 %v5973
      %v6125 = vpop.f32.mrf.mxu0
      %v6126 = vadd.f32 0.0, %v6125
      %v6127 = vpop.f32.mrf.mxu0
      %v6128 = vpop.f32.mrf.mxu0
      %v6129 = vadd.f32 0.0, %v6128
      %v6130 = vpop.f32.mrf.mxu0
      %6131 = vmatprep.mubr.bf16.mxu0 %v5976
      %6132 = vmatmul.mubr.bf16.gmra.mxu0 %v5975
      %v6133 = vpop.f32.mrf.mxu0
      %v6134 = vadd.f32 0.0, %v6133
      %v6135 = vpop.f32.mrf.mxu0
      %v6136 = vpop.f32.mrf.mxu0
      %v6137 = vadd.f32 0.0, %v6136
      %v6138 = vpop.f32.mrf.mxu0
      %6139 = vmatprep.mubr.bf16.mxu0 %v5978
      %6140 = vmatmul.mubr.bf16.gmra.mxu0 %v5977
      %v6141 = vpop.f32.mrf.mxu0
      %v6142 = vadd.f32 0.0, %v6141
      %v6143 = vpop.f32.mrf.mxu0
      %v6144 = vpop.f32.mrf.mxu0
      %v6145 = vadd.f32 0.0, %v6144
      %v6146 = vpop.f32.mrf.mxu0
      %6147 = vmatprep.mubr.bf16.mxu0 %v5980
      %6148 = vmatmul.mubr.bf16.gmra.mxu0 %v5979
      %v6149 = vpop.f32.mrf.mxu0
      %v6150 = vadd.f32 0.0, %v6149
      %v6151 = vpop.f32.mrf.mxu0
      %v6152 = vpop.f32.mrf.mxu0
      %v6153 = vadd.f32 0.0, %v6152
      %v6154 = vpop.f32.mrf.mxu0
      %6155 = vmatprep.mubr.bf16.mxu0 %v5982
      %6156 = vmatmul.mubr.bf16.gmra.mxu0 %v5981
      %v6157 = vpop.f32.mrf.mxu0
      %v6158 = vadd.f32 0.0, %v6157
      %v6159 = vpop.f32.mrf.mxu0
      %v6160 = vpop.f32.mrf.mxu0
      %v6161 = vadd.f32 0.0, %v6160
      %v6162 = vpop.f32.mrf.mxu0
      %6163 = vmatprep.mubr.bf16.mxu0 %v5984
      %6164 = vmatmul.mubr.bf16.gmra.mxu0 %v5983
      %v6165 = vpop.f32.mrf.mxu0
      %v6166 = vadd.f32 0.0, %v6165
      %v6167 = vpop.f32.mrf.mxu0
      %v6168 = vpop.f32.mrf.mxu0
      %v6169 = vadd.f32 0.0, %v6168
      %v6170 = vpop.f32.mrf.mxu0
      %6171 = vmatprep.mubr.bf16.mxu0 %v5986
      %6172 = vmatmul.mubr.bf16.gmra.mxu0 %v5985
      %v6173 = vpop.f32.mrf.mxu0
      %v6174 = vadd.f32 0.0, %v6173
      %v6175 = vpop.f32.mrf.mxu0
      %v6176 = vpop.f32.mrf.mxu0
      %v6177 = vadd.f32 0.0, %v6176
      %v6178 = vpop.f32.mrf.mxu0
      %6179 = vdwg.mxu0
      %v6180 = vadd.f32 %v5552, %v6054
      %v6181 = vadd.f32 %v5553, %v6057
      %v6182 = vadd.f32 %v5554, %v6062
      %v6183 = vadd.f32 %v5555, %v6065
      %v6184 = vadd.f32 %v5556, %v6070
      %v6185 = vadd.f32 %v5557, %v6073
      %v6186 = vadd.f32 %v5558, %v6078
      %v6187 = vadd.f32 %v5559, %v6081
      %v6188 = vadd.f32 %v5560, %v6086
      %v6189 = vadd.f32 %v5561, %v6089
      %v6190 = vadd.f32 %v5562, %v6094
      %v6191 = vadd.f32 %v5563, %v6097
      %v6192 = vadd.f32 %v5564, %v6102
      %v6193 = vadd.f32 %v5565, %v6105
      %v6194 = vadd.f32 %v5566, %v6110
      %v6195 = vadd.f32 %v5567, %v6113
      %v6196 = vadd.f32 %v5568, %v6118
      %v6197 = vadd.f32 %v5569, %v6121
      %v6198 = vadd.f32 %v5570, %v6126
      %v6199 = vadd.f32 %v5571, %v6129
      %v6200 = vadd.f32 %v5572, %v6134
      %v6201 = vadd.f32 %v5573, %v6137
      %v6202 = vadd.f32 %v5574, %v6142
      %v6203 = vadd.f32 %v5575, %v6145
      %v6204 = vadd.f32 %v5576, %v6150
      %v6205 = vadd.f32 %v5577, %v6153
      %v6206 = vadd.f32 %v5578, %v6158
      %v6207 = vadd.f32 %v5579, %v6161
      %v6208 = vadd.f32 %v5580, %v6166
      %v6209 = vadd.f32 %v5581, %v6169
      %v6210 = vadd.f32 %v5582, %v6174
      %v6211 = vadd.f32 %v5583, %v6177
      %s6212 = scalar_lea.vmem %s2, 512
      %v6213 = vld [vmem:[%s6212] sm:$0xf]
      %v6214 = vld [vmem:[%s6212 + $0x4] sm:$0xf]
      %v6215 = vld [vmem:[%s6212 + $0x8] sm:$0xf]
      %v6216 = vld [vmem:[%s6212 + $0xc] sm:$0xf]
      %v6217 = vld [vmem:[%s6212 + $0x10] sm:$0xf]
      %v6218 = vld [vmem:[%s6212 + $0x14] sm:$0xf]
      %v6219 = vld [vmem:[%s6212 + $0x18] sm:$0xf]
      %v6220 = vld [vmem:[%s6212 + $0x1c] sm:$0xf]
      %v6221 = vld [vmem:[%s6212 + $0x20] sm:$0xf]
      %v6222 = vld [vmem:[%s6212 + $0x24] sm:$0xf]
      %v6223 = vld [vmem:[%s6212 + $0x28] sm:$0xf]
      %v6224 = vld [vmem:[%s6212 + $0x2c] sm:$0xf]
      %v6225 = vld [vmem:[%s6212 + $0x30] sm:$0xf]
      %v6226 = vld [vmem:[%s6212 + $0x34] sm:$0xf]
      %v6227 = vld [vmem:[%s6212 + $0x38] sm:$0xf]
      %v6228 = vld [vmem:[%s6212 + $0x3c] sm:$0xf]
      %v6245 = vunpack.c.l.b16 %v6213
      %v6246 = vunpack.c.l.b16 %v6214
      %v6247 = vunpack.c.l.b16 %v6215
      %v6248 = vunpack.c.l.b16 %v6216
      %v6249 = vunpack.c.l.b16 %v6217
      %v6250 = vunpack.c.l.b16 %v6218
      %v6251 = vunpack.c.l.b16 %v6219
      %v6252 = vunpack.c.l.b16 %v6220
      %v6253 = vunpack.c.l.b16 %v6221
      %v6254 = vunpack.c.l.b16 %v6222
      %v6255 = vunpack.c.l.b16 %v6223
      %v6256 = vunpack.c.l.b16 %v6224
      %v6257 = vunpack.c.l.b16 %v6225
      %v6258 = vunpack.c.l.b16 %v6226
      %v6259 = vunpack.c.l.b16 %v6227
      %v6260 = vunpack.c.l.b16 %v6228
      %v6261 = vpack.c.b16 %v6246, %v6245
      %v6262 = vpack.c.b16 %v6248, %v6247
      %v6263 = vpack.c.b16 %v6250, %v6249
      %v6264 = vpack.c.b16 %v6252, %v6251
      %v6265 = vpack.c.b16 %v6254, %v6253
      %v6266 = vpack.c.b16 %v6256, %v6255
      %v6267 = vpack.c.b16 %v6258, %v6257
      %v6268 = vpack.c.b16 %v6260, %v6259
      %6277 = vmatprep.subr.bf16.mxu0 0
      %6278 = vmatpush1.bf16.msra.mxu0 %v6268
      %6279 = vmatprep.subr.bf16.mxu0 0
      %6280 = vmatpush1.bf16.msra.mxu0 %v6267
      %6281 = vmatprep.subr.bf16.mxu0 0
      %6282 = vmatpush1.bf16.msra.mxu0 %v6266
      %6283 = vmatprep.subr.bf16.mxu0 0
      %6284 = vmatpush1.bf16.msra.mxu0 %v6265
      %6285 = vmatprep.subr.bf16.mxu0 0
      %6286 = vmatpush1.bf16.msra.mxu0 %v6264
      %6287 = vmatprep.subr.bf16.mxu0 0
      %6288 = vmatpush1.bf16.msra.mxu0 %v6263
      %6289 = vmatprep.subr.bf16.mxu0 0
      %6290 = vmatpush1.bf16.msra.mxu0 %v6262
      %6291 = vmatprep.subr.bf16.mxu0 0
      %6292 = vmatpush1.bf16.msra.mxu0 %v6261
      %6293 = vmatprep.subr.bf16.mxu0 0
      %6294 = vmatpush2.bf16.msra.mxu0 0
      %6295 = vmatprep.subr.bf16.mxu0 0
      %6296 = vmatpush2.bf16.msra.mxu0 0
      %6297 = vmatprep.subr.bf16.mxu0 0
      %6298 = vmatpush2.bf16.msra.mxu0 0
      %6299 = vmatprep.subr.bf16.mxu0 0
      %6300 = vmatpush2.bf16.msra.mxu0 0
      %6301 = vmatprep.subr.bf16.mxu0 0
      %6302 = vmatpush2.bf16.msra.mxu0 0
      %6303 = vmatprep.subr.bf16.mxu0 0
      %6304 = vmatpush2.bf16.msra.mxu0 0
      %6305 = vmatprep.subr.bf16.mxu0 0
      %6306 = vmatpush2.bf16.msra.mxu0 0
      %6307 = vmatprep.subr.bf16.mxu0 0
      %6308 = vmatpush2.bf16.msra.mxu0 0
      %6309 = vmatprep.mubr.bf16.mxu0 0
      %6310 = vmatmul.mubr.bf16.gmra.mxu0 %v1238
      %v6311 = vpop.f32.mrf.mxu0
      %v6312 = vadd.f32 0.0, %v6311
      %v6313 = vpop.f32.mrf.mxu0
      %v6314 = vpop.f32.mrf.mxu0
      %v6315 = vadd.f32 0.0, %v6314
      %v6316 = vpop.f32.mrf.mxu0
      %6317 = vmatprep.mubr.bf16.mxu0 0
      %6318 = vmatmul.mubr.bf16.gmra.mxu0 %v1239
      %v6319 = vpop.f32.mrf.mxu0
      %v6320 = vadd.f32 0.0, %v6319
      %v6321 = vpop.f32.mrf.mxu0
      %v6322 = vpop.f32.mrf.mxu0
      %v6323 = vadd.f32 0.0, %v6322
      %v6324 = vpop.f32.mrf.mxu0
      %6325 = vmatprep.mubr.bf16.mxu0 0
      %6326 = vmatmul.mubr.bf16.gmra.mxu0 %v1240
      %v6327 = vpop.f32.mrf.mxu0
      %v6328 = vadd.f32 0.0, %v6327
      %v6329 = vpop.f32.mrf.mxu0
      %v6330 = vpop.f32.mrf.mxu0
      %v6331 = vadd.f32 0.0, %v6330
      %v6332 = vpop.f32.mrf.mxu0
      %6333 = vmatprep.mubr.bf16.mxu0 0
      %6334 = vmatmul.mubr.bf16.gmra.mxu0 %v1241
      %v6335 = vpop.f32.mrf.mxu0
      %v6336 = vadd.f32 0.0, %v6335
      %v6337 = vpop.f32.mrf.mxu0
      %v6338 = vpop.f32.mrf.mxu0
      %v6339 = vadd.f32 0.0, %v6338
      %v6340 = vpop.f32.mrf.mxu0
      %6341 = vmatprep.mubr.bf16.mxu0 0
      %6342 = vmatmul.mubr.bf16.gmra.mxu0 %v1242
      %v6343 = vpop.f32.mrf.mxu0
      %v6344 = vadd.f32 0.0, %v6343
      %v6345 = vpop.f32.mrf.mxu0
      %v6346 = vpop.f32.mrf.mxu0
      %v6347 = vadd.f32 0.0, %v6346
      %v6348 = vpop.f32.mrf.mxu0
      %6349 = vmatprep.mubr.bf16.mxu0 0
      %6350 = vmatmul.mubr.bf16.gmra.mxu0 %v1243
      %v6351 = vpop.f32.mrf.mxu0
      %v6352 = vadd.f32 0.0, %v6351
      %v6353 = vpop.f32.mrf.mxu0
      %v6354 = vpop.f32.mrf.mxu0
      %v6355 = vadd.f32 0.0, %v6354
      %v6356 = vpop.f32.mrf.mxu0
      %6357 = vmatprep.mubr.bf16.mxu0 0
      %6358 = vmatmul.mubr.bf16.gmra.mxu0 %v1244
      %v6359 = vpop.f32.mrf.mxu0
      %v6360 = vadd.f32 0.0, %v6359
      %v6361 = vpop.f32.mrf.mxu0
      %v6362 = vpop.f32.mrf.mxu0
      %v6363 = vadd.f32 0.0, %v6362
      %v6364 = vpop.f32.mrf.mxu0
      %6365 = vmatprep.mubr.bf16.mxu0 0
      %6366 = vmatmul.mubr.bf16.gmra.mxu0 %v1245
      %v6367 = vpop.f32.mrf.mxu0
      %v6368 = vadd.f32 0.0, %v6367
      %v6369 = vpop.f32.mrf.mxu0
      %v6370 = vpop.f32.mrf.mxu0
      %v6371 = vadd.f32 0.0, %v6370
      %v6372 = vpop.f32.mrf.mxu0
      %6373 = vmatprep.mubr.bf16.mxu0 0
      %6374 = vmatmul.mubr.bf16.gmra.mxu0 %v1246
      %v6375 = vpop.f32.mrf.mxu0
      %v6376 = vadd.f32 0.0, %v6375
      %v6377 = vpop.f32.mrf.mxu0
      %v6378 = vpop.f32.mrf.mxu0
      %v6379 = vadd.f32 0.0, %v6378
      %v6380 = vpop.f32.mrf.mxu0
      %6381 = vmatprep.mubr.bf16.mxu0 0
      %6382 = vmatmul.mubr.bf16.gmra.mxu0 %v1247
      %v6383 = vpop.f32.mrf.mxu0
      %v6384 = vadd.f32 0.0, %v6383
      %v6385 = vpop.f32.mrf.mxu0
      %v6386 = vpop.f32.mrf.mxu0
      %v6387 = vadd.f32 0.0, %v6386
      %v6388 = vpop.f32.mrf.mxu0
      %6389 = vmatprep.mubr.bf16.mxu0 0
      %6390 = vmatmul.mubr.bf16.gmra.mxu0 %v1248
      %v6391 = vpop.f32.mrf.mxu0
      %v6392 = vadd.f32 0.0, %v6391
      %v6393 = vpop.f32.mrf.mxu0
      %v6394 = vpop.f32.mrf.mxu0
      %v6395 = vadd.f32 0.0, %v6394
      %v6396 = vpop.f32.mrf.mxu0
      %6397 = vmatprep.mubr.bf16.mxu0 0
      %6398 = vmatmul.mubr.bf16.gmra.mxu0 %v1249
      %v6399 = vpop.f32.mrf.mxu0
      %v6400 = vadd.f32 0.0, %v6399
      %v6401 = vpop.f32.mrf.mxu0
      %v6402 = vpop.f32.mrf.mxu0
      %v6403 = vadd.f32 0.0, %v6402
      %v6404 = vpop.f32.mrf.mxu0
      %6405 = vmatprep.mubr.bf16.mxu0 0
      %6406 = vmatmul.mubr.bf16.gmra.mxu0 %v1250
      %v6407 = vpop.f32.mrf.mxu0
      %v6408 = vadd.f32 0.0, %v6407
      %v6409 = vpop.f32.mrf.mxu0
      %v6410 = vpop.f32.mrf.mxu0
      %v6411 = vadd.f32 0.0, %v6410
      %v6412 = vpop.f32.mrf.mxu0
      %6413 = vmatprep.mubr.bf16.mxu0 0
      %6414 = vmatmul.mubr.bf16.gmra.mxu0 %v1251
      %v6415 = vpop.f32.mrf.mxu0
      %v6416 = vadd.f32 0.0, %v6415
      %v6417 = vpop.f32.mrf.mxu0
      %v6418 = vpop.f32.mrf.mxu0
      %v6419 = vadd.f32 0.0, %v6418
      %v6420 = vpop.f32.mrf.mxu0
      %6421 = vmatprep.mubr.bf16.mxu0 0
      %6422 = vmatmul.mubr.bf16.gmra.mxu0 %v1252
      %v6423 = vpop.f32.mrf.mxu0
      %v6424 = vadd.f32 0.0, %v6423
      %v6425 = vpop.f32.mrf.mxu0
      %v6426 = vpop.f32.mrf.mxu0
      %v6427 = vadd.f32 0.0, %v6426
      %v6428 = vpop.f32.mrf.mxu0
      %6429 = vmatprep.mubr.bf16.mxu0 0
      %6430 = vmatmul.mubr.bf16.gmra.mxu0 %v1253
      %v6431 = vpop.f32.mrf.mxu0
      %v6432 = vadd.f32 0.0, %v6431
      %v6433 = vpop.f32.mrf.mxu0
      %v6434 = vpop.f32.mrf.mxu0
      %v6435 = vadd.f32 0.0, %v6434
      %v6436 = vpop.f32.mrf.mxu0
      %6437 = vdwg.mxu0
      %s6438 = scalar_lea.vmem %s565, 2048
      %v6439 = vld [vmem:[%s6438] sm:$0xff]
      %v6440 = vld [vmem:[%s6438 + $0x8] sm:$0xff]
      %v6441 = vld [vmem:[%s6438 + $0x10] sm:$0xff]
      %v6442 = vld [vmem:[%s6438 + $0x18] sm:$0xff]
      %v6443 = vld [vmem:[%s6438 + $0x20] sm:$0xff]
      %v6444 = vld [vmem:[%s6438 + $0x28] sm:$0xff]
      %v6445 = vld [vmem:[%s6438 + $0x30] sm:$0xff]
      %v6446 = vld [vmem:[%s6438 + $0x38] sm:$0xff]
      %v6447 = vld [vmem:[%s6438 + $0x40] sm:$0xff]
      %v6448 = vld [vmem:[%s6438 + $0x48] sm:$0xff]
      %v6449 = vld [vmem:[%s6438 + $0x50] sm:$0xff]
      %v6450 = vld [vmem:[%s6438 + $0x58] sm:$0xff]
      %v6451 = vld [vmem:[%s6438 + $0x60] sm:$0xff]
      %v6452 = vld [vmem:[%s6438 + $0x68] sm:$0xff]
      %v6453 = vld [vmem:[%s6438 + $0x70] sm:$0xff]
      %v6454 = vld [vmem:[%s6438 + $0x78] sm:$0xff]
      %v6455 = vld [vmem:[%s6438 + $0x80] sm:$0xff]
      %v6456 = vld [vmem:[%s6438 + $0x88] sm:$0xff]
      %v6457 = vld [vmem:[%s6438 + $0x90] sm:$0xff]
      %v6458 = vld [vmem:[%s6438 + $0x98] sm:$0xff]
      %v6459 = vld [vmem:[%s6438 + $0xa0] sm:$0xff]
      %v6460 = vld [vmem:[%s6438 + $0xa8] sm:$0xff]
      %v6461 = vld [vmem:[%s6438 + $0xb0] sm:$0xff]
      %v6462 = vld [vmem:[%s6438 + $0xb8] sm:$0xff]
      %v6463 = vld [vmem:[%s6438 + $0xc0] sm:$0xff]
      %v6464 = vld [vmem:[%s6438 + $0xc8] sm:$0xff]
      %v6465 = vld [vmem:[%s6438 + $0xd0] sm:$0xff]
      %v6466 = vld [vmem:[%s6438 + $0xd8] sm:$0xff]
      %v6467 = vld [vmem:[%s6438 + $0xe0] sm:$0xff]
      %v6468 = vld [vmem:[%s6438 + $0xe8] sm:$0xff]
      %v6469 = vld [vmem:[%s6438 + $0xf0] sm:$0xff]
      %v6470 = vld [vmem:[%s6438 + $0xf8] sm:$0xff]
      %v6471 = vpack.c.bf16 %v6315, %v6312
      %v6472 = vpack.c.bf16 %v6323, %v6320
      %v6473 = vpack.c.bf16 %v6331, %v6328
      %v6474 = vpack.c.bf16 %v6339, %v6336
      %v6475 = vpack.c.bf16 %v6347, %v6344
      %v6476 = vpack.c.bf16 %v6355, %v6352
      %v6477 = vpack.c.bf16 %v6363, %v6360
      %v6478 = vpack.c.bf16 %v6371, %v6368
      %v6479 = vpack.c.bf16 %v6379, %v6376
      %v6480 = vpack.c.bf16 %v6387, %v6384
      %v6481 = vpack.c.bf16 %v6395, %v6392
      %v6482 = vpack.c.bf16 %v6403, %v6400
      %v6483 = vpack.c.bf16 %v6411, %v6408
      %v6484 = vpack.c.bf16 %v6419, %v6416
      %v6485 = vpack.c.bf16 %v6427, %v6424
      %v6486 = vpack.c.bf16 %v6435, %v6432
      %v6519 = vunpack.c.l.b16 %v6439
      %v6520 = vunpack.c.h.b16 %v6439
      %v6521 = vunpack.c.l.b16 %v6440
      %v6522 = vunpack.c.h.b16 %v6440
      %v6523 = vunpack.c.l.b16 %v6441
      %v6524 = vunpack.c.h.b16 %v6441
      %v6525 = vunpack.c.l.b16 %v6442
      %v6526 = vunpack.c.h.b16 %v6442
      %v6527 = vunpack.c.l.b16 %v6443
      %v6528 = vunpack.c.h.b16 %v6443
      %v6529 = vunpack.c.l.b16 %v6444
      %v6530 = vunpack.c.h.b16 %v6444
      %v6531 = vunpack.c.l.b16 %v6445
      %v6532 = vunpack.c.h.b16 %v6445
      %v6533 = vunpack.c.l.b16 %v6446
      %v6534 = vunpack.c.h.b16 %v6446
      %v6535 = vunpack.c.l.b16 %v6447
      %v6536 = vunpack.c.h.b16 %v6447
      %v6537 = vunpack.c.l.b16 %v6448
      %v6538 = vunpack.c.h.b16 %v6448
      %v6539 = vunpack.c.l.b16 %v6449
      %v6540 = vunpack.c.h.b16 %v6449
      %v6541 = vunpack.c.l.b16 %v6450
      %v6542 = vunpack.c.h.b16 %v6450
      %v6543 = vunpack.c.l.b16 %v6451
      %v6544 = vunpack.c.h.b16 %v6451
      %v6545 = vunpack.c.l.b16 %v6452
      %v6546 = vunpack.c.h.b16 %v6452
      %v6547 = vunpack.c.l.b16 %v6453
      %v6548 = vunpack.c.h.b16 %v6453
      %v6549 = vunpack.c.l.b16 %v6454
      %v6550 = vunpack.c.h.b16 %v6454
      %v6551 = vunpack.c.l.b16 %v6455
      %v6552 = vunpack.c.h.b16 %v6455
      %v6553 = vunpack.c.l.b16 %v6456
      %v6554 = vunpack.c.h.b16 %v6456
      %v6555 = vunpack.c.l.b16 %v6457
      %v6556 = vunpack.c.h.b16 %v6457
      %v6557 = vunpack.c.l.b16 %v6458
      %v6558 = vunpack.c.h.b16 %v6458
      %v6559 = vunpack.c.l.b16 %v6459
      %v6560 = vunpack.c.h.b16 %v6459
      %v6561 = vunpack.c.l.b16 %v6460
      %v6562 = vunpack.c.h.b16 %v6460
      %v6563 = vunpack.c.l.b16 %v6461
      %v6564 = vunpack.c.h.b16 %v6461
      %v6565 = vunpack.c.l.b16 %v6462
      %v6566 = vunpack.c.h.b16 %v6462
      %v6567 = vunpack.c.l.b16 %v6463
      %v6568 = vunpack.c.h.b16 %v6463
      %v6569 = vunpack.c.l.b16 %v6464
      %v6570 = vunpack.c.h.b16 %v6464
      %v6571 = vunpack.c.l.b16 %v6465
      %v6572 = vunpack.c.h.b16 %v6465
      %v6573 = vunpack.c.l.b16 %v6466
      %v6574 = vunpack.c.h.b16 %v6466
      %v6575 = vunpack.c.l.b16 %v6467
      %v6576 = vunpack.c.h.b16 %v6467
      %v6577 = vunpack.c.l.b16 %v6468
      %v6578 = vunpack.c.h.b16 %v6468
      %v6579 = vunpack.c.l.b16 %v6469
      %v6580 = vunpack.c.h.b16 %v6469
      %v6581 = vunpack.c.l.b16 %v6470
      %v6582 = vunpack.c.h.b16 %v6470
      %v6583 = vpack.c.b16 %v6521, %v6519
      %v6584 = vpack.c.b16 %v6522, %v6520
      %v6585 = vpack.c.b16 %v6525, %v6523
      %v6586 = vpack.c.b16 %v6526, %v6524
      %v6587 = vpack.c.b16 %v6529, %v6527
      %v6588 = vpack.c.b16 %v6530, %v6528
      %v6589 = vpack.c.b16 %v6533, %v6531
      %v6590 = vpack.c.b16 %v6534, %v6532
      %v6591 = vpack.c.b16 %v6537, %v6535
      %v6592 = vpack.c.b16 %v6538, %v6536
      %v6593 = vpack.c.b16 %v6541, %v6539
      %v6594 = vpack.c.b16 %v6542, %v6540
      %v6595 = vpack.c.b16 %v6545, %v6543
      %v6596 = vpack.c.b16 %v6546, %v6544
      %v6597 = vpack.c.b16 %v6549, %v6547
      %v6598 = vpack.c.b16 %v6550, %v6548
      %v6599 = vpack.c.b16 %v6553, %v6551
      %v6600 = vpack.c.b16 %v6554, %v6552
      %v6601 = vpack.c.b16 %v6557, %v6555
      %v6602 = vpack.c.b16 %v6558, %v6556
      %v6603 = vpack.c.b16 %v6561, %v6559
      %v6604 = vpack.c.b16 %v6562, %v6560
      %v6605 = vpack.c.b16 %v6565, %v6563
      %v6606 = vpack.c.b16 %v6566, %v6564
      %v6607 = vpack.c.b16 %v6569, %v6567
      %v6608 = vpack.c.b16 %v6570, %v6568
      %v6609 = vpack.c.b16 %v6573, %v6571
      %v6610 = vpack.c.b16 %v6574, %v6572
      %v6611 = vpack.c.b16 %v6577, %v6575
      %v6612 = vpack.c.b16 %v6578, %v6576
      %v6613 = vpack.c.b16 %v6581, %v6579
      %v6614 = vpack.c.b16 %v6582, %v6580
      %6647 = vmatprep.subr.bf16.mxu0 0
      %6648 = vmatpush1.bf16.msra.mxu0 %v6478
      %6649 = vmatprep.subr.bf16.mxu0 0
      %6650 = vmatpush1.bf16.msra.mxu0 %v6477
      %6651 = vmatprep.subr.bf16.mxu0 0
      %6652 = vmatpush1.bf16.msra.mxu0 %v6476
      %6653 = vmatprep.subr.bf16.mxu0 0
      %6654 = vmatpush1.bf16.msra.mxu0 %v6475
      %6655 = vmatprep.subr.bf16.mxu0 0
      %6656 = vmatpush1.bf16.msra.mxu0 %v6474
      %6657 = vmatprep.subr.bf16.mxu0 0
      %6658 = vmatpush1.bf16.msra.mxu0 %v6473
      %6659 = vmatprep.subr.bf16.mxu0 0
      %6660 = vmatpush1.bf16.msra.mxu0 %v6472
      %6661 = vmatprep.subr.bf16.mxu0 0
      %6662 = vmatpush1.bf16.msra.mxu0 %v6471
      %6663 = vmatprep.subr.bf16.mxu0 0
      %6664 = vmatpush2.bf16.msra.mxu0 %v6486
      %6665 = vmatprep.subr.bf16.mxu0 0
      %6666 = vmatpush2.bf16.msra.mxu0 %v6485
      %6667 = vmatprep.subr.bf16.mxu0 0
      %6668 = vmatpush2.bf16.msra.mxu0 %v6484
      %6669 = vmatprep.subr.bf16.mxu0 0
      %6670 = vmatpush2.bf16.msra.mxu0 %v6483
      %6671 = vmatprep.subr.bf16.mxu0 0
      %6672 = vmatpush2.bf16.msra.mxu0 %v6482
      %6673 = vmatprep.subr.bf16.mxu0 0
      %6674 = vmatpush2.bf16.msra.mxu0 %v6481
      %6675 = vmatprep.subr.bf16.mxu0 0
      %6676 = vmatpush2.bf16.msra.mxu0 %v6480
      %6677 = vmatprep.subr.bf16.mxu0 0
      %6678 = vmatpush2.bf16.msra.mxu0 %v6479
      %6679 = vmatprep.mubr.bf16.mxu0 %v6584
      %6680 = vmatmul.mubr.bf16.gmra.mxu0 %v6583
      %v6681 = vpop.f32.mrf.mxu0
      %v6682 = vadd.f32 0.0, %v6681
      %v6683 = vpop.f32.mrf.mxu0
      %v6684 = vpop.f32.mrf.mxu0
      %v6685 = vadd.f32 0.0, %v6684
      %v6686 = vpop.f32.mrf.mxu0
      %6687 = vmatprep.mubr.bf16.mxu0 %v6586
      %6688 = vmatmul.mubr.bf16.gmra.mxu0 %v6585
      %v6689 = vpop.f32.mrf.mxu0
      %v6690 = vadd.f32 0.0, %v6689
      %v6691 = vpop.f32.mrf.mxu0
      %v6692 = vpop.f32.mrf.mxu0
      %v6693 = vadd.f32 0.0, %v6692
      %v6694 = vpop.f32.mrf.mxu0
      %6695 = vmatprep.mubr.bf16.mxu0 %v6588
      %6696 = vmatmul.mubr.bf16.gmra.mxu0 %v6587
      %v6697 = vpop.f32.mrf.mxu0
      %v6698 = vadd.f32 0.0, %v6697
      %v6699 = vpop.f32.mrf.mxu0
      %v6700 = vpop.f32.mrf.mxu0
      %v6701 = vadd.f32 0.0, %v6700
      %v6702 = vpop.f32.mrf.mxu0
      %6703 = vmatprep.mubr.bf16.mxu0 %v6590
      %6704 = vmatmul.mubr.bf16.gmra.mxu0 %v6589
      %v6705 = vpop.f32.mrf.mxu0
      %v6706 = vadd.f32 0.0, %v6705
      %v6707 = vpop.f32.mrf.mxu0
      %v6708 = vpop.f32.mrf.mxu0
      %v6709 = vadd.f32 0.0, %v6708
      %v6710 = vpop.f32.mrf.mxu0
      %6711 = vmatprep.mubr.bf16.mxu0 %v6592
      %6712 = vmatmul.mubr.bf16.gmra.mxu0 %v6591
      %v6713 = vpop.f32.mrf.mxu0
      %v6714 = vadd.f32 0.0, %v6713
      %v6715 = vpop.f32.mrf.mxu0
      %v6716 = vpop.f32.mrf.mxu0
      %v6717 = vadd.f32 0.0, %v6716
      %v6718 = vpop.f32.mrf.mxu0
      %6719 = vmatprep.mubr.bf16.mxu0 %v6594
      %6720 = vmatmul.mubr.bf16.gmra.mxu0 %v6593
      %v6721 = vpop.f32.mrf.mxu0
      %v6722 = vadd.f32 0.0, %v6721
      %v6723 = vpop.f32.mrf.mxu0
      %v6724 = vpop.f32.mrf.mxu0
      %v6725 = vadd.f32 0.0, %v6724
      %v6726 = vpop.f32.mrf.mxu0
      %6727 = vmatprep.mubr.bf16.mxu0 %v6596
      %6728 = vmatmul.mubr.bf16.gmra.mxu0 %v6595
      %v6729 = vpop.f32.mrf.mxu0
      %v6730 = vadd.f32 0.0, %v6729
      %v6731 = vpop.f32.mrf.mxu0
      %v6732 = vpop.f32.mrf.mxu0
      %v6733 = vadd.f32 0.0, %v6732
      %v6734 = vpop.f32.mrf.mxu0
      %6735 = vmatprep.mubr.bf16.mxu0 %v6598
      %6736 = vmatmul.mubr.bf16.gmra.mxu0 %v6597
      %v6737 = vpop.f32.mrf.mxu0
      %v6738 = vadd.f32 0.0, %v6737
      %v6739 = vpop.f32.mrf.mxu0
      %v6740 = vpop.f32.mrf.mxu0
      %v6741 = vadd.f32 0.0, %v6740
      %v6742 = vpop.f32.mrf.mxu0
      %6743 = vmatprep.mubr.bf16.mxu0 %v6600
      %6744 = vmatmul.mubr.bf16.gmra.mxu0 %v6599
      %v6745 = vpop.f32.mrf.mxu0
      %v6746 = vadd.f32 0.0, %v6745
      %v6747 = vpop.f32.mrf.mxu0
      %v6748 = vpop.f32.mrf.mxu0
      %v6749 = vadd.f32 0.0, %v6748
      %v6750 = vpop.f32.mrf.mxu0
      %6751 = vmatprep.mubr.bf16.mxu0 %v6602
      %6752 = vmatmul.mubr.bf16.gmra.mxu0 %v6601
      %v6753 = vpop.f32.mrf.mxu0
      %v6754 = vadd.f32 0.0, %v6753
      %v6755 = vpop.f32.mrf.mxu0
      %v6756 = vpop.f32.mrf.mxu0
      %v6757 = vadd.f32 0.0, %v6756
      %v6758 = vpop.f32.mrf.mxu0
      %6759 = vmatprep.mubr.bf16.mxu0 %v6604
      %6760 = vmatmul.mubr.bf16.gmra.mxu0 %v6603
      %v6761 = vpop.f32.mrf.mxu0
      %v6762 = vadd.f32 0.0, %v6761
      %v6763 = vpop.f32.mrf.mxu0
      %v6764 = vpop.f32.mrf.mxu0
      %v6765 = vadd.f32 0.0, %v6764
      %v6766 = vpop.f32.mrf.mxu0
      %6767 = vmatprep.mubr.bf16.mxu0 %v6606
      %6768 = vmatmul.mubr.bf16.gmra.mxu0 %v6605
      %v6769 = vpop.f32.mrf.mxu0
      %v6770 = vadd.f32 0.0, %v6769
      %v6771 = vpop.f32.mrf.mxu0
      %v6772 = vpop.f32.mrf.mxu0
      %v6773 = vadd.f32 0.0, %v6772
      %v6774 = vpop.f32.mrf.mxu0
      %6775 = vmatprep.mubr.bf16.mxu0 %v6608
      %6776 = vmatmul.mubr.bf16.gmra.mxu0 %v6607
      %v6777 = vpop.f32.mrf.mxu0
      %v6778 = vadd.f32 0.0, %v6777
      %v6779 = vpop.f32.mrf.mxu0
      %v6780 = vpop.f32.mrf.mxu0
      %v6781 = vadd.f32 0.0, %v6780
      %v6782 = vpop.f32.mrf.mxu0
      %6783 = vmatprep.mubr.bf16.mxu0 %v6610
      %6784 = vmatmul.mubr.bf16.gmra.mxu0 %v6609
      %v6785 = vpop.f32.mrf.mxu0
      %v6786 = vadd.f32 0.0, %v6785
      %v6787 = vpop.f32.mrf.mxu0
      %v6788 = vpop.f32.mrf.mxu0
      %v6789 = vadd.f32 0.0, %v6788
      %v6790 = vpop.f32.mrf.mxu0
      %6791 = vmatprep.mubr.bf16.mxu0 %v6612
      %6792 = vmatmul.mubr.bf16.gmra.mxu0 %v6611
      %v6793 = vpop.f32.mrf.mxu0
      %v6794 = vadd.f32 0.0, %v6793
      %v6795 = vpop.f32.mrf.mxu0
      %v6796 = vpop.f32.mrf.mxu0
      %v6797 = vadd.f32 0.0, %v6796
      %v6798 = vpop.f32.mrf.mxu0
      %6799 = vmatprep.mubr.bf16.mxu0 %v6614
      %6800 = vmatmul.mubr.bf16.gmra.mxu0 %v6613
      %v6801 = vpop.f32.mrf.mxu0
      %v6802 = vadd.f32 0.0, %v6801
      %v6803 = vpop.f32.mrf.mxu0
      %v6804 = vpop.f32.mrf.mxu0
      %v6805 = vadd.f32 0.0, %v6804
      %v6806 = vpop.f32.mrf.mxu0
      %6807 = vdwg.mxu0
      %v6808 = vadd.f32 %v6180, %v6682
      %v6809 = vadd.f32 %v6181, %v6685
      %v6810 = vadd.f32 %v6182, %v6690
      %v6811 = vadd.f32 %v6183, %v6693
      %v6812 = vadd.f32 %v6184, %v6698
      %v6813 = vadd.f32 %v6185, %v6701
      %v6814 = vadd.f32 %v6186, %v6706
      %v6815 = vadd.f32 %v6187, %v6709
      %v6816 = vadd.f32 %v6188, %v6714
      %v6817 = vadd.f32 %v6189, %v6717
      %v6818 = vadd.f32 %v6190, %v6722
      %v6819 = vadd.f32 %v6191, %v6725
      %v6820 = vadd.f32 %v6192, %v6730
      %v6821 = vadd.f32 %v6193, %v6733
      %v6822 = vadd.f32 %v6194, %v6738
      %v6823 = vadd.f32 %v6195, %v6741
      %v6824 = vadd.f32 %v6196, %v6746
      %v6825 = vadd.f32 %v6197, %v6749
      %v6826 = vadd.f32 %v6198, %v6754
      %v6827 = vadd.f32 %v6199, %v6757
      %v6828 = vadd.f32 %v6200, %v6762
      %v6829 = vadd.f32 %v6201, %v6765
      %v6830 = vadd.f32 %v6202, %v6770
      %v6831 = vadd.f32 %v6203, %v6773
      %v6832 = vadd.f32 %v6204, %v6778
      %v6833 = vadd.f32 %v6205, %v6781
      %v6834 = vadd.f32 %v6206, %v6786
      %v6835 = vadd.f32 %v6207, %v6789
      %v6836 = vadd.f32 %v6208, %v6794
      %v6837 = vadd.f32 %v6209, %v6797
      %v6838 = vadd.f32 %v6210, %v6802
      %v6839 = vadd.f32 %v6211, %v6805
      %s6840 = scalar_lea.vmem %s590, 256
      %v6841 = vld [vmem:[%s6840] sm:$0xff]
      %v6842 = vld [vmem:[%s6840 + $0x8] sm:$0xff]
      %v6843 = vld [vmem:[%s6840 + $0x10] sm:$0xff]
      %v6844 = vld [vmem:[%s6840 + $0x18] sm:$0xff]
      %v6845 = vld [vmem:[%s6840 + $0x20] sm:$0xff]
      %v6846 = vld [vmem:[%s6840 + $0x28] sm:$0xff]
      %v6847 = vld [vmem:[%s6840 + $0x30] sm:$0xff]
      %v6848 = vld [vmem:[%s6840 + $0x38] sm:$0xff]
      %v6849 = vld [vmem:[%s6840 + $0x40] sm:$0xff]
      %v6850 = vld [vmem:[%s6840 + $0x48] sm:$0xff]
      %v6851 = vld [vmem:[%s6840 + $0x50] sm:$0xff]
      %v6852 = vld [vmem:[%s6840 + $0x58] sm:$0xff]
      %v6853 = vld [vmem:[%s6840 + $0x60] sm:$0xff]
      %v6854 = vld [vmem:[%s6840 + $0x68] sm:$0xff]
      %v6855 = vld [vmem:[%s6840 + $0x70] sm:$0xff]
      %v6856 = vld [vmem:[%s6840 + $0x78] sm:$0xff]
      %v6857 = vld [vmem:[%s6840 + $0x80] sm:$0xff]
      %v6858 = vld [vmem:[%s6840 + $0x88] sm:$0xff]
      %v6859 = vld [vmem:[%s6840 + $0x90] sm:$0xff]
      %v6860 = vld [vmem:[%s6840 + $0x98] sm:$0xff]
      %v6861 = vld [vmem:[%s6840 + $0xa0] sm:$0xff]
      %v6862 = vld [vmem:[%s6840 + $0xa8] sm:$0xff]
      %v6863 = vld [vmem:[%s6840 + $0xb0] sm:$0xff]
      %v6864 = vld [vmem:[%s6840 + $0xb8] sm:$0xff]
      %v6865 = vld [vmem:[%s6840 + $0xc0] sm:$0xff]
      %v6866 = vld [vmem:[%s6840 + $0xc8] sm:$0xff]
      %v6867 = vld [vmem:[%s6840 + $0xd0] sm:$0xff]
      %v6868 = vld [vmem:[%s6840 + $0xd8] sm:$0xff]
      %v6869 = vld [vmem:[%s6840 + $0xe0] sm:$0xff]
      %v6870 = vld [vmem:[%s6840 + $0xe8] sm:$0xff]
      %v6871 = vld [vmem:[%s6840 + $0xf0] sm:$0xff]
      %v6872 = vld [vmem:[%s6840 + $0xf8] sm:$0xff]
      %6874 = vset.pattern.permute.xlu0 0
      %6875 = vperm.xlu0 %6874, %v6841
      %v6876 = vpop.permute.xlu0 %6875
      %6879 = vset.pattern.permute.xlu0 0
      %6880 = vperm.xlu0 %6879, %v6842
      %v6881 = vpop.permute.xlu0 %6880
      %6884 = vset.pattern.permute.xlu0 0
      %6885 = vperm.xlu0 %6884, %v6843
      %v6886 = vpop.permute.xlu0 %6885
      %6889 = vset.pattern.permute.xlu0 0
      %6890 = vperm.xlu0 %6889, %v6844
      %v6891 = vpop.permute.xlu0 %6890
      %6894 = vset.pattern.permute.xlu0 0
      %6895 = vperm.xlu0 %6894, %v6845
      %v6896 = vpop.permute.xlu0 %6895
      %6899 = vset.pattern.permute.xlu0 0
      %6900 = vperm.xlu0 %6899, %v6846
      %v6901 = vpop.permute.xlu0 %6900
      %6904 = vset.pattern.permute.xlu0 0
      %6905 = vperm.xlu0 %6904, %v6847
      %v6906 = vpop.permute.xlu0 %6905
      %6909 = vset.pattern.permute.xlu0 0
      %6910 = vperm.xlu0 %6909, %v6848
      %v6911 = vpop.permute.xlu0 %6910
      %6914 = vset.pattern.permute.xlu0 0
      %6915 = vperm.xlu0 %6914, %v6849
      %v6916 = vpop.permute.xlu0 %6915
      %6919 = vset.pattern.permute.xlu0 0
      %6920 = vperm.xlu0 %6919, %v6850
      %v6921 = vpop.permute.xlu0 %6920
      %6924 = vset.pattern.permute.xlu0 0
      %6925 = vperm.xlu0 %6924, %v6851
      %v6926 = vpop.permute.xlu0 %6925
      %6929 = vset.pattern.permute.xlu0 0
      %6930 = vperm.xlu0 %6929, %v6852
      %v6931 = vpop.permute.xlu0 %6930
      %6934 = vset.pattern.permute.xlu0 0
      %6935 = vperm.xlu0 %6934, %v6853
      %v6936 = vpop.permute.xlu0 %6935
      %6939 = vset.pattern.permute.xlu0 0
      %6940 = vperm.xlu0 %6939, %v6854
      %v6941 = vpop.permute.xlu0 %6940
      %6944 = vset.pattern.permute.xlu0 0
      %6945 = vperm.xlu0 %6944, %v6855
      %v6946 = vpop.permute.xlu0 %6945
      %6949 = vset.pattern.permute.xlu0 0
      %6950 = vperm.xlu0 %6949, %v6856
      %v6951 = vpop.permute.xlu0 %6950
      %6954 = vset.pattern.permute.xlu0 0
      %6955 = vperm.xlu0 %6954, %v6857
      %v6956 = vpop.permute.xlu0 %6955
      %6959 = vset.pattern.permute.xlu0 0
      %6960 = vperm.xlu0 %6959, %v6858
      %v6961 = vpop.permute.xlu0 %6960
      %6964 = vset.pattern.permute.xlu0 0
      %6965 = vperm.xlu0 %6964, %v6859
      %v6966 = vpop.permute.xlu0 %6965
      %6969 = vset.pattern.permute.xlu0 0
      %6970 = vperm.xlu0 %6969, %v6860
      %v6971 = vpop.permute.xlu0 %6970
      %6974 = vset.pattern.permute.xlu0 0
      %6975 = vperm.xlu0 %6974, %v6861
      %v6976 = vpop.permute.xlu0 %6975
      %6979 = vset.pattern.permute.xlu0 0
      %6980 = vperm.xlu0 %6979, %v6862
      %v6981 = vpop.permute.xlu0 %6980
      %6984 = vset.pattern.permute.xlu0 0
      %6985 = vperm.xlu0 %6984, %v6863
      %v6986 = vpop.permute.xlu0 %6985
      %6989 = vset.pattern.permute.xlu0 0
      %6990 = vperm.xlu0 %6989, %v6864
      %v6991 = vpop.permute.xlu0 %6990
      %6994 = vset.pattern.permute.xlu0 0
      %6995 = vperm.xlu0 %6994, %v6865
      %v6996 = vpop.permute.xlu0 %6995
      %6999 = vset.pattern.permute.xlu0 0
      %7000 = vperm.xlu0 %6999, %v6866
      %v7001 = vpop.permute.xlu0 %7000
      %7004 = vset.pattern.permute.xlu0 0
      %7005 = vperm.xlu0 %7004, %v6867
      %v7006 = vpop.permute.xlu0 %7005
      %7009 = vset.pattern.permute.xlu0 0
      %7010 = vperm.xlu0 %7009, %v6868
      %v7011 = vpop.permute.xlu0 %7010
      %7014 = vset.pattern.permute.xlu0 0
      %7015 = vperm.xlu0 %7014, %v6869
      %v7016 = vpop.permute.xlu0 %7015
      %7019 = vset.pattern.permute.xlu0 0
      %7020 = vperm.xlu0 %7019, %v6870
      %v7021 = vpop.permute.xlu0 %7020
      %7024 = vset.pattern.permute.xlu0 0
      %7025 = vperm.xlu0 %7024, %v6871
      %v7026 = vpop.permute.xlu0 %7025
      %7029 = vset.pattern.permute.xlu0 0
      %7030 = vperm.xlu0 %7029, %v6872
      %v7031 = vpop.permute.xlu0 %7030
      %v7033 = vadd.f32 %v6808, %v6876
      %v7034 = vadd.f32 %v6809, %v6881
      %v7035 = vadd.f32 %v6810, %v6886
      %v7036 = vadd.f32 %v6811, %v6891
      %v7037 = vadd.f32 %v6812, %v6896
      %v7038 = vadd.f32 %v6813, %v6901
      %v7039 = vadd.f32 %v6814, %v6906
      %v7040 = vadd.f32 %v6815, %v6911
      %v7041 = vadd.f32 %v6816, %v6916
      %v7042 = vadd.f32 %v6817, %v6921
      %v7043 = vadd.f32 %v6818, %v6926
      %v7044 = vadd.f32 %v6819, %v6931
      %v7045 = vadd.f32 %v6820, %v6936
      %v7046 = vadd.f32 %v6821, %v6941
      %v7047 = vadd.f32 %v6822, %v6946
      %v7048 = vadd.f32 %v6823, %v6951
      %v7049 = vadd.f32 %v6824, %v6956
      %v7050 = vadd.f32 %v6825, %v6961
      %v7051 = vadd.f32 %v6826, %v6966
      %v7052 = vadd.f32 %v6827, %v6971
      %v7053 = vadd.f32 %v6828, %v6976
      %v7054 = vadd.f32 %v6829, %v6981
      %v7055 = vadd.f32 %v6830, %v6986
      %v7056 = vadd.f32 %v6831, %v6991
      %v7057 = vadd.f32 %v6832, %v6996
      %v7058 = vadd.f32 %v6833, %v7001
      %v7059 = vadd.f32 %v6834, %v7006
      %v7060 = vadd.f32 %v6835, %v7011
      %v7061 = vadd.f32 %v6836, %v7016
      %v7062 = vadd.f32 %v6837, %v7021
      %v7063 = vadd.f32 %v6838, %v7026
      %v7064 = vadd.f32 %v6839, %v7031
      %vm7065 = vcmp.ge.f32.partialorder %v7033, 0.0
      %vm7066 = vcmp.ge.f32.partialorder %v7034, 0.0
      %vm7067 = vcmp.ge.f32.partialorder %v7035, 0.0
      %vm7068 = vcmp.ge.f32.partialorder %v7036, 0.0
      %vm7069 = vcmp.ge.f32.partialorder %v7037, 0.0
      %vm7070 = vcmp.ge.f32.partialorder %v7038, 0.0
      %vm7071 = vcmp.ge.f32.partialorder %v7039, 0.0
      %vm7072 = vcmp.ge.f32.partialorder %v7040, 0.0
      %vm7073 = vcmp.ge.f32.partialorder %v7041, 0.0
      %vm7074 = vcmp.ge.f32.partialorder %v7042, 0.0
      %vm7075 = vcmp.ge.f32.partialorder %v7043, 0.0
      %vm7076 = vcmp.ge.f32.partialorder %v7044, 0.0
      %vm7077 = vcmp.ge.f32.partialorder %v7045, 0.0
      %vm7078 = vcmp.ge.f32.partialorder %v7046, 0.0
      %vm7079 = vcmp.ge.f32.partialorder %v7047, 0.0
      %vm7080 = vcmp.ge.f32.partialorder %v7048, 0.0
      %vm7081 = vcmp.ge.f32.partialorder %v7049, 0.0
      %vm7082 = vcmp.ge.f32.partialorder %v7050, 0.0
      %vm7083 = vcmp.ge.f32.partialorder %v7051, 0.0
      %vm7084 = vcmp.ge.f32.partialorder %v7052, 0.0
      %vm7085 = vcmp.ge.f32.partialorder %v7053, 0.0
      %vm7086 = vcmp.ge.f32.partialorder %v7054, 0.0
      %vm7087 = vcmp.ge.f32.partialorder %v7055, 0.0
      %vm7088 = vcmp.ge.f32.partialorder %v7056, 0.0
      %vm7089 = vcmp.ge.f32.partialorder %v7057, 0.0
      %vm7090 = vcmp.ge.f32.partialorder %v7058, 0.0
      %vm7091 = vcmp.ge.f32.partialorder %v7059, 0.0
      %vm7092 = vcmp.ge.f32.partialorder %v7060, 0.0
      %vm7093 = vcmp.ge.f32.partialorder %v7061, 0.0
      %vm7094 = vcmp.ge.f32.partialorder %v7062, 0.0
      %vm7095 = vcmp.ge.f32.partialorder %v7063, 0.0
      %vm7096 = vcmp.ge.f32.partialorder %v7064, 0.0
      %v7097 = vmul.f32 %v7033, 0.01
      %v7098 = vmul.f32 %v7034, 0.01
      %v7099 = vmul.f32 %v7035, 0.01
      %v7100 = vmul.f32 %v7036, 0.01
      %v7101 = vmul.f32 %v7037, 0.01
      %v7102 = vmul.f32 %v7038, 0.01
      %v7103 = vmul.f32 %v7039, 0.01
      %v7104 = vmul.f32 %v7040, 0.01
      %v7105 = vmul.f32 %v7041, 0.01
      %v7106 = vmul.f32 %v7042, 0.01
      %v7107 = vmul.f32 %v7043, 0.01
      %v7108 = vmul.f32 %v7044, 0.01
      %v7109 = vmul.f32 %v7045, 0.01
      %v7110 = vmul.f32 %v7046, 0.01
      %v7111 = vmul.f32 %v7047, 0.01
      %v7112 = vmul.f32 %v7048, 0.01
      %v7113 = vmul.f32 %v7049, 0.01
      %v7114 = vmul.f32 %v7050, 0.01
      %v7115 = vmul.f32 %v7051, 0.01
      %v7116 = vmul.f32 %v7052, 0.01
      %v7117 = vmul.f32 %v7053, 0.01
      %v7118 = vmul.f32 %v7054, 0.01
      %v7119 = vmul.f32 %v7055, 0.01
      %v7120 = vmul.f32 %v7056, 0.01
      %v7121 = vmul.f32 %v7057, 0.01
      %v7122 = vmul.f32 %v7058, 0.01
      %v7123 = vmul.f32 %v7059, 0.01
      %v7124 = vmul.f32 %v7060, 0.01
      %v7125 = vmul.f32 %v7061, 0.01
      %v7126 = vmul.f32 %v7062, 0.01
      %v7127 = vmul.f32 %v7063, 0.01
      %v7128 = vmul.f32 %v7064, 0.01
      %v7129 = vsel %vm7065, %v7033, %v7097
      %v7130 = vsel %vm7066, %v7034, %v7098
      %v7131 = vsel %vm7067, %v7035, %v7099
      %v7132 = vsel %vm7068, %v7036, %v7100
      %v7133 = vsel %vm7069, %v7037, %v7101
      %v7134 = vsel %vm7070, %v7038, %v7102
      %v7135 = vsel %vm7071, %v7039, %v7103
      %v7136 = vsel %vm7072, %v7040, %v7104
      %v7137 = vsel %vm7073, %v7041, %v7105
      %v7138 = vsel %vm7074, %v7042, %v7106
      %v7139 = vsel %vm7075, %v7043, %v7107
      %v7140 = vsel %vm7076, %v7044, %v7108
      %v7141 = vsel %vm7077, %v7045, %v7109
      %v7142 = vsel %vm7078, %v7046, %v7110
      %v7143 = vsel %vm7079, %v7047, %v7111
      %v7144 = vsel %vm7080, %v7048, %v7112
      %v7145 = vsel %vm7081, %v7049, %v7113
      %v7146 = vsel %vm7082, %v7050, %v7114
      %v7147 = vsel %vm7083, %v7051, %v7115
      %v7148 = vsel %vm7084, %v7052, %v7116
      %v7149 = vsel %vm7085, %v7053, %v7117
      %v7150 = vsel %vm7086, %v7054, %v7118
      %v7151 = vsel %vm7087, %v7055, %v7119
      %v7152 = vsel %vm7088, %v7056, %v7120
      %v7153 = vsel %vm7089, %v7057, %v7121
      %v7154 = vsel %vm7090, %v7058, %v7122
      %v7155 = vsel %vm7091, %v7059, %v7123
      %v7156 = vsel %vm7092, %v7060, %v7124
      %v7157 = vsel %vm7093, %v7061, %v7125
      %v7158 = vsel %vm7094, %v7062, %v7126
      %v7159 = vsel %vm7095, %v7063, %v7127
      %v7160 = vsel %vm7096, %v7064, %v7128
      %v7161 = vld [vmem:[%s570] sm:$0xff]
      %v7162 = vld [vmem:[%s570 + $0x8] sm:$0xff]
      %v7163 = vld [vmem:[%s570 + $0x10] sm:$0xff]
      %v7164 = vld [vmem:[%s570 + $0x18] sm:$0xff]
      %v7165 = vld [vmem:[%s570 + $0x20] sm:$0xff]
      %v7166 = vld [vmem:[%s570 + $0x28] sm:$0xff]
      %v7167 = vld [vmem:[%s570 + $0x30] sm:$0xff]
      %v7168 = vld [vmem:[%s570 + $0x38] sm:$0xff]
      %v7169 = vld [vmem:[%s570 + $0x40] sm:$0xff]
      %v7170 = vld [vmem:[%s570 + $0x48] sm:$0xff]
      %v7171 = vld [vmem:[%s570 + $0x50] sm:$0xff]
      %v7172 = vld [vmem:[%s570 + $0x58] sm:$0xff]
      %v7173 = vld [vmem:[%s570 + $0x60] sm:$0xff]
      %v7174 = vld [vmem:[%s570 + $0x68] sm:$0xff]
      %v7175 = vld [vmem:[%s570 + $0x70] sm:$0xff]
      %v7176 = vld [vmem:[%s570 + $0x78] sm:$0xff]
      %v7177 = vld [vmem:[%s570 + $0x80] sm:$0xff]
      %v7178 = vld [vmem:[%s570 + $0x88] sm:$0xff]
      %v7179 = vld [vmem:[%s570 + $0x90] sm:$0xff]
      %v7180 = vld [vmem:[%s570 + $0x98] sm:$0xff]
      %v7181 = vld [vmem:[%s570 + $0xa0] sm:$0xff]
      %v7182 = vld [vmem:[%s570 + $0xa8] sm:$0xff]
      %v7183 = vld [vmem:[%s570 + $0xb0] sm:$0xff]
      %v7184 = vld [vmem:[%s570 + $0xb8] sm:$0xff]
      %v7185 = vld [vmem:[%s570 + $0xc0] sm:$0xff]
      %v7186 = vld [vmem:[%s570 + $0xc8] sm:$0xff]
      %v7187 = vld [vmem:[%s570 + $0xd0] sm:$0xff]
      %v7188 = vld [vmem:[%s570 + $0xd8] sm:$0xff]
      %v7189 = vld [vmem:[%s570 + $0xe0] sm:$0xff]
      %v7190 = vld [vmem:[%s570 + $0xe8] sm:$0xff]
      %v7191 = vld [vmem:[%s570 + $0xf0] sm:$0xff]
      %v7192 = vld [vmem:[%s570 + $0xf8] sm:$0xff]
      %v7193 = vpack.c.bf16 %v7130, %v7129
      %v7194 = vpack.c.bf16 %v7132, %v7131
      %v7195 = vpack.c.bf16 %v7134, %v7133
      %v7196 = vpack.c.bf16 %v7136, %v7135
      %v7197 = vpack.c.bf16 %v7138, %v7137
      %v7198 = vpack.c.bf16 %v7140, %v7139
      %v7199 = vpack.c.bf16 %v7142, %v7141
      %v7200 = vpack.c.bf16 %v7144, %v7143
      %v7201 = vpack.c.bf16 %v7146, %v7145
      %v7202 = vpack.c.bf16 %v7148, %v7147
      %v7203 = vpack.c.bf16 %v7150, %v7149
      %v7204 = vpack.c.bf16 %v7152, %v7151
      %v7205 = vpack.c.bf16 %v7154, %v7153
      %v7206 = vpack.c.bf16 %v7156, %v7155
      %v7207 = vpack.c.bf16 %v7158, %v7157
      %v7208 = vpack.c.bf16 %v7160, %v7159
      %s7209 = scalar_lea.vmem %s590, 512
      %v7210 = vld [vmem:[%s7209] sm:$0xff]
      %v7211 = vld [vmem:[%s7209 + $0x8] sm:$0xff]
      %v7212 = vld [vmem:[%s7209 + $0x10] sm:$0xff]
      %v7213 = vld [vmem:[%s7209 + $0x18] sm:$0xff]
      %v7214 = vld [vmem:[%s7209 + $0x20] sm:$0xff]
      %v7215 = vld [vmem:[%s7209 + $0x28] sm:$0xff]
      %v7216 = vld [vmem:[%s7209 + $0x30] sm:$0xff]
      %v7217 = vld [vmem:[%s7209 + $0x38] sm:$0xff]
      %v7218 = vld [vmem:[%s7209 + $0x40] sm:$0xff]
      %v7219 = vld [vmem:[%s7209 + $0x48] sm:$0xff]
      %v7220 = vld [vmem:[%s7209 + $0x50] sm:$0xff]
      %v7221 = vld [vmem:[%s7209 + $0x58] sm:$0xff]
      %v7222 = vld [vmem:[%s7209 + $0x60] sm:$0xff]
      %v7223 = vld [vmem:[%s7209 + $0x68] sm:$0xff]
      %v7224 = vld [vmem:[%s7209 + $0x70] sm:$0xff]
      %v7225 = vld [vmem:[%s7209 + $0x78] sm:$0xff]
      %v7226 = vld [vmem:[%s7209 + $0x80] sm:$0xff]
      %v7227 = vld [vmem:[%s7209 + $0x88] sm:$0xff]
      %v7228 = vld [vmem:[%s7209 + $0x90] sm:$0xff]
      %v7229 = vld [vmem:[%s7209 + $0x98] sm:$0xff]
      %v7230 = vld [vmem:[%s7209 + $0xa0] sm:$0xff]
      %v7231 = vld [vmem:[%s7209 + $0xa8] sm:$0xff]
      %v7232 = vld [vmem:[%s7209 + $0xb0] sm:$0xff]
      %v7233 = vld [vmem:[%s7209 + $0xb8] sm:$0xff]
      %v7234 = vld [vmem:[%s7209 + $0xc0] sm:$0xff]
      %v7235 = vld [vmem:[%s7209 + $0xc8] sm:$0xff]
      %v7236 = vld [vmem:[%s7209 + $0xd0] sm:$0xff]
      %v7237 = vld [vmem:[%s7209 + $0xd8] sm:$0xff]
      %v7238 = vld [vmem:[%s7209 + $0xe0] sm:$0xff]
      %v7239 = vld [vmem:[%s7209 + $0xe8] sm:$0xff]
      %v7240 = vld [vmem:[%s7209 + $0xf0] sm:$0xff]
      %v7241 = vld [vmem:[%s7209 + $0xf8] sm:$0xff]
      %7243 = vset.pattern.permute.xlu0 0
      %7244 = vperm.xlu0 %7243, %v7210
      %v7245 = vpop.permute.xlu0 %7244
      %7248 = vset.pattern.permute.xlu0 0
      %7249 = vperm.xlu0 %7248, %v7211
      %v7250 = vpop.permute.xlu0 %7249
      %7253 = vset.pattern.permute.xlu0 0
      %7254 = vperm.xlu0 %7253, %v7212
      %v7255 = vpop.permute.xlu0 %7254
      %7258 = vset.pattern.permute.xlu0 0
      %7259 = vperm.xlu0 %7258, %v7213
      %v7260 = vpop.permute.xlu0 %7259
      %7263 = vset.pattern.permute.xlu0 0
      %7264 = vperm.xlu0 %7263, %v7214
      %v7265 = vpop.permute.xlu0 %7264
      %7268 = vset.pattern.permute.xlu0 0
      %7269 = vperm.xlu0 %7268, %v7215
      %v7270 = vpop.permute.xlu0 %7269
      %7273 = vset.pattern.permute.xlu0 0
      %7274 = vperm.xlu0 %7273, %v7216
      %v7275 = vpop.permute.xlu0 %7274
      %7278 = vset.pattern.permute.xlu0 0
      %7279 = vperm.xlu0 %7278, %v7217
      %v7280 = vpop.permute.xlu0 %7279
      %7283 = vset.pattern.permute.xlu0 0
      %7284 = vperm.xlu0 %7283, %v7218
      %v7285 = vpop.permute.xlu0 %7284
      %7288 = vset.pattern.permute.xlu0 0
      %7289 = vperm.xlu0 %7288, %v7219
      %v7290 = vpop.permute.xlu0 %7289
      %7293 = vset.pattern.permute.xlu0 0
      %7294 = vperm.xlu0 %7293, %v7220
      %v7295 = vpop.permute.xlu0 %7294
      %7298 = vset.pattern.permute.xlu0 0
      %7299 = vperm.xlu0 %7298, %v7221
      %v7300 = vpop.permute.xlu0 %7299
      %7303 = vset.pattern.permute.xlu0 0
      %7304 = vperm.xlu0 %7303, %v7222
      %v7305 = vpop.permute.xlu0 %7304
      %7308 = vset.pattern.permute.xlu0 0
      %7309 = vperm.xlu0 %7308, %v7223
      %v7310 = vpop.permute.xlu0 %7309
      %7313 = vset.pattern.permute.xlu0 0
      %7314 = vperm.xlu0 %7313, %v7224
      %v7315 = vpop.permute.xlu0 %7314
      %7318 = vset.pattern.permute.xlu0 0
      %7319 = vperm.xlu0 %7318, %v7225
      %v7320 = vpop.permute.xlu0 %7319
      %7323 = vset.pattern.permute.xlu0 0
      %7324 = vperm.xlu0 %7323, %v7226
      %v7325 = vpop.permute.xlu0 %7324
      %7328 = vset.pattern.permute.xlu0 0
      %7329 = vperm.xlu0 %7328, %v7227
      %v7330 = vpop.permute.xlu0 %7329
      %7333 = vset.pattern.permute.xlu0 0
      %7334 = vperm.xlu0 %7333, %v7228
      %v7335 = vpop.permute.xlu0 %7334
      %7338 = vset.pattern.permute.xlu0 0
      %7339 = vperm.xlu0 %7338, %v7229
      %v7340 = vpop.permute.xlu0 %7339
      %7343 = vset.pattern.permute.xlu0 0
      %7344 = vperm.xlu0 %7343, %v7230
      %v7345 = vpop.permute.xlu0 %7344
      %7348 = vset.pattern.permute.xlu0 0
      %7349 = vperm.xlu0 %7348, %v7231
      %v7350 = vpop.permute.xlu0 %7349
      %7353 = vset.pattern.permute.xlu0 0
      %7354 = vperm.xlu0 %7353, %v7232
      %v7355 = vpop.permute.xlu0 %7354
      %7358 = vset.pattern.permute.xlu0 0
      %7359 = vperm.xlu0 %7358, %v7233
      %v7360 = vpop.permute.xlu0 %7359
      %7363 = vset.pattern.permute.xlu0 0
      %7364 = vperm.xlu0 %7363, %v7234
      %v7365 = vpop.permute.xlu0 %7364
      %7368 = vset.pattern.permute.xlu0 0
      %7369 = vperm.xlu0 %7368, %v7235
      %v7370 = vpop.permute.xlu0 %7369
      %7373 = vset.pattern.permute.xlu0 0
      %7374 = vperm.xlu0 %7373, %v7236
      %v7375 = vpop.permute.xlu0 %7374
      %7378 = vset.pattern.permute.xlu0 0
      %7379 = vperm.xlu0 %7378, %v7237
      %v7380 = vpop.permute.xlu0 %7379
      %7383 = vset.pattern.permute.xlu0 0
      %7384 = vperm.xlu0 %7383, %v7238
      %v7385 = vpop.permute.xlu0 %7384
      %7388 = vset.pattern.permute.xlu0 0
      %7389 = vperm.xlu0 %7388, %v7239
      %v7390 = vpop.permute.xlu0 %7389
      %7393 = vset.pattern.permute.xlu0 0
      %7394 = vperm.xlu0 %7393, %v7240
      %v7395 = vpop.permute.xlu0 %7394
      %7398 = vset.pattern.permute.xlu0 0
      %7399 = vperm.xlu0 %7398, %v7241
      %v7400 = vpop.permute.xlu0 %7399
      %v7434 = vunpack.c.l.b16 %v7161
      %v7435 = vunpack.c.h.b16 %v7161
      %v7436 = vunpack.c.l.b16 %v7162
      %v7437 = vunpack.c.h.b16 %v7162
      %v7438 = vunpack.c.l.b16 %v7163
      %v7439 = vunpack.c.h.b16 %v7163
      %v7440 = vunpack.c.l.b16 %v7164
      %v7441 = vunpack.c.h.b16 %v7164
      %v7442 = vunpack.c.l.b16 %v7165
      %v7443 = vunpack.c.h.b16 %v7165
      %v7444 = vunpack.c.l.b16 %v7166
      %v7445 = vunpack.c.h.b16 %v7166
      %v7446 = vunpack.c.l.b16 %v7167
      %v7447 = vunpack.c.h.b16 %v7167
      %v7448 = vunpack.c.l.b16 %v7168
      %v7449 = vunpack.c.h.b16 %v7168
      %v7450 = vunpack.c.l.b16 %v7169
      %v7451 = vunpack.c.h.b16 %v7169
      %v7452 = vunpack.c.l.b16 %v7170
      %v7453 = vunpack.c.h.b16 %v7170
      %v7454 = vunpack.c.l.b16 %v7171
      %v7455 = vunpack.c.h.b16 %v7171
      %v7456 = vunpack.c.l.b16 %v7172
      %v7457 = vunpack.c.h.b16 %v7172
      %v7458 = vunpack.c.l.b16 %v7173
      %v7459 = vunpack.c.h.b16 %v7173
      %v7460 = vunpack.c.l.b16 %v7174
      %v7461 = vunpack.c.h.b16 %v7174
      %v7462 = vunpack.c.l.b16 %v7175
      %v7463 = vunpack.c.h.b16 %v7175
      %v7464 = vunpack.c.l.b16 %v7176
      %v7465 = vunpack.c.h.b16 %v7176
      %v7466 = vunpack.c.l.b16 %v7177
      %v7467 = vunpack.c.h.b16 %v7177
      %v7468 = vunpack.c.l.b16 %v7178
      %v7469 = vunpack.c.h.b16 %v7178
      %v7470 = vunpack.c.l.b16 %v7179
      %v7471 = vunpack.c.h.b16 %v7179
      %v7472 = vunpack.c.l.b16 %v7180
      %v7473 = vunpack.c.h.b16 %v7180
      %v7474 = vunpack.c.l.b16 %v7181
      %v7475 = vunpack.c.h.b16 %v7181
      %v7476 = vunpack.c.l.b16 %v7182
      %v7477 = vunpack.c.h.b16 %v7182
      %v7478 = vunpack.c.l.b16 %v7183
      %v7479 = vunpack.c.h.b16 %v7183
      %v7480 = vunpack.c.l.b16 %v7184
      %v7481 = vunpack.c.h.b16 %v7184
      %v7482 = vunpack.c.l.b16 %v7185
      %v7483 = vunpack.c.h.b16 %v7185
      %v7484 = vunpack.c.l.b16 %v7186
      %v7485 = vunpack.c.h.b16 %v7186
      %v7486 = vunpack.c.l.b16 %v7187
      %v7487 = vunpack.c.h.b16 %v7187
      %v7488 = vunpack.c.l.b16 %v7188
      %v7489 = vunpack.c.h.b16 %v7188
      %v7490 = vunpack.c.l.b16 %v7189
      %v7491 = vunpack.c.h.b16 %v7189
      %v7492 = vunpack.c.l.b16 %v7190
      %v7493 = vunpack.c.h.b16 %v7190
      %v7494 = vunpack.c.l.b16 %v7191
      %v7495 = vunpack.c.h.b16 %v7191
      %v7496 = vunpack.c.l.b16 %v7192
      %v7497 = vunpack.c.h.b16 %v7192
      %v7498 = vpack.c.b16 %v7436, %v7434
      %v7499 = vpack.c.b16 %v7437, %v7435
      %v7500 = vpack.c.b16 %v7440, %v7438
      %v7501 = vpack.c.b16 %v7441, %v7439
      %v7502 = vpack.c.b16 %v7444, %v7442
      %v7503 = vpack.c.b16 %v7445, %v7443
      %v7504 = vpack.c.b16 %v7448, %v7446
      %v7505 = vpack.c.b16 %v7449, %v7447
      %v7506 = vpack.c.b16 %v7452, %v7450
      %v7507 = vpack.c.b16 %v7453, %v7451
      %v7508 = vpack.c.b16 %v7456, %v7454
      %v7509 = vpack.c.b16 %v7457, %v7455
      %v7510 = vpack.c.b16 %v7460, %v7458
      %v7511 = vpack.c.b16 %v7461, %v7459
      %v7512 = vpack.c.b16 %v7464, %v7462
      %v7513 = vpack.c.b16 %v7465, %v7463
      %v7514 = vpack.c.b16 %v7468, %v7466
      %v7515 = vpack.c.b16 %v7469, %v7467
      %v7516 = vpack.c.b16 %v7472, %v7470
      %v7517 = vpack.c.b16 %v7473, %v7471
      %v7518 = vpack.c.b16 %v7476, %v7474
      %v7519 = vpack.c.b16 %v7477, %v7475
      %v7520 = vpack.c.b16 %v7480, %v7478
      %v7521 = vpack.c.b16 %v7481, %v7479
      %v7522 = vpack.c.b16 %v7484, %v7482
      %v7523 = vpack.c.b16 %v7485, %v7483
      %v7524 = vpack.c.b16 %v7488, %v7486
      %v7525 = vpack.c.b16 %v7489, %v7487
      %v7526 = vpack.c.b16 %v7492, %v7490
      %v7527 = vpack.c.b16 %v7493, %v7491
      %v7528 = vpack.c.b16 %v7496, %v7494
      %v7529 = vpack.c.b16 %v7497, %v7495
      %7562 = vmatprep.subr.bf16.mxu0 0
      %7563 = vmatpush1.bf16.msra.mxu0 %v7200
      %7564 = vmatprep.subr.bf16.mxu0 0
      %7565 = vmatpush1.bf16.msra.mxu0 %v7199
      %7566 = vmatprep.subr.bf16.mxu0 0
      %7567 = vmatpush1.bf16.msra.mxu0 %v7198
      %7568 = vmatprep.subr.bf16.mxu0 0
      %7569 = vmatpush1.bf16.msra.mxu0 %v7197
      %7570 = vmatprep.subr.bf16.mxu0 0
      %7571 = vmatpush1.bf16.msra.mxu0 %v7196
      %7572 = vmatprep.subr.bf16.mxu0 0
      %7573 = vmatpush1.bf16.msra.mxu0 %v7195
      %7574 = vmatprep.subr.bf16.mxu0 0
      %7575 = vmatpush1.bf16.msra.mxu0 %v7194
      %7576 = vmatprep.subr.bf16.mxu0 0
      %7577 = vmatpush1.bf16.msra.mxu0 %v7193
      %7578 = vmatprep.subr.bf16.mxu0 0
      %7579 = vmatpush2.bf16.msra.mxu0 %v7208
      %7580 = vmatprep.subr.bf16.mxu0 0
      %7581 = vmatpush2.bf16.msra.mxu0 %v7207
      %7582 = vmatprep.subr.bf16.mxu0 0
      %7583 = vmatpush2.bf16.msra.mxu0 %v7206
      %7584 = vmatprep.subr.bf16.mxu0 0
      %7585 = vmatpush2.bf16.msra.mxu0 %v7205
      %7586 = vmatprep.subr.bf16.mxu0 0
      %7587 = vmatpush2.bf16.msra.mxu0 %v7204
      %7588 = vmatprep.subr.bf16.mxu0 0
      %7589 = vmatpush2.bf16.msra.mxu0 %v7203
      %7590 = vmatprep.subr.bf16.mxu0 0
      %7591 = vmatpush2.bf16.msra.mxu0 %v7202
      %7592 = vmatprep.subr.bf16.mxu0 0
      %7593 = vmatpush2.bf16.msra.mxu0 %v7201
      %7594 = vmatprep.mubr.bf16.mxu0 %v7499
      %7595 = vmatmul.mubr.bf16.gmra.mxu0 %v7498
      %v7596 = vpop.f32.mrf.mxu0
      %v7597 = vadd.f32 %v7245, %v7596
      %v7598 = vpop.f32.mrf.mxu0
      %v7599 = vpop.f32.mrf.mxu0
      %v7600 = vadd.f32 %v7250, %v7599
      %v7601 = vpop.f32.mrf.mxu0
      %7602 = vmatprep.mubr.bf16.mxu0 %v7501
      %7603 = vmatmul.mubr.bf16.gmra.mxu0 %v7500
      %v7604 = vpop.f32.mrf.mxu0
      %v7605 = vadd.f32 %v7255, %v7604
      %v7606 = vpop.f32.mrf.mxu0
      %v7607 = vpop.f32.mrf.mxu0
      %v7608 = vadd.f32 %v7260, %v7607
      %v7609 = vpop.f32.mrf.mxu0
      %7610 = vmatprep.mubr.bf16.mxu0 %v7503
      %7611 = vmatmul.mubr.bf16.gmra.mxu0 %v7502
      %v7612 = vpop.f32.mrf.mxu0
      %v7613 = vadd.f32 %v7265, %v7612
      %v7614 = vpop.f32.mrf.mxu0
      %v7615 = vpop.f32.mrf.mxu0
      %v7616 = vadd.f32 %v7270, %v7615
      %v7617 = vpop.f32.mrf.mxu0
      %7618 = vmatprep.mubr.bf16.mxu0 %v7505
      %7619 = vmatmul.mubr.bf16.gmra.mxu0 %v7504
      %v7620 = vpop.f32.mrf.mxu0
      %v7621 = vadd.f32 %v7275, %v7620
      %v7622 = vpop.f32.mrf.mxu0
      %v7623 = vpop.f32.mrf.mxu0
      %v7624 = vadd.f32 %v7280, %v7623
      %v7625 = vpop.f32.mrf.mxu0
      %7626 = vmatprep.mubr.bf16.mxu0 %v7507
      %7627 = vmatmul.mubr.bf16.gmra.mxu0 %v7506
      %v7628 = vpop.f32.mrf.mxu0
      %v7629 = vadd.f32 %v7285, %v7628
      %v7630 = vpop.f32.mrf.mxu0
      %v7631 = vpop.f32.mrf.mxu0
      %v7632 = vadd.f32 %v7290, %v7631
      %v7633 = vpop.f32.mrf.mxu0
      %7634 = vmatprep.mubr.bf16.mxu0 %v7509
      %7635 = vmatmul.mubr.bf16.gmra.mxu0 %v7508
      %v7636 = vpop.f32.mrf.mxu0
      %v7637 = vadd.f32 %v7295, %v7636
      %v7638 = vpop.f32.mrf.mxu0
      %v7639 = vpop.f32.mrf.mxu0
      %v7640 = vadd.f32 %v7300, %v7639
      %v7641 = vpop.f32.mrf.mxu0
      %7642 = vmatprep.mubr.bf16.mxu0 %v7511
      %7643 = vmatmul.mubr.bf16.gmra.mxu0 %v7510
      %v7644 = vpop.f32.mrf.mxu0
      %v7645 = vadd.f32 %v7305, %v7644
      %v7646 = vpop.f32.mrf.mxu0
      %v7647 = vpop.f32.mrf.mxu0
      %v7648 = vadd.f32 %v7310, %v7647
      %v7649 = vpop.f32.mrf.mxu0
      %7650 = vmatprep.mubr.bf16.mxu0 %v7513
      %7651 = vmatmul.mubr.bf16.gmra.mxu0 %v7512
      %v7652 = vpop.f32.mrf.mxu0
      %v7653 = vadd.f32 %v7315, %v7652
      %v7654 = vpop.f32.mrf.mxu0
      %v7655 = vpop.f32.mrf.mxu0
      %v7656 = vadd.f32 %v7320, %v7655
      %v7657 = vpop.f32.mrf.mxu0
      %7658 = vmatprep.mubr.bf16.mxu0 %v7515
      %7659 = vmatmul.mubr.bf16.gmra.mxu0 %v7514
      %v7660 = vpop.f32.mrf.mxu0
      %v7661 = vadd.f32 %v7325, %v7660
      %v7662 = vpop.f32.mrf.mxu0
      %v7663 = vpop.f32.mrf.mxu0
      %v7664 = vadd.f32 %v7330, %v7663
      %v7665 = vpop.f32.mrf.mxu0
      %7666 = vmatprep.mubr.bf16.mxu0 %v7517
      %7667 = vmatmul.mubr.bf16.gmra.mxu0 %v7516
      %v7668 = vpop.f32.mrf.mxu0
      %v7669 = vadd.f32 %v7335, %v7668
      %v7670 = vpop.f32.mrf.mxu0
      %v7671 = vpop.f32.mrf.mxu0
      %v7672 = vadd.f32 %v7340, %v7671
      %v7673 = vpop.f32.mrf.mxu0
      %7674 = vmatprep.mubr.bf16.mxu0 %v7519
      %7675 = vmatmul.mubr.bf16.gmra.mxu0 %v7518
      %v7676 = vpop.f32.mrf.mxu0
      %v7677 = vadd.f32 %v7345, %v7676
      %v7678 = vpop.f32.mrf.mxu0
      %v7679 = vpop.f32.mrf.mxu0
      %v7680 = vadd.f32 %v7350, %v7679
      %v7681 = vpop.f32.mrf.mxu0
      %7682 = vmatprep.mubr.bf16.mxu0 %v7521
      %7683 = vmatmul.mubr.bf16.gmra.mxu0 %v7520
      %v7684 = vpop.f32.mrf.mxu0
      %v7685 = vadd.f32 %v7355, %v7684
      %v7686 = vpop.f32.mrf.mxu0
      %v7687 = vpop.f32.mrf.mxu0
      %v7688 = vadd.f32 %v7360, %v7687
      %v7689 = vpop.f32.mrf.mxu0
      %7690 = vmatprep.mubr.bf16.mxu0 %v7523
      %7691 = vmatmul.mubr.bf16.gmra.mxu0 %v7522
      %v7692 = vpop.f32.mrf.mxu0
      %v7693 = vadd.f32 %v7365, %v7692
      %v7694 = vpop.f32.mrf.mxu0
      %v7695 = vpop.f32.mrf.mxu0
      %v7696 = vadd.f32 %v7370, %v7695
      %v7697 = vpop.f32.mrf.mxu0
      %7698 = vmatprep.mubr.bf16.mxu0 %v7525
      %7699 = vmatmul.mubr.bf16.gmra.mxu0 %v7524
      %v7700 = vpop.f32.mrf.mxu0
      %v7701 = vadd.f32 %v7375, %v7700
      %v7702 = vpop.f32.mrf.mxu0
      %v7703 = vpop.f32.mrf.mxu0
      %v7704 = vadd.f32 %v7380, %v7703
      %v7705 = vpop.f32.mrf.mxu0
      %7706 = vmatprep.mubr.bf16.mxu0 %v7527
      %7707 = vmatmul.mubr.bf16.gmra.mxu0 %v7526
      %v7708 = vpop.f32.mrf.mxu0
      %v7709 = vadd.f32 %v7385, %v7708
      %v7710 = vpop.f32.mrf.mxu0
      %v7711 = vpop.f32.mrf.mxu0
      %v7712 = vadd.f32 %v7390, %v7711
      %v7713 = vpop.f32.mrf.mxu0
      %7714 = vmatprep.mubr.bf16.mxu0 %v7529
      %7715 = vmatmul.mubr.bf16.gmra.mxu0 %v7528
      %v7716 = vpop.f32.mrf.mxu0
      %v7717 = vadd.f32 %v7395, %v7716
      %v7718 = vpop.f32.mrf.mxu0
      %v7719 = vpop.f32.mrf.mxu0
      %v7720 = vadd.f32 %v7400, %v7719
      %v7721 = vpop.f32.mrf.mxu0
      %7722 = vdwg.mxu0
      %vm7723 = vcmp.ge.f32.partialorder %v7597, 0.0
      %vm7724 = vcmp.ge.f32.partialorder %v7600, 0.0
      %vm7725 = vcmp.ge.f32.partialorder %v7605, 0.0
      %vm7726 = vcmp.ge.f32.partialorder %v7608, 0.0
      %vm7727 = vcmp.ge.f32.partialorder %v7613, 0.0
      %vm7728 = vcmp.ge.f32.partialorder %v7616, 0.0
      %vm7729 = vcmp.ge.f32.partialorder %v7621, 0.0
      %vm7730 = vcmp.ge.f32.partialorder %v7624, 0.0
      %vm7731 = vcmp.ge.f32.partialorder %v7629, 0.0
      %vm7732 = vcmp.ge.f32.partialorder %v7632, 0.0
      %vm7733 = vcmp.ge.f32.partialorder %v7637, 0.0
      %vm7734 = vcmp.ge.f32.partialorder %v7640, 0.0
      %vm7735 = vcmp.ge.f32.partialorder %v7645, 0.0
      %vm7736 = vcmp.ge.f32.partialorder %v7648, 0.0
      %vm7737 = vcmp.ge.f32.partialorder %v7653, 0.0
      %vm7738 = vcmp.ge.f32.partialorder %v7656, 0.0
      %vm7739 = vcmp.ge.f32.partialorder %v7661, 0.0
      %vm7740 = vcmp.ge.f32.partialorder %v7664, 0.0
      %vm7741 = vcmp.ge.f32.partialorder %v7669, 0.0
      %vm7742 = vcmp.ge.f32.partialorder %v7672, 0.0
      %vm7743 = vcmp.ge.f32.partialorder %v7677, 0.0
      %vm7744 = vcmp.ge.f32.partialorder %v7680, 0.0
      %vm7745 = vcmp.ge.f32.partialorder %v7685, 0.0
      %vm7746 = vcmp.ge.f32.partialorder %v7688, 0.0
      %vm7747 = vcmp.ge.f32.partialorder %v7693, 0.0
      %vm7748 = vcmp.ge.f32.partialorder %v7696, 0.0
      %vm7749 = vcmp.ge.f32.partialorder %v7701, 0.0
      %vm7750 = vcmp.ge.f32.partialorder %v7704, 0.0
      %vm7751 = vcmp.ge.f32.partialorder %v7709, 0.0
      %vm7752 = vcmp.ge.f32.partialorder %v7712, 0.0
      %vm7753 = vcmp.ge.f32.partialorder %v7717, 0.0
      %vm7754 = vcmp.ge.f32.partialorder %v7720, 0.0
      %v7755 = vmul.f32 %v7597, 0.01
      %v7756 = vmul.f32 %v7600, 0.01
      %v7757 = vmul.f32 %v7605, 0.01
      %v7758 = vmul.f32 %v7608, 0.01
      %v7759 = vmul.f32 %v7613, 0.01
      %v7760 = vmul.f32 %v7616, 0.01
      %v7761 = vmul.f32 %v7621, 0.01
      %v7762 = vmul.f32 %v7624, 0.01
      %v7763 = vmul.f32 %v7629, 0.01
      %v7764 = vmul.f32 %v7632, 0.01
      %v7765 = vmul.f32 %v7637, 0.01
      %v7766 = vmul.f32 %v7640, 0.01
      %v7767 = vmul.f32 %v7645, 0.01
      %v7768 = vmul.f32 %v7648, 0.01
      %v7769 = vmul.f32 %v7653, 0.01
      %v7770 = vmul.f32 %v7656, 0.01
      %v7771 = vmul.f32 %v7661, 0.01
      %v7772 = vmul.f32 %v7664, 0.01
      %v7773 = vmul.f32 %v7669, 0.01
      %v7774 = vmul.f32 %v7672, 0.01
      %v7775 = vmul.f32 %v7677, 0.01
      %v7776 = vmul.f32 %v7680, 0.01
      %v7777 = vmul.f32 %v7685, 0.01
      %v7778 = vmul.f32 %v7688, 0.01
      %v7779 = vmul.f32 %v7693, 0.01
      %v7780 = vmul.f32 %v7696, 0.01
      %v7781 = vmul.f32 %v7701, 0.01
      %v7782 = vmul.f32 %v7704, 0.01
      %v7783 = vmul.f32 %v7709, 0.01
      %v7784 = vmul.f32 %v7712, 0.01
      %v7785 = vmul.f32 %v7717, 0.01
      %v7786 = vmul.f32 %v7720, 0.01
      %v7787 = vsel %vm7723, %v7597, %v7755
      %v7788 = vsel %vm7724, %v7600, %v7756
      %v7789 = vsel %vm7725, %v7605, %v7757
      %v7790 = vsel %vm7726, %v7608, %v7758
      %v7791 = vsel %vm7727, %v7613, %v7759
      %v7792 = vsel %vm7728, %v7616, %v7760
      %v7793 = vsel %vm7729, %v7621, %v7761
      %v7794 = vsel %vm7730, %v7624, %v7762
      %v7795 = vsel %vm7731, %v7629, %v7763
      %v7796 = vsel %vm7732, %v7632, %v7764
      %v7797 = vsel %vm7733, %v7637, %v7765
      %v7798 = vsel %vm7734, %v7640, %v7766
      %v7799 = vsel %vm7735, %v7645, %v7767
      %v7800 = vsel %vm7736, %v7648, %v7768
      %v7801 = vsel %vm7737, %v7653, %v7769
      %v7802 = vsel %vm7738, %v7656, %v7770
      %v7803 = vsel %vm7739, %v7661, %v7771
      %v7804 = vsel %vm7740, %v7664, %v7772
      %v7805 = vsel %vm7741, %v7669, %v7773
      %v7806 = vsel %vm7742, %v7672, %v7774
      %v7807 = vsel %vm7743, %v7677, %v7775
      %v7808 = vsel %vm7744, %v7680, %v7776
      %v7809 = vsel %vm7745, %v7685, %v7777
      %v7810 = vsel %vm7746, %v7688, %v7778
      %v7811 = vsel %vm7747, %v7693, %v7779
      %v7812 = vsel %vm7748, %v7696, %v7780
      %v7813 = vsel %vm7749, %v7701, %v7781
      %v7814 = vsel %vm7750, %v7704, %v7782
      %v7815 = vsel %vm7751, %v7709, %v7783
      %v7816 = vsel %vm7752, %v7712, %v7784
      %v7817 = vsel %vm7753, %v7717, %v7785
      %v7818 = vsel %vm7754, %v7720, %v7786
      %v7819 = vld [vmem:[%s575] sm:$0xff]
      %v7820 = vld [vmem:[%s575 + $0x8] sm:$0xff]
      %v7821 = vld [vmem:[%s575 + $0x10] sm:$0xff]
      %v7822 = vld [vmem:[%s575 + $0x18] sm:$0xff]
      %v7823 = vld [vmem:[%s575 + $0x20] sm:$0xff]
      %v7824 = vld [vmem:[%s575 + $0x28] sm:$0xff]
      %v7825 = vld [vmem:[%s575 + $0x30] sm:$0xff]
      %v7826 = vld [vmem:[%s575 + $0x38] sm:$0xff]
      %v7827 = vld [vmem:[%s575 + $0x40] sm:$0xff]
      %v7828 = vld [vmem:[%s575 + $0x48] sm:$0xff]
      %v7829 = vld [vmem:[%s575 + $0x50] sm:$0xff]
      %v7830 = vld [vmem:[%s575 + $0x58] sm:$0xff]
      %v7831 = vld [vmem:[%s575 + $0x60] sm:$0xff]
      %v7832 = vld [vmem:[%s575 + $0x68] sm:$0xff]
      %v7833 = vld [vmem:[%s575 + $0x70] sm:$0xff]
      %v7834 = vld [vmem:[%s575 + $0x78] sm:$0xff]
      %v7835 = vld [vmem:[%s575 + $0x80] sm:$0xff]
      %v7836 = vld [vmem:[%s575 + $0x88] sm:$0xff]
      %v7837 = vld [vmem:[%s575 + $0x90] sm:$0xff]
      %v7838 = vld [vmem:[%s575 + $0x98] sm:$0xff]
      %v7839 = vld [vmem:[%s575 + $0xa0] sm:$0xff]
      %v7840 = vld [vmem:[%s575 + $0xa8] sm:$0xff]
      %v7841 = vld [vmem:[%s575 + $0xb0] sm:$0xff]
      %v7842 = vld [vmem:[%s575 + $0xb8] sm:$0xff]
      %v7843 = vld [vmem:[%s575 + $0xc0] sm:$0xff]
      %v7844 = vld [vmem:[%s575 + $0xc8] sm:$0xff]
      %v7845 = vld [vmem:[%s575 + $0xd0] sm:$0xff]
      %v7846 = vld [vmem:[%s575 + $0xd8] sm:$0xff]
      %v7847 = vld [vmem:[%s575 + $0xe0] sm:$0xff]
      %v7848 = vld [vmem:[%s575 + $0xe8] sm:$0xff]
      %v7849 = vld [vmem:[%s575 + $0xf0] sm:$0xff]
      %v7850 = vld [vmem:[%s575 + $0xf8] sm:$0xff]
      %v7851 = vpack.c.bf16 %v7788, %v7787
      %v7852 = vpack.c.bf16 %v7790, %v7789
      %v7853 = vpack.c.bf16 %v7792, %v7791
      %v7854 = vpack.c.bf16 %v7794, %v7793
      %v7855 = vpack.c.bf16 %v7796, %v7795
      %v7856 = vpack.c.bf16 %v7798, %v7797
      %v7857 = vpack.c.bf16 %v7800, %v7799
      %v7858 = vpack.c.bf16 %v7802, %v7801
      %v7859 = vpack.c.bf16 %v7804, %v7803
      %v7860 = vpack.c.bf16 %v7806, %v7805
      %v7861 = vpack.c.bf16 %v7808, %v7807
      %v7862 = vpack.c.bf16 %v7810, %v7809
      %v7863 = vpack.c.bf16 %v7812, %v7811
      %v7864 = vpack.c.bf16 %v7814, %v7813
      %v7865 = vpack.c.bf16 %v7816, %v7815
      %v7866 = vpack.c.bf16 %v7818, %v7817
      %s7867 = scalar_lea.vmem %s590, 768
      %v7868 = vld [vmem:[%s7867] sm:$0xff]
      %v7869 = vld [vmem:[%s7867 + $0x8] sm:$0xff]
      %v7870 = vld [vmem:[%s7867 + $0x10] sm:$0xff]
      %v7871 = vld [vmem:[%s7867 + $0x18] sm:$0xff]
      %v7872 = vld [vmem:[%s7867 + $0x20] sm:$0xff]
      %v7873 = vld [vmem:[%s7867 + $0x28] sm:$0xff]
      %v7874 = vld [vmem:[%s7867 + $0x30] sm:$0xff]
      %v7875 = vld [vmem:[%s7867 + $0x38] sm:$0xff]
      %v7876 = vld [vmem:[%s7867 + $0x40] sm:$0xff]
      %v7877 = vld [vmem:[%s7867 + $0x48] sm:$0xff]
      %v7878 = vld [vmem:[%s7867 + $0x50] sm:$0xff]
      %v7879 = vld [vmem:[%s7867 + $0x58] sm:$0xff]
      %v7880 = vld [vmem:[%s7867 + $0x60] sm:$0xff]
      %v7881 = vld [vmem:[%s7867 + $0x68] sm:$0xff]
      %v7882 = vld [vmem:[%s7867 + $0x70] sm:$0xff]
      %v7883 = vld [vmem:[%s7867 + $0x78] sm:$0xff]
      %v7884 = vld [vmem:[%s7867 + $0x80] sm:$0xff]
      %v7885 = vld [vmem:[%s7867 + $0x88] sm:$0xff]
      %v7886 = vld [vmem:[%s7867 + $0x90] sm:$0xff]
      %v7887 = vld [vmem:[%s7867 + $0x98] sm:$0xff]
      %v7888 = vld [vmem:[%s7867 + $0xa0] sm:$0xff]
      %v7889 = vld [vmem:[%s7867 + $0xa8] sm:$0xff]
      %v7890 = vld [vmem:[%s7867 + $0xb0] sm:$0xff]
      %v7891 = vld [vmem:[%s7867 + $0xb8] sm:$0xff]
      %v7892 = vld [vmem:[%s7867 + $0xc0] sm:$0xff]
      %v7893 = vld [vmem:[%s7867 + $0xc8] sm:$0xff]
      %v7894 = vld [vmem:[%s7867 + $0xd0] sm:$0xff]
      %v7895 = vld [vmem:[%s7867 + $0xd8] sm:$0xff]
      %v7896 = vld [vmem:[%s7867 + $0xe0] sm:$0xff]
      %v7897 = vld [vmem:[%s7867 + $0xe8] sm:$0xff]
      %v7898 = vld [vmem:[%s7867 + $0xf0] sm:$0xff]
      %v7899 = vld [vmem:[%s7867 + $0xf8] sm:$0xff]
      %7901 = vset.pattern.permute.xlu0 0
      %7902 = vperm.xlu0 %7901, %v7868
      %v7903 = vpop.permute.xlu0 %7902
      %7906 = vset.pattern.permute.xlu0 0
      %7907 = vperm.xlu0 %7906, %v7869
      %v7908 = vpop.permute.xlu0 %7907
      %7911 = vset.pattern.permute.xlu0 0
      %7912 = vperm.xlu0 %7911, %v7870
      %v7913 = vpop.permute.xlu0 %7912
      %7916 = vset.pattern.permute.xlu0 0
      %7917 = vperm.xlu0 %7916, %v7871
      %v7918 = vpop.permute.xlu0 %7917
      %7921 = vset.pattern.permute.xlu0 0
      %7922 = vperm.xlu0 %7921, %v7872
      %v7923 = vpop.permute.xlu0 %7922
      %7926 = vset.pattern.permute.xlu0 0
      %7927 = vperm.xlu0 %7926, %v7873
      %v7928 = vpop.permute.xlu0 %7927
      %7931 = vset.pattern.permute.xlu0 0
      %7932 = vperm.xlu0 %7931, %v7874
      %v7933 = vpop.permute.xlu0 %7932
      %7936 = vset.pattern.permute.xlu0 0
      %7937 = vperm.xlu0 %7936, %v7875
      %v7938 = vpop.permute.xlu0 %7937
      %7941 = vset.pattern.permute.xlu0 0
      %7942 = vperm.xlu0 %7941, %v7876
      %v7943 = vpop.permute.xlu0 %7942
      %7946 = vset.pattern.permute.xlu0 0
      %7947 = vperm.xlu0 %7946, %v7877
      %v7948 = vpop.permute.xlu0 %7947
      %7951 = vset.pattern.permute.xlu0 0
      %7952 = vperm.xlu0 %7951, %v7878
      %v7953 = vpop.permute.xlu0 %7952
      %7956 = vset.pattern.permute.xlu0 0
      %7957 = vperm.xlu0 %7956, %v7879
      %v7958 = vpop.permute.xlu0 %7957
      %7961 = vset.pattern.permute.xlu0 0
      %7962 = vperm.xlu0 %7961, %v7880
      %v7963 = vpop.permute.xlu0 %7962
      %7966 = vset.pattern.permute.xlu0 0
      %7967 = vperm.xlu0 %7966, %v7881
      %v7968 = vpop.permute.xlu0 %7967
      %7971 = vset.pattern.permute.xlu0 0
      %7972 = vperm.xlu0 %7971, %v7882
      %v7973 = vpop.permute.xlu0 %7972
      %7976 = vset.pattern.permute.xlu0 0
      %7977 = vperm.xlu0 %7976, %v7883
      %v7978 = vpop.permute.xlu0 %7977
      %7981 = vset.pattern.permute.xlu0 0
      %7982 = vperm.xlu0 %7981, %v7884
      %v7983 = vpop.permute.xlu0 %7982
      %7986 = vset.pattern.permute.xlu0 0
      %7987 = vperm.xlu0 %7986, %v7885
      %v7988 = vpop.permute.xlu0 %7987
      %7991 = vset.pattern.permute.xlu0 0
      %7992 = vperm.xlu0 %7991, %v7886
      %v7993 = vpop.permute.xlu0 %7992
      %7996 = vset.pattern.permute.xlu0 0
      %7997 = vperm.xlu0 %7996, %v7887
      %v7998 = vpop.permute.xlu0 %7997
      %8001 = vset.pattern.permute.xlu0 0
      %8002 = vperm.xlu0 %8001, %v7888
      %v8003 = vpop.permute.xlu0 %8002
      %8006 = vset.pattern.permute.xlu0 0
      %8007 = vperm.xlu0 %8006, %v7889
      %v8008 = vpop.permute.xlu0 %8007
      %8011 = vset.pattern.permute.xlu0 0
      %8012 = vperm.xlu0 %8011, %v7890
      %v8013 = vpop.permute.xlu0 %8012
      %8016 = vset.pattern.permute.xlu0 0
      %8017 = vperm.xlu0 %8016, %v7891
      %v8018 = vpop.permute.xlu0 %8017
      %8021 = vset.pattern.permute.xlu0 0
      %8022 = vperm.xlu0 %8021, %v7892
      %v8023 = vpop.permute.xlu0 %8022
      %8026 = vset.pattern.permute.xlu0 0
      %8027 = vperm.xlu0 %8026, %v7893
      %v8028 = vpop.permute.xlu0 %8027
      %8031 = vset.pattern.permute.xlu0 0
      %8032 = vperm.xlu0 %8031, %v7894
      %v8033 = vpop.permute.xlu0 %8032
      %8036 = vset.pattern.permute.xlu0 0
      %8037 = vperm.xlu0 %8036, %v7895
      %v8038 = vpop.permute.xlu0 %8037
      %8041 = vset.pattern.permute.xlu0 0
      %8042 = vperm.xlu0 %8041, %v7896
      %v8043 = vpop.permute.xlu0 %8042
      %8046 = vset.pattern.permute.xlu0 0
      %8047 = vperm.xlu0 %8046, %v7897
      %v8048 = vpop.permute.xlu0 %8047
      %8051 = vset.pattern.permute.xlu0 0
      %8052 = vperm.xlu0 %8051, %v7898
      %v8053 = vpop.permute.xlu0 %8052
      %8056 = vset.pattern.permute.xlu0 0
      %8057 = vperm.xlu0 %8056, %v7899
      %v8058 = vpop.permute.xlu0 %8057
      %v8092 = vunpack.c.l.b16 %v7819
      %v8093 = vunpack.c.h.b16 %v7819
      %v8094 = vunpack.c.l.b16 %v7820
      %v8095 = vunpack.c.h.b16 %v7820
      %v8096 = vunpack.c.l.b16 %v7821
      %v8097 = vunpack.c.h.b16 %v7821
      %v8098 = vunpack.c.l.b16 %v7822
      %v8099 = vunpack.c.h.b16 %v7822
      %v8100 = vunpack.c.l.b16 %v7823
      %v8101 = vunpack.c.h.b16 %v7823
      %v8102 = vunpack.c.l.b16 %v7824
      %v8103 = vunpack.c.h.b16 %v7824
      %v8104 = vunpack.c.l.b16 %v7825
      %v8105 = vunpack.c.h.b16 %v7825
      %v8106 = vunpack.c.l.b16 %v7826
      %v8107 = vunpack.c.h.b16 %v7826
      %v8108 = vunpack.c.l.b16 %v7827
      %v8109 = vunpack.c.h.b16 %v7827
      %v8110 = vunpack.c.l.b16 %v7828
      %v8111 = vunpack.c.h.b16 %v7828
      %v8112 = vunpack.c.l.b16 %v7829
      %v8113 = vunpack.c.h.b16 %v7829
      %v8114 = vunpack.c.l.b16 %v7830
      %v8115 = vunpack.c.h.b16 %v7830
      %v8116 = vunpack.c.l.b16 %v7831
      %v8117 = vunpack.c.h.b16 %v7831
      %v8118 = vunpack.c.l.b16 %v7832
      %v8119 = vunpack.c.h.b16 %v7832
      %v8120 = vunpack.c.l.b16 %v7833
      %v8121 = vunpack.c.h.b16 %v7833
      %v8122 = vunpack.c.l.b16 %v7834
      %v8123 = vunpack.c.h.b16 %v7834
      %v8124 = vunpack.c.l.b16 %v7835
      %v8125 = vunpack.c.h.b16 %v7835
      %v8126 = vunpack.c.l.b16 %v7836
      %v8127 = vunpack.c.h.b16 %v7836
      %v8128 = vunpack.c.l.b16 %v7837
      %v8129 = vunpack.c.h.b16 %v7837
      %v8130 = vunpack.c.l.b16 %v7838
      %v8131 = vunpack.c.h.b16 %v7838
      %v8132 = vunpack.c.l.b16 %v7839
      %v8133 = vunpack.c.h.b16 %v7839
      %v8134 = vunpack.c.l.b16 %v7840
      %v8135 = vunpack.c.h.b16 %v7840
      %v8136 = vunpack.c.l.b16 %v7841
      %v8137 = vunpack.c.h.b16 %v7841
      %v8138 = vunpack.c.l.b16 %v7842
      %v8139 = vunpack.c.h.b16 %v7842
      %v8140 = vunpack.c.l.b16 %v7843
      %v8141 = vunpack.c.h.b16 %v7843
      %v8142 = vunpack.c.l.b16 %v7844
      %v8143 = vunpack.c.h.b16 %v7844
      %v8144 = vunpack.c.l.b16 %v7845
      %v8145 = vunpack.c.h.b16 %v7845
      %v8146 = vunpack.c.l.b16 %v7846
      %v8147 = vunpack.c.h.b16 %v7846
      %v8148 = vunpack.c.l.b16 %v7847
      %v8149 = vunpack.c.h.b16 %v7847
      %v8150 = vunpack.c.l.b16 %v7848
      %v8151 = vunpack.c.h.b16 %v7848
      %v8152 = vunpack.c.l.b16 %v7849
      %v8153 = vunpack.c.h.b16 %v7849
      %v8154 = vunpack.c.l.b16 %v7850
      %v8155 = vunpack.c.h.b16 %v7850
      %v8156 = vpack.c.b16 %v8094, %v8092
      %v8157 = vpack.c.b16 %v8095, %v8093
      %v8158 = vpack.c.b16 %v8098, %v8096
      %v8159 = vpack.c.b16 %v8099, %v8097
      %v8160 = vpack.c.b16 %v8102, %v8100
      %v8161 = vpack.c.b16 %v8103, %v8101
      %v8162 = vpack.c.b16 %v8106, %v8104
      %v8163 = vpack.c.b16 %v8107, %v8105
      %v8164 = vpack.c.b16 %v8110, %v8108
      %v8165 = vpack.c.b16 %v8111, %v8109
      %v8166 = vpack.c.b16 %v8114, %v8112
      %v8167 = vpack.c.b16 %v8115, %v8113
      %v8168 = vpack.c.b16 %v8118, %v8116
      %v8169 = vpack.c.b16 %v8119, %v8117
      %v8170 = vpack.c.b16 %v8122, %v8120
      %v8171 = vpack.c.b16 %v8123, %v8121
      %v8172 = vpack.c.b16 %v8126, %v8124
      %v8173 = vpack.c.b16 %v8127, %v8125
      %v8174 = vpack.c.b16 %v8130, %v8128
      %v8175 = vpack.c.b16 %v8131, %v8129
      %v8176 = vpack.c.b16 %v8134, %v8132
      %v8177 = vpack.c.b16 %v8135, %v8133
      %v8178 = vpack.c.b16 %v8138, %v8136
      %v8179 = vpack.c.b16 %v8139, %v8137
      %v8180 = vpack.c.b16 %v8142, %v8140
      %v8181 = vpack.c.b16 %v8143, %v8141
      %v8182 = vpack.c.b16 %v8146, %v8144
      %v8183 = vpack.c.b16 %v8147, %v8145
      %v8184 = vpack.c.b16 %v8150, %v8148
      %v8185 = vpack.c.b16 %v8151, %v8149
      %v8186 = vpack.c.b16 %v8154, %v8152
      %v8187 = vpack.c.b16 %v8155, %v8153
      %8220 = vmatprep.subr.bf16.mxu0 0
      %8221 = vmatpush1.bf16.msra.mxu0 %v7858
      %8222 = vmatprep.subr.bf16.mxu0 0
      %8223 = vmatpush1.bf16.msra.mxu0 %v7857
      %8224 = vmatprep.subr.bf16.mxu0 0
      %8225 = vmatpush1.bf16.msra.mxu0 %v7856
      %8226 = vmatprep.subr.bf16.mxu0 0
      %8227 = vmatpush1.bf16.msra.mxu0 %v7855
      %8228 = vmatprep.subr.bf16.mxu0 0
      %8229 = vmatpush1.bf16.msra.mxu0 %v7854
      %8230 = vmatprep.subr.bf16.mxu0 0
      %8231 = vmatpush1.bf16.msra.mxu0 %v7853
      %8232 = vmatprep.subr.bf16.mxu0 0
      %8233 = vmatpush1.bf16.msra.mxu0 %v7852
      %8234 = vmatprep.subr.bf16.mxu0 0
      %8235 = vmatpush1.bf16.msra.mxu0 %v7851
      %8236 = vmatprep.subr.bf16.mxu0 0
      %8237 = vmatpush2.bf16.msra.mxu0 %v7866
      %8238 = vmatprep.subr.bf16.mxu0 0
      %8239 = vmatpush2.bf16.msra.mxu0 %v7865
      %8240 = vmatprep.subr.bf16.mxu0 0
      %8241 = vmatpush2.bf16.msra.mxu0 %v7864
      %8242 = vmatprep.subr.bf16.mxu0 0
      %8243 = vmatpush2.bf16.msra.mxu0 %v7863
      %8244 = vmatprep.subr.bf16.mxu0 0
      %8245 = vmatpush2.bf16.msra.mxu0 %v7862
      %8246 = vmatprep.subr.bf16.mxu0 0
      %8247 = vmatpush2.bf16.msra.mxu0 %v7861
      %8248 = vmatprep.subr.bf16.mxu0 0
      %8249 = vmatpush2.bf16.msra.mxu0 %v7860
      %8250 = vmatprep.subr.bf16.mxu0 0
      %8251 = vmatpush2.bf16.msra.mxu0 %v7859
      %8252 = vmatprep.mubr.bf16.mxu0 %v8157
      %8253 = vmatmul.mubr.bf16.gmra.mxu0 %v8156
      %v8254 = vpop.f32.mrf.mxu0
      %v8255 = vadd.f32 %v7903, %v8254
      %v8256 = vpop.f32.mrf.mxu0
      %v8257 = vpop.f32.mrf.mxu0
      %v8258 = vadd.f32 %v7908, %v8257
      %v8259 = vpop.f32.mrf.mxu0
      %8260 = vmatprep.mubr.bf16.mxu0 %v8159
      %8261 = vmatmul.mubr.bf16.gmra.mxu0 %v8158
      %v8262 = vpop.f32.mrf.mxu0
      %v8263 = vadd.f32 %v7913, %v8262
      %v8264 = vpop.f32.mrf.mxu0
      %v8265 = vpop.f32.mrf.mxu0
      %v8266 = vadd.f32 %v7918, %v8265
      %v8267 = vpop.f32.mrf.mxu0
      %8268 = vmatprep.mubr.bf16.mxu0 %v8161
      %8269 = vmatmul.mubr.bf16.gmra.mxu0 %v8160
      %v8270 = vpop.f32.mrf.mxu0
      %v8271 = vadd.f32 %v7923, %v8270
      %v8272 = vpop.f32.mrf.mxu0
      %v8273 = vpop.f32.mrf.mxu0
      %v8274 = vadd.f32 %v7928, %v8273
      %v8275 = vpop.f32.mrf.mxu0
      %8276 = vmatprep.mubr.bf16.mxu0 %v8163
      %8277 = vmatmul.mubr.bf16.gmra.mxu0 %v8162
      %v8278 = vpop.f32.mrf.mxu0
      %v8279 = vadd.f32 %v7933, %v8278
      %v8280 = vpop.f32.mrf.mxu0
      %v8281 = vpop.f32.mrf.mxu0
      %v8282 = vadd.f32 %v7938, %v8281
      %v8283 = vpop.f32.mrf.mxu0
      %8284 = vmatprep.mubr.bf16.mxu0 %v8165
      %8285 = vmatmul.mubr.bf16.gmra.mxu0 %v8164
      %v8286 = vpop.f32.mrf.mxu0
      %v8287 = vadd.f32 %v7943, %v8286
      %v8288 = vpop.f32.mrf.mxu0
      %v8289 = vpop.f32.mrf.mxu0
      %v8290 = vadd.f32 %v7948, %v8289
      %v8291 = vpop.f32.mrf.mxu0
      %8292 = vmatprep.mubr.bf16.mxu0 %v8167
      %8293 = vmatmul.mubr.bf16.gmra.mxu0 %v8166
      %v8294 = vpop.f32.mrf.mxu0
      %v8295 = vadd.f32 %v7953, %v8294
      %v8296 = vpop.f32.mrf.mxu0
      %v8297 = vpop.f32.mrf.mxu0
      %v8298 = vadd.f32 %v7958, %v8297
      %v8299 = vpop.f32.mrf.mxu0
      %8300 = vmatprep.mubr.bf16.mxu0 %v8169
      %8301 = vmatmul.mubr.bf16.gmra.mxu0 %v8168
      %v8302 = vpop.f32.mrf.mxu0
      %v8303 = vadd.f32 %v7963, %v8302
      %v8304 = vpop.f32.mrf.mxu0
      %v8305 = vpop.f32.mrf.mxu0
      %v8306 = vadd.f32 %v7968, %v8305
      %v8307 = vpop.f32.mrf.mxu0
      %8308 = vmatprep.mubr.bf16.mxu0 %v8171
      %8309 = vmatmul.mubr.bf16.gmra.mxu0 %v8170
      %v8310 = vpop.f32.mrf.mxu0
      %v8311 = vadd.f32 %v7973, %v8310
      %v8312 = vpop.f32.mrf.mxu0
      %v8313 = vpop.f32.mrf.mxu0
      %v8314 = vadd.f32 %v7978, %v8313
      %v8315 = vpop.f32.mrf.mxu0
      %8316 = vmatprep.mubr.bf16.mxu0 %v8173
      %8317 = vmatmul.mubr.bf16.gmra.mxu0 %v8172
      %v8318 = vpop.f32.mrf.mxu0
      %v8319 = vadd.f32 %v7983, %v8318
      %v8320 = vpop.f32.mrf.mxu0
      %v8321 = vpop.f32.mrf.mxu0
      %v8322 = vadd.f32 %v7988, %v8321
      %v8323 = vpop.f32.mrf.mxu0
      %8324 = vmatprep.mubr.bf16.mxu0 %v8175
      %8325 = vmatmul.mubr.bf16.gmra.mxu0 %v8174
      %v8326 = vpop.f32.mrf.mxu0
      %v8327 = vadd.f32 %v7993, %v8326
      %v8328 = vpop.f32.mrf.mxu0
      %v8329 = vpop.f32.mrf.mxu0
      %v8330 = vadd.f32 %v7998, %v8329
      %v8331 = vpop.f32.mrf.mxu0
      %8332 = vmatprep.mubr.bf16.mxu0 %v8177
      %8333 = vmatmul.mubr.bf16.gmra.mxu0 %v8176
      %v8334 = vpop.f32.mrf.mxu0
      %v8335 = vadd.f32 %v8003, %v8334
      %v8336 = vpop.f32.mrf.mxu0
      %v8337 = vpop.f32.mrf.mxu0
      %v8338 = vadd.f32 %v8008, %v8337
      %v8339 = vpop.f32.mrf.mxu0
      %8340 = vmatprep.mubr.bf16.mxu0 %v8179
      %8341 = vmatmul.mubr.bf16.gmra.mxu0 %v8178
      %v8342 = vpop.f32.mrf.mxu0
      %v8343 = vadd.f32 %v8013, %v8342
      %v8344 = vpop.f32.mrf.mxu0
      %v8345 = vpop.f32.mrf.mxu0
      %v8346 = vadd.f32 %v8018, %v8345
      %v8347 = vpop.f32.mrf.mxu0
      %8348 = vmatprep.mubr.bf16.mxu0 %v8181
      %8349 = vmatmul.mubr.bf16.gmra.mxu0 %v8180
      %v8350 = vpop.f32.mrf.mxu0
      %v8351 = vadd.f32 %v8023, %v8350
      %v8352 = vpop.f32.mrf.mxu0
      %v8353 = vpop.f32.mrf.mxu0
      %v8354 = vadd.f32 %v8028, %v8353
      %v8355 = vpop.f32.mrf.mxu0
      %8356 = vmatprep.mubr.bf16.mxu0 %v8183
      %8357 = vmatmul.mubr.bf16.gmra.mxu0 %v8182
      %v8358 = vpop.f32.mrf.mxu0
      %v8359 = vadd.f32 %v8033, %v8358
      %v8360 = vpop.f32.mrf.mxu0
      %v8361 = vpop.f32.mrf.mxu0
      %v8362 = vadd.f32 %v8038, %v8361
      %v8363 = vpop.f32.mrf.mxu0
      %8364 = vmatprep.mubr.bf16.mxu0 %v8185
      %8365 = vmatmul.mubr.bf16.gmra.mxu0 %v8184
      %v8366 = vpop.f32.mrf.mxu0
      %v8367 = vadd.f32 %v8043, %v8366
      %v8368 = vpop.f32.mrf.mxu0
      %v8369 = vpop.f32.mrf.mxu0
      %v8370 = vadd.f32 %v8048, %v8369
      %v8371 = vpop.f32.mrf.mxu0
      %8372 = vmatprep.mubr.bf16.mxu0 %v8187
      %8373 = vmatmul.mubr.bf16.gmra.mxu0 %v8186
      %v8374 = vpop.f32.mrf.mxu0
      %v8375 = vadd.f32 %v8053, %v8374
      %v8376 = vpop.f32.mrf.mxu0
      %v8377 = vpop.f32.mrf.mxu0
      %v8378 = vadd.f32 %v8058, %v8377
      %v8379 = vpop.f32.mrf.mxu0
      %8380 = vdwg.mxu0
      %vm8381 = vcmp.ge.f32.partialorder %v8255, 0.0
      %vm8382 = vcmp.ge.f32.partialorder %v8258, 0.0
      %vm8383 = vcmp.ge.f32.partialorder %v8263, 0.0
      %vm8384 = vcmp.ge.f32.partialorder %v8266, 0.0
      %vm8385 = vcmp.ge.f32.partialorder %v8271, 0.0
      %vm8386 = vcmp.ge.f32.partialorder %v8274, 0.0
      %vm8387 = vcmp.ge.f32.partialorder %v8279, 0.0
      %vm8388 = vcmp.ge.f32.partialorder %v8282, 0.0
      %vm8389 = vcmp.ge.f32.partialorder %v8287, 0.0
      %vm8390 = vcmp.ge.f32.partialorder %v8290, 0.0
      %vm8391 = vcmp.ge.f32.partialorder %v8295, 0.0
      %vm8392 = vcmp.ge.f32.partialorder %v8298, 0.0
      %vm8393 = vcmp.ge.f32.partialorder %v8303, 0.0
      %vm8394 = vcmp.ge.f32.partialorder %v8306, 0.0
      %vm8395 = vcmp.ge.f32.partialorder %v8311, 0.0
      %vm8396 = vcmp.ge.f32.partialorder %v8314, 0.0
      %vm8397 = vcmp.ge.f32.partialorder %v8319, 0.0
      %vm8398 = vcmp.ge.f32.partialorder %v8322, 0.0
      %vm8399 = vcmp.ge.f32.partialorder %v8327, 0.0
      %vm8400 = vcmp.ge.f32.partialorder %v8330, 0.0
      %vm8401 = vcmp.ge.f32.partialorder %v8335, 0.0
      %vm8402 = vcmp.ge.f32.partialorder %v8338, 0.0
      %vm8403 = vcmp.ge.f32.partialorder %v8343, 0.0
      %vm8404 = vcmp.ge.f32.partialorder %v8346, 0.0
      %vm8405 = vcmp.ge.f32.partialorder %v8351, 0.0
      %vm8406 = vcmp.ge.f32.partialorder %v8354, 0.0
      %vm8407 = vcmp.ge.f32.partialorder %v8359, 0.0
      %vm8408 = vcmp.ge.f32.partialorder %v8362, 0.0
      %vm8409 = vcmp.ge.f32.partialorder %v8367, 0.0
      %vm8410 = vcmp.ge.f32.partialorder %v8370, 0.0
      %vm8411 = vcmp.ge.f32.partialorder %v8375, 0.0
      %vm8412 = vcmp.ge.f32.partialorder %v8378, 0.0
      %v8413 = vmul.f32 %v8255, 0.01
      %v8414 = vmul.f32 %v8258, 0.01
      %v8415 = vmul.f32 %v8263, 0.01
      %v8416 = vmul.f32 %v8266, 0.01
      %v8417 = vmul.f32 %v8271, 0.01
      %v8418 = vmul.f32 %v8274, 0.01
      %v8419 = vmul.f32 %v8279, 0.01
      %v8420 = vmul.f32 %v8282, 0.01
      %v8421 = vmul.f32 %v8287, 0.01
      %v8422 = vmul.f32 %v8290, 0.01
      %v8423 = vmul.f32 %v8295, 0.01
      %v8424 = vmul.f32 %v8298, 0.01
      %v8425 = vmul.f32 %v8303, 0.01
      %v8426 = vmul.f32 %v8306, 0.01
      %v8427 = vmul.f32 %v8311, 0.01
      %v8428 = vmul.f32 %v8314, 0.01
      %v8429 = vmul.f32 %v8319, 0.01
      %v8430 = vmul.f32 %v8322, 0.01
      %v8431 = vmul.f32 %v8327, 0.01
      %v8432 = vmul.f32 %v8330, 0.01
      %v8433 = vmul.f32 %v8335, 0.01
      %v8434 = vmul.f32 %v8338, 0.01
      %v8435 = vmul.f32 %v8343, 0.01
      %v8436 = vmul.f32 %v8346, 0.01
      %v8437 = vmul.f32 %v8351, 0.01
      %v8438 = vmul.f32 %v8354, 0.01
      %v8439 = vmul.f32 %v8359, 0.01
      %v8440 = vmul.f32 %v8362, 0.01
      %v8441 = vmul.f32 %v8367, 0.01
      %v8442 = vmul.f32 %v8370, 0.01
      %v8443 = vmul.f32 %v8375, 0.01
      %v8444 = vmul.f32 %v8378, 0.01
      %v8445 = vsel %vm8381, %v8255, %v8413
      %v8446 = vsel %vm8382, %v8258, %v8414
      %v8447 = vsel %vm8383, %v8263, %v8415
      %v8448 = vsel %vm8384, %v8266, %v8416
      %v8449 = vsel %vm8385, %v8271, %v8417
      %v8450 = vsel %vm8386, %v8274, %v8418
      %v8451 = vsel %vm8387, %v8279, %v8419
      %v8452 = vsel %vm8388, %v8282, %v8420
      %v8453 = vsel %vm8389, %v8287, %v8421
      %v8454 = vsel %vm8390, %v8290, %v8422
      %v8455 = vsel %vm8391, %v8295, %v8423
      %v8456 = vsel %vm8392, %v8298, %v8424
      %v8457 = vsel %vm8393, %v8303, %v8425
      %v8458 = vsel %vm8394, %v8306, %v8426
      %v8459 = vsel %vm8395, %v8311, %v8427
      %v8460 = vsel %vm8396, %v8314, %v8428
      %v8461 = vsel %vm8397, %v8319, %v8429
      %v8462 = vsel %vm8398, %v8322, %v8430
      %v8463 = vsel %vm8399, %v8327, %v8431
      %v8464 = vsel %vm8400, %v8330, %v8432
      %v8465 = vsel %vm8401, %v8335, %v8433
      %v8466 = vsel %vm8402, %v8338, %v8434
      %v8467 = vsel %vm8403, %v8343, %v8435
      %v8468 = vsel %vm8404, %v8346, %v8436
      %v8469 = vsel %vm8405, %v8351, %v8437
      %v8470 = vsel %vm8406, %v8354, %v8438
      %v8471 = vsel %vm8407, %v8359, %v8439
      %v8472 = vsel %vm8408, %v8362, %v8440
      %v8473 = vsel %vm8409, %v8367, %v8441
      %v8474 = vsel %vm8410, %v8370, %v8442
      %v8475 = vsel %vm8411, %v8375, %v8443
      %v8476 = vsel %vm8412, %v8378, %v8444
      %v8477 = vpack.c.bf16 %v8446, %v8445
      %v8478 = vpack.c.bf16 %v8448, %v8447
      %v8479 = vpack.c.bf16 %v8450, %v8449
      %v8480 = vpack.c.bf16 %v8452, %v8451
      %v8481 = vpack.c.bf16 %v8454, %v8453
      %v8482 = vpack.c.bf16 %v8456, %v8455
      %v8483 = vpack.c.bf16 %v8458, %v8457
      %v8484 = vpack.c.bf16 %v8460, %v8459
      %v8485 = vpack.c.bf16 %v8462, %v8461
      %v8486 = vpack.c.bf16 %v8464, %v8463
      %v8487 = vpack.c.bf16 %v8466, %v8465
      %v8488 = vpack.c.bf16 %v8468, %v8467
      %v8489 = vpack.c.bf16 %v8470, %v8469
      %v8490 = vpack.c.bf16 %v8472, %v8471
      %v8491 = vpack.c.bf16 %v8474, %v8473
      %v8492 = vpack.c.bf16 %v8476, %v8475
      %v8493 = vld [vmem:[%s580] sm:$0xf]
      %v8494 = vld [vmem:[%s594] sm:$0xf]
      %8496 = vset.pattern.permute.xlu0 0
      %8497 = vperm.xlu0 %8496, %v8494
      %v8498 = vpop.permute.xlu0 %8497
      %v8502 = vunpack.c.l.s4 1983009808
      %v8503 = vunpack.c.0.s8 %v8502
      %v8504 = vlaneseq
      %v8505 = vshrl.u32 %v8504, 7
      %v8506 = vsub.s32 %v8503, %v8505
      %v8507 = vrot.slane %v8493, %v8506
      %v8508 = vcombine.high %v8507, %v8507
      %8511 = vmatprep.subr.bf16.mxu0 0
      %8512 = vmatpush1.bf16.msra.mxu0 %v8484
      %8513 = vmatprep.subr.bf16.mxu0 0
      %8514 = vmatpush1.bf16.msra.mxu0 %v8483
      %8515 = vmatprep.subr.bf16.mxu0 0
      %8516 = vmatpush1.bf16.msra.mxu0 %v8482
      %8517 = vmatprep.subr.bf16.mxu0 0
      %8518 = vmatpush1.bf16.msra.mxu0 %v8481
      %8519 = vmatprep.subr.bf16.mxu0 0
      %8520 = vmatpush1.bf16.msra.mxu0 %v8480
      %8521 = vmatprep.subr.bf16.mxu0 0
      %8522 = vmatpush1.bf16.msra.mxu0 %v8479
      %8523 = vmatprep.subr.bf16.mxu0 0
      %8524 = vmatpush1.bf16.msra.mxu0 %v8478
      %8525 = vmatprep.subr.bf16.mxu0 0
      %8526 = vmatpush1.bf16.msra.mxu0 %v8477
      %8527 = vmatprep.subr.bf16.mxu0 0
      %8528 = vmatpush2.bf16.msra.mxu0 %v8492
      %8529 = vmatprep.subr.bf16.mxu0 0
      %8530 = vmatpush2.bf16.msra.mxu0 %v8491
      %8531 = vmatprep.subr.bf16.mxu0 0
      %8532 = vmatpush2.bf16.msra.mxu0 %v8490
      %8533 = vmatprep.subr.bf16.mxu0 0
      %8534 = vmatpush2.bf16.msra.mxu0 %v8489
      %8535 = vmatprep.subr.bf16.mxu0 0
      %8536 = vmatpush2.bf16.msra.mxu0 %v8488
      %8537 = vmatprep.subr.bf16.mxu0 0
      %8538 = vmatpush2.bf16.msra.mxu0 %v8487
      %8539 = vmatprep.subr.bf16.mxu0 0
      %8540 = vmatpush2.bf16.msra.mxu0 %v8486
      %8541 = vmatprep.subr.bf16.mxu0 0
      %8542 = vmatpush2.bf16.msra.mxu0 %v8485
      %8543 = vmatprep.mubr.bf16.mxu0 %v8508
      %8544 = vmatmul.mubr.bf16.gmra.mxu0 %v8507
      %v8545 = vpop.f32.mrf.mxu0
      %v8546 = vadd.f32 %v8498, %v8545
      %v8547 = vpop.f32.mrf.mxu0
      %v8548 = vpop.f32.mrf.mxu0
      %v8549 = vpop.f32.mrf.mxu0
      %8550 = vdwg.mxu0
      %v8551 = vld [vmem:[%s585] sm:$0xf]
      %v8552 = vld [vmem:[%s598] sm:$0xf]
      %8554 = vset.pattern.permute.xlu0 0
      %8555 = vperm.xlu0 %8554, %v8552
      %v8556 = vpop.permute.xlu0 %8555
      %v8560 = vunpack.c.l.s4 1983009808
      %v8561 = vunpack.c.0.s8 %v8560
      %v8562 = vlaneseq
      %v8563 = vshrl.u32 %v8562, 7
      %v8564 = vsub.s32 %v8561, %v8563
      %v8565 = vrot.slane %v8551, %v8564
      %v8566 = vcombine.high %v8565, %v8565
      %8569 = vmatprep.subr.bf16.mxu0 0
      %8570 = vmatpush1.bf16.msra.mxu0 %v8484
      %8571 = vmatprep.subr.bf16.mxu0 0
      %8572 = vmatpush1.bf16.msra.mxu0 %v8483
      %8573 = vmatprep.subr.bf16.mxu0 0
      %8574 = vmatpush1.bf16.msra.mxu0 %v8482
      %8575 = vmatprep.subr.bf16.mxu0 0
      %8576 = vmatpush1.bf16.msra.mxu0 %v8481
      %8577 = vmatprep.subr.bf16.mxu0 0
      %8578 = vmatpush1.bf16.msra.mxu0 %v8480
      %8579 = vmatprep.subr.bf16.mxu0 0
      %8580 = vmatpush1.bf16.msra.mxu0 %v8479
      %8581 = vmatprep.subr.bf16.mxu0 0
      %8582 = vmatpush1.bf16.msra.mxu0 %v8478
      %8583 = vmatprep.subr.bf16.mxu0 0
      %8584 = vmatpush1.bf16.msra.mxu0 %v8477
      %8585 = vmatprep.subr.bf16.mxu0 0
      %8586 = vmatpush2.bf16.msra.mxu0 %v8492
      %8587 = vmatprep.subr.bf16.mxu0 0
      %8588 = vmatpush2.bf16.msra.mxu0 %v8491
      %8589 = vmatprep.subr.bf16.mxu0 0
      %8590 = vmatpush2.bf16.msra.mxu0 %v8490
      %8591 = vmatprep.subr.bf16.mxu0 0
      %8592 = vmatpush2.bf16.msra.mxu0 %v8489
      %8593 = vmatprep.subr.bf16.mxu0 0
      %8594 = vmatpush2.bf16.msra.mxu0 %v8488
      %8595 = vmatprep.subr.bf16.mxu0 0
      %8596 = vmatpush2.bf16.msra.mxu0 %v8487
      %8597 = vmatprep.subr.bf16.mxu0 0
      %8598 = vmatpush2.bf16.msra.mxu0 %v8486
      %8599 = vmatprep.subr.bf16.mxu0 0
      %8600 = vmatpush2.bf16.msra.mxu0 %v8485
      %8601 = vmatprep.mubr.bf16.mxu0 %v8566
      %8602 = vmatmul.mubr.bf16.gmra.mxu0 %v8565
      %v8603 = vpop.f32.mrf.mxu0
      %v8604 = vadd.f32 %v8556, %v8603
      %v8605 = vpop.f32.mrf.mxu0
      %v8606 = vpop.f32.mrf.mxu0
      %v8607 = vpop.f32.mrf.mxu0
      %8608 = vdwg.mxu0
      %v8609 = vld [vmem:[%s555] sm:$0xf]
      %v8610 = vsub.f32 %v8609, %v8546
      %v8611 = vfloor.f32 %v8610
      %v8612 = vsub.f32 %v8610, %v8611
      %v8613 = vmul.f32 %v8611, 0.5
      %v8614 = vfloor.f32 %v8613
      %v8615 = vmul.f32 %v8614, 2.0
      %v8616 = vsub.f32 %v8611, %v8615
      %vm8617 = vcmp.eq.f32.partialorder %v8616, 0.0
      %vm8618 = vcmp.lt.f32.partialorder %v8612, 0.5
      %vm8619 = vcmp.gt.f32.partialorder %v8612, 0.5
      %v8620 = vadd.f32 %v8611, 1.0
      %v8621 = vsel %vm8617, %v8611, %v8620
      %v8622 = vsel %vm8619, %v8620, %v8621
      %v8623 = vsel %vm8618, %v8611, %v8622
      %v8624 = vand.u32 2147483647, %v8623
      %v8625 = vmax.f32 %v8604, 0.11
      %v8626 = vsub.f32 0.5, %v8624
      %v8627 = vrcp.pop %v8625
      %v8628 = vmul.f32 %v8626, %v8627
      %v8629 = vsub.f32 0.0, %v8628
      %v8630 = vmul.f32 %v8629, 0.70710677
      %v8631 = vand.u32 2147483647, %v8630
      %v8632 = vmul.f32 %v8631, 0.5
      %v8633 = vadd.f32 %v8632, 1.0
      %v8634 = vrcp.pop %v8633
      %v8635 = vmul.f32 1.0, %v8634
      %v8636 = vmul.f32 %v8635, 0.17087276
      %v8637 = vadd.f32 %v8636, -0.82215226
      %v8638 = vmul.f32 %v8635, %v8637
      %v8639 = vadd.f32 %v8638, 1.4885159
      %v8640 = vmul.f32 %v8635, %v8639
      %v8641 = vadd.f32 %v8640, -1.135204
      %v8642 = vmul.f32 %v8635, %v8641
      %v8643 = vadd.f32 %v8642, 0.27886808
      %v8644 = vmul.f32 %v8635, %v8643
      %v8645 = vadd.f32 %v8644, -0.18628806
      %v8646 = vmul.f32 %v8635, %v8645
      %v8647 = vadd.f32 %v8646, 0.09678418
      %v8648 = vmul.f32 %v8635, %v8647
      %v8649 = vadd.f32 %v8648, 0.37409195
      %v8650 = vmul.f32 %v8635, %v8649
      %v8651 = vadd.f32 %v8650, 1.0000237
      %v8652 = vmul.f32 %v8635, %v8651
      %v8653 = vadd.f32 %v8652, -1.2655122
      %v8654 = vsub.f32 0.0, %v8631
      %v8655 = vmul.f32 %v8654, %v8631
      %v8656 = vadd.f32 %v8655, %v8653
      %v8657 = vmul.f32 %v8656, 1.442695
      %v8658 = vpow.pop %v8657
      %v8659 = vmul.f32 %v8635, %v8658
      %vm8660 = vcmp.ge.f32.partialorder %v8630, 0.0
      %v8661 = vsub.f32 2.0, %v8659
      %v8662 = vsel %vm8660, %v8659, %v8661
      %v8663 = vmul.f32 %v8662, 0.5
      %v8664 = vsub.f32 -0.5, %v8624
      %v8665 = vmul.f32 %v8664, %v8627
      %v8666 = vsub.f32 0.0, %v8665
      %v8667 = vmul.f32 %v8666, 0.70710677
      %v8668 = vand.u32 2147483647, %v8667
      %v8669 = vmul.f32 %v8668, 0.5
      %v8670 = vadd.f32 %v8669, 1.0
      %v8671 = vrcp.pop %v8670
      %v8672 = vmul.f32 1.0, %v8671
      %v8673 = vmul.f32 %v8672, 0.17087276
      %v8674 = vadd.f32 %v8673, -0.82215226
      %v8675 = vmul.f32 %v8672, %v8674
      %v8676 = vadd.f32 %v8675, 1.4885159
      %v8677 = vmul.f32 %v8672, %v8676
      %v8678 = vadd.f32 %v8677, -1.135204
      %v8679 = vmul.f32 %v8672, %v8678
      %v8680 = vadd.f32 %v8679, 0.27886808
      %v8681 = vmul.f32 %v8672, %v8680
      %v8682 = vadd.f32 %v8681, -0.18628806
      %v8683 = vmul.f32 %v8672, %v8682
      %v8684 = vadd.f32 %v8683, 0.09678418
      %v8685 = vmul.f32 %v8672, %v8684
      %v8686 = vadd.f32 %v8685, 0.37409195
      %v8687 = vmul.f32 %v8672, %v8686
      %v8688 = vadd.f32 %v8687, 1.0000237
      %v8689 = vmul.f32 %v8672, %v8688
      %v8690 = vadd.f32 %v8689, -1.2655122
      %v8691 = vsub.f32 0.0, %v8668
      %v8692 = vmul.f32 %v8691, %v8668
      %v8693 = vadd.f32 %v8692, %v8690
      %v8694 = vmul.f32 %v8693, 1.442695
      %v8695 = vpow.pop %v8694
      %v8696 = vmul.f32 %v8672, %v8695
      %vm8697 = vcmp.ge.f32.partialorder %v8667, 0.0
      %v8698 = vsub.f32 2.0, %v8696
      %v8699 = vsel %vm8697, %v8696, %v8698
      %v8700 = vmul.f32 %v8699, 0.5
      %v8701 = vsub.f32 %v8663, %v8700
      %v8702 = vmax.f32 %v8701, 1e-09
      %v8703 = vlog2.pop %v8702
      %v8704 = vmul.f32 %v8703, 0.6931472
      %v8705 = vsub.f32 0.0, %v8704
      %v8706 = vmul.f32 %v8705, 1.442695
      %8707 = vst [vmem:[%s602] sm:$0xf] %v8706
      %p8708 = scmp.lt.s32.totalorder %s23, 2
      %s8709 = scalar_select %p8708, %s23, 2
      %s8710 = smul.addr %s8709, 4
      %s8711 = scalar_lea.vmem %s12, %s8710
      // Predicated region
      $region69: #{forward.3} parent=67 // pred_check
        %p8712 = pneg %p348
      $region70: #{forward.3} parent=67 // pred_check_branch
        %8714 = sbr.rel (%p8712) target = $region72
      $region71: #{forward.3} parent=67 // pred_region
        _
      $region72: #{forward.3} parent=67 // pred_fallthru
        _
    $region68: #{forward.3} parent=5 // pred_fallthru
      _
    %p8715 = scmp.le.s32.totalorder 2, %s18
    // Predicated region
    $region73: #{forward.3} parent=5 // pred_check
      %p8716 = pneg %p8715
    $region74: #{forward.3} parent=5 // pred_check_branch
      %8718 = sbr.rel (%p8716) target = $region76
    $region75: #{forward.3} parent=5 // pred_region
      %s8719 = ssub.s32 %s18, 2
      // Predicated region
      $region77: #{forward.3} parent=75 // pred_check
        %p8720 = pneg %p354
      $region78: #{forward.3} parent=75 // pred_check_branch
        %8722 = sbr.rel (%p8720) target = $region80
      $region79: #{forward.3} parent=75 // pred_region
        %p8723 = scmp.lt.s32.totalorder %s24, 2
        %s8724 = scalar_select %p8723, %s24, 2
        %s8725 = smul.addr %s8724, 4
        %s8726 = scalar_lea.vmem %s12, %s8725
      $region80: #{forward.3} parent=75 // pred_fallthru
        _
    $region76: #{forward.3} parent=5 // pred_fallthru
      _
  $region6: #{forward.3} parent=0 // loop_footer
    %s22 = sadd.s32 1, %s18
  $region7: #{forward.3} parent=0 // loop_footer_branch
    %17 = sbr.rel target = $region3
  $region8: #{forward.3} parent=0 // loop_exit
    _

</llo_original>
